<compile_context>
chip_gen: v7x
topology: tpu7x:2x2x1
jax: 0.10.0
libtpu: 0.0.40
codegen_flags: <defaults>
</compile_context>

<pallas_src>
import functools
import math

import jax
import jax.numpy as jnp
from jax.experimental import pallas as pl
from jax.experimental.pallas import tpu as pltpu


_NEG_INF = -1e30
_LN_EPS = 1e-5


# --------------------------- in-kernel helpers ------------------------------

def _bf16(x):
    return x.astype(jnp.bfloat16)


def _proj(x, w_ref, b_ref):
    """x @ W + b with bf16 MXU operands, f32 accumulation."""
    return jnp.dot(_bf16(x), w_ref[...], preferred_element_type=jnp.float32) + b_ref[...]


def _layer_norm(x, g, b, eps=_LN_EPS):
    mu = jnp.mean(x, axis=-1, keepdims=True)
    var = jnp.mean(jnp.square(x - mu), axis=-1, keepdims=True)
    return (x - mu) * jax.lax.rsqrt(var + eps) * g + b


def _softmax_last(s):
    s = s - jnp.max(s, axis=-1, keepdims=True)
    p = jnp.exp(s)
    return p * pl.reciprocal(jnp.sum(p, axis=-1, keepdims=True), approx=True)


def _split_heads(x, num_head):
    n, d = x.shape
    return jnp.swapaxes(x.reshape(n, num_head, d // num_head), 0, 1)   # (H, n, dh)


def _merge_heads(x):
    h, n, dh = x.shape
    return jnp.swapaxes(x, 0, 1).reshape(n, h * dh)


def _mha(q, k, v, num_head, *, bias=None, mask=None):
    """Batched-head attention. q:(Q,D), k/v:(N,D). 1/sqrt(dh) is pre-folded into W_q."""
    qh = _bf16(_split_heads(q, num_head))                              # (H, Q, dh)
    kh = _bf16(_split_heads(k, num_head))                              # (H, N, dh)
    vh = _bf16(_split_heads(v, num_head))                              # (H, N, dh)
    s = jax.lax.dot_general(qh, kh, (((2,), (2,)), ((0,), (0,))),
                            preferred_element_type=jnp.float32)        # (H, Q, N)
    if bias is not None:
        s = s + bias
    if mask is not None:
        s = jnp.where(mask > 0.5, _NEG_INF, s)
    p = _softmax_last(s)
    o = jax.lax.dot_general(_bf16(p), vh, (((2,), (1,)), ((0,), (0,))),
                            preferred_element_type=jnp.float32)        # (H, Q, dh)
    return _merge_heads(o)                                             # (Q, D)


# ------------------------------- kernels ------------------------------------

def _encoder_fused_kernel(ab_ref,                       # SMEM prefetch: (L, 2H) f32
                          nodes_ref, ea_ref,
                          wd_ref, bd_ref, wc_ref, bc_ref,
                          wq_ref, bq_ref, wk_ref, bk_ref, wv_ref, bv_ref,
                          wo_ref, bo_ref,
                          w1_ref, b1_ref, w2_ref, b2_ref,
                          g1_ref, be1_ref, g2_ref, be2_ref,
                          o_ref, x_vmem, *, num_head):
    l = pl.program_id(1)

    # ---- layer 0: embed (customer projection everywhere, depot row overwritten) ----
    @pl.when(l == 0)
    def _():
        xb = _bf16(nodes_ref[...])                                     # (N, Fc)
        e = jnp.dot(xb, wc_ref[...], preferred_element_type=jnp.float32) + bc_ref[...]
        e0 = jnp.dot(xb[0:1, :], wd_ref[...], preferred_element_type=jnp.float32) + bd_ref[...]
        x_vmem[...] = e
        x_vmem[0:1, :] = e0                                            # depot is row 0

    x = x_vmem[...]                                                    # (N, D) f32
    ea = ea_ref[...]                                                   # (N, N) f32

    q = _proj(x, wq_ref, bq_ref)                                       # scale folded in wq/bq
    k = _proj(x, wk_ref, bk_ref)
    v = _proj(x, wv_ref, bv_ref)

    # edge bias per head: bias_h(i,j) = edge(i,j) * alpha[h] + beta[h]  (SMEM scalars)
    bias = jnp.concatenate(
        [(ea * ab_ref[l, h] + ab_ref[l, num_head + h])[None]
         for h in range(num_head)], axis=0)                            # (H, N, N)

    attn = _mha(q, k, v, num_head, bias=bias)                          # (N, D)
    attn = _proj(attn, wo_ref, bo_ref)
    x1 = _layer_norm(x + attn, g1_ref[...], be1_ref[...])
    h1 = jnp.maximum(_proj(x1, w1_ref, b1_ref), 0.0)
    h2 = _proj(h1, w2_ref, b2_ref)
    xo = _layer_norm(x1 + h2, g2_ref[...], be2_ref[...])
    x_vmem[...] = xo

    @pl.when(l == pl.num_programs(1) - 1)
    def _():
        o_ref[...] = xo


def _decoder_kernel(idx_ref,                            # SMEM prefetch: (B, Vq) int32
                    veh_ref, enc_ref, mask_ref,
                    wp_ref, bp_ref,
                    fwq_ref, fbq_ref, fwk_ref, fbk_ref, fwv_ref, fbv_ref,
                    fwo_ref, fbo_ref,
                    vwq_ref, vbq_ref, vwk_ref, vbk_ref, vwv_ref, vbv_ref,
                    vwo_ref, vbo_ref,
                    o_ref, fleet_vmem, *, num_head, scaling_factor, tanh_xplor):
    b = pl.program_id(0)
    veh = veh_ref[...]                                  # (V, Fv)
    enc = enc_ref[...]                                  # (N, D) customer encoding
    mask = mask_ref[...]                                # (1, N) float {0,1}, 1 = masked
    mask3 = mask.reshape(1, 1, mask.shape[-1])          # (1, 1, N)

    # customer_projection
    cr = _proj(enc, wp_ref, bp_ref)                     # (N, D)

    # fleet attention: vehicles attend over customer encoding (masked keys)
    fq = _proj(veh, fwq_ref, fbq_ref)
    fk = _proj(enc, fwk_ref, fbk_ref)
    fv = _proj(enc, fwv_ref, fbv_ref)
    fleet = _mha(fq, fk, fv, num_head, mask=mask3)
    fleet = _proj(fleet, fwo_ref, fbo_ref)              # (V, D)
    fleet_vmem[...] = fleet

    # gather current vehicle rows: dynamic sublane slice with the prefetched index
    n_query = o_ref.shape[0]
    rows = [fleet_vmem[pl.ds(idx_ref[b, t], 1), :] for t in range(n_query)]
    vq_in = rows[0] if n_query == 1 else jnp.concatenate(rows, axis=0)   # (Vq, D)

    # vehicle attention: current vehicle attends over customer representation
    vq = _proj(vq_in, vwq_ref, vbq_ref)
    vk = _proj(cr, vwk_ref, vbk_ref)
    vv = _proj(cr, vwv_ref, vbv_ref)
    vr = _mha(vq, vk, vv, num_head)
    vr = _proj(vr, vwo_ref, vbo_ref)                    # (Vq, D)

    # decoder scores (f32) + tanh exploration + mask + exact softmax
    compact = jax.lax.dot_general(vr, cr, (((1,), (1,)), ((), ())),
                                  preferred_element_type=jnp.float32)
    compact = tanh_xplor * jnp.tanh(compact * scaling_factor)
    compact = jnp.where(mask > 0.5, _NEG_INF, compact)
    compact = compact - jnp.max(compact, axis=-1, keepdims=True)
    p = jnp.exp(compact)
    o_ref[...] = p / jnp.sum(p, axis=-1, keepdims=True)


# ------------------------------ wrappers -------------------------------------

def encode(nodes, edge_attr, ew, *, num_head):
    B, N, Fc = nodes.shape
    L, _, D = ew["wq"].shape
    F = ew["w1"].shape[2]
    sq = pl.Squeezed()
    b_map = lambda b, l, ab: (b, 0, 0)
    l_map = lambda b, l, ab: (l, 0, 0)
    c_map = lambda b, l, ab: (0, 0)

    grid_spec = pltpu.PrefetchScalarGridSpec(
        num_scalar_prefetch=1,
        grid=(B, L),
        in_specs=[
            pl.BlockSpec((sq, N, Fc), b_map),
            pl.BlockSpec((sq, N, N), b_map),
            pl.BlockSpec((Fc, D), c_map), pl.BlockSpec((1, D), c_map),
            pl.BlockSpec((Fc, D), c_map), pl.BlockSpec((1, D), c_map),
            pl.BlockSpec((sq, D, D), l_map), pl.BlockSpec((sq, 1, D), l_map),
            pl.BlockSpec((sq, D, D), l_map), pl.BlockSpec((sq, 1, D), l_map),
            pl.BlockSpec((sq, D, D), l_map), pl.BlockSpec((sq, 1, D), l_map),
            pl.BlockSpec((sq, D, D), l_map), pl.BlockSpec((sq, 1, D), l_map),
            pl.BlockSpec((sq, D, F), l_map), pl.BlockSpec((sq, 1, F), l_map),
            pl.BlockSpec((sq, F, D), l_map), pl.BlockSpec((sq, 1, D), l_map),
            pl.BlockSpec((sq, 1, D), l_map), pl.BlockSpec((sq, 1, D), l_map),
            pl.BlockSpec((sq, 1, D), l_map), pl.BlockSpec((sq, 1, D), l_map),
        ],
        out_specs=pl.BlockSpec((sq, N, D), b_map),
        scratch_shapes=[pltpu.VMEM((N, D), jnp.float32)],
    )
    return pl.pallas_call(
        functools.partial(_encoder_fused_kernel, num_head=num_head),
        out_shape=jax.ShapeDtypeStruct((B, N, D), jnp.float32),
        grid_spec=grid_spec,
        compiler_params=pltpu.CompilerParams(
            dimension_semantics=("parallel", "arbitrary")),
    )(ew["ab"], nodes, edge_attr,
      ew["wd"], ew["bd"], ew["wc"], ew["bc"],
      ew["wq"], ew["bq"], ew["wk"], ew["bk"], ew["wv"], ew["bv"],
      ew["wo"], ew["bo"], ew["w1"], ew["b1"], ew["w2"], ew["b2"],
      ew["g1"], ew["be1"], ew["g2"], ew["be2"])


def decode(current_vehicle_index, vehicles, customer_encoding, mask_f, dw, *,
           num_head, scaling_factor, tanh_xplor):
    B, V, Fv = vehicles.shape
    _, N, D = customer_encoding.shape
    Vq = current_vehicle_index.shape[1]
    sq = pl.Squeezed()
    b_map = lambda b, idx: (b, 0, 0)
    c_map = lambda b, idx: (0, 0)
    fl, ve = dw["fleet"], dw["veh"]

    grid_spec = pltpu.PrefetchScalarGridSpec(
        num_scalar_prefetch=1,
        grid=(B,),
        in_specs=[
            pl.BlockSpec((sq, V, Fv), b_map),
            pl.BlockSpec((sq, N, D), b_map),
            pl.BlockSpec((sq, 1, N), b_map),
            pl.BlockSpec((D, D), c_map), pl.BlockSpec((1, D), c_map),   # customer proj
            pl.BlockSpec((Fv, D), c_map), pl.BlockSpec((1, D), c_map),  # fleet q
            pl.BlockSpec((D, D), c_map), pl.BlockSpec((1, D), c_map),   # fleet k
            pl.BlockSpec((D, D), c_map), pl.BlockSpec((1, D), c_map),   # fleet v
            pl.BlockSpec((D, D), c_map), pl.BlockSpec((1, D), c_map),   # fleet o
            pl.BlockSpec((D, D), c_map), pl.BlockSpec((1, D), c_map),   # vehicle q
            pl.BlockSpec((D, D), c_map), pl.BlockSpec((1, D), c_map),   # vehicle k
            pl.BlockSpec((D, D), c_map), pl.BlockSpec((1, D), c_map),   # vehicle v
            pl.BlockSpec((D, D), c_map), pl.BlockSpec((1, D), c_map),   # vehicle o
        ],
        out_specs=pl.BlockSpec((sq, Vq, N), b_map),
        scratch_shapes=[pltpu.VMEM((V, D), jnp.float32)],
    )
    return pl.pallas_call(
        functools.partial(_decoder_kernel, num_head=num_head,
                          scaling_factor=scaling_factor, tanh_xplor=tanh_xplor),
        out_shape=jax.ShapeDtypeStruct((B, Vq, N), jnp.float32),
        grid_spec=grid_spec,
        compiler_params=pltpu.CompilerParams(dimension_semantics=("parallel",)),
    )(current_vehicle_index, vehicles, customer_encoding, mask_f,
      dw["wp"], dw["bp"],
      fl["wq"], fl["bq"], fl["wk"], fl["bk"], fl["wv"], fl["bv"], fl["wo"], fl["bo"],
      ve["wq"], ve["bq"], ve["wk"], ve["bk"], ve["wv"], ve["bv"], ve["wo"], ve["bo"])


# -------------------------- parameter preparation ---------------------------

def init_linear_params(key, fan_in, fan_out):
    kw, kb = jax.random.split(key)
    bound = 1.0 / math.sqrt(fan_in)
    return {
        "w": jax.random.uniform(kw, (fan_in, fan_out), jnp.float32, -bound, bound),
        "b": jax.random.uniform(kb, (fan_out,), jnp.float32, -bound, bound),
    }


def init_mha_params(key, num_head, query_dim, model_size):
    ks = jax.random.split(key, 4)
    return {
        "H": num_head,
        "q": init_linear_params(ks[0], query_dim, model_size),
        "k": init_linear_params(ks[1], model_size, model_size),
        "v": init_linear_params(ks[2], model_size, model_size),
        "o": init_linear_params(ks[3], model_size, model_size),
    }


def init_encoder_layer(key, num_head, edge_dim, model_size, ff_size):
    ks = jax.random.split(key, 4)
    return {
        "mha": init_mha_params(ks[0], num_head, model_size, model_size),
        "edge": init_linear_params(ks[1], edge_dim, num_head),
        "ff1": init_linear_params(ks[2], model_size, ff_size),
        "ff2": init_linear_params(ks[3], ff_size, model_size),
        "ln1": {"g": jnp.ones((model_size,), jnp.float32),
                "b": jnp.zeros((model_size,), jnp.float32)},
        "ln2": {"g": jnp.ones((model_size,), jnp.float32),
                "b": jnp.zeros((model_size,), jnp.float32)},
    }


def init_model_params(key, customer_feature, vehicle_feature, model_size,
                      encoder_layer_n, num_head, ff_size, tanh_xplor, edge_dim):
    ks = jax.random.split(key, 6 + encoder_layer_n)
    return {
        "model_size": model_size,
        "num_head": num_head,
        "scaling_factor": 1.0 / math.sqrt(model_size),
        "tanh_xplor": float(tanh_xplor),
        "cust_emb": init_linear_params(ks[0], customer_feature, model_size),
        "depot_emb": init_linear_params(ks[1], customer_feature, model_size),
        "edge_emb": init_linear_params(ks[2], 1, edge_dim),
        "fleet_attn": init_mha_params(ks[3], num_head, vehicle_feature, model_size),
        "vehicle_attn": init_mha_params(ks[4], num_head, model_size, model_size),
        "cust_proj": init_linear_params(ks[5], model_size, model_size),
        "encoder": {"layers": [
            init_encoder_layer(ks[6 + l], num_head, edge_dim, model_size, ff_size)
            for l in range(encoder_layer_n)]},
    }


def prepare_params(params):
    """One-time prep: stack per-layer weights, fold scales, pre-cast to bf16."""
    D = params["model_size"]
    H = params["num_head"]
    layers = params["encoder"]["layers"]
    scale = jnp.float32(1.0 / math.sqrt(D // H))        # 1/sqrt(d_head), folded into W_q

    ee_w = params["edge_emb"]["w"]                      # (1, edge_dim)
    ee_b = params["edge_emb"]["b"]                      # (edge_dim,)

    def stack(fn):
        return jnp.stack([fn(lp) for lp in layers], axis=0)

    def ab_row(lp):
        alpha = (ee_w @ lp["edge"]["w"])[0]                              # (H,)
        beta = ee_b @ lp["edge"]["w"] + lp["edge"]["b"]                  # (H,)
        return jnp.concatenate([alpha, beta], axis=0)                    # (2H,)

    enc = {
        "wd": _bf16(params["depot_emb"]["w"]), "bd": params["depot_emb"]["b"].reshape(1, D),
        "wc": _bf16(params["cust_emb"]["w"]), "bc": params["cust_emb"]["b"].reshape(1, D),
        "ab": stack(ab_row).astype(jnp.float32),                         # (L, 2H)
        "wq": _bf16(stack(lambda lp: lp["mha"]["q"]["w"] * scale)),
        "bq": stack(lambda lp: (lp["mha"]["q"]["b"] * scale).reshape(1, D)),
        "wk": _bf16(stack(lambda lp: lp["mha"]["k"]["w"])),
        "bk": stack(lambda lp: lp["mha"]["k"]["b"].reshape(1, D)),
        "wv": _bf16(stack(lambda lp: lp["mha"]["v"]["w"])),
        "bv": stack(lambda lp: lp["mha"]["v"]["b"].reshape(1, D)),
        "wo": _bf16(stack(lambda lp: lp["mha"]["o"]["w"])),
        "bo": stack(lambda lp: lp["mha"]["o"]["b"].reshape(1, D)),
        "w1": _bf16(stack(lambda lp: lp["ff1"]["w"])),
        "b1": stack(lambda lp: lp["ff1"]["b"].reshape(1, -1)),
        "w2": _bf16(stack(lambda lp: lp["ff2"]["w"])),
        "b2": stack(lambda lp: lp["ff2"]["b"].reshape(1, D)),
        "g1": stack(lambda lp: lp["ln1"]["g"].reshape(1, D)),
        "be1": stack(lambda lp: lp["ln1"]["b"].reshape(1, D)),
        "g2": stack(lambda lp: lp["ln2"]["g"].reshape(1, D)),
        "be2": stack(lambda lp: lp["ln2"]["b"].reshape(1, D)),
    }

    def mha_prep(p):
        return {
            "wq": _bf16(p["q"]["w"] * scale), "bq": (p["q"]["b"] * scale).reshape(1, D),
            "wk": _bf16(p["k"]["w"]), "bk": p["k"]["b"].reshape(1, D),
            "wv": _bf16(p["v"]["w"]), "bv": p["v"]["b"].reshape(1, D),
            "wo": _bf16(p["o"]["w"]), "bo": p["o"]["b"].reshape(1, D),
        }

    dec = {
        "wp": _bf16(params["cust_proj"]["w"]), "bp": params["cust_proj"]["b"].reshape(1, D),
        "fleet": mha_prep(params["fleet_attn"]),
        "veh": mha_prep(params["vehicle_attn"]),
    }

    cfg = {"num_head": H,
           "scaling_factor": float(params["scaling_factor"]),
           "tanh_xplor": float(params["tanh_xplor"])}
    weights = {"enc": enc, "dec": dec}
    return cfg, weights


# ------------------------------ model glue ----------------------------------

def graph_attention_model_forward(cfg, weights, nodes, edge_attributes, vehicles,
                                  current_vehicle_index, current_vehicle_mask):
    # ---- encoder (customer_mask=None path): embed + all layers, one kernel ----
    edge_attr = edge_attributes[..., 0]                                  # (B, N, N)
    x = encode(nodes, edge_attr, weights["enc"], num_head=cfg["num_head"])

    # ---- decoder: fleet attn + gather + vehicle attn + scores, one kernel ----
    mask_f = current_vehicle_mask.astype(jnp.float32)
    return decode(current_vehicle_index.astype(jnp.int32), vehicles, x, mask_f,
                  weights["dec"], num_head=cfg["num_head"],
                  scaling_factor=cfg["scaling_factor"],
                  tanh_xplor=cfg["tanh_xplor"])


# --------------------------------- main --------------------------------------

if __name__ == "__main__":
    B, N, V = 2, 8, 3                 # batch, nodes (1 depot + 7 customers), vehicles
    customer_feature, vehicle_feature = 4, 6
    model_size, num_head, ff_size = 32, 4, 32
    edge_dim, encoder_layer_n, tanh_xplor = 16, 2, 10

    root = jax.random.PRNGKey(0)
    kp, kn, ke, kv, ki, km = jax.random.split(root, 6)

    params = init_model_params(kp, customer_feature, vehicle_feature, model_size,
                               encoder_layer_n, num_head, ff_size, tanh_xplor, edge_dim)
    cfg, weights = prepare_params(params)     # one-time: stack / fold / bf16-cast

    nodes = jax.random.normal(kn, (B, N, customer_feature), jnp.float32)
    edge_attributes = jax.random.uniform(ke, (B, N, N, 1), jnp.float32)
    vehicles = jax.random.normal(kv, (B, V, vehicle_feature), jnp.float32)
    current_vehicle_index = jax.random.randint(ki, (B, 1), 0, V, jnp.int32)
    current_vehicle_mask = jax.random.bernoulli(km, 0.3, (B, 1, N))
    current_vehicle_mask = current_vehicle_mask.at[:, :, 0].set(False)  # keep depot unmasked

    fwd = jax.jit(functools.partial(graph_attention_model_forward, cfg))
    prop = fwd(weights, nodes, edge_attributes, vehicles,
               current_vehicle_index, current_vehicle_mask)
    prop = jax.block_until_ready(prop)

    assert prop.shape == (B, 1, N)
    assert bool(jnp.all(jnp.isfinite(prop)))
    assert bool(jnp.allclose(jnp.sum(prop, axis=-1), 1.0, atol=1e-4))
    print("KERNEL_OK")
</pallas_src>

<mosaic_0001>
module attributes {stable_mosaic.version = 11 : i64} {
  func.func @_encoder_fused_kernel(%arg0: i32, %arg1: i32, %arg2: memref<2x8xf32, #tpu.memory_space<smem>>, %arg3: memref<1x8x4xf32, #tpu.memory_space<vmem>>, %arg4: memref<1x8x8xf32, #tpu.memory_space<vmem>>, %arg5: memref<4x32xbf16, #tpu.memory_space<vmem>>, %arg6: memref<1x32xf32, #tpu.memory_space<vmem>>, %arg7: memref<4x32xbf16, #tpu.memory_space<vmem>>, %arg8: memref<1x32xf32, #tpu.memory_space<vmem>>, %arg9: memref<1x32x32xbf16, #tpu.memory_space<vmem>>, %arg10: memref<1x1x32xf32, #tpu.memory_space<vmem>>, %arg11: memref<1x32x32xbf16, #tpu.memory_space<vmem>>, %arg12: memref<1x1x32xf32, #tpu.memory_space<vmem>>, %arg13: memref<1x32x32xbf16, #tpu.memory_space<vmem>>, %arg14: memref<1x1x32xf32, #tpu.memory_space<vmem>>, %arg15: memref<1x32x32xbf16, #tpu.memory_space<vmem>>, %arg16: memref<1x1x32xf32, #tpu.memory_space<vmem>>, %arg17: memref<1x32x32xbf16, #tpu.memory_space<vmem>>, %arg18: memref<1x1x32xf32, #tpu.memory_space<vmem>>, %arg19: memref<1x32x32xbf16, #tpu.memory_space<vmem>>, %arg20: memref<1x1x32xf32, #tpu.memory_space<vmem>>, %arg21: memref<1x1x32xf32, #tpu.memory_space<vmem>>, %arg22: memref<1x1x32xf32, #tpu.memory_space<vmem>>, %arg23: memref<1x1x32xf32, #tpu.memory_space<vmem>>, %arg24: memref<1x1x32xf32, #tpu.memory_space<vmem>>, %arg25: memref<1x8x32xf32, #tpu.memory_space<vmem>>, %arg26: memref<8x32xf32, #tpu.memory_space<vmem>>) attributes {dimension_semantics = [#tpu.dimension_semantics<parallel>, #tpu.dimension_semantics<arbitrary>], iteration_bounds = array<i64: 2, 2>, scalar_prefetch = 1 : i64, scratch_operands = 1 : i64, tpu.core_type = #tpu.core_type<tc>, window_params = [{transform_indices = @transform_0, window_bounds = array<i64: 1, 8, 4>}, {transform_indices = @transform_1, window_bounds = array<i64: 1, 8, 8>}, {pipeline_mode = #tpu.pipeline_mode<synchronous>, transform_indices = @transform_2, window_bounds = array<i64: 4, 32>}, {pipeline_mode = #tpu.pipeline_mode<synchronous>, transform_indices = @transform_3, window_bounds = array<i64: 1, 32>}, {pipeline_mode = #tpu.pipeline_mode<synchronous>, transform_indices = @transform_4, window_bounds = array<i64: 4, 32>}, {pipeline_mode = #tpu.pipeline_mode<synchronous>, transform_indices = @transform_5, window_bounds = array<i64: 1, 32>}, {transform_indices = @transform_6, window_bounds = array<i64: 1, 32, 32>}, {transform_indices = @transform_7, window_bounds = array<i64: 1, 1, 32>}, {transform_indices = @transform_8, window_bounds = array<i64: 1, 32, 32>}, {transform_indices = @transform_9, window_bounds = array<i64: 1, 1, 32>}, {transform_indices = @transform_10, window_bounds = array<i64: 1, 32, 32>}, {transform_indices = @transform_11, window_bounds = array<i64: 1, 1, 32>}, {transform_indices = @transform_12, window_bounds = array<i64: 1, 32, 32>}, {transform_indices = @transform_13, window_bounds = array<i64: 1, 1, 32>}, {transform_indices = @transform_14, window_bounds = array<i64: 1, 32, 32>}, {transform_indices = @transform_15, window_bounds = array<i64: 1, 1, 32>}, {transform_indices = @transform_16, window_bounds = array<i64: 1, 32, 32>}, {transform_indices = @transform_17, window_bounds = array<i64: 1, 1, 32>}, {transform_indices = @transform_18, window_bounds = array<i64: 1, 1, 32>}, {transform_indices = @transform_19, window_bounds = array<i64: 1, 1, 32>}, {transform_indices = @transform_20, window_bounds = array<i64: 1, 1, 32>}, {transform_indices = @transform_21, window_bounds = array<i64: 1, 1, 32>}, {transform_indices = @transform_22, window_bounds = array<i64: 1, 8, 32>}]} {
    %c0_i32 = arith.constant 0 : i32
    %0 = arith.cmpi eq, %arg1, %c0_i32 : i32
    %1 = arith.extui %0 : i1 to i32
    %c0_i32_0 = arith.constant 0 : i32
    %2 = arith.cmpi ne, %1, %c0_i32_0 : i32
    scf.if %2 {
      %c0_77 = arith.constant 0 : index
      %c0_78 = arith.constant 0 : index
      %c0_79 = arith.constant 0 : index
      %176 = vector.load %arg3[%c0_77, %c0_78, %c0_79] : memref<1x8x4xf32, #tpu.memory_space<vmem>>, vector<1x8x4xf32>
      %177 = vector.shape_cast %176 : vector<1x8x4xf32> to vector<8x4xf32>
      %178 = arith.truncf %177 : vector<8x4xf32> to vector<8x4xbf16>
      %c0_80 = arith.constant 0 : index
      %c0_81 = arith.constant 0 : index
      %179 = vector.load %arg7[%c0_80, %c0_81] : memref<4x32xbf16, #tpu.memory_space<vmem>>, vector<4x32xbf16>
      %cst_82 = arith.constant dense<0.000000e+00> : vector<8x32xf32>
      %180 = tpu.matmul %178, %179, %cst_82 {dimension_numbers = #tpu.dot_dimension_numbers<[1], [0], [0], [1], [0, 0, 1, 1], [], []>} : vector<8x4xbf16>, vector<4x32xbf16>, vector<8x32xf32> -> vector<8x32xf32>
      %c0_83 = arith.constant 0 : index
      %c0_84 = arith.constant 0 : index
      %181 = vector.load %arg8[%c0_83, %c0_84] : memref<1x32xf32, #tpu.memory_space<vmem>>, vector<1x32xf32>
      %182 = vector.broadcast %181 : vector<1x32xf32> to vector<8x32xf32>
      %183 = arith.addf %180, %182 : vector<8x32xf32>
      %184 = vector.extract_strided_slice %178 {offsets = [0, 0], sizes = [1, 4], strides = [1, 1]} : vector<8x4xbf16> to vector<1x4xbf16>
      %c0_85 = arith.constant 0 : index
      %c0_86 = arith.constant 0 : index
      %185 = vector.load %arg5[%c0_85, %c0_86] : memref<4x32xbf16, #tpu.memory_space<vmem>>, vector<4x32xbf16>
      %cst_87 = arith.constant dense<0.000000e+00> : vector<1x32xf32>
      %186 = tpu.matmul %184, %185, %cst_87 {dimension_numbers = #tpu.dot_dimension_numbers<[1], [0], [0], [1], [0, 0, 1, 1], [], []>} : vector<1x4xbf16>, vector<4x32xbf16>, vector<1x32xf32> -> vector<1x32xf32>
      %c0_88 = arith.constant 0 : index
      %c0_89 = arith.constant 0 : index
      %187 = vector.load %arg6[%c0_88, %c0_89] : memref<1x32xf32, #tpu.memory_space<vmem>>, vector<1x32xf32>
      %188 = arith.addf %186, %187 : vector<1x32xf32>
      %c0_90 = arith.constant 0 : index
      %c0_91 = arith.constant 0 : index
      %189 = vector.load %arg26[%c0_90, %c0_91] : memref<8x32xf32, #tpu.memory_space<vmem>>, vector<8x32xf32>
      tpu.vector_store %arg26[%c0_90, %c0_91], %183 {strides = array<i32>} : memref<8x32xf32, #tpu.memory_space<vmem>>, vector<8x32xf32>,
      %c0_92 = arith.constant 0 : index
      %c0_93 = arith.constant 0 : index
      %190 = vector.load %arg26[%c0_92, %c0_93] : memref<8x32xf32, #tpu.memory_space<vmem>>, vector<1x32xf32>
      tpu.vector_store %arg26[%c0_92, %c0_93], %188 {strides = array<i32>} : memref<8x32xf32, #tpu.memory_space<vmem>>, vector<1x32xf32>,
    } else {
    }
    %c0 = arith.constant 0 : index
    %c0_1 = arith.constant 0 : index
    %3 = vector.load %arg26[%c0, %c0_1] : memref<8x32xf32, #tpu.memory_space<vmem>>, vector<8x32xf32>
    %c0_2 = arith.constant 0 : index
    %c0_3 = arith.constant 0 : index
    %c0_4 = arith.constant 0 : index
    %4 = vector.load %arg4[%c0_2, %c0_3, %c0_4] : memref<1x8x8xf32, #tpu.memory_space<vmem>>, vector<1x8x8xf32>
    %5 = vector.shape_cast %4 : vector<1x8x8xf32> to vector<8x8xf32>
    %6 = arith.truncf %3 : vector<8x32xf32> to vector<8x32xbf16>
    %c0_5 = arith.constant 0 : index
    %c0_6 = arith.constant 0 : index
    %c0_7 = arith.constant 0 : index
    %7 = vector.load %arg9[%c0_5, %c0_6, %c0_7] : memref<1x32x32xbf16, #tpu.memory_space<vmem>>, vector<1x32x32xbf16>
    %8 = vector.shape_cast %7 : vector<1x32x32xbf16> to vector<32x32xbf16>
    %cst = arith.constant dense<0.000000e+00> : vector<8x32xf32>
    %9 = tpu.matmul %6, %8, %cst {dimension_numbers = #tpu.dot_dimension_numbers<[1], [0], [0], [1], [0, 0, 1, 1], [], []>} : vector<8x32xbf16>, vector<32x32xbf16>, vector<8x32xf32> -> vector<8x32xf32>
    %c0_8 = arith.constant 0 : index
    %c0_9 = arith.constant 0 : index
    %c0_10 = arith.constant 0 : index
    %10 = vector.load %arg10[%c0_8, %c0_9, %c0_10] : memref<1x1x32xf32, #tpu.memory_space<vmem>>, vector<1x1x32xf32>
    %11 = vector.shape_cast %10 : vector<1x1x32xf32> to vector<1x32xf32>
    %12 = vector.broadcast %11 : vector<1x32xf32> to vector<8x32xf32>
    %13 = arith.addf %9, %12 : vector<8x32xf32>
    %14 = arith.truncf %3 : vector<8x32xf32> to vector<8x32xbf16>
    %c0_11 = arith.constant 0 : index
    %c0_12 = arith.constant 0 : index
    %c0_13 = arith.constant 0 : index
    %15 = vector.load %arg11[%c0_11, %c0_12, %c0_13] : memref<1x32x32xbf16, #tpu.memory_space<vmem>>, vector<1x32x32xbf16>
    %16 = vector.shape_cast %15 : vector<1x32x32xbf16> to vector<32x32xbf16>
    %cst_14 = arith.constant dense<0.000000e+00> : vector<8x32xf32>
    %17 = tpu.matmul %14, %16, %cst_14 {dimension_numbers = #tpu.dot_dimension_numbers<[1], [0], [0], [1], [0, 0, 1, 1], [], []>} : vector<8x32xbf16>, vector<32x32xbf16>, vector<8x32xf32> -> vector<8x32xf32>
    %c0_15 = arith.constant 0 : index
    %c0_16 = arith.constant 0 : index
    %c0_17 = arith.constant 0 : index
    %18 = vector.load %arg12[%c0_15, %c0_16, %c0_17] : memref<1x1x32xf32, #tpu.memory_space<vmem>>, vector<1x1x32xf32>
    %19 = vector.shape_cast %18 : vector<1x1x32xf32> to vector<1x32xf32>
    %20 = vector.broadcast %19 : vector<1x32xf32> to vector<8x32xf32>
    %21 = arith.addf %17, %20 : vector<8x32xf32>
    %22 = arith.truncf %3 : vector<8x32xf32> to vector<8x32xbf16>
    %c0_18 = arith.constant 0 : index
    %c0_19 = arith.constant 0 : index
    %c0_20 = arith.constant 0 : index
    %23 = vector.load %arg13[%c0_18, %c0_19, %c0_20] : memref<1x32x32xbf16, #tpu.memory_space<vmem>>, vector<1x32x32xbf16>
    %24 = vector.shape_cast %23 : vector<1x32x32xbf16> to vector<32x32xbf16>
    %cst_21 = arith.constant dense<0.000000e+00> : vector<8x32xf32>
    %25 = tpu.matmul %22, %24, %cst_21 {dimension_numbers = #tpu.dot_dimension_numbers<[1], [0], [0], [1], [0, 0, 1, 1], [], []>} : vector<8x32xbf16>, vector<32x32xbf16>, vector<8x32xf32> -> vector<8x32xf32>
    %c0_22 = arith.constant 0 : index
    %c0_23 = arith.constant 0 : index
    %c0_24 = arith.constant 0 : index
    %26 = vector.load %arg14[%c0_22, %c0_23, %c0_24] : memref<1x1x32xf32, #tpu.memory_space<vmem>>, vector<1x1x32xf32>
    %27 = vector.shape_cast %26 : vector<1x1x32xf32> to vector<1x32xf32>
    %28 = vector.broadcast %27 : vector<1x32xf32> to vector<8x32xf32>
    %29 = arith.addf %25, %28 : vector<8x32xf32>
    %30 = arith.index_cast %arg1 : i32 to index
    %c0_25 = arith.constant 0 : index
    %31 = memref.load %arg2[%30, %c0_25] : memref<2x8xf32, #tpu.memory_space<smem>>
    %32 = vector.broadcast %31 : f32 to vector<8x8xf32>
    %33 = arith.mulf %5, %32 : vector<8x8xf32>
    %34 = arith.index_cast %arg1 : i32 to index
    %c4 = arith.constant 4 : index
    %35 = memref.load %arg2[%34, %c4] : memref<2x8xf32, #tpu.memory_space<smem>>
    %36 = vector.broadcast %35 : f32 to vector<8x8xf32>
    %37 = arith.addf %33, %36 : vector<8x8xf32>
    %38 = vector.shape_cast %37 : vector<8x8xf32> to vector<1x8x8xf32>
    %39 = arith.index_cast %arg1 : i32 to index
    %c1 = arith.constant 1 : index
    %40 = memref.load %arg2[%39, %c1] : memref<2x8xf32, #tpu.memory_space<smem>>
    %41 = vector.broadcast %40 : f32 to vector<8x8xf32>
    %42 = arith.mulf %5, %41 : vector<8x8xf32>
    %43 = arith.index_cast %arg1 : i32 to index
    %c5 = arith.constant 5 : index
    %44 = memref.load %arg2[%43, %c5] : memref<2x8xf32, #tpu.memory_space<smem>>
    %45 = vector.broadcast %44 : f32 to vector<8x8xf32>
    %46 = arith.addf %42, %45 : vector<8x8xf32>
    %47 = vector.shape_cast %46 : vector<8x8xf32> to vector<1x8x8xf32>
    %48 = arith.index_cast %arg1 : i32 to index
    %c2 = arith.constant 2 : index
    %49 = memref.load %arg2[%48, %c2] : memref<2x8xf32, #tpu.memory_space<smem>>
    %50 = vector.broadcast %49 : f32 to vector<8x8xf32>
    %51 = arith.mulf %5, %50 : vector<8x8xf32>
    %52 = arith.index_cast %arg1 : i32 to index
    %c6 = arith.constant 6 : index
    %53 = memref.load %arg2[%52, %c6] : memref<2x8xf32, #tpu.memory_space<smem>>
    %54 = vector.broadcast %53 : f32 to vector<8x8xf32>
    %55 = arith.addf %51, %54 : vector<8x8xf32>
    %56 = vector.shape_cast %55 : vector<8x8xf32> to vector<1x8x8xf32>
    %57 = arith.index_cast %arg1 : i32 to index
    %c3 = arith.constant 3 : index
    %58 = memref.load %arg2[%57, %c3] : memref<2x8xf32, #tpu.memory_space<smem>>
    %59 = vector.broadcast %58 : f32 to vector<8x8xf32>
    %60 = arith.mulf %5, %59 : vector<8x8xf32>
    %61 = arith.index_cast %arg1 : i32 to index
    %c7 = arith.constant 7 : index
    %62 = memref.load %arg2[%61, %c7] : memref<2x8xf32, #tpu.memory_space<smem>>
    %63 = vector.broadcast %62 : f32 to vector<8x8xf32>
    %64 = arith.addf %60, %63 : vector<8x8xf32>
    %65 = vector.shape_cast %64 : vector<8x8xf32> to vector<1x8x8xf32>
    %66 = tpu.concatenate %38, %47, %56, %65 in 0 : vector<1x8x8xf32>, vector<1x8x8xf32>, vector<1x8x8xf32>, vector<1x8x8xf32> -> vector<4x8x8xf32>
    %67 = vector.shape_cast %13 : vector<8x32xf32> to vector<8x4x8xf32>
    %68 = tpu.transpose %67, [1, 0, 2] : vector<8x4x8xf32> -> vector<4x8x8xf32>
    %69 = arith.truncf %68 : vector<4x8x8xf32> to vector<4x8x8xbf16>
    %70 = vector.shape_cast %21 : vector<8x32xf32> to vector<8x4x8xf32>
    %71 = tpu.transpose %70, [1, 0, 2] : vector<8x4x8xf32> -> vector<4x8x8xf32>
    %72 = arith.truncf %71 : vector<4x8x8xf32> to vector<4x8x8xbf16>
    %73 = vector.shape_cast %29 : vector<8x32xf32> to vector<8x4x8xf32>
    %74 = tpu.transpose %73, [1, 0, 2] : vector<8x4x8xf32> -> vector<4x8x8xf32>
    %75 = arith.truncf %74 : vector<4x8x8xf32> to vector<4x8x8xbf16>
    %cst_26 = arith.constant dense<0.000000e+00> : vector<4x8x8xf32>
    %76 = tpu.matmul %69, %72, %cst_26 {dimension_numbers = #tpu.dot_dimension_numbers<[2], [2], [1], [1], [0, 0, 0, 1, 1, 1], [0], [0]>} : vector<4x8x8xbf16>, vector<4x8x8xbf16>, vector<4x8x8xf32> -> vector<4x8x8xf32>
    %77 = arith.addf %76, %66 : vector<4x8x8xf32>
    %cst_27 = arith.constant dense<0xFF800000> : vector<4x8xf32>
    %78 = vector.multi_reduction <maximumf>, %77, %cst_27 [2] : vector<4x8x8xf32> to vector<4x8xf32>
    %79 = vector.shape_cast %78 : vector<4x8xf32> to vector<4x8x1xf32>
    %80 = vector.broadcast %79 : vector<4x8x1xf32> to vector<4x8x8xf32>
    %81 = arith.subf %77, %80 : vector<4x8x8xf32>
    %82 = math.exp %81 : vector<4x8x8xf32>
    %cst_28 = arith.constant dense<0.000000e+00> : vector<4x8xf32>
    %83 = vector.multi_reduction <add>, %82, %cst_28 [2] : vector<4x8x8xf32> to vector<4x8xf32>
    %84 = vector.shape_cast %83 : vector<4x8xf32> to vector<4x8x1xf32>
    %85 = tpu.reciprocal %84 {approx = true} : vector<4x8x1xf32> -> vector<4x8x1xf32>
    %86 = vector.broadcast %85 : vector<4x8x1xf32> to vector<4x8x8xf32>
    %87 = arith.mulf %82, %86 : vector<4x8x8xf32>
    %88 = arith.truncf %87 : vector<4x8x8xf32> to vector<4x8x8xbf16>
    %cst_29 = arith.constant dense<0.000000e+00> : vector<4x8x8xf32>
    %89 = tpu.matmul %88, %75, %cst_29 {dimension_numbers = #tpu.dot_dimension_numbers<[2], [1], [1], [2], [0, 0, 0, 1, 1, 2], [0], [0]>} : vector<4x8x8xbf16>, vector<4x8x8xbf16>, vector<4x8x8xf32> -> vector<4x8x8xf32>
    %90 = tpu.transpose %89, [1, 0, 2] : vector<4x8x8xf32> -> vector<8x4x8xf32>
    %91 = vector.shape_cast %90 : vector<8x4x8xf32> to vector<8x32xf32>
    %92 = arith.truncf %91 : vector<8x32xf32> to vector<8x32xbf16>
    %c0_30 = arith.constant 0 : index
    %c0_31 = arith.constant 0 : index
    %c0_32 = arith.constant 0 : index
    %93 = vector.load %arg15[%c0_30, %c0_31, %c0_32] : memref<1x32x32xbf16, #tpu.memory_space<vmem>>, vector<1x32x32xbf16>
    %94 = vector.shape_cast %93 : vector<1x32x32xbf16> to vector<32x32xbf16>
    %cst_33 = arith.constant dense<0.000000e+00> : vector<8x32xf32>
    %95 = tpu.matmul %92, %94, %cst_33 {dimension_numbers = #tpu.dot_dimension_numbers<[1], [0], [0], [1], [0, 0, 1, 1], [], []>} : vector<8x32xbf16>, vector<32x32xbf16>, vector<8x32xf32> -> vector<8x32xf32>
    %c0_34 = arith.constant 0 : index
    %c0_35 = arith.constant 0 : index
    %c0_36 = arith.constant 0 : index
    %96 = vector.load %arg16[%c0_34, %c0_35, %c0_36] : memref<1x1x32xf32, #tpu.memory_space<vmem>>, vector<1x1x32xf32>
    %97 = vector.shape_cast %96 : vector<1x1x32xf32> to vector<1x32xf32>
    %98 = vector.broadcast %97 : vector<1x32xf32> to vector<8x32xf32>
    %99 = arith.addf %95, %98 : vector<8x32xf32>
    %100 = arith.addf %3, %99 : vector<8x32xf32>
    %c0_37 = arith.constant 0 : index
    %c0_38 = arith.constant 0 : index
    %c0_39 = arith.constant 0 : index
    %101 = vector.load %arg21[%c0_37, %c0_38, %c0_39] : memref<1x1x32xf32, #tpu.memory_space<vmem>>, vector<1x1x32xf32>
    %102 = vector.shape_cast %101 : vector<1x1x32xf32> to vector<1x32xf32>
    %c0_40 = arith.constant 0 : index
    %c0_41 = arith.constant 0 : index
    %c0_42 = arith.constant 0 : index
    %103 = vector.load %arg22[%c0_40, %c0_41, %c0_42] : memref<1x1x32xf32, #tpu.memory_space<vmem>>, vector<1x1x32xf32>
    %104 = vector.shape_cast %103 : vector<1x1x32xf32> to vector<1x32xf32>
    %cst_43 = arith.constant dense<0.000000e+00> : vector<8xf32>
    %105 = vector.multi_reduction <add>, %100, %cst_43 [1] : vector<8x32xf32> to vector<8xf32>
    %106 = vector.shape_cast %105 : vector<8xf32> to vector<8x1xf32>
    %cst_44 = arith.constant 3.200000e+01 : f32
    %107 = vector.broadcast %cst_44 : f32 to vector<8x1xf32>
    %108 = arith.divf %106, %107 : vector<8x1xf32>
    %109 = vector.broadcast %108 : vector<8x1xf32> to vector<8x32xf32>
    %110 = arith.subf %100, %109 : vector<8x32xf32>
    %111 = arith.mulf %110, %110 : vector<8x32xf32>
    %cst_45 = arith.constant dense<0.000000e+00> : vector<8xf32>
    %112 = vector.multi_reduction <add>, %111, %cst_45 [1] : vector<8x32xf32> to vector<8xf32>
    %113 = vector.shape_cast %112 : vector<8xf32> to vector<8x1xf32>
    %cst_46 = arith.constant 3.200000e+01 : f32
    %114 = vector.broadcast %cst_46 : f32 to vector<8x1xf32>
    %115 = arith.divf %113, %114 : vector<8x1xf32>
    %116 = vector.broadcast %108 : vector<8x1xf32> to vector<8x32xf32>
    %117 = arith.subf %100, %116 : vector<8x32xf32>
    %cst_47 = arith.constant 9.99999974E-6 : f32
    %118 = vector.broadcast %cst_47 : f32 to vector<8x1xf32>
    %119 = arith.addf %115, %118 : vector<8x1xf32>
    %120 = math.rsqrt %119 : vector<8x1xf32>
    %121 = vector.broadcast %120 : vector<8x1xf32> to vector<8x32xf32>
    %122 = arith.mulf %117, %121 : vector<8x32xf32>
    %123 = vector.broadcast %102 : vector<1x32xf32> to vector<8x32xf32>
    %124 = arith.mulf %122, %123 : vector<8x32xf32>
    %125 = vector.broadcast %104 : vector<1x32xf32> to vector<8x32xf32>
    %126 = arith.addf %124, %125 : vector<8x32xf32>
    %127 = arith.truncf %126 : vector<8x32xf32> to vector<8x32xbf16>
    %c0_48 = arith.constant 0 : index
    %c0_49 = arith.constant 0 : index
    %c0_50 = arith.constant 0 : index
    %128 = vector.load %arg17[%c0_48, %c0_49, %c0_50] : memref<1x32x32xbf16, #tpu.memory_space<vmem>>, vector<1x32x32xbf16>
    %129 = vector.shape_cast %128 : vector<1x32x32xbf16> to vector<32x32xbf16>
    %cst_51 = arith.constant dense<0.000000e+00> : vector<8x32xf32>
    %130 = tpu.matmul %127, %129, %cst_51 {dimension_numbers = #tpu.dot_dimension_numbers<[1], [0], [0], [1], [0, 0, 1, 1], [], []>} : vector<8x32xbf16>, vector<32x32xbf16>, vector<8x32xf32> -> vector<8x32xf32>
    %c0_52 = arith.constant 0 : index
    %c0_53 = arith.constant 0 : index
    %c0_54 = arith.constant 0 : index
    %131 = vector.load %arg18[%c0_52, %c0_53, %c0_54] : memref<1x1x32xf32, #tpu.memory_space<vmem>>, vector<1x1x32xf32>
    %132 = vector.shape_cast %131 : vector<1x1x32xf32> to vector<1x32xf32>
    %133 = vector.broadcast %132 : vector<1x32xf32> to vector<8x32xf32>
    %134 = arith.addf %130, %133 : vector<8x32xf32>
    %cst_55 = arith.constant 0.000000e+00 : f32
    %135 = vector.broadcast %cst_55 : f32 to vector<8x32xf32>
    %136 = arith.maximumf %134, %135 : vector<8x32xf32>
    %137 = arith.truncf %136 : vector<8x32xf32> to vector<8x32xbf16>
    %c0_56 = arith.constant 0 : index
    %c0_57 = arith.constant 0 : index
    %c0_58 = arith.constant 0 : index
    %138 = vector.load %arg19[%c0_56, %c0_57, %c0_58] : memref<1x32x32xbf16, #tpu.memory_space<vmem>>, vector<1x32x32xbf16>
    %139 = vector.shape_cast %138 : vector<1x32x32xbf16> to vector<32x32xbf16>
    %cst_59 = arith.constant dense<0.000000e+00> : vector<8x32xf32>
    %140 = tpu.matmul %137, %139, %cst_59 {dimension_numbers = #tpu.dot_dimension_numbers<[1], [0], [0], [1], [0, 0, 1, 1], [], []>} : vector<8x32xbf16>, vector<32x32xbf16>, vector<8x32xf32> -> vector<8x32xf32>
    %c0_60 = arith.constant 0 : index
    %c0_61 = arith.constant 0 : index
    %c0_62 = arith.constant 0 : index
    %141 = vector.load %arg20[%c0_60, %c0_61, %c0_62] : memref<1x1x32xf32, #tpu.memory_space<vmem>>, vector<1x1x32xf32>
    %142 = vector.shape_cast %141 : vector<1x1x32xf32> to vector<1x32xf32>
    %143 = vector.broadcast %142 : vector<1x32xf32> to vector<8x32xf32>
    %144 = arith.addf %140, %143 : vector<8x32xf32>
    %145 = arith.addf %126, %144 : vector<8x32xf32>
    %c0_63 = arith.constant 0 : index
    %c0_64 = arith.constant 0 : index
    %c0_65 = arith.constant 0 : index
    %146 = vector.load %arg23[%c0_63, %c0_64, %c0_65] : memref<1x1x32xf32, #tpu.memory_space<vmem>>, vector<1x1x32xf32>
    %147 = vector.shape_cast %146 : vector<1x1x32xf32> to vector<1x32xf32>
    %c0_66 = arith.constant 0 : index
    %c0_67 = arith.constant 0 : index
    %c0_68 = arith.constant 0 : index
    %148 = vector.load %arg24[%c0_66, %c0_67, %c0_68] : memref<1x1x32xf32, #tpu.memory_space<vmem>>, vector<1x1x32xf32>
    %149 = vector.shape_cast %148 : vector<1x1x32xf32> to vector<1x32xf32>
    %cst_69 = arith.constant dense<0.000000e+00> : vector<8xf32>
    %150 = vector.multi_reduction <add>, %145, %cst_69 [1] : vector<8x32xf32> to vector<8xf32>
    %151 = vector.shape_cast %150 : vector<8xf32> to vector<8x1xf32>
    %cst_70 = arith.constant 3.200000e+01 : f32
    %152 = vector.broadcast %cst_70 : f32 to vector<8x1xf32>
    %153 = arith.divf %151, %152 : vector<8x1xf32>
    %154 = vector.broadcast %153 : vector<8x1xf32> to vector<8x32xf32>
    %155 = arith.subf %145, %154 : vector<8x32xf32>
    %156 = arith.mulf %155, %155 : vector<8x32xf32>
    %cst_71 = arith.constant dense<0.000000e+00> : vector<8xf32>
    %157 = vector.multi_reduction <add>, %156, %cst_71 [1] : vector<8x32xf32> to vector<8xf32>
    %158 = vector.shape_cast %157 : vector<8xf32> to vector<8x1xf32>
    %cst_72 = arith.constant 3.200000e+01 : f32
    %159 = vector.broadcast %cst_72 : f32 to vector<8x1xf32>
    %160 = arith.divf %158, %159 : vector<8x1xf32>
    %161 = vector.broadcast %153 : vector<8x1xf32> to vector<8x32xf32>
    %162 = arith.subf %145, %161 : vector<8x32xf32>
    %cst_73 = arith.constant 9.99999974E-6 : f32
    %163 = vector.broadcast %cst_73 : f32 to vector<8x1xf32>
    %164 = arith.addf %160, %163 : vector<8x1xf32>
    %165 = math.rsqrt %164 : vector<8x1xf32>
    %166 = vector.broadcast %165 : vector<8x1xf32> to vector<8x32xf32>
    %167 = arith.mulf %162, %166 : vector<8x32xf32>
    %168 = vector.broadcast %147 : vector<1x32xf32> to vector<8x32xf32>
    %169 = arith.mulf %167, %168 : vector<8x32xf32>
    %170 = vector.broadcast %149 : vector<1x32xf32> to vector<8x32xf32>
    %171 = arith.addf %169, %170 : vector<8x32xf32>
    %c0_74 = arith.constant 0 : index
    %c0_75 = arith.constant 0 : index
    %172 = vector.load %arg26[%c0_74, %c0_75] : memref<8x32xf32, #tpu.memory_space<vmem>>, vector<8x32xf32>
    tpu.vector_store %arg26[%c0_74, %c0_75], %171 {strides = array<i32>} : memref<8x32xf32, #tpu.memory_space<vmem>>, vector<8x32xf32>,
    %c1_i32 = arith.constant 1 : i32
    %173 = arith.cmpi eq, %arg1, %c1_i32 : i32
    %174 = arith.extui %173 : i1 to i32
    %c0_i32_76 = arith.constant 0 : i32
    %175 = arith.cmpi ne, %174, %c0_i32_76 : i32
    scf.if %175 {
      %c0_77 = arith.constant 0 : index
      %c0_78 = arith.constant 0 : index
      %c0_79 = arith.constant 0 : index
      %176 = vector.load %arg25[%c0_77, %c0_78, %c0_79] : memref<1x8x32xf32, #tpu.memory_space<vmem>>, vector<1x8x32xf32>
      %177 = vector.shape_cast %176 : vector<1x8x32xf32> to vector<8x32xf32>
      %178 = vector.shape_cast %171 : vector<8x32xf32> to vector<1x8x32xf32>
      tpu.vector_store %arg25[%c0_77, %c0_78, %c0_79], %178 {strides = array<i32>} : memref<1x8x32xf32, #tpu.memory_space<vmem>>, vector<1x8x32xf32>,
    } else {
    }
    return
  }
  func.func @transform_0(%arg0: i32, %arg1: i32, %arg2: memref<2x8xf32, #tpu.memory_space<smem>>) -> (i32, i32, i32) {
    %c0_i32 = arith.constant 0 : i32
    %c0_i32_0 = arith.constant 0 : i32
    %c0_i32_1 = arith.constant 0 : i32
    return %arg0, %c0_i32, %c0_i32_0 : i32, i32, i32
  }
  func.func @transform_1(%arg0: i32, %arg1: i32, %arg2: memref<2x8xf32, #tpu.memory_space<smem>>) -> (i32, i32, i32) {
    %c0_i32 = arith.constant 0 : i32
    %c0_i32_0 = arith.constant 0 : i32
    %c0_i32_1 = arith.constant 0 : i32
    return %arg0, %c0_i32, %c0_i32_0 : i32, i32, i32
  }
  func.func @transform_2(%arg0: i32, %arg1: i32, %arg2: memref<2x8xf32, #tpu.memory_space<smem>>) -> (i32, i32) {
    %c0_i32 = arith.constant 0 : i32
    %c0_i32_0 = arith.constant 0 : i32
    %c0_i32_1 = arith.constant 0 : i32
    return %c0_i32, %c0_i32_0 : i32, i32
  }
  func.func @transform_3(%arg0: i32, %arg1: i32, %arg2: memref<2x8xf32, #tpu.memory_space<smem>>) -> (i32, i32) {
    %c0_i32 = arith.constant 0 : i32
    %c0_i32_0 = arith.constant 0 : i32
    %c0_i32_1 = arith.constant 0 : i32
    return %c0_i32, %c0_i32_0 : i32, i32
  }
  func.func @transform_4(%arg0: i32, %arg1: i32, %arg2: memref<2x8xf32, #tpu.memory_space<smem>>) -> (i32, i32) {
    %c0_i32 = arith.constant 0 : i32
    %c0_i32_0 = arith.constant 0 : i32
    %c0_i32_1 = arith.constant 0 : i32
    return %c0_i32, %c0_i32_0 : i32, i32
  }
  func.func @transform_5(%arg0: i32, %arg1: i32, %arg2: memref<2x8xf32, #tpu.memory_space<smem>>) -> (i32, i32) {
    %c0_i32 = arith.constant 0 : i32
    %c0_i32_0 = arith.constant 0 : i32
    %c0_i32_1 = arith.constant 0 : i32
    return %c0_i32, %c0_i32_0 : i32, i32
  }
  func.func @transform_6(%arg0: i32, %arg1: i32, %arg2: memref<2x8xf32, #tpu.memory_space<smem>>) -> (i32, i32, i32) {
    %c0_i32 = arith.constant 0 : i32
    %c0_i32_0 = arith.constant 0 : i32
    %c0_i32_1 = arith.constant 0 : i32
    return %arg1, %c0_i32, %c0_i32_0 : i32, i32, i32
  }
  func.func @transform_7(%arg0: i32, %arg1: i32, %arg2: memref<2x8xf32, #tpu.memory_space<smem>>) -> (i32, i32, i32) {
    %c0_i32 = arith.constant 0 : i32
    %c0_i32_0 = arith.constant 0 : i32
    %c0_i32_1 = arith.constant 0 : i32
    return %arg1, %c0_i32, %c0_i32_0 : i32, i32, i32
  }
  func.func @transform_8(%arg0: i32, %arg1: i32, %arg2: memref<2x8xf32, #tpu.memory_space<smem>>) -> (i32, i32, i32) {
    %c0_i32 = arith.constant 0 : i32
    %c0_i32_0 = arith.constant 0 : i32
    %c0_i32_1 = arith.constant 0 : i32
    return %arg1, %c0_i32, %c0_i32_0 : i32, i32, i32
  }
  func.func @transform_9(%arg0: i32, %arg1: i32, %arg2: memref<2x8xf32, #tpu.memory_space<smem>>) -> (i32, i32, i32) {
    %c0_i32 = arith.constant 0 : i32
    %c0_i32_0 = arith.constant 0 : i32
    %c0_i32_1 = arith.constant 0 : i32
    return %arg1, %c0_i32, %c0_i32_0 : i32, i32, i32
  }
  func.func @transform_10(%arg0: i32, %arg1: i32, %arg2: memref<2x8xf32, #tpu.memory_space<smem>>) -> (i32, i32, i32) {
    %c0_i32 = arith.constant 0 : i32
    %c0_i32_0 = arith.constant 0 : i32
    %c0_i32_1 = arith.constant 0 : i32
    return %arg1, %c0_i32, %c0_i32_0 : i32, i32, i32
  }
  func.func @transform_11(%arg0: i32, %arg1: i32, %arg2: memref<2x8xf32, #tpu.memory_space<smem>>) -> (i32, i32, i32) {
    %c0_i32 = arith.constant 0 : i32
    %c0_i32_0 = arith.constant 0 : i32
    %c0_i32_1 = arith.constant 0 : i32
    return %arg1, %c0_i32, %c0_i32_0 : i32, i32, i32
  }
  func.func @transform_12(%arg0: i32, %arg1: i32, %arg2: memref<2x8xf32, #tpu.memory_space<smem>>) -> (i32, i32, i32) {
    %c0_i32 = arith.constant 0 : i32
    %c0_i32_0 = arith.constant 0 : i32
    %c0_i32_1 = arith.constant 0 : i32
    return %arg1, %c0_i32, %c0_i32_0 : i32, i32, i32
  }
  func.func @transform_13(%arg0: i32, %arg1: i32, %arg2: memref<2x8xf32, #tpu.memory_space<smem>>) -> (i32, i32, i32) {
    %c0_i32 = arith.constant 0 : i32
    %c0_i32_0 = arith.constant 0 : i32
    %c0_i32_1 = arith.constant 0 : i32
    return %arg1, %c0_i32, %c0_i32_0 : i32, i32, i32
  }
  func.func @transform_14(%arg0: i32, %arg1: i32, %arg2: memref<2x8xf32, #tpu.memory_space<smem>>) -> (i32, i32, i32) {
    %c0_i32 = arith.constant 0 : i32
    %c0_i32_0 = arith.constant 0 : i32
    %c0_i32_1 = arith.constant 0 : i32
    return %arg1, %c0_i32, %c0_i32_0 : i32, i32, i32
  }
  func.func @transform_15(%arg0: i32, %arg1: i32, %arg2: memref<2x8xf32, #tpu.memory_space<smem>>) -> (i32, i32, i32) {
    %c0_i32 = arith.constant 0 : i32
    %c0_i32_0 = arith.constant 0 : i32
    %c0_i32_1 = arith.constant 0 : i32
    return %arg1, %c0_i32, %c0_i32_0 : i32, i32, i32
  }
  func.func @transform_16(%arg0: i32, %arg1: i32, %arg2: memref<2x8xf32, #tpu.memory_space<smem>>) -> (i32, i32, i32) {
    %c0_i32 = arith.constant 0 : i32
    %c0_i32_0 = arith.constant 0 : i32
    %c0_i32_1 = arith.constant 0 : i32
    return %arg1, %c0_i32, %c0_i32_0 : i32, i32, i32
  }
  func.func @transform_17(%arg0: i32, %arg1: i32, %arg2: memref<2x8xf32, #tpu.memory_space<smem>>) -> (i32, i32, i32) {
    %c0_i32 = arith.constant 0 : i32
    %c0_i32_0 = arith.constant 0 : i32
    %c0_i32_1 = arith.constant 0 : i32
    return %arg1, %c0_i32, %c0_i32_0 : i32, i32, i32
  }
  func.func @transform_18(%arg0: i32, %arg1: i32, %arg2: memref<2x8xf32, #tpu.memory_space<smem>>) -> (i32, i32, i32) {
    %c0_i32 = arith.constant 0 : i32
    %c0_i32_0 = arith.constant 0 : i32
    %c0_i32_1 = arith.constant 0 : i32
    return %arg1, %c0_i32, %c0_i32_0 : i32, i32, i32
  }
  func.func @transform_19(%arg0: i32, %arg1: i32, %arg2: memref<2x8xf32, #tpu.memory_space<smem>>) -> (i32, i32, i32) {
    %c0_i32 = arith.constant 0 : i32
    %c0_i32_0 = arith.constant 0 : i32
    %c0_i32_1 = arith.constant 0 : i32
    return %arg1, %c0_i32, %c0_i32_0 : i32, i32, i32
  }
  func.func @transform_20(%arg0: i32, %arg1: i32, %arg2: memref<2x8xf32, #tpu.memory_space<smem>>) -> (i32, i32, i32) {
    %c0_i32 = arith.constant 0 : i32
    %c0_i32_0 = arith.constant 0 : i32
    %c0_i32_1 = arith.constant 0 : i32
    return %arg1, %c0_i32, %c0_i32_0 : i32, i32, i32
  }
  func.func @transform_21(%arg0: i32, %arg1: i32, %arg2: memref<2x8xf32, #tpu.memory_space<smem>>) -> (i32, i32, i32) {
    %c0_i32 = arith.constant 0 : i32
    %c0_i32_0 = arith.constant 0 : i32
    %c0_i32_1 = arith.constant 0 : i32
    return %arg1, %c0_i32, %c0_i32_0 : i32, i32, i32
  }
  func.func @transform_22(%arg0: i32, %arg1: i32, %arg2: memref<2x8xf32, #tpu.memory_space<smem>>) -> (i32, i32, i32) {
    %c0_i32 = arith.constant 0 : i32
    %c0_i32_0 = arith.constant 0 : i32
    %c0_i32_1 = arith.constant 0 : i32
    return %arg0, %c0_i32, %c0_i32_0 : i32, i32, i32
  }
}

module attributes {stable_mosaic.version = 11 : i64} {
  func.func @_decoder_kernel(%arg0: i32, %arg1: memref<2x1xi32, #tpu.memory_space<smem>>, %arg2: memref<1x3x6xf32, #tpu.memory_space<vmem>>, %arg3: memref<1x8x32xf32, #tpu.memory_space<vmem>>, %arg4: memref<1x1x8xf32, #tpu.memory_space<vmem>>, %arg5: memref<32x32xbf16, #tpu.memory_space<vmem>>, %arg6: memref<1x32xf32, #tpu.memory_space<vmem>>, %arg7: memref<6x32xbf16, #tpu.memory_space<vmem>>, %arg8: memref<1x32xf32, #tpu.memory_space<vmem>>, %arg9: memref<32x32xbf16, #tpu.memory_space<vmem>>, %arg10: memref<1x32xf32, #tpu.memory_space<vmem>>, %arg11: memref<32x32xbf16, #tpu.memory_space<vmem>>, %arg12: memref<1x32xf32, #tpu.memory_space<vmem>>, %arg13: memref<32x32xbf16, #tpu.memory_space<vmem>>, %arg14: memref<1x32xf32, #tpu.memory_space<vmem>>, %arg15: memref<32x32xbf16, #tpu.memory_space<vmem>>, %arg16: memref<1x32xf32, #tpu.memory_space<vmem>>, %arg17: memref<32x32xbf16, #tpu.memory_space<vmem>>, %arg18: memref<1x32xf32, #tpu.memory_space<vmem>>, %arg19: memref<32x32xbf16, #tpu.memory_space<vmem>>, %arg20: memref<1x32xf32, #tpu.memory_space<vmem>>, %arg21: memref<32x32xbf16, #tpu.memory_space<vmem>>, %arg22: memref<1x32xf32, #tpu.memory_space<vmem>>, %arg23: memref<1x1x8xf32, #tpu.memory_space<vmem>>, %arg24: memref<3x32xf32, #tpu.memory_space<vmem>>) attributes {dimension_semantics = [#tpu.dimension_semantics<parallel>], iteration_bounds = array<i64: 2>, scalar_prefetch = 1 : i64, scratch_operands = 1 : i64, tpu.core_type = #tpu.core_type<tc>, window_params = [{transform_indices = @transform_0, window_bounds = array<i64: 1, 3, 6>}, {transform_indices = @transform_1, window_bounds = array<i64: 1, 8, 32>}, {transform_indices = @transform_2, window_bounds = array<i64: 1, 1, 8>}, {pipeline_mode = #tpu.pipeline_mode<synchronous>, transform_indices = @transform_3, window_bounds = array<i64: 32, 32>}, {pipeline_mode = #tpu.pipeline_mode<synchronous>, transform_indices = @transform_4, window_bounds = array<i64: 1, 32>}, {pipeline_mode = #tpu.pipeline_mode<synchronous>, transform_indices = @transform_5, window_bounds = array<i64: 6, 32>}, {pipeline_mode = #tpu.pipeline_mode<synchronous>, transform_indices = @transform_6, window_bounds = array<i64: 1, 32>}, {pipeline_mode = #tpu.pipeline_mode<synchronous>, transform_indices = @transform_7, window_bounds = array<i64: 32, 32>}, {pipeline_mode = #tpu.pipeline_mode<synchronous>, transform_indices = @transform_8, window_bounds = array<i64: 1, 32>}, {pipeline_mode = #tpu.pipeline_mode<synchronous>, transform_indices = @transform_9, window_bounds = array<i64: 32, 32>}, {pipeline_mode = #tpu.pipeline_mode<synchronous>, transform_indices = @transform_10, window_bounds = array<i64: 1, 32>}, {pipeline_mode = #tpu.pipeline_mode<synchronous>, transform_indices = @transform_11, window_bounds = array<i64: 32, 32>}, {pipeline_mode = #tpu.pipeline_mode<synchronous>, transform_indices = @transform_12, window_bounds = array<i64: 1, 32>}, {pipeline_mode = #tpu.pipeline_mode<synchronous>, transform_indices = @transform_13, window_bounds = array<i64: 32, 32>}, {pipeline_mode = #tpu.pipeline_mode<synchronous>, transform_indices = @transform_14, window_bounds = array<i64: 1, 32>}, {pipeline_mode = #tpu.pipeline_mode<synchronous>, transform_indices = @transform_15, window_bounds = array<i64: 32, 32>}, {pipeline_mode = #tpu.pipeline_mode<synchronous>, transform_indices = @transform_16, window_bounds = array<i64: 1, 32>}, {pipeline_mode = #tpu.pipeline_mode<synchronous>, transform_indices = @transform_17, window_bounds = array<i64: 32, 32>}, {pipeline_mode = #tpu.pipeline_mode<synchronous>, transform_indices = @transform_18, window_bounds = array<i64: 1, 32>}, {pipeline_mode = #tpu.pipeline_mode<synchronous>, transform_indices = @transform_19, window_bounds = array<i64: 32, 32>}, {pipeline_mode = #tpu.pipeline_mode<synchronous>, transform_indices = @transform_20, window_bounds = array<i64: 1, 32>}, {transform_indices = @transform_21, window_bounds = array<i64: 1, 1, 8>}]} {
    %c0 = arith.constant 0 : index
    %c0_0 = arith.constant 0 : index
    %c0_1 = arith.constant 0 : index
    %0 = vector.load %arg2[%c0, %c0_0, %c0_1] : memref<1x3x6xf32, #tpu.memory_space<vmem>>, vector<1x3x6xf32>
    %1 = vector.shape_cast %0 : vector<1x3x6xf32> to vector<3x6xf32>
    %c0_2 = arith.constant 0 : index
    %c0_3 = arith.constant 0 : index
    %c0_4 = arith.constant 0 : index
    %2 = vector.load %arg3[%c0_2, %c0_3, %c0_4] : memref<1x8x32xf32, #tpu.memory_space<vmem>>, vector<1x8x32xf32>
    %3 = vector.shape_cast %2 : vector<1x8x32xf32> to vector<8x32xf32>
    %c0_5 = arith.constant 0 : index
    %c0_6 = arith.constant 0 : index
    %c0_7 = arith.constant 0 : index
    %4 = vector.load %arg4[%c0_5, %c0_6, %c0_7] : memref<1x1x8xf32, #tpu.memory_space<vmem>>, vector<1x1x8xf32>
    %5 = vector.shape_cast %4 : vector<1x1x8xf32> to vector<1x8xf32>
    %6 = vector.shape_cast %5 : vector<1x8xf32> to vector<1x1x8xf32>
    %7 = arith.truncf %3 : vector<8x32xf32> to vector<8x32xbf16>
    %c0_8 = arith.constant 0 : index
    %c0_9 = arith.constant 0 : index
    %8 = vector.load %arg5[%c0_8, %c0_9] : memref<32x32xbf16, #tpu.memory_space<vmem>>, vector<32x32xbf16>
    %cst = arith.constant dense<0.000000e+00> : vector<8x32xf32>
    %9 = tpu.matmul %7, %8, %cst {dimension_numbers = #tpu.dot_dimension_numbers<[1], [0], [0], [1], [0, 0, 1, 1], [], []>} : vector<8x32xbf16>, vector<32x32xbf16>, vector<8x32xf32> -> vector<8x32xf32>
    %c0_10 = arith.constant 0 : index
    %c0_11 = arith.constant 0 : index
    %10 = vector.load %arg6[%c0_10, %c0_11] : memref<1x32xf32, #tpu.memory_space<vmem>>, vector<1x32xf32>
    %11 = vector.broadcast %10 : vector<1x32xf32> to vector<8x32xf32>
    %12 = arith.addf %9, %11 : vector<8x32xf32>
    %13 = arith.truncf %1 : vector<3x6xf32> to vector<3x6xbf16>
    %c0_12 = arith.constant 0 : index
    %c0_13 = arith.constant 0 : index
    %14 = vector.load %arg7[%c0_12, %c0_13] : memref<6x32xbf16, #tpu.memory_space<vmem>>, vector<6x32xbf16>
    %cst_14 = arith.constant dense<0.000000e+00> : vector<3x32xf32>
    %15 = tpu.matmul %13, %14, %cst_14 {dimension_numbers = #tpu.dot_dimension_numbers<[1], [0], [0], [1], [0, 0, 1, 1], [], []>} : vector<3x6xbf16>, vector<6x32xbf16>, vector<3x32xf32> -> vector<3x32xf32>
    %c0_15 = arith.constant 0 : index
    %c0_16 = arith.constant 0 : index
    %16 = vector.load %arg8[%c0_15, %c0_16] : memref<1x32xf32, #tpu.memory_space<vmem>>, vector<1x32xf32>
    %17 = vector.broadcast %16 : vector<1x32xf32> to vector<3x32xf32>
    %18 = arith.addf %15, %17 : vector<3x32xf32>
    %19 = arith.truncf %3 : vector<8x32xf32> to vector<8x32xbf16>
    %c0_17 = arith.constant 0 : index
    %c0_18 = arith.constant 0 : index
    %20 = vector.load %arg9[%c0_17, %c0_18] : memref<32x32xbf16, #tpu.memory_space<vmem>>, vector<32x32xbf16>
    %cst_19 = arith.constant dense<0.000000e+00> : vector<8x32xf32>
    %21 = tpu.matmul %19, %20, %cst_19 {dimension_numbers = #tpu.dot_dimension_numbers<[1], [0], [0], [1], [0, 0, 1, 1], [], []>} : vector<8x32xbf16>, vector<32x32xbf16>, vector<8x32xf32> -> vector<8x32xf32>
    %c0_20 = arith.constant 0 : index
    %c0_21 = arith.constant 0 : index
    %22 = vector.load %arg10[%c0_20, %c0_21] : memref<1x32xf32, #tpu.memory_space<vmem>>, vector<1x32xf32>
    %23 = vector.broadcast %22 : vector<1x32xf32> to vector<8x32xf32>
    %24 = arith.addf %21, %23 : vector<8x32xf32>
    %25 = arith.truncf %3 : vector<8x32xf32> to vector<8x32xbf16>
    %c0_22 = arith.constant 0 : index
    %c0_23 = arith.constant 0 : index
    %26 = vector.load %arg11[%c0_22, %c0_23] : memref<32x32xbf16, #tpu.memory_space<vmem>>, vector<32x32xbf16>
    %cst_24 = arith.constant dense<0.000000e+00> : vector<8x32xf32>
    %27 = tpu.matmul %25, %26, %cst_24 {dimension_numbers = #tpu.dot_dimension_numbers<[1], [0], [0], [1], [0, 0, 1, 1], [], []>} : vector<8x32xbf16>, vector<32x32xbf16>, vector<8x32xf32> -> vector<8x32xf32>
    %c0_25 = arith.constant 0 : index
    %c0_26 = arith.constant 0 : index
    %28 = vector.load %arg12[%c0_25, %c0_26] : memref<1x32xf32, #tpu.memory_space<vmem>>, vector<1x32xf32>
    %29 = vector.broadcast %28 : vector<1x32xf32> to vector<8x32xf32>
    %30 = arith.addf %27, %29 : vector<8x32xf32>
    %31 = vector.shape_cast %18 : vector<3x32xf32> to vector<3x4x8xf32>
    %32 = tpu.transpose %31, [1, 0, 2] : vector<3x4x8xf32> -> vector<4x3x8xf32>
    %33 = arith.truncf %32 : vector<4x3x8xf32> to vector<4x3x8xbf16>
    %34 = vector.shape_cast %24 : vector<8x32xf32> to vector<8x4x8xf32>
    %35 = tpu.transpose %34, [1, 0, 2] : vector<8x4x8xf32> -> vector<4x8x8xf32>
    %36 = arith.truncf %35 : vector<4x8x8xf32> to vector<4x8x8xbf16>
    %37 = vector.shape_cast %30 : vector<8x32xf32> to vector<8x4x8xf32>
    %38 = tpu.transpose %37, [1, 0, 2] : vector<8x4x8xf32> -> vector<4x8x8xf32>
    %39 = arith.truncf %38 : vector<4x8x8xf32> to vector<4x8x8xbf16>
    %cst_27 = arith.constant dense<0.000000e+00> : vector<4x3x8xf32>
    %40 = tpu.matmul %33, %36, %cst_27 {dimension_numbers = #tpu.dot_dimension_numbers<[2], [2], [1], [1], [0, 0, 0, 1, 1, 1], [0], [0]>} : vector<4x3x8xbf16>, vector<4x8x8xbf16>, vector<4x3x8xf32> -> vector<4x3x8xf32>
    %cst_28 = arith.constant 5.000000e-01 : f32
    %41 = vector.broadcast %cst_28 : f32 to vector<1x1x8xf32>
    %42 = arith.cmpf ogt, %6, %41 : vector<1x1x8xf32>
    %cst_29 = arith.constant -1.000000e+30 : f32
    %43 = vector.shape_cast %42 : vector<1x1x8xi1> to vector<1x1x8xi1>
    %44 = vector.broadcast %43 : vector<1x1x8xi1> to vector<4x3x8xi1>
    %45 = vector.broadcast %cst_29 : f32 to vector<4x3x8xf32>
    %46 = arith.select %44, %45, %40 : vector<4x3x8xi1>, vector<4x3x8xf32>
    %cst_30 = arith.constant dense<0xFF800000> : vector<4x3xf32>
    %47 = vector.multi_reduction <maximumf>, %46, %cst_30 [2] : vector<4x3x8xf32> to vector<4x3xf32>
    %48 = vector.shape_cast %47 : vector<4x3xf32> to vector<4x3x1xf32>
    %49 = vector.broadcast %48 : vector<4x3x1xf32> to vector<4x3x8xf32>
    %50 = arith.subf %46, %49 : vector<4x3x8xf32>
    %51 = math.exp %50 : vector<4x3x8xf32>
    %cst_31 = arith.constant dense<0.000000e+00> : vector<4x3xf32>
    %52 = vector.multi_reduction <add>, %51, %cst_31 [2] : vector<4x3x8xf32> to vector<4x3xf32>
    %53 = vector.shape_cast %52 : vector<4x3xf32> to vector<4x3x1xf32>
    %54 = tpu.reciprocal %53 {approx = true} : vector<4x3x1xf32> -> vector<4x3x1xf32>
    %55 = vector.broadcast %54 : vector<4x3x1xf32> to vector<4x3x8xf32>
    %56 = arith.mulf %51, %55 : vector<4x3x8xf32>
    %57 = arith.truncf %56 : vector<4x3x8xf32> to vector<4x3x8xbf16>
    %cst_32 = arith.constant dense<0.000000e+00> : vector<4x3x8xf32>
    %58 = tpu.matmul %57, %39, %cst_32 {dimension_numbers = #tpu.dot_dimension_numbers<[2], [1], [1], [2], [0, 0, 0, 1, 1, 2], [0], [0]>} : vector<4x3x8xbf16>, vector<4x8x8xbf16>, vector<4x3x8xf32> -> vector<4x3x8xf32>
    %59 = tpu.transpose %58, [1, 0, 2] : vector<4x3x8xf32> -> vector<3x4x8xf32>
    %60 = vector.shape_cast %59 : vector<3x4x8xf32> to vector<3x32xf32>
    %61 = arith.truncf %60 : vector<3x32xf32> to vector<3x32xbf16>
    %c0_33 = arith.constant 0 : index
    %c0_34 = arith.constant 0 : index
    %62 = vector.load %arg13[%c0_33, %c0_34] : memref<32x32xbf16, #tpu.memory_space<vmem>>, vector<32x32xbf16>
    %cst_35 = arith.constant dense<0.000000e+00> : vector<3x32xf32>
    %63 = tpu.matmul %61, %62, %cst_35 {dimension_numbers = #tpu.dot_dimension_numbers<[1], [0], [0], [1], [0, 0, 1, 1], [], []>} : vector<3x32xbf16>, vector<32x32xbf16>, vector<3x32xf32> -> vector<3x32xf32>
    %c0_36 = arith.constant 0 : index
    %c0_37 = arith.constant 0 : index
    %64 = vector.load %arg14[%c0_36, %c0_37] : memref<1x32xf32, #tpu.memory_space<vmem>>, vector<1x32xf32>
    %65 = vector.broadcast %64 : vector<1x32xf32> to vector<3x32xf32>
    %66 = arith.addf %63, %65 : vector<3x32xf32>
    %c0_38 = arith.constant 0 : index
    %c0_39 = arith.constant 0 : index
    %67 = vector.load %arg24[%c0_38, %c0_39] : memref<3x32xf32, #tpu.memory_space<vmem>>, vector<3x32xf32>
    tpu.vector_store %arg24[%c0_38, %c0_39], %66 {strides = array<i32>} : memref<3x32xf32, #tpu.memory_space<vmem>>, vector<3x32xf32>,
    %68 = arith.index_cast %arg0 : i32 to index
    %c0_40 = arith.constant 0 : index
    %69 = memref.load %arg1[%68, %c0_40] : memref<2x1xi32, #tpu.memory_space<smem>>
    %70 = arith.index_cast %69 : i32 to index
    %c0_41 = arith.constant 0 : index
    %71 = vector.load %arg24[%70, %c0_41] : memref<3x32xf32, #tpu.memory_space<vmem>>, vector<1x32xf32>
    %72 = arith.truncf %71 : vector<1x32xf32> to vector<1x32xbf16>
    %c0_42 = arith.constant 0 : index
    %c0_43 = arith.constant 0 : index
    %73 = vector.load %arg15[%c0_42, %c0_43] : memref<32x32xbf16, #tpu.memory_space<vmem>>, vector<32x32xbf16>
    %cst_44 = arith.constant dense<0.000000e+00> : vector<1x32xf32>
    %74 = tpu.matmul %72, %73, %cst_44 {dimension_numbers = #tpu.dot_dimension_numbers<[1], [0], [0], [1], [0, 0, 1, 1], [], []>} : vector<1x32xbf16>, vector<32x32xbf16>, vector<1x32xf32> -> vector<1x32xf32>
    %c0_45 = arith.constant 0 : index
    %c0_46 = arith.constant 0 : index
    %75 = vector.load %arg16[%c0_45, %c0_46] : memref<1x32xf32, #tpu.memory_space<vmem>>, vector<1x32xf32>
    %76 = arith.addf %74, %75 : vector<1x32xf32>
    %77 = arith.truncf %12 : vector<8x32xf32> to vector<8x32xbf16>
    %c0_47 = arith.constant 0 : index
    %c0_48 = arith.constant 0 : index
    %78 = vector.load %arg17[%c0_47, %c0_48] : memref<32x32xbf16, #tpu.memory_space<vmem>>, vector<32x32xbf16>
    %cst_49 = arith.constant dense<0.000000e+00> : vector<8x32xf32>
    %79 = tpu.matmul %77, %78, %cst_49 {dimension_numbers = #tpu.dot_dimension_numbers<[1], [0], [0], [1], [0, 0, 1, 1], [], []>} : vector<8x32xbf16>, vector<32x32xbf16>, vector<8x32xf32> -> vector<8x32xf32>
    %c0_50 = arith.constant 0 : index
    %c0_51 = arith.constant 0 : index
    %80 = vector.load %arg18[%c0_50, %c0_51] : memref<1x32xf32, #tpu.memory_space<vmem>>, vector<1x32xf32>
    %81 = vector.broadcast %80 : vector<1x32xf32> to vector<8x32xf32>
    %82 = arith.addf %79, %81 : vector<8x32xf32>
    %83 = arith.truncf %12 : vector<8x32xf32> to vector<8x32xbf16>
    %c0_52 = arith.constant 0 : index
    %c0_53 = arith.constant 0 : index
    %84 = vector.load %arg19[%c0_52, %c0_53] : memref<32x32xbf16, #tpu.memory_space<vmem>>, vector<32x32xbf16>
    %cst_54 = arith.constant dense<0.000000e+00> : vector<8x32xf32>
    %85 = tpu.matmul %83, %84, %cst_54 {dimension_numbers = #tpu.dot_dimension_numbers<[1], [0], [0], [1], [0, 0, 1, 1], [], []>} : vector<8x32xbf16>, vector<32x32xbf16>, vector<8x32xf32> -> vector<8x32xf32>
    %c0_55 = arith.constant 0 : index
    %c0_56 = arith.constant 0 : index
    %86 = vector.load %arg20[%c0_55, %c0_56] : memref<1x32xf32, #tpu.memory_space<vmem>>, vector<1x32xf32>
    %87 = vector.broadcast %86 : vector<1x32xf32> to vector<8x32xf32>
    %88 = arith.addf %85, %87 : vector<8x32xf32>
    %89 = vector.shape_cast %76 : vector<1x32xf32> to vector<1x4x8xf32>
    %90 = tpu.transpose %89, [1, 0, 2] : vector<1x4x8xf32> -> vector<4x1x8xf32>
    %91 = arith.truncf %90 : vector<4x1x8xf32> to vector<4x1x8xbf16>
    %92 = vector.shape_cast %82 : vector<8x32xf32> to vector<8x4x8xf32>
    %93 = tpu.transpose %92, [1, 0, 2] : vector<8x4x8xf32> -> vector<4x8x8xf32>
    %94 = arith.truncf %93 : vector<4x8x8xf32> to vector<4x8x8xbf16>
    %95 = vector.shape_cast %88 : vector<8x32xf32> to vector<8x4x8xf32>
    %96 = tpu.transpose %95, [1, 0, 2] : vector<8x4x8xf32> -> vector<4x8x8xf32>
    %97 = arith.truncf %96 : vector<4x8x8xf32> to vector<4x8x8xbf16>
    %cst_57 = arith.constant dense<0.000000e+00> : vector<4x1x8xf32>
    %98 = tpu.matmul %91, %94, %cst_57 {dimension_numbers = #tpu.dot_dimension_numbers<[2], [2], [1], [1], [0, 0, 0, 1, 1, 1], [0], [0]>} : vector<4x1x8xbf16>, vector<4x8x8xbf16>, vector<4x1x8xf32> -> vector<4x1x8xf32>
    %cst_58 = arith.constant dense<0xFF800000> : vector<4x1xf32>
    %99 = vector.multi_reduction <maximumf>, %98, %cst_58 [2] : vector<4x1x8xf32> to vector<4x1xf32>
    %100 = vector.shape_cast %99 : vector<4x1xf32> to vector<4x1x1xf32>
    %101 = vector.broadcast %100 : vector<4x1x1xf32> to vector<4x1x8xf32>
    %102 = arith.subf %98, %101 : vector<4x1x8xf32>
    %103 = math.exp %102 : vector<4x1x8xf32>
    %cst_59 = arith.constant dense<0.000000e+00> : vector<4x1xf32>
    %104 = vector.multi_reduction <add>, %103, %cst_59 [2] : vector<4x1x8xf32> to vector<4x1xf32>
    %105 = vector.shape_cast %104 : vector<4x1xf32> to vector<4x1x1xf32>
    %106 = tpu.reciprocal %105 {approx = true} : vector<4x1x1xf32> -> vector<4x1x1xf32>
    %107 = vector.broadcast %106 : vector<4x1x1xf32> to vector<4x1x8xf32>
    %108 = arith.mulf %103, %107 : vector<4x1x8xf32>
    %109 = arith.truncf %108 : vector<4x1x8xf32> to vector<4x1x8xbf16>
    %cst_60 = arith.constant dense<0.000000e+00> : vector<4x1x8xf32>
    %110 = tpu.matmul %109, %97, %cst_60 {dimension_numbers = #tpu.dot_dimension_numbers<[2], [1], [1], [2], [0, 0, 0, 1, 1, 2], [0], [0]>} : vector<4x1x8xbf16>, vector<4x8x8xbf16>, vector<4x1x8xf32> -> vector<4x1x8xf32>
    %111 = tpu.transpose %110, [1, 0, 2] : vector<4x1x8xf32> -> vector<1x4x8xf32>
    %112 = vector.shape_cast %111 : vector<1x4x8xf32> to vector<1x32xf32>
    %113 = arith.truncf %112 : vector<1x32xf32> to vector<1x32xbf16>
    %c0_61 = arith.constant 0 : index
    %c0_62 = arith.constant 0 : index
    %114 = vector.load %arg21[%c0_61, %c0_62] : memref<32x32xbf16, #tpu.memory_space<vmem>>, vector<32x32xbf16>
    %cst_63 = arith.constant dense<0.000000e+00> : vector<1x32xf32>
    %115 = tpu.matmul %113, %114, %cst_63 {dimension_numbers = #tpu.dot_dimension_numbers<[1], [0], [0], [1], [0, 0, 1, 1], [], []>} : vector<1x32xbf16>, vector<32x32xbf16>, vector<1x32xf32> -> vector<1x32xf32>
    %c0_64 = arith.constant 0 : index
    %c0_65 = arith.constant 0 : index
    %116 = vector.load %arg22[%c0_64, %c0_65] : memref<1x32xf32, #tpu.memory_space<vmem>>, vector<1x32xf32>
    %117 = arith.addf %115, %116 : vector<1x32xf32>
    %cst_66 = arith.constant dense<0.000000e+00> : vector<1x8xf32>
    %118 = tpu.matmul %117, %12, %cst_66 {dimension_numbers = #tpu.dot_dimension_numbers<[1], [1], [0], [0], [0, 0, 1, 0], [], []>} : vector<1x32xf32>, vector<8x32xf32>, vector<1x8xf32> -> vector<1x8xf32>
    %cst_67 = arith.constant 0.176776692 : f32
    %119 = vector.broadcast %cst_67 : f32 to vector<1x8xf32>
    %120 = arith.mulf %118, %119 : vector<1x8xf32>
    %121 = math.tanh %120 : vector<1x8xf32>
    %cst_68 = arith.constant 1.000000e+01 : f32
    %122 = vector.broadcast %cst_68 : f32 to vector<1x8xf32>
    %123 = arith.mulf %122, %121 : vector<1x8xf32>
    %cst_69 = arith.constant 5.000000e-01 : f32
    %124 = vector.broadcast %cst_69 : f32 to vector<1x8xf32>
    %125 = arith.cmpf ogt, %5, %124 : vector<1x8xf32>
    %cst_70 = arith.constant -1.000000e+30 : f32
    %126 = vector.broadcast %cst_70 : f32 to vector<1x8xf32>
    %127 = arith.select %125, %126, %123 : vector<1x8xi1>, vector<1x8xf32>
    %cst_71 = arith.constant dense<0xFF800000> : vector<1xf32>
    %128 = vector.multi_reduction <maximumf>, %127, %cst_71 [1] : vector<1x8xf32> to vector<1xf32>
    %129 = vector.shape_cast %128 : vector<1xf32> to vector<1x1xf32>
    %130 = vector.broadcast %129 : vector<1x1xf32> to vector<1x8xf32>
    %131 = arith.subf %127, %130 : vector<1x8xf32>
    %132 = math.exp %131 : vector<1x8xf32>
    %cst_72 = arith.constant dense<0.000000e+00> : vector<1xf32>
    %133 = vector.multi_reduction <add>, %132, %cst_72 [1] : vector<1x8xf32> to vector<1xf32>
    %134 = vector.shape_cast %133 : vector<1xf32> to vector<1x1xf32>
    %135 = vector.broadcast %134 : vector<1x1xf32> to vector<1x8xf32>
    %136 = arith.divf %132, %135 : vector<1x8xf32>
    %c0_73 = arith.constant 0 : index
    %c0_74 = arith.constant 0 : index
    %c0_75 = arith.constant 0 : index
    %137 = vector.load %arg23[%c0_73, %c0_74, %c0_75] : memref<1x1x8xf32, #tpu.memory_space<vmem>>, vector<1x1x8xf32>
    %138 = vector.shape_cast %137 : vector<1x1x8xf32> to vector<1x8xf32>
    %139 = vector.shape_cast %136 : vector<1x8xf32> to vector<1x1x8xf32>
    tpu.vector_store %arg23[%c0_73, %c0_74, %c0_75], %139 {strides = array<i32>} : memref<1x1x8xf32, #tpu.memory_space<vmem>>, vector<1x1x8xf32>,
    return
  }
  func.func @transform_0(%arg0: i32, %arg1: memref<2x1xi32, #tpu.memory_space<smem>>) -> (i32, i32, i32) {
    %c0_i32 = arith.constant 0 : i32
    %c0_i32_0 = arith.constant 0 : i32
    %c0_i32_1 = arith.constant 0 : i32
    return %arg0, %c0_i32, %c0_i32_0 : i32, i32, i32
  }
  func.func @transform_1(%arg0: i32, %arg1: memref<2x1xi32, #tpu.memory_space<smem>>) -> (i32, i32, i32) {
    %c0_i32 = arith.constant 0 : i32
    %c0_i32_0 = arith.constant 0 : i32
    %c0_i32_1 = arith.constant 0 : i32
    return %arg0, %c0_i32, %c0_i32_0 : i32, i32, i32
  }
  func.func @transform_2(%arg0: i32, %arg1: memref<2x1xi32, #tpu.memory_space<smem>>) -> (i32, i32, i32) {
    %c0_i32 = arith.constant 0 : i32
    %c0_i32_0 = arith.constant 0 : i32
    %c0_i32_1 = arith.constant 0 : i32
    return %arg0, %c0_i32, %c0_i32_0 : i32, i32, i32
  }
  func.func @transform_3(%arg0: i32, %arg1: memref<2x1xi32, #tpu.memory_space<smem>>) -> (i32, i32) {
    %c0_i32 = arith.constant 0 : i32
    %c0_i32_0 = arith.constant 0 : i32
    %c0_i32_1 = arith.constant 0 : i32
    return %c0_i32, %c0_i32_0 : i32, i32
  }
  func.func @transform_4(%arg0: i32, %arg1: memref<2x1xi32, #tpu.memory_space<smem>>) -> (i32, i32) {
    %c0_i32 = arith.constant 0 : i32
    %c0_i32_0 = arith.constant 0 : i32
    %c0_i32_1 = arith.constant 0 : i32
    return %c0_i32, %c0_i32_0 : i32, i32
  }
  func.func @transform_5(%arg0: i32, %arg1: memref<2x1xi32, #tpu.memory_space<smem>>) -> (i32, i32) {
    %c0_i32 = arith.constant 0 : i32
    %c0_i32_0 = arith.constant 0 : i32
    %c0_i32_1 = arith.constant 0 : i32
    return %c0_i32, %c0_i32_0 : i32, i32
  }
  func.func @transform_6(%arg0: i32, %arg1: memref<2x1xi32, #tpu.memory_space<smem>>) -> (i32, i32) {
    %c0_i32 = arith.constant 0 : i32
    %c0_i32_0 = arith.constant 0 : i32
    %c0_i32_1 = arith.constant 0 : i32
    return %c0_i32, %c0_i32_0 : i32, i32
  }
  func.func @transform_7(%arg0: i32, %arg1: memref<2x1xi32, #tpu.memory_space<smem>>) -> (i32, i32) {
    %c0_i32 = arith.constant 0 : i32
    %c0_i32_0 = arith.constant 0 : i32
    %c0_i32_1 = arith.constant 0 : i32
    return %c0_i32, %c0_i32_0 : i32, i32
  }
  func.func @transform_8(%arg0: i32, %arg1: memref<2x1xi32, #tpu.memory_space<smem>>) -> (i32, i32) {
    %c0_i32 = arith.constant 0 : i32
    %c0_i32_0 = arith.constant 0 : i32
    %c0_i32_1 = arith.constant 0 : i32
    return %c0_i32, %c0_i32_0 : i32, i32
  }
  func.func @transform_9(%arg0: i32, %arg1: memref<2x1xi32, #tpu.memory_space<smem>>) -> (i32, i32) {
    %c0_i32 = arith.constant 0 : i32
    %c0_i32_0 = arith.constant 0 : i32
    %c0_i32_1 = arith.constant 0 : i32
    return %c0_i32, %c0_i32_0 : i32, i32
  }
  func.func @transform_10(%arg0: i32, %arg1: memref<2x1xi32, #tpu.memory_space<smem>>) -> (i32, i32) {
    %c0_i32 = arith.constant 0 : i32
    %c0_i32_0 = arith.constant 0 : i32
    %c0_i32_1 = arith.constant 0 : i32
    return %c0_i32, %c0_i32_0 : i32, i32
  }
  func.func @transform_11(%arg0: i32, %arg1: memref<2x1xi32, #tpu.memory_space<smem>>) -> (i32, i32) {
    %c0_i32 = arith.constant 0 : i32
    %c0_i32_0 = arith.constant 0 : i32
    %c0_i32_1 = arith.constant 0 : i32
    return %c0_i32, %c0_i32_0 : i32, i32
  }
  func.func @transform_12(%arg0: i32, %arg1: memref<2x1xi32, #tpu.memory_space<smem>>) -> (i32, i32) {
    %c0_i32 = arith.constant 0 : i32
    %c0_i32_0 = arith.constant 0 : i32
    %c0_i32_1 = arith.constant 0 : i32
    return %c0_i32, %c0_i32_0 : i32, i32
  }
  func.func @transform_13(%arg0: i32, %arg1: memref<2x1xi32, #tpu.memory_space<smem>>) -> (i32, i32) {
    %c0_i32 = arith.constant 0 : i32
    %c0_i32_0 = arith.constant 0 : i32
    %c0_i32_1 = arith.constant 0 : i32
    return %c0_i32, %c0_i32_0 : i32, i32
  }
  func.func @transform_14(%arg0: i32, %arg1: memref<2x1xi32, #tpu.memory_space<smem>>) -> (i32, i32) {
    %c0_i32 = arith.constant 0 : i32
    %c0_i32_0 = arith.constant 0 : i32
    %c0_i32_1 = arith.constant 0 : i32
    return %c0_i32, %c0_i32_0 : i32, i32
  }
  func.func @transform_15(%arg0: i32, %arg1: memref<2x1xi32, #tpu.memory_space<smem>>) -> (i32, i32) {
    %c0_i32 = arith.constant 0 : i32
    %c0_i32_0 = arith.constant 0 : i32
    %c0_i32_1 = arith.constant 0 : i32
    return %c0_i32, %c0_i32_0 : i32, i32
  }
  func.func @transform_16(%arg0: i32, %arg1: memref<2x1xi32, #tpu.memory_space<smem>>) -> (i32, i32) {
    %c0_i32 = arith.constant 0 : i32
    %c0_i32_0 = arith.constant 0 : i32
    %c0_i32_1 = arith.constant 0 : i32
    return %c0_i32, %c0_i32_0 : i32, i32
  }
  func.func @transform_17(%arg0: i32, %arg1: memref<2x1xi32, #tpu.memory_space<smem>>) -> (i32, i32) {
    %c0_i32 = arith.constant 0 : i32
    %c0_i32_0 = arith.constant 0 : i32
    %c0_i32_1 = arith.constant 0 : i32
    return %c0_i32, %c0_i32_0 : i32, i32
  }
  func.func @transform_18(%arg0: i32, %arg1: memref<2x1xi32, #tpu.memory_space<smem>>) -> (i32, i32) {
    %c0_i32 = arith.constant 0 : i32
    %c0_i32_0 = arith.constant 0 : i32
    %c0_i32_1 = arith.constant 0 : i32
    return %c0_i32, %c0_i32_0 : i32, i32
  }
  func.func @transform_19(%arg0: i32, %arg1: memref<2x1xi32, #tpu.memory_space<smem>>) -> (i32, i32) {
    %c0_i32 = arith.constant 0 : i32
    %c0_i32_0 = arith.constant 0 : i32
    %c0_i32_1 = arith.constant 0 : i32
    return %c0_i32, %c0_i32_0 : i32, i32
  }
  func.func @transform_20(%arg0: i32, %arg1: memref<2x1xi32, #tpu.memory_space<smem>>) -> (i32, i32) {
    %c0_i32 = arith.constant 0 : i32
    %c0_i32_0 = arith.constant 0 : i32
    %c0_i32_1 = arith.constant 0 : i32
    return %c0_i32, %c0_i32_0 : i32, i32
  }
  func.func @transform_21(%arg0: i32, %arg1: memref<2x1xi32, #tpu.memory_space<smem>>) -> (i32, i32, i32) {
    %c0_i32 = arith.constant 0 : i32
    %c0_i32_0 = arith.constant 0 : i32
    %c0_i32_1 = arith.constant 0 : i32
    return %arg0, %c0_i32, %c0_i32_0 : i32, i32, i32
  }
}

</mosaic_0001>

<llo_original>
// kernel: graph_attention_model_forward.2
$region0: #{graph_attention_model_forward.2}
  #allocation0 [shape = 'u32[]', space=smem, size = 0x4, offset = 0x4, fixed_abs, tag = 'smem constant byte address 0x4 - core index']
  #allocation1 [shape = 'u32[144,128]{1,0:T(1,128)}', space=vmem, size = 0x12000, scoped, tag = 'internal scratch']
  #allocation2 [shape = 'f32[8,32]{1,0:T(8,128)}', space=vmem, size = 0x1000, scoped, tag = 'scratch operand']
  #allocation3 [shape = 's32[1]{0}', space=sflag, size = 0x4, scoped, tag = 'scoped memory for graph_attention_model_forward.2']
  #allocation4 [shape = 'u8[1024]{0}', space=smem, size = 0x400, scoped, tag = 'prefetched SMEM operand 0']
  %s0 = inlined_call_operand.vmem [shape: f32[2,8], index: 0, kind: input, shape index: {}]
  %s1 = inlined_call_operand.vmem [shape: f32[2,8,4], index: 1, kind: input, shape index: {}]
  %s2 = inlined_call_operand.vmem [shape: f32[2,8,8], index: 2, kind: input, shape index: {}]
  %s3 = inlined_call_operand.hbm [shape: bf16[4,32], index: 3, kind: input, shape index: {}]
  %s4 = inlined_call_operand.vmem [shape: f32[1,32], index: 4, kind: input, shape index: {}]
  %s5 = inlined_call_operand.hbm [shape: bf16[4,32], index: 5, kind: input, shape index: {}]
  %s6 = inlined_call_operand.vmem [shape: f32[1,32], index: 6, kind: input, shape index: {}]
  %s7 = inlined_call_operand.vmem [shape: bf16[2,32,32], index: 7, kind: input, shape index: {}]
  %s8 = inlined_call_operand.hbm [shape: f32[2,1,32], index: 8, kind: input, shape index: {}]
  %s9 = inlined_call_operand.vmem [shape: bf16[2,32,32], index: 9, kind: input, shape index: {}]
  %s10 = inlined_call_operand.vmem [shape: f32[2,1,32], index: 10, kind: input, shape index: {}]
  %s11 = inlined_call_operand.vmem [shape: bf16[2,32,32], index: 11, kind: input, shape index: {}]
  %s12 = inlined_call_operand.hbm [shape: f32[2,1,32], index: 12, kind: input, shape index: {}]
  %s13 = inlined_call_operand.hbm [shape: bf16[2,32,32], index: 13, kind: input, shape index: {}]
  %s14 = inlined_call_operand.hbm [shape: f32[2,1,32], index: 14, kind: input, shape index: {}]
  %s15 = inlined_call_operand.vmem [shape: bf16[2,32,32], index: 15, kind: input, shape index: {}]
  %s16 = inlined_call_operand.vmem [shape: f32[2,1,32], index: 16, kind: input, shape index: {}]
  %s17 = inlined_call_operand.hbm [shape: bf16[2,32,32], index: 17, kind: input, shape index: {}]
  %s18 = inlined_call_operand.vmem [shape: f32[2,1,32], index: 18, kind: input, shape index: {}]
  %s19 = inlined_call_operand.hbm [shape: f32[2,1,32], index: 19, kind: input, shape index: {}]
  %s20 = inlined_call_operand.vmem [shape: f32[2,1,32], index: 20, kind: input, shape index: {}]
  %s21 = inlined_call_operand.hbm [shape: f32[2,1,32], index: 21, kind: input, shape index: {}]
  %s22 = inlined_call_operand.hbm [shape: f32[2,1,32], index: 22, kind: input, shape index: {}]
  %s23 = inlined_call_operand.vmem [shape: f32[2,8,32], index: 23, kind: output, shape index: {}]
  %s24 = sld [smem:[#allocation0]]
  $region169: #{graph_attention_model_forward.2} parent=0
    _
  %s26 = ssub.s32 1, %s24
  %s27 = scalar_select 0, %s26, %s24
  %s28 = sshll.u32 %s0, 4
  %s29 = int_to_ptr.vmem [resolvable:$true] %s28
  %31 = dma.vmem_to_smem %s29, 32, [#allocation4], [#allocation3]
  %32 = dma.done [#allocation3], 32
  %33 = sfence
  $region1: #{graph_attention_model_forward.2} parent=0
    #allocation5 [shape = 'u8[1024]{0}', space=vmem, size = 0x400, scoped, tag = 'input window, operand 3, single buffered']
    #allocation6 [shape = 's32[2]{0}', space=sflag, size = 0x8, scoped, tag = 'scoped memory for graph_attention_model_forward.2']
    #allocation7 [shape = 'u8[1024]{0}', space=vmem, size = 0x400, scoped, tag = 'input window, operand 5, single buffered']
    #allocation8 [shape = 's32[1]{0}', space=sflag, size = 0x4, scoped, tag = 'scoped memory for graph_attention_model_forward.2']
    #allocation9 [shape = 'u8[1024]{0}', space=vmem, size = 0x400, scoped, tag = 'input window, operand 8']
    #allocation10 [shape = 'u8[1024]{0}', space=vmem, size = 0x400, scoped, tag = 'input window, operand 12']
    #allocation11 [shape = 'u8[16384]{0}', space=vmem, size = 0x4000, scoped, tag = 'input window, operand 13']
    #allocation12 [shape = 'u8[1024]{0}', space=vmem, size = 0x400, scoped, tag = 'input window, operand 14']
    #allocation13 [shape = 'u8[16384]{0}', space=vmem, size = 0x4000, scoped, tag = 'input window, operand 17']
    #allocation14 [shape = 'u8[1024]{0}', space=vmem, size = 0x400, scoped, tag = 'input window, operand 19']
    #allocation15 [shape = 'u8[1024]{0}', space=vmem, size = 0x400, scoped, tag = 'input window, operand 21']
    #allocation16 [shape = 'u8[1024]{0}', space=vmem, size = 0x400, scoped, tag = 'input window, operand 22']
    %34 = vsyncpa [#allocation6], 0
    %35 = vsyncpa [#allocation8], 0
    loop: start=0, step=1, limit=6
    $region2: #{graph_attention_model_forward.2} parent=1 // loop_pre_header
      _
    $region3: #{graph_attention_model_forward.2} parent=1 // loop_header
      %s37 = sphi 0, %s41
      %p38 = scmp.ge.s32.totalorder %s37, 6
      %s44 = sphi 0, %s56
      %s45 = sphi 0, %s52
      %s46 = sphi 0, %s44
      %s47 = sphi 0, %s45
      %s48 = sphi 0, %s46
      %s49 = sphi 0, %s47
      %s59 = sphi 0, %s61
      %s62 = sphi 0, %s59
      %s63 = sphi 0, %s62
      %s79 = sphi 0, %s63
      %s85 = sphi 0, %s87
      %s88 = sphi 0, %s85
      %s89 = sphi 0, %s88
      %s105 = sphi 0, %s89
      %s109 = sphi 0, %s109
      %s111 = sphi 0, %s109
      %s112 = sphi 0, %s111
      %s126 = sphi 0, %s112
      %s130 = sphi 0, %s130
      %s132 = sphi 0, %s130
      %s133 = sphi 0, %s132
      %s147 = sphi 0, %s133
      %s151 = sphi 0, %s151
      %s153 = sphi 0, %s151
      %s154 = sphi 0, %s153
      %s168 = sphi 0, %s154
      %s172 = sphi 0, %s172
      %s174 = sphi 0, %s172
      %s175 = sphi 0, %s174
      %s189 = sphi 0, %s175
      %s195 = sphi 0, %s197
      %s198 = sphi 0, %s195
      %s199 = sphi 0, %s198
      %s215 = sphi 0, %s199
      %s221 = sphi 0, %s223
      %s224 = sphi 0, %s221
      %s225 = sphi 0, %s224
      %s241 = sphi 0, %s225
      %s247 = sphi 0, %s249
      %s250 = sphi 0, %s247
      %s251 = sphi 0, %s250
      %s267 = sphi 0, %s251
      %s273 = sphi 0, %s275
      %s276 = sphi 0, %s273
      %s277 = sphi 0, %s276
      %s293 = sphi 0, %s277
      %s299 = sphi 0, %s301
      %s302 = sphi 0, %s299
      %s303 = sphi 0, %s302
      %s319 = sphi 0, %s303
      %s325 = sphi 0, %s327
      %s328 = sphi 0, %s325
      %s329 = sphi 0, %s328
      %s345 = sphi 0, %s329
      %s351 = sphi 0, %s353
      %s354 = sphi 0, %s351
      %s355 = sphi 0, %s354
      %s371 = sphi 0, %s355
      %s377 = sphi 0, %s379
      %s380 = sphi 0, %s377
      %s381 = sphi 0, %s380
      %s397 = sphi 0, %s381
      %s403 = sphi 0, %s405
      %s406 = sphi 0, %s403
      %s407 = sphi 0, %s406
      %s423 = sphi 0, %s407
      %s429 = sphi 0, %s431
      %s432 = sphi 0, %s429
      %s433 = sphi 0, %s432
      %s449 = sphi 0, %s433
      %s455 = sphi 0, %s457
      %s458 = sphi 0, %s455
      %s459 = sphi 0, %s458
      %s475 = sphi 0, %s459
      %s481 = sphi 0, %s483
      %s484 = sphi 0, %s481
      %s485 = sphi 0, %s484
      %s501 = sphi 0, %s485
      %s507 = sphi 0, %s509
      %s510 = sphi 0, %s507
      %s511 = sphi 0, %s510
      %s527 = sphi 0, %s511
      %s533 = sphi 0, %s535
      %s536 = sphi 0, %s533
      %s537 = sphi 0, %s536
      %s553 = sphi 0, %s537
      %s559 = sphi 0, %s561
      %s562 = sphi 0, %s559
      %s563 = sphi 0, %s562
      %s579 = sphi 0, %s563
      %s585 = sphi 0, %s587
      %s588 = sphi 0, %s585
      %s589 = sphi 0, %s588
      %s605 = sphi 0, %s589
      %s611 = sphi 0, %s613
      %s614 = sphi 0, %s611
      %s615 = sphi 0, %s614
      %s631 = sphi 0, %s615
    $region4: #{graph_attention_model_forward.2} parent=1 // loop_header_branch
      %40 = sbr.rel (%p38) target = $region8
    $region5: #{graph_attention_model_forward.2} parent=1 // loop_body
      %s42 = ssub.s32 %s37, 1
      %s43 = ssub.s32 %s37, 2
      %s50 = sadd.s32 1, %s45
      %p51 = scmp.ge.s32.totalorder %s50, 2
      %s52 = scalar_select %p51, 0, %s50
      %s53 = sadd.s32 1, %s44
      %s54 = scalar_select %p51, %s53, %s44
      %p55 = scmp.ge.s32.totalorder %s54, 2
      %s56 = scalar_select %p55, 0, %s54
      %s57 = ssub.s32 %s44, %s56
      %p58 = scmp.eq.s32.totalorder %s57, 0
      %s60 = sadd.s32 %s59, 1
      %s61 = scalar_select %p58, %s59, %s60
      %p64 = pneg %p58
      %p65 = scmp.eq.s32.totalorder %s37, 3
      %p66 = por %p64, %p65
      %p67 = scmp.ne.s32.totalorder %s59, %s62
      %p68 = scmp.eq.s32.totalorder %s37, 0
      %p69 = por %p67, %p68
      %p70 = scmp.ne.s32.totalorder %s59, %s62
      %p71 = scmp.eq.s32.totalorder %s42, 3
      %p72 = por %p70, %p71
      %p73 = scmp.ne.s32.totalorder %s62, %s63
      %p74 = scmp.eq.s32.totalorder %s42, 0
      %p75 = por %p73, %p74
      %p76 = scmp.ne.s32.totalorder %s62, %s63
      %p77 = scmp.eq.s32.totalorder %s43, 3
      %p78 = por %p76, %p77
      %p80 = scmp.ne.s32.totalorder %s63, %s79
      %p81 = scmp.eq.s32.totalorder %s43, 0
      %p82 = por %p80, %p81
      %s83 = ssub.s32 %s44, %s56
      %p84 = scmp.eq.s32.totalorder %s83, 0
      %s86 = sadd.s32 %s85, 1
      %s87 = scalar_select %p84, %s85, %s86
      %p90 = pneg %p84
      %p91 = scmp.eq.s32.totalorder %s37, 3
      %p92 = por %p90, %p91
      %p93 = scmp.ne.s32.totalorder %s85, %s88
      %p94 = scmp.eq.s32.totalorder %s37, 0
      %p95 = por %p93, %p94
      %p96 = scmp.ne.s32.totalorder %s85, %s88
      %p97 = scmp.eq.s32.totalorder %s42, 3
      %p98 = por %p96, %p97
      %p99 = scmp.ne.s32.totalorder %s88, %s89
      %p100 = scmp.eq.s32.totalorder %s42, 0
      %p101 = por %p99, %p100
      %p102 = scmp.ne.s32.totalorder %s88, %s89
      %p103 = scmp.eq.s32.totalorder %s43, 3
      %p104 = por %p102, %p103
      %p106 = scmp.ne.s32.totalorder %s89, %s105
      %p107 = scmp.eq.s32.totalorder %s43, 0
      %p108 = por %p106, %p107
      %s110 = sadd.s32 %s109, 1
      %p113 = scmp.eq.s32.totalorder %s37, 3
      %p114 = scmp.ne.s32.totalorder %s109, %s111
      %p115 = scmp.eq.s32.totalorder %s37, 0
      %p116 = por %p114, %p115
      %p117 = scmp.ne.s32.totalorder %s109, %s111
      %p118 = scmp.eq.s32.totalorder %s42, 3
      %p119 = por %p117, %p118
      %p120 = scmp.ne.s32.totalorder %s111, %s112
      %p121 = scmp.eq.s32.totalorder %s42, 0
      %p122 = por %p120, %p121
      %p123 = scmp.ne.s32.totalorder %s111, %s112
      %p124 = scmp.eq.s32.totalorder %s43, 3
      %p125 = por %p123, %p124
      %p127 = scmp.ne.s32.totalorder %s112, %s126
      %p128 = scmp.eq.s32.totalorder %s43, 0
      %p129 = por %p127, %p128
      %s131 = sadd.s32 %s130, 1
      %p134 = scmp.eq.s32.totalorder %s37, 3
      %p135 = scmp.ne.s32.totalorder %s130, %s132
      %p136 = scmp.eq.s32.totalorder %s37, 0
      %p137 = por %p135, %p136
      %p138 = scmp.ne.s32.totalorder %s130, %s132
      %p139 = scmp.eq.s32.totalorder %s42, 3
      %p140 = por %p138, %p139
      %p141 = scmp.ne.s32.totalorder %s132, %s133
      %p142 = scmp.eq.s32.totalorder %s42, 0
      %p143 = por %p141, %p142
      %p144 = scmp.ne.s32.totalorder %s132, %s133
      %p145 = scmp.eq.s32.totalorder %s43, 3
      %p146 = por %p144, %p145
      %p148 = scmp.ne.s32.totalorder %s133, %s147
      %p149 = scmp.eq.s32.totalorder %s43, 0
      %p150 = por %p148, %p149
      %s152 = sadd.s32 %s151, 1
      %p155 = scmp.eq.s32.totalorder %s37, 3
      %p156 = scmp.ne.s32.totalorder %s151, %s153
      %p157 = scmp.eq.s32.totalorder %s37, 0
      %p158 = por %p156, %p157
      %p159 = scmp.ne.s32.totalorder %s151, %s153
      %p160 = scmp.eq.s32.totalorder %s42, 3
      %p161 = por %p159, %p160
      %p162 = scmp.ne.s32.totalorder %s153, %s154
      %p163 = scmp.eq.s32.totalorder %s42, 0
      %p164 = por %p162, %p163
      %p165 = scmp.ne.s32.totalorder %s153, %s154
      %p166 = scmp.eq.s32.totalorder %s43, 3
      %p167 = por %p165, %p166
      %p169 = scmp.ne.s32.totalorder %s154, %s168
      %p170 = scmp.eq.s32.totalorder %s43, 0
      %p171 = por %p169, %p170
      %s173 = sadd.s32 %s172, 1
      %p176 = scmp.eq.s32.totalorder %s37, 3
      %p177 = scmp.ne.s32.totalorder %s172, %s174
      %p178 = scmp.eq.s32.totalorder %s37, 0
      %p179 = por %p177, %p178
      %p180 = scmp.ne.s32.totalorder %s172, %s174
      %p181 = scmp.eq.s32.totalorder %s42, 3
      %p182 = por %p180, %p181
      %p183 = scmp.ne.s32.totalorder %s174, %s175
      %p184 = scmp.eq.s32.totalorder %s42, 0
      %p185 = por %p183, %p184
      %p186 = scmp.ne.s32.totalorder %s174, %s175
      %p187 = scmp.eq.s32.totalorder %s43, 3
      %p188 = por %p186, %p187
      %p190 = scmp.ne.s32.totalorder %s175, %s189
      %p191 = scmp.eq.s32.totalorder %s43, 0
      %p192 = por %p190, %p191
      %s193 = ssub.s32 %s45, %s52
      %p194 = scmp.eq.s32.totalorder %s193, 0
      %s196 = sadd.s32 %s195, 1
      %s197 = scalar_select %p194, %s195, %s196
      %p200 = pneg %p194
      %p201 = scmp.eq.s32.totalorder %s37, 3
      %p202 = por %p200, %p201
      %p203 = scmp.ne.s32.totalorder %s195, %s198
      %p204 = scmp.eq.s32.totalorder %s37, 0
      %p205 = por %p203, %p204
      %p206 = scmp.ne.s32.totalorder %s195, %s198
      %p207 = scmp.eq.s32.totalorder %s42, 3
      %p208 = por %p206, %p207
      %p209 = scmp.ne.s32.totalorder %s198, %s199
      %p210 = scmp.eq.s32.totalorder %s42, 0
      %p211 = por %p209, %p210
      %p212 = scmp.ne.s32.totalorder %s198, %s199
      %p213 = scmp.eq.s32.totalorder %s43, 3
      %p214 = por %p212, %p213
      %p216 = scmp.ne.s32.totalorder %s199, %s215
      %p217 = scmp.eq.s32.totalorder %s43, 0
      %p218 = por %p216, %p217
      %s219 = ssub.s32 %s45, %s52
      %p220 = scmp.eq.s32.totalorder %s219, 0
      %s222 = sadd.s32 %s221, 1
      %s223 = scalar_select %p220, %s221, %s222
      %p226 = pneg %p220
      %p227 = scmp.eq.s32.totalorder %s37, 3
      %p228 = por %p226, %p227
      %p229 = scmp.ne.s32.totalorder %s221, %s224
      %p230 = scmp.eq.s32.totalorder %s37, 0
      %p231 = por %p229, %p230
      %p232 = scmp.ne.s32.totalorder %s221, %s224
      %p233 = scmp.eq.s32.totalorder %s42, 3
      %p234 = por %p232, %p233
      %p235 = scmp.ne.s32.totalorder %s224, %s225
      %p236 = scmp.eq.s32.totalorder %s42, 0
      %p237 = por %p235, %p236
      %p238 = scmp.ne.s32.totalorder %s224, %s225
      %p239 = scmp.eq.s32.totalorder %s43, 3
      %p240 = por %p238, %p239
      %p242 = scmp.ne.s32.totalorder %s225, %s241
      %p243 = scmp.eq.s32.totalorder %s43, 0
      %p244 = por %p242, %p243
      %s245 = ssub.s32 %s45, %s52
      %p246 = scmp.eq.s32.totalorder %s245, 0
      %s248 = sadd.s32 %s247, 1
      %s249 = scalar_select %p246, %s247, %s248
      %p252 = pneg %p246
      %p253 = scmp.eq.s32.totalorder %s37, 3
      %p254 = por %p252, %p253
      %p255 = scmp.ne.s32.totalorder %s247, %s250
      %p256 = scmp.eq.s32.totalorder %s37, 0
      %p257 = por %p255, %p256
      %p258 = scmp.ne.s32.totalorder %s247, %s250
      %p259 = scmp.eq.s32.totalorder %s42, 3
      %p260 = por %p258, %p259
      %p261 = scmp.ne.s32.totalorder %s250, %s251
      %p262 = scmp.eq.s32.totalorder %s42, 0
      %p263 = por %p261, %p262
      %p264 = scmp.ne.s32.totalorder %s250, %s251
      %p265 = scmp.eq.s32.totalorder %s43, 3
      %p266 = por %p264, %p265
      %p268 = scmp.ne.s32.totalorder %s251, %s267
      %p269 = scmp.eq.s32.totalorder %s43, 0
      %p270 = por %p268, %p269
      %s271 = ssub.s32 %s45, %s52
      %p272 = scmp.eq.s32.totalorder %s271, 0
      %s274 = sadd.s32 %s273, 1
      %s275 = scalar_select %p272, %s273, %s274
      %p278 = pneg %p272
      %p279 = scmp.eq.s32.totalorder %s37, 3
      %p280 = por %p278, %p279
      %p281 = scmp.ne.s32.totalorder %s273, %s276
      %p282 = scmp.eq.s32.totalorder %s37, 0
      %p283 = por %p281, %p282
      %p284 = scmp.ne.s32.totalorder %s273, %s276
      %p285 = scmp.eq.s32.totalorder %s42, 3
      %p286 = por %p284, %p285
      %p287 = scmp.ne.s32.totalorder %s276, %s277
      %p288 = scmp.eq.s32.totalorder %s42, 0
      %p289 = por %p287, %p288
      %p290 = scmp.ne.s32.totalorder %s276, %s277
      %p291 = scmp.eq.s32.totalorder %s43, 3
      %p292 = por %p290, %p291
      %p294 = scmp.ne.s32.totalorder %s277, %s293
      %p295 = scmp.eq.s32.totalorder %s43, 0
      %p296 = por %p294, %p295
      %s297 = ssub.s32 %s45, %s52
      %p298 = scmp.eq.s32.totalorder %s297, 0
      %s300 = sadd.s32 %s299, 1
      %s301 = scalar_select %p298, %s299, %s300
      %p304 = pneg %p298
      %p305 = scmp.eq.s32.totalorder %s37, 3
      %p306 = por %p304, %p305
      %p307 = scmp.ne.s32.totalorder %s299, %s302
      %p308 = scmp.eq.s32.totalorder %s37, 0
      %p309 = por %p307, %p308
      %p310 = scmp.ne.s32.totalorder %s299, %s302
      %p311 = scmp.eq.s32.totalorder %s42, 3
      %p312 = por %p310, %p311
      %p313 = scmp.ne.s32.totalorder %s302, %s303
      %p314 = scmp.eq.s32.totalorder %s42, 0
      %p315 = por %p313, %p314
      %p316 = scmp.ne.s32.totalorder %s302, %s303
      %p317 = scmp.eq.s32.totalorder %s43, 3
      %p318 = por %p316, %p317
      %p320 = scmp.ne.s32.totalorder %s303, %s319
      %p321 = scmp.eq.s32.totalorder %s43, 0
      %p322 = por %p320, %p321
      %s323 = ssub.s32 %s45, %s52
      %p324 = scmp.eq.s32.totalorder %s323, 0
      %s326 = sadd.s32 %s325, 1
      %s327 = scalar_select %p324, %s325, %s326
      %p330 = pneg %p324
      %p331 = scmp.eq.s32.totalorder %s37, 3
      %p332 = por %p330, %p331
      %p333 = scmp.ne.s32.totalorder %s325, %s328
      %p334 = scmp.eq.s32.totalorder %s37, 0
      %p335 = por %p333, %p334
      %p336 = scmp.ne.s32.totalorder %s325, %s328
      %p337 = scmp.eq.s32.totalorder %s42, 3
      %p338 = por %p336, %p337
      %p339 = scmp.ne.s32.totalorder %s328, %s329
      %p340 = scmp.eq.s32.totalorder %s42, 0
      %p341 = por %p339, %p340
      %p342 = scmp.ne.s32.totalorder %s328, %s329
      %p343 = scmp.eq.s32.totalorder %s43, 3
      %p344 = por %p342, %p343
      %p346 = scmp.ne.s32.totalorder %s329, %s345
      %p347 = scmp.eq.s32.totalorder %s43, 0
      %p348 = por %p346, %p347
      %s349 = ssub.s32 %s45, %s52
      %p350 = scmp.eq.s32.totalorder %s349, 0
      %s352 = sadd.s32 %s351, 1
      %s353 = scalar_select %p350, %s351, %s352
      %p356 = pneg %p350
      %p357 = scmp.eq.s32.totalorder %s37, 3
      %p358 = por %p356, %p357
      %p359 = scmp.ne.s32.totalorder %s351, %s354
      %p360 = scmp.eq.s32.totalorder %s37, 0
      %p361 = por %p359, %p360
      %p362 = scmp.ne.s32.totalorder %s351, %s354
      %p363 = scmp.eq.s32.totalorder %s42, 3
      %p364 = por %p362, %p363
      %p365 = scmp.ne.s32.totalorder %s354, %s355
      %p366 = scmp.eq.s32.totalorder %s42, 0
      %p367 = por %p365, %p366
      %p368 = scmp.ne.s32.totalorder %s354, %s355
      %p369 = scmp.eq.s32.totalorder %s43, 3
      %p370 = por %p368, %p369
      %p372 = scmp.ne.s32.totalorder %s355, %s371
      %p373 = scmp.eq.s32.totalorder %s43, 0
      %p374 = por %p372, %p373
      %s375 = ssub.s32 %s45, %s52
      %p376 = scmp.eq.s32.totalorder %s375, 0
      %s378 = sadd.s32 %s377, 1
      %s379 = scalar_select %p376, %s377, %s378
      %p382 = pneg %p376
      %p383 = scmp.eq.s32.totalorder %s37, 3
      %p384 = por %p382, %p383
      %p385 = scmp.ne.s32.totalorder %s377, %s380
      %p386 = scmp.eq.s32.totalorder %s37, 0
      %p387 = por %p385, %p386
      %p388 = scmp.ne.s32.totalorder %s377, %s380
      %p389 = scmp.eq.s32.totalorder %s42, 3
      %p390 = por %p388, %p389
      %p391 = scmp.ne.s32.totalorder %s380, %s381
      %p392 = scmp.eq.s32.totalorder %s42, 0
      %p393 = por %p391, %p392
      %p394 = scmp.ne.s32.totalorder %s380, %s381
      %p395 = scmp.eq.s32.totalorder %s43, 3
      %p396 = por %p394, %p395
      %p398 = scmp.ne.s32.totalorder %s381, %s397
      %p399 = scmp.eq.s32.totalorder %s43, 0
      %p400 = por %p398, %p399
      %s401 = ssub.s32 %s45, %s52
      %p402 = scmp.eq.s32.totalorder %s401, 0
      %s404 = sadd.s32 %s403, 1
      %s405 = scalar_select %p402, %s403, %s404
      %p408 = pneg %p402
      %p409 = scmp.eq.s32.totalorder %s37, 3
      %p410 = por %p408, %p409
      %p411 = scmp.ne.s32.totalorder %s403, %s406
      %p412 = scmp.eq.s32.totalorder %s37, 0
      %p413 = por %p411, %p412
      %p414 = scmp.ne.s32.totalorder %s403, %s406
      %p415 = scmp.eq.s32.totalorder %s42, 3
      %p416 = por %p414, %p415
      %p417 = scmp.ne.s32.totalorder %s406, %s407
      %p418 = scmp.eq.s32.totalorder %s42, 0
      %p419 = por %p417, %p418
      %p420 = scmp.ne.s32.totalorder %s406, %s407
      %p421 = scmp.eq.s32.totalorder %s43, 3
      %p422 = por %p420, %p421
      %p424 = scmp.ne.s32.totalorder %s407, %s423
      %p425 = scmp.eq.s32.totalorder %s43, 0
      %p426 = por %p424, %p425
      %s427 = ssub.s32 %s45, %s52
      %p428 = scmp.eq.s32.totalorder %s427, 0
      %s430 = sadd.s32 %s429, 1
      %s431 = scalar_select %p428, %s429, %s430
      %p434 = pneg %p428
      %p435 = scmp.eq.s32.totalorder %s37, 3
      %p436 = por %p434, %p435
      %p437 = scmp.ne.s32.totalorder %s429, %s432
      %p438 = scmp.eq.s32.totalorder %s37, 0
      %p439 = por %p437, %p438
      %p440 = scmp.ne.s32.totalorder %s429, %s432
      %p441 = scmp.eq.s32.totalorder %s42, 3
      %p442 = por %p440, %p441
      %p443 = scmp.ne.s32.totalorder %s432, %s433
      %p444 = scmp.eq.s32.totalorder %s42, 0
      %p445 = por %p443, %p444
      %p446 = scmp.ne.s32.totalorder %s432, %s433
      %p447 = scmp.eq.s32.totalorder %s43, 3
      %p448 = por %p446, %p447
      %p450 = scmp.ne.s32.totalorder %s433, %s449
      %p451 = scmp.eq.s32.totalorder %s43, 0
      %p452 = por %p450, %p451
      %s453 = ssub.s32 %s45, %s52
      %p454 = scmp.eq.s32.totalorder %s453, 0
      %s456 = sadd.s32 %s455, 1
      %s457 = scalar_select %p454, %s455, %s456
      %p460 = pneg %p454
      %p461 = scmp.eq.s32.totalorder %s37, 3
      %p462 = por %p460, %p461
      %p463 = scmp.ne.s32.totalorder %s455, %s458
      %p464 = scmp.eq.s32.totalorder %s37, 0
      %p465 = por %p463, %p464
      %p466 = scmp.ne.s32.totalorder %s455, %s458
      %p467 = scmp.eq.s32.totalorder %s42, 3
      %p468 = por %p466, %p467
      %p469 = scmp.ne.s32.totalorder %s458, %s459
      %p470 = scmp.eq.s32.totalorder %s42, 0
      %p471 = por %p469, %p470
      %p472 = scmp.ne.s32.totalorder %s458, %s459
      %p473 = scmp.eq.s32.totalorder %s43, 3
      %p474 = por %p472, %p473
      %p476 = scmp.ne.s32.totalorder %s459, %s475
      %p477 = scmp.eq.s32.totalorder %s43, 0
      %p478 = por %p476, %p477
      %s479 = ssub.s32 %s45, %s52
      %p480 = scmp.eq.s32.totalorder %s479, 0
      %s482 = sadd.s32 %s481, 1
      %s483 = scalar_select %p480, %s481, %s482
      %p486 = pneg %p480
      %p487 = scmp.eq.s32.totalorder %s37, 3
      %p488 = por %p486, %p487
      %p489 = scmp.ne.s32.totalorder %s481, %s484
      %p490 = scmp.eq.s32.totalorder %s37, 0
      %p491 = por %p489, %p490
      %p492 = scmp.ne.s32.totalorder %s481, %s484
      %p493 = scmp.eq.s32.totalorder %s42, 3
      %p494 = por %p492, %p493
      %p495 = scmp.ne.s32.totalorder %s484, %s485
      %p496 = scmp.eq.s32.totalorder %s42, 0
      %p497 = por %p495, %p496
      %p498 = scmp.ne.s32.totalorder %s484, %s485
      %p499 = scmp.eq.s32.totalorder %s43, 3
      %p500 = por %p498, %p499
      %p502 = scmp.ne.s32.totalorder %s485, %s501
      %p503 = scmp.eq.s32.totalorder %s43, 0
      %p504 = por %p502, %p503
      %s505 = ssub.s32 %s45, %s52
      %p506 = scmp.eq.s32.totalorder %s505, 0
      %s508 = sadd.s32 %s507, 1
      %s509 = scalar_select %p506, %s507, %s508
      %p512 = pneg %p506
      %p513 = scmp.eq.s32.totalorder %s37, 3
      %p514 = por %p512, %p513
      %p515 = scmp.ne.s32.totalorder %s507, %s510
      %p516 = scmp.eq.s32.totalorder %s37, 0
      %p517 = por %p515, %p516
      %p518 = scmp.ne.s32.totalorder %s507, %s510
      %p519 = scmp.eq.s32.totalorder %s42, 3
      %p520 = por %p518, %p519
      %p521 = scmp.ne.s32.totalorder %s510, %s511
      %p522 = scmp.eq.s32.totalorder %s42, 0
      %p523 = por %p521, %p522
      %p524 = scmp.ne.s32.totalorder %s510, %s511
      %p525 = scmp.eq.s32.totalorder %s43, 3
      %p526 = por %p524, %p525
      %p528 = scmp.ne.s32.totalorder %s511, %s527
      %p529 = scmp.eq.s32.totalorder %s43, 0
      %p530 = por %p528, %p529
      %s531 = ssub.s32 %s45, %s52
      %p532 = scmp.eq.s32.totalorder %s531, 0
      %s534 = sadd.s32 %s533, 1
      %s535 = scalar_select %p532, %s533, %s534
      %p538 = pneg %p532
      %p539 = scmp.eq.s32.totalorder %s37, 3
      %p540 = por %p538, %p539
      %p541 = scmp.ne.s32.totalorder %s533, %s536
      %p542 = scmp.eq.s32.totalorder %s37, 0
      %p543 = por %p541, %p542
      %p544 = scmp.ne.s32.totalorder %s533, %s536
      %p545 = scmp.eq.s32.totalorder %s42, 3
      %p546 = por %p544, %p545
      %p547 = scmp.ne.s32.totalorder %s536, %s537
      %p548 = scmp.eq.s32.totalorder %s42, 0
      %p549 = por %p547, %p548
      %p550 = scmp.ne.s32.totalorder %s536, %s537
      %p551 = scmp.eq.s32.totalorder %s43, 3
      %p552 = por %p550, %p551
      %p554 = scmp.ne.s32.totalorder %s537, %s553
      %p555 = scmp.eq.s32.totalorder %s43, 0
      %p556 = por %p554, %p555
      %s557 = ssub.s32 %s45, %s52
      %p558 = scmp.eq.s32.totalorder %s557, 0
      %s560 = sadd.s32 %s559, 1
      %s561 = scalar_select %p558, %s559, %s560
      %p564 = pneg %p558
      %p565 = scmp.eq.s32.totalorder %s37, 3
      %p566 = por %p564, %p565
      %p567 = scmp.ne.s32.totalorder %s559, %s562
      %p568 = scmp.eq.s32.totalorder %s37, 0
      %p569 = por %p567, %p568
      %p570 = scmp.ne.s32.totalorder %s559, %s562
      %p571 = scmp.eq.s32.totalorder %s42, 3
      %p572 = por %p570, %p571
      %p573 = scmp.ne.s32.totalorder %s562, %s563
      %p574 = scmp.eq.s32.totalorder %s42, 0
      %p575 = por %p573, %p574
      %p576 = scmp.ne.s32.totalorder %s562, %s563
      %p577 = scmp.eq.s32.totalorder %s43, 3
      %p578 = por %p576, %p577
      %p580 = scmp.ne.s32.totalorder %s563, %s579
      %p581 = scmp.eq.s32.totalorder %s43, 0
      %p582 = por %p580, %p581
      %s583 = ssub.s32 %s45, %s52
      %p584 = scmp.eq.s32.totalorder %s583, 0
      %s586 = sadd.s32 %s585, 1
      %s587 = scalar_select %p584, %s585, %s586
      %p590 = pneg %p584
      %p591 = scmp.eq.s32.totalorder %s37, 3
      %p592 = por %p590, %p591
      %p593 = scmp.ne.s32.totalorder %s585, %s588
      %p594 = scmp.eq.s32.totalorder %s37, 0
      %p595 = por %p593, %p594
      %p596 = scmp.ne.s32.totalorder %s585, %s588
      %p597 = scmp.eq.s32.totalorder %s42, 3
      %p598 = por %p596, %p597
      %p599 = scmp.ne.s32.totalorder %s588, %s589
      %p600 = scmp.eq.s32.totalorder %s42, 0
      %p601 = por %p599, %p600
      %p602 = scmp.ne.s32.totalorder %s588, %s589
      %p603 = scmp.eq.s32.totalorder %s43, 3
      %p604 = por %p602, %p603
      %p606 = scmp.ne.s32.totalorder %s589, %s605
      %p607 = scmp.eq.s32.totalorder %s43, 0
      %p608 = por %p606, %p607
      %s609 = ssub.s32 %s44, %s56
      %p610 = scmp.eq.s32.totalorder %s609, 0
      %s612 = sadd.s32 %s611, 1
      %s613 = scalar_select %p610, %s611, %s612
      %p616 = pneg %p610
      %p617 = scmp.eq.s32.totalorder %s37, 3
      %p618 = por %p616, %p617
      %p619 = scmp.ne.s32.totalorder %s611, %s614
      %p620 = scmp.eq.s32.totalorder %s37, 0
      %p621 = por %p619, %p620
      %p622 = scmp.ne.s32.totalorder %s611, %s614
      %p623 = scmp.eq.s32.totalorder %s42, 3
      %p624 = por %p622, %p623
      %p625 = scmp.ne.s32.totalorder %s614, %s615
      %p626 = scmp.eq.s32.totalorder %s42, 0
      %p627 = por %p625, %p626
      %p628 = scmp.ne.s32.totalorder %s614, %s615
      %p629 = scmp.eq.s32.totalorder %s43, 3
      %p630 = por %p628, %p629
      %p632 = scmp.ne.s32.totalorder %s615, %s631
      %p633 = scmp.eq.s32.totalorder %s43, 0
      %p634 = por %p632, %p633
      %p635 = scmp.le.s32.totalorder 1, %s37
      %p636 = scmp.lt.s32.totalorder %s37, 5
      %p637 = pnand %p635, %p636
      %p638 = pneg %p637
      // Predicated region
      $region9: #{graph_attention_model_forward.2} parent=5 // pred_check
        _
      $region10: #{graph_attention_model_forward.2} parent=5 // pred_check_branch
        %640 = sbr.rel (%p637) target = $region12
      $region11: #{graph_attention_model_forward.2} parent=5 // pred_region
        %s641 = ssub.s32 %s37, 1
        // Predicated region
        $region13: #{graph_attention_model_forward.2} parent=11 // pred_check
          %p642 = pneg %p122
        $region14: #{graph_attention_model_forward.2} parent=11 // pred_check_branch
          %644 = sbr.rel (%p642) target = $region16
        $region15: #{graph_attention_model_forward.2} parent=11 // pred_region
          %s646 = ssub.s32 32, 32
          %647 = vsyncadd [#allocation6], %s646
          %s649 = sshll.u32 [#allocation5], 4
          %s650 = int_to_ptr.vmem [resolvable:$true] %s649
          %652 = dma.hbm_to_vmem [thread:$0]  %s3, 32, %s650, [#allocation6]
        $region16: #{graph_attention_model_forward.2} parent=11 // pred_fallthru
          _
        // Predicated region
        $region17: #{graph_attention_model_forward.2} parent=11 // pred_check
          %p653 = pneg %p143
        $region18: #{graph_attention_model_forward.2} parent=11 // pred_check_branch
          %655 = sbr.rel (%p653) target = $region20
        $region19: #{graph_attention_model_forward.2} parent=11 // pred_region
          _
        $region20: #{graph_attention_model_forward.2} parent=11 // pred_fallthru
          _
        // Predicated region
        $region21: #{graph_attention_model_forward.2} parent=11 // pred_check
          %p656 = pneg %p164
        $region22: #{graph_attention_model_forward.2} parent=11 // pred_check_branch
          %658 = sbr.rel (%p656) target = $region24
        $region23: #{graph_attention_model_forward.2} parent=11 // pred_region
          %s660 = ssub.s32 32, 32
          %661 = vsyncadd [#allocation8], %s660
          %s663 = sshll.u32 [#allocation7], 4
          %s664 = int_to_ptr.vmem [resolvable:$true] %s663
          %666 = dma.hbm_to_vmem [thread:$0]  %s5, 32, %s664, [#allocation8]
        $region24: #{graph_attention_model_forward.2} parent=11 // pred_fallthru
          _
        // Predicated region
        $region25: #{graph_attention_model_forward.2} parent=11 // pred_check
          %p667 = pneg %p185
        $region26: #{graph_attention_model_forward.2} parent=11 // pred_check_branch
          %669 = sbr.rel (%p667) target = $region28
        $region27: #{graph_attention_model_forward.2} parent=11 // pred_region
          _
        $region28: #{graph_attention_model_forward.2} parent=11 // pred_fallthru
          _
      $region12: #{graph_attention_model_forward.2} parent=5 // pred_fallthru
        _
      %p670 = scmp.lt.s32.totalorder %s37, 4
      // Predicated region
      $region29: #{graph_attention_model_forward.2} parent=5 // pred_check
        %p671 = pneg %p670
      $region30: #{graph_attention_model_forward.2} parent=5 // pred_check_branch
        %673 = sbr.rel (%p671) target = $region32
      $region31: #{graph_attention_model_forward.2} parent=5 // pred_region
        // Predicated region
        $region33: #{graph_attention_model_forward.2} parent=31 // pred_check
          %p674 = pneg %p69
        $region34: #{graph_attention_model_forward.2} parent=31 // pred_check_branch
          %676 = sbr.rel (%p674) target = $region36
        $region35: #{graph_attention_model_forward.2} parent=31 // pred_region
          %p677 = scmp.lt.s32.totalorder %s44, 1
          %s678 = scalar_select %p677, %s44, 1
          %s679 = smul.addr %s678, 8
          %s680 = scalar_lea.vmem %s1, %s679
        $region36: #{graph_attention_model_forward.2} parent=31 // pred_fallthru
          _
        // Predicated region
        $region37: #{graph_attention_model_forward.2} parent=31 // pred_check
          %p681 = pneg %p95
        $region38: #{graph_attention_model_forward.2} parent=31 // pred_check_branch
          %683 = sbr.rel (%p681) target = $region40
        $region39: #{graph_attention_model_forward.2} parent=31 // pred_region
          %p684 = scmp.lt.s32.totalorder %s44, 1
          %s685 = scalar_select %p684, %s44, 1
          %s686 = smul.addr %s685, 8
          %s687 = scalar_lea.vmem %s2, %s686
        $region40: #{graph_attention_model_forward.2} parent=31 // pred_fallthru
          _
        // Predicated region
        $region41: #{graph_attention_model_forward.2} parent=31 // pred_check
          %p688 = pneg %p205
        $region42: #{graph_attention_model_forward.2} parent=31 // pred_check_branch
          %690 = sbr.rel (%p688) target = $region44
        $region43: #{graph_attention_model_forward.2} parent=31 // pred_region
          %p691 = scmp.lt.s32.totalorder %s45, 1
          %s692 = scalar_select %p691, %s45, 1
          %s693 = smul.addr %s692, 4
          %s694 = smul.addr %s693, 4
          %s695 = scalar_lea.vmem %s7, %s694
        $region44: #{graph_attention_model_forward.2} parent=31 // pred_fallthru
          _
        // Predicated region
        $region45: #{graph_attention_model_forward.2} parent=31 // pred_check
          %p696 = pneg %p231
        $region46: #{graph_attention_model_forward.2} parent=31 // pred_check_branch
          %698 = sbr.rel (%p696) target = $region48
        $region47: #{graph_attention_model_forward.2} parent=31 // pred_region
          %s699 = sand.u32 %s37, 1
          %s700 = scalar_lea.sflag [#allocation6], %s699
          %s701 = sand.u32 %s221, 1
          %s702 = scalar_lea.vmem [#allocation9], %s701
          %s704 = ssub.s32 16, 16
          %705 = vsyncadd %s700, %s704
          %s706 = smul.addr %s45, 16
          %s707 = scalar_lea.hbm %s8, %s706
          %s709 = sshll.u32 %s702, 4
          %s710 = int_to_ptr.vmem [resolvable:$true] %s709
          %712 = dma.hbm_to_vmem [thread:$0]  %s707, 16, %s710, %s700
        $region48: #{graph_attention_model_forward.2} parent=31 // pred_fallthru
          _
        // Predicated region
        $region49: #{graph_attention_model_forward.2} parent=31 // pred_check
          %p713 = pneg %p257
        $region50: #{graph_attention_model_forward.2} parent=31 // pred_check_branch
          %715 = sbr.rel (%p713) target = $region52
        $region51: #{graph_attention_model_forward.2} parent=31 // pred_region
          %p716 = scmp.lt.s32.totalorder %s45, 1
          %s717 = scalar_select %p716, %s45, 1
          %s718 = smul.addr %s717, 4
          %s719 = smul.addr %s718, 4
          %s720 = scalar_lea.vmem %s9, %s719
        $region52: #{graph_attention_model_forward.2} parent=31 // pred_fallthru
          _
        // Predicated region
        $region53: #{graph_attention_model_forward.2} parent=31 // pred_check
          %p721 = pneg %p283
        $region54: #{graph_attention_model_forward.2} parent=31 // pred_check_branch
          %723 = sbr.rel (%p721) target = $region56
        $region55: #{graph_attention_model_forward.2} parent=31 // pred_region
          %p724 = scmp.lt.s32.totalorder %s45, 1
          %s725 = scalar_select %p724, %s45, 1
          %s726 = scalar_lea.vmem %s10, %s725
        $region56: #{graph_attention_model_forward.2} parent=31 // pred_fallthru
          _
        // Predicated region
        $region57: #{graph_attention_model_forward.2} parent=31 // pred_check
          %p727 = pneg %p309
        $region58: #{graph_attention_model_forward.2} parent=31 // pred_check_branch
          %729 = sbr.rel (%p727) target = $region60
        $region59: #{graph_attention_model_forward.2} parent=31 // pred_region
          %p730 = scmp.lt.s32.totalorder %s45, 1
          %s731 = scalar_select %p730, %s45, 1
          %s732 = smul.addr %s731, 4
          %s733 = smul.addr %s732, 4
          %s734 = scalar_lea.vmem %s11, %s733
        $region60: #{graph_attention_model_forward.2} parent=31 // pred_fallthru
          _
        // Predicated region
        $region61: #{graph_attention_model_forward.2} parent=31 // pred_check
          %p735 = pneg %p335
        $region62: #{graph_attention_model_forward.2} parent=31 // pred_check_branch
          %737 = sbr.rel (%p735) target = $region64
        $region63: #{graph_attention_model_forward.2} parent=31 // pred_region
          %s738 = sand.u32 %s37, 1
          %s739 = scalar_lea.sflag [#allocation6], %s738
          %s740 = sand.u32 %s325, 1
          %s741 = scalar_lea.vmem [#allocation10], %s740
          %s743 = ssub.s32 16, 16
          %744 = vsyncadd %s739, %s743
          %s745 = smul.addr %s45, 16
          %s746 = scalar_lea.hbm %s12, %s745
          %s748 = sshll.u32 %s741, 4
          %s749 = int_to_ptr.vmem [resolvable:$true] %s748
          %751 = dma.hbm_to_vmem [thread:$0]  %s746, 16, %s749, %s739
        $region64: #{graph_attention_model_forward.2} parent=31 // pred_fallthru
          _
        // Predicated region
        $region65: #{graph_attention_model_forward.2} parent=31 // pred_check
          %p752 = pneg %p361
        $region66: #{graph_attention_model_forward.2} parent=31 // pred_check_branch
          %754 = sbr.rel (%p752) target = $region68
        $region67: #{graph_attention_model_forward.2} parent=31 // pred_region
          %s755 = sand.u32 %s37, 1
          %s756 = scalar_lea.sflag [#allocation6], %s755
          %s757 = sand.u32 %s351, 1
          %s758 = smul.addr %s757, 16
          %s759 = scalar_lea.vmem [#allocation11], %s758
          %s761 = ssub.s32 256, 256
          %762 = vsyncadd %s756, %s761
          %s763 = smul.addr %s45, 4
          %s764 = smul.addr %s763, 64
          %s765 = scalar_lea.hbm %s13, %s764
          %s766 = sshll.u32 %s759, 4
          %s767 = int_to_ptr.vmem [resolvable:$true] %s766
          %772 = dma.hbm_to_vmem [thread:$0]  %s765, 256, %s767, %s756, 64, 64, 4
        $region68: #{graph_attention_model_forward.2} parent=31 // pred_fallthru
          _
        // Predicated region
        $region69: #{graph_attention_model_forward.2} parent=31 // pred_check
          %p773 = pneg %p387
        $region70: #{graph_attention_model_forward.2} parent=31 // pred_check_branch
          %775 = sbr.rel (%p773) target = $region72
        $region71: #{graph_attention_model_forward.2} parent=31 // pred_region
          %s776 = sand.u32 %s37, 1
          %s777 = scalar_lea.sflag [#allocation6], %s776
          %s778 = sand.u32 %s377, 1
          %s779 = scalar_lea.vmem [#allocation12], %s778
          %s781 = ssub.s32 16, 16
          %782 = vsyncadd %s777, %s781
          %s783 = smul.addr %s45, 16
          %s784 = scalar_lea.hbm %s14, %s783
          %s786 = sshll.u32 %s779, 4
          %s787 = int_to_ptr.vmem [resolvable:$true] %s786
          %789 = dma.hbm_to_vmem [thread:$0]  %s784, 16, %s787, %s777
        $region72: #{graph_attention_model_forward.2} parent=31 // pred_fallthru
          _
        // Predicated region
        $region73: #{graph_attention_model_forward.2} parent=31 // pred_check
          %p790 = pneg %p413
        $region74: #{graph_attention_model_forward.2} parent=31 // pred_check_branch
          %792 = sbr.rel (%p790) target = $region76
        $region75: #{graph_attention_model_forward.2} parent=31 // pred_region
          %p793 = scmp.lt.s32.totalorder %s45, 1
          %s794 = scalar_select %p793, %s45, 1
          %s795 = smul.addr %s794, 4
          %s796 = smul.addr %s795, 4
          %s797 = scalar_lea.vmem %s15, %s796
        $region76: #{graph_attention_model_forward.2} parent=31 // pred_fallthru
          _
        // Predicated region
        $region77: #{graph_attention_model_forward.2} parent=31 // pred_check
          %p798 = pneg %p439
        $region78: #{graph_attention_model_forward.2} parent=31 // pred_check_branch
          %800 = sbr.rel (%p798) target = $region80
        $region79: #{graph_attention_model_forward.2} parent=31 // pred_region
          %p801 = scmp.lt.s32.totalorder %s45, 1
          %s802 = scalar_select %p801, %s45, 1
          %s803 = scalar_lea.vmem %s16, %s802
        $region80: #{graph_attention_model_forward.2} parent=31 // pred_fallthru
          _
        // Predicated region
        $region81: #{graph_attention_model_forward.2} parent=31 // pred_check
          %p804 = pneg %p465
        $region82: #{graph_attention_model_forward.2} parent=31 // pred_check_branch
          %806 = sbr.rel (%p804) target = $region84
        $region83: #{graph_attention_model_forward.2} parent=31 // pred_region
          %s807 = sand.u32 %s37, 1
          %s808 = scalar_lea.sflag [#allocation6], %s807
          %s809 = sand.u32 %s455, 1
          %s810 = smul.addr %s809, 16
          %s811 = scalar_lea.vmem [#allocation13], %s810
          %s813 = ssub.s32 256, 256
          %814 = vsyncadd %s808, %s813
          %s815 = smul.addr %s45, 4
          %s816 = smul.addr %s815, 64
          %s817 = scalar_lea.hbm %s17, %s816
          %s818 = sshll.u32 %s811, 4
          %s819 = int_to_ptr.vmem [resolvable:$true] %s818
          %824 = dma.hbm_to_vmem [thread:$0]  %s817, 256, %s819, %s808, 64, 64, 4
        $region84: #{graph_attention_model_forward.2} parent=31 // pred_fallthru
          _
        // Predicated region
        $region85: #{graph_attention_model_forward.2} parent=31 // pred_check
          %p825 = pneg %p491
        $region86: #{graph_attention_model_forward.2} parent=31 // pred_check_branch
          %827 = sbr.rel (%p825) target = $region88
        $region87: #{graph_attention_model_forward.2} parent=31 // pred_region
          %p828 = scmp.lt.s32.totalorder %s45, 1
          %s829 = scalar_select %p828, %s45, 1
          %s830 = scalar_lea.vmem %s18, %s829
        $region88: #{graph_attention_model_forward.2} parent=31 // pred_fallthru
          _
        // Predicated region
        $region89: #{graph_attention_model_forward.2} parent=31 // pred_check
          %p831 = pneg %p517
        $region90: #{graph_attention_model_forward.2} parent=31 // pred_check_branch
          %833 = sbr.rel (%p831) target = $region92
        $region91: #{graph_attention_model_forward.2} parent=31 // pred_region
          %s834 = sand.u32 %s37, 1
          %s835 = scalar_lea.sflag [#allocation6], %s834
          %s836 = sand.u32 %s507, 1
          %s837 = scalar_lea.vmem [#allocation14], %s836
          %s839 = ssub.s32 16, 16
          %840 = vsyncadd %s835, %s839
          %s841 = smul.addr %s45, 16
          %s842 = scalar_lea.hbm %s19, %s841
          %s844 = sshll.u32 %s837, 4
          %s845 = int_to_ptr.vmem [resolvable:$true] %s844
          %847 = dma.hbm_to_vmem [thread:$0]  %s842, 16, %s845, %s835
        $region92: #{graph_attention_model_forward.2} parent=31 // pred_fallthru
          _
        // Predicated region
        $region93: #{graph_attention_model_forward.2} parent=31 // pred_check
          %p848 = pneg %p543
        $region94: #{graph_attention_model_forward.2} parent=31 // pred_check_branch
          %850 = sbr.rel (%p848) target = $region96
        $region95: #{graph_attention_model_forward.2} parent=31 // pred_region
          %p851 = scmp.lt.s32.totalorder %s45, 1
          %s852 = scalar_select %p851, %s45, 1
          %s853 = scalar_lea.vmem %s20, %s852
        $region96: #{graph_attention_model_forward.2} parent=31 // pred_fallthru
          _
        // Predicated region
        $region97: #{graph_attention_model_forward.2} parent=31 // pred_check
          %p854 = pneg %p569
        $region98: #{graph_attention_model_forward.2} parent=31 // pred_check_branch
          %856 = sbr.rel (%p854) target = $region100
        $region99: #{graph_attention_model_forward.2} parent=31 // pred_region
          %s857 = sand.u32 %s37, 1
          %s858 = scalar_lea.sflag [#allocation6], %s857
          %s859 = sand.u32 %s559, 1
          %s860 = scalar_lea.vmem [#allocation15], %s859
          %s862 = ssub.s32 16, 16
          %863 = vsyncadd %s858, %s862
          %s864 = smul.addr %s45, 16
          %s865 = scalar_lea.hbm %s21, %s864
          %s867 = sshll.u32 %s860, 4
          %s868 = int_to_ptr.vmem [resolvable:$true] %s867
          %870 = dma.hbm_to_vmem [thread:$0]  %s865, 16, %s868, %s858
        $region100: #{graph_attention_model_forward.2} parent=31 // pred_fallthru
          _
        // Predicated region
        $region101: #{graph_attention_model_forward.2} parent=31 // pred_check
          %p871 = pneg %p595
        $region102: #{graph_attention_model_forward.2} parent=31 // pred_check_branch
          %873 = sbr.rel (%p871) target = $region104
        $region103: #{graph_attention_model_forward.2} parent=31 // pred_region
          %s874 = sand.u32 %s37, 1
          %s875 = scalar_lea.sflag [#allocation6], %s874
          %s876 = sand.u32 %s585, 1
          %s877 = scalar_lea.vmem [#allocation16], %s876
          %s879 = ssub.s32 16, 16
          %880 = vsyncadd %s875, %s879
          %s881 = smul.addr %s45, 16
          %s882 = scalar_lea.hbm %s22, %s881
          %s884 = sshll.u32 %s877, 4
          %s885 = int_to_ptr.vmem [resolvable:$true] %s884
          %887 = dma.hbm_to_vmem [thread:$0]  %s882, 16, %s885, %s875
        $region104: #{graph_attention_model_forward.2} parent=31 // pred_fallthru
          _
      $region32: #{graph_attention_model_forward.2} parent=5 // pred_fallthru
        _
      %p888 = scmp.le.s32.totalorder 1, %s37
      %p889 = scmp.lt.s32.totalorder %s37, 5
      %p890 = pnand %p888, %p889
      %p891 = pneg %p890
      // Predicated region
      $region105: #{graph_attention_model_forward.2} parent=5 // pred_check
        _
      $region106: #{graph_attention_model_forward.2} parent=5 // pred_check_branch
        %893 = sbr.rel (%p890) target = $region108
      $region107: #{graph_attention_model_forward.2} parent=5 // pred_region
        %s894 = ssub.s32 %s37, 1
        // Predicated region
        $region109: #{graph_attention_model_forward.2} parent=107 // pred_check
          %p895 = pneg %p122
        $region110: #{graph_attention_model_forward.2} parent=107 // pred_check_branch
          %897 = sbr.rel (%p895) target = $region112
        $region111: #{graph_attention_model_forward.2} parent=107 // pred_region
          %898 = dma.done [#allocation6], 32
        $region112: #{graph_attention_model_forward.2} parent=107 // pred_fallthru
          _
        // Predicated region
        $region113: #{graph_attention_model_forward.2} parent=107 // pred_check
          %p899 = pneg %p164
        $region114: #{graph_attention_model_forward.2} parent=107 // pred_check_branch
          %901 = sbr.rel (%p899) target = $region116
        $region115: #{graph_attention_model_forward.2} parent=107 // pred_region
          %902 = dma.done [#allocation8], 32
        $region116: #{graph_attention_model_forward.2} parent=107 // pred_fallthru
          _
        %s903 = sand.u32 %s42, 1
        %s904 = scalar_lea.sflag [#allocation6], %s903
        %s905 = sand.u32 %s224, 1
        %s906 = scalar_lea.vmem [#allocation9], %s905
        // Predicated region
        $region117: #{graph_attention_model_forward.2} parent=107 // pred_check
          %p907 = pneg %p237
        $region118: #{graph_attention_model_forward.2} parent=107 // pred_check_branch
          %909 = sbr.rel (%p907) target = $region120
        $region119: #{graph_attention_model_forward.2} parent=107 // pred_region
          %910 = dma.done %s904, 16
        $region120: #{graph_attention_model_forward.2} parent=107 // pred_fallthru
          _
        %s911 = sand.u32 %s42, 1
        %s912 = scalar_lea.sflag [#allocation6], %s911
        %s913 = sand.u32 %s328, 1
        %s914 = scalar_lea.vmem [#allocation10], %s913
        // Predicated region
        $region121: #{graph_attention_model_forward.2} parent=107 // pred_check
          %p915 = pneg %p341
        $region122: #{graph_attention_model_forward.2} parent=107 // pred_check_branch
          %917 = sbr.rel (%p915) target = $region124
        $region123: #{graph_attention_model_forward.2} parent=107 // pred_region
          %918 = dma.done %s912, 16
        $region124: #{graph_attention_model_forward.2} parent=107 // pred_fallthru
          _
        %s919 = sand.u32 %s42, 1
        %s920 = scalar_lea.sflag [#allocation6], %s919
        %s921 = sand.u32 %s354, 1
        %s922 = smul.addr %s921, 16
        %s923 = scalar_lea.vmem [#allocation11], %s922
        // Predicated region
        $region125: #{graph_attention_model_forward.2} parent=107 // pred_check
          %p924 = pneg %p367
        $region126: #{graph_attention_model_forward.2} parent=107 // pred_check_branch
          %926 = sbr.rel (%p924) target = $region128
        $region127: #{graph_attention_model_forward.2} parent=107 // pred_region
          %927 = dma.done %s920, 256
        $region128: #{graph_attention_model_forward.2} parent=107 // pred_fallthru
          _
        %s928 = sand.u32 %s42, 1
        %s929 = scalar_lea.sflag [#allocation6], %s928
        %s930 = sand.u32 %s380, 1
        %s931 = scalar_lea.vmem [#allocation12], %s930
        // Predicated region
        $region129: #{graph_attention_model_forward.2} parent=107 // pred_check
          %p932 = pneg %p393
        $region130: #{graph_attention_model_forward.2} parent=107 // pred_check_branch
          %934 = sbr.rel (%p932) target = $region132
        $region131: #{graph_attention_model_forward.2} parent=107 // pred_region
          %935 = dma.done %s929, 16
        $region132: #{graph_attention_model_forward.2} parent=107 // pred_fallthru
          _
        %s936 = sand.u32 %s42, 1
        %s937 = scalar_lea.sflag [#allocation6], %s936
        %s938 = sand.u32 %s458, 1
        %s939 = smul.addr %s938, 16
        %s940 = scalar_lea.vmem [#allocation13], %s939
        // Predicated region
        $region133: #{graph_attention_model_forward.2} parent=107 // pred_check
          %p941 = pneg %p471
        $region134: #{graph_attention_model_forward.2} parent=107 // pred_check_branch
          %943 = sbr.rel (%p941) target = $region136
        $region135: #{graph_attention_model_forward.2} parent=107 // pred_region
          %944 = dma.done %s937, 256
        $region136: #{graph_attention_model_forward.2} parent=107 // pred_fallthru
          _
        %s945 = sand.u32 %s42, 1
        %s946 = scalar_lea.sflag [#allocation6], %s945
        %s947 = sand.u32 %s510, 1
        %s948 = scalar_lea.vmem [#allocation14], %s947
        // Predicated region
        $region137: #{graph_attention_model_forward.2} parent=107 // pred_check
          %p949 = pneg %p523
        $region138: #{graph_attention_model_forward.2} parent=107 // pred_check_branch
          %951 = sbr.rel (%p949) target = $region140
        $region139: #{graph_attention_model_forward.2} parent=107 // pred_region
          %952 = dma.done %s946, 16
        $region140: #{graph_attention_model_forward.2} parent=107 // pred_fallthru
          _
        %s953 = sand.u32 %s42, 1
        %s954 = scalar_lea.sflag [#allocation6], %s953
        %s955 = sand.u32 %s562, 1
        %s956 = scalar_lea.vmem [#allocation15], %s955
        // Predicated region
        $region141: #{graph_attention_model_forward.2} parent=107 // pred_check
          %p957 = pneg %p575
        $region142: #{graph_attention_model_forward.2} parent=107 // pred_check_branch
          %959 = sbr.rel (%p957) target = $region144
        $region143: #{graph_attention_model_forward.2} parent=107 // pred_region
          %960 = dma.done %s954, 16
        $region144: #{graph_attention_model_forward.2} parent=107 // pred_fallthru
          _
        %s961 = sand.u32 %s42, 1
        %s962 = scalar_lea.sflag [#allocation6], %s961
        %s963 = sand.u32 %s588, 1
        %s964 = scalar_lea.vmem [#allocation16], %s963
        // Predicated region
        $region145: #{graph_attention_model_forward.2} parent=107 // pred_check
          %p965 = pneg %p601
        $region146: #{graph_attention_model_forward.2} parent=107 // pred_check_branch
          %967 = sbr.rel (%p965) target = $region148
        $region147: #{graph_attention_model_forward.2} parent=107 // pred_region
          %968 = dma.done %s962, 16
        $region148: #{graph_attention_model_forward.2} parent=107 // pred_fallthru
          _
        %p969 = scmp.lt.s32.totalorder %s46, 1
        %s970 = scalar_select %p969, %s46, 1
        %s971 = smul.addr %s970, 8
        %s972 = scalar_lea.vmem %s1, %s971
        %p973 = pneg %p75
        %p974 = pneg %p72
        %p975 = scmp.lt.s32.totalorder %s46, 1
        %s976 = scalar_select %p975, %s46, 1
        %s977 = smul.addr %s976, 8
        %s978 = scalar_lea.vmem %s2, %s977
        %p979 = pneg %p101
        %p980 = pneg %p98
        %p981 = pneg %p122
        %p982 = pneg %p119
        %p983 = pneg %p143
        %p984 = pneg %p140
        %p985 = pneg %p164
        %p986 = pneg %p161
        %p987 = pneg %p185
        %p988 = pneg %p182
        %p989 = scmp.lt.s32.totalorder %s47, 1
        %s990 = scalar_select %p989, %s47, 1
        %s991 = smul.addr %s990, 4
        %s992 = smul.addr %s991, 4
        %s993 = scalar_lea.vmem %s7, %s992
        %p994 = pneg %p211
        %p995 = pneg %p208
        %s996 = sand.u32 %s42, 1
        %s997 = scalar_lea.sflag [#allocation6], %s996
        %s998 = sand.u32 %s224, 1
        %s999 = scalar_lea.vmem [#allocation9], %s998
        %p1000 = pneg %p237
        %p1001 = pneg %p234
        %p1002 = scmp.lt.s32.totalorder %s47, 1
        %s1003 = scalar_select %p1002, %s47, 1
        %s1004 = smul.addr %s1003, 4
        %s1005 = smul.addr %s1004, 4
        %s1006 = scalar_lea.vmem %s9, %s1005
        %p1007 = pneg %p263
        %p1008 = pneg %p260
        %p1009 = scmp.lt.s32.totalorder %s47, 1
        %s1010 = scalar_select %p1009, %s47, 1
        %s1011 = scalar_lea.vmem %s10, %s1010
        %p1012 = pneg %p289
        %p1013 = pneg %p286
        %p1014 = scmp.lt.s32.totalorder %s47, 1
        %s1015 = scalar_select %p1014, %s47, 1
        %s1016 = smul.addr %s1015, 4
        %s1017 = smul.addr %s1016, 4
        %s1018 = scalar_lea.vmem %s11, %s1017
        %p1019 = pneg %p315
        %p1020 = pneg %p312
        %s1021 = sand.u32 %s42, 1
        %s1022 = scalar_lea.sflag [#allocation6], %s1021
        %s1023 = sand.u32 %s328, 1
        %s1024 = scalar_lea.vmem [#allocation10], %s1023
        %p1025 = pneg %p341
        %p1026 = pneg %p338
        %s1027 = sand.u32 %s42, 1
        %s1028 = scalar_lea.sflag [#allocation6], %s1027
        %s1029 = sand.u32 %s354, 1
        %s1030 = smul.addr %s1029, 16
        %s1031 = scalar_lea.vmem [#allocation11], %s1030
        %p1032 = pneg %p367
        %p1033 = pneg %p364
        %s1034 = sand.u32 %s42, 1
        %s1035 = scalar_lea.sflag [#allocation6], %s1034
        %s1036 = sand.u32 %s380, 1
        %s1037 = scalar_lea.vmem [#allocation12], %s1036
        %p1038 = pneg %p393
        %p1039 = pneg %p390
        %p1040 = scmp.lt.s32.totalorder %s47, 1
        %s1041 = scalar_select %p1040, %s47, 1
        %s1042 = smul.addr %s1041, 4
        %s1043 = smul.addr %s1042, 4
        %s1044 = scalar_lea.vmem %s15, %s1043
        %p1045 = pneg %p419
        %p1046 = pneg %p416
        %p1047 = scmp.lt.s32.totalorder %s47, 1
        %s1048 = scalar_select %p1047, %s47, 1
        %s1049 = scalar_lea.vmem %s16, %s1048
        %p1050 = pneg %p445
        %p1051 = pneg %p442
        %s1052 = sand.u32 %s42, 1
        %s1053 = scalar_lea.sflag [#allocation6], %s1052
        %s1054 = sand.u32 %s458, 1
        %s1055 = smul.addr %s1054, 16
        %s1056 = scalar_lea.vmem [#allocation13], %s1055
        %p1057 = pneg %p471
        %p1058 = pneg %p468
        %p1059 = scmp.lt.s32.totalorder %s47, 1
        %s1060 = scalar_select %p1059, %s47, 1
        %s1061 = scalar_lea.vmem %s18, %s1060
        %p1062 = pneg %p497
        %p1063 = pneg %p494
        %s1064 = sand.u32 %s42, 1
        %s1065 = scalar_lea.sflag [#allocation6], %s1064
        %s1066 = sand.u32 %s510, 1
        %s1067 = scalar_lea.vmem [#allocation14], %s1066
        %p1068 = pneg %p523
        %p1069 = pneg %p520
        %p1070 = scmp.lt.s32.totalorder %s47, 1
        %s1071 = scalar_select %p1070, %s47, 1
        %s1072 = scalar_lea.vmem %s20, %s1071
        %p1073 = pneg %p549
        %p1074 = pneg %p546
        %s1075 = sand.u32 %s42, 1
        %s1076 = scalar_lea.sflag [#allocation6], %s1075
        %s1077 = sand.u32 %s562, 1
        %s1078 = scalar_lea.vmem [#allocation15], %s1077
        %p1079 = pneg %p575
        %p1080 = pneg %p572
        %s1081 = sand.u32 %s42, 1
        %s1082 = scalar_lea.sflag [#allocation6], %s1081
        %s1083 = sand.u32 %s588, 1
        %s1084 = scalar_lea.vmem [#allocation16], %s1083
        %p1085 = pneg %p601
        %p1086 = pneg %p598
        %p1087 = pneg %p627
        %p1088 = pneg %p624
        %p1089 = scmp.lt.s32.totalorder %s46, 1
        %s1090 = scalar_select %p1089, %s46, 1
        %s1091 = smul.addr %s1090, 8
        %s1092 = scalar_lea.vmem %s23, %s1091
        %p1093 = scmp.lt.s32.totalorder %s46, 1
        %s1094 = scalar_select %p1093, %s46, 1
        %s1095 = smul.addr %s1094, 8
        %s1096 = scalar_lea.vmem %s1, %s1095
        %p1097 = scmp.lt.s32.totalorder %s46, 1
        %s1098 = scalar_select %p1097, %s46, 1
        %s1099 = smul.addr %s1098, 8
        %s1100 = scalar_lea.vmem %s2, %s1099
        %p1101 = scmp.lt.s32.totalorder %s47, 1
        %s1102 = scalar_select %p1101, %s47, 1
        %s1103 = smul.addr %s1102, 4
        %s1104 = smul.addr %s1103, 4
        %s1105 = scalar_lea.vmem %s7, %s1104
        %p1106 = scmp.lt.s32.totalorder %s47, 1
        %s1107 = scalar_select %p1106, %s47, 1
        %s1108 = smul.addr %s1107, 4
        %s1109 = smul.addr %s1108, 4
        %s1110 = scalar_lea.vmem %s9, %s1109
        %p1111 = scmp.lt.s32.totalorder %s47, 1
        %s1112 = scalar_select %p1111, %s47, 1
        %s1113 = scalar_lea.vmem %s10, %s1112
        %p1114 = scmp.lt.s32.totalorder %s47, 1
        %s1115 = scalar_select %p1114, %s47, 1
        %s1116 = smul.addr %s1115, 4
        %s1117 = smul.addr %s1116, 4
        %s1118 = scalar_lea.vmem %s11, %s1117
        %p1119 = scmp.lt.s32.totalorder %s47, 1
        %s1120 = scalar_select %p1119, %s47, 1
        %s1121 = smul.addr %s1120, 4
        %s1122 = smul.addr %s1121, 4
        %s1123 = scalar_lea.vmem %s15, %s1122
        %p1124 = scmp.lt.s32.totalorder %s47, 1
        %s1125 = scalar_select %p1124, %s47, 1
        %s1126 = scalar_lea.vmem %s16, %s1125
        %p1127 = scmp.lt.s32.totalorder %s47, 1
        %s1128 = scalar_select %p1127, %s47, 1
        %s1129 = scalar_lea.vmem %s18, %s1128
        %p1130 = scmp.lt.s32.totalorder %s47, 1
        %s1131 = scalar_select %p1130, %s47, 1
        %s1132 = scalar_lea.vmem %s20, %s1131
        %p1133 = scmp.lt.s32.totalorder %s46, 1
        %s1134 = scalar_select %p1133, %s46, 1
        %s1135 = smul.addr %s1134, 8
        %s1136 = scalar_lea.vmem %s23, %s1135
        %p1138 = scmp.eq.s32.totalorder %s47, 0
        // Predicated region
        $region149: #{graph_attention_model_forward.2} parent=107 // pred_check
          %p1139 = pneg %p1138
        $region150: #{graph_attention_model_forward.2} parent=107 // pred_check_branch
          %1141 = sbr.rel (%p1139) target = $region152
        $region151: #{graph_attention_model_forward.2} parent=107 // pred_region
          %v1142 = vld [vmem:[%s1096] sm:$0xff]
          %v1143 = vpack.c.bf16 %v1142, %v1142
          %v1144 = vld [vmem:[#allocation7] sm:$0x3]
          %v1145 = vld [vmem:[%s6] sm:$0x1]
          %v1147 = vlaneseq
          %v1148 = vshrl.u32 %v1147, 7
          %v1149 = vsub.s32 0, %v1148
          %v1150 = vrot.slane %v1145, %v1149
          %vm1152 = vcmask 31744
          %v1154 = vsel %vm1152, %v1143, 0
          %vm1156 = vcmask 1041408
          %v1158 = vsel %vm1156, %v1144, 0
          %1160 = vmatprep.subr.bf16.mxu0 0
          %1161 = vmatpush1.bf16.msra.mxu0 %v1158
          %1162 = vmatprep.subr.bf16.mxu0 0
          %1163 = vmatpush1.bf16.msra.mxu0 0
          %1164 = vmatprep.subr.bf16.mxu0 0
          %1165 = vmatpush1.bf16.msra.mxu0 0
          %1166 = vmatprep.subr.bf16.mxu0 0
          %1167 = vmatpush1.bf16.msra.mxu0 0
          %1168 = vmatprep.subr.bf16.mxu0 0
          %1169 = vmatpush1.bf16.msra.mxu0 0
          %1170 = vmatprep.subr.bf16.mxu0 0
          %1171 = vmatpush1.bf16.msra.mxu0 0
          %1172 = vmatprep.subr.bf16.mxu0 0
          %1173 = vmatpush1.bf16.msra.mxu0 0
          %1174 = vmatprep.subr.bf16.mxu0 0
          %1175 = vmatpush1.bf16.msra.mxu0 0
          %1176 = vmatprep.subr.bf16.mxu0 0
          %1177 = vmatpush1.bf16.msra.mxu0 0
          %1178 = vmatprep.subr.bf16.mxu0 0
          %1179 = vmatpush1.bf16.msra.mxu0 0
          %1180 = vmatprep.subr.bf16.mxu0 0
          %1181 = vmatpush1.bf16.msra.mxu0 0
          %1182 = vmatprep.subr.bf16.mxu0 0
          %1183 = vmatpush1.bf16.msra.mxu0 0
          %1184 = vmatprep.subr.bf16.mxu0 0
          %1185 = vmatpush1.bf16.msra.mxu0 0
          %1186 = vmatprep.subr.bf16.mxu0 0
          %1187 = vmatpush1.bf16.msra.mxu0 0
          %1188 = vmatprep.subr.bf16.mxu0 0
          %1189 = vmatpush1.bf16.msra.mxu0 0
          %1190 = vmatprep.subr.bf16.mxu0 0
          %1191 = vmatpush1.bf16.msra.mxu0 0
          %1192 = vmatprep.mubr.bf16.mxu0 0
          %1193 = vmatmul.mubr.bf16.gmra.mrb[0].mxu0 %v1154
          %v1194 = vpop.f32.mrb[0].mxu0
          %v1195 = vadd.f32 %v1150, %v1194
          %v1196 = vpop.f32.mrb[0].mxu0
          %v1197 = vpop.f32.mrb[0].mxu0
          %v1198 = vpop.f32.mrb[0].mxu0
          %1199 = vdwg.mxu0
          %v1200 = vld [vmem:[#allocation5] sm:$0x3]
          %v1201 = vld [vmem:[%s4] sm:$0x1]
          %v1203 = vsel %vm1156, %v1200, 0
          %1205 = vmatprep.subr.bf16.mxu0 0
          %1206 = vmatpush1.bf16.msra.mxu0 %v1203
          %1207 = vmatprep.subr.bf16.mxu0 0
          %1208 = vmatpush1.bf16.msra.mxu0 0
          %1209 = vmatprep.subr.bf16.mxu0 0
          %1210 = vmatpush1.bf16.msra.mxu0 0
          %1211 = vmatprep.subr.bf16.mxu0 0
          %1212 = vmatpush1.bf16.msra.mxu0 0
          %1213 = vmatprep.subr.bf16.mxu0 0
          %1214 = vmatpush1.bf16.msra.mxu0 0
          %1215 = vmatprep.subr.bf16.mxu0 0
          %1216 = vmatpush1.bf16.msra.mxu0 0
          %1217 = vmatprep.subr.bf16.mxu0 0
          %1218 = vmatpush1.bf16.msra.mxu0 0
          %1219 = vmatprep.subr.bf16.mxu0 0
          %1220 = vmatpush1.bf16.msra.mxu0 0
          %1221 = vmatprep.subr.bf16.mxu0 0
          %1222 = vmatpush1.bf16.msra.mxu0 0
          %1223 = vmatprep.subr.bf16.mxu0 0
          %1224 = vmatpush1.bf16.msra.mxu0 0
          %1225 = vmatprep.subr.bf16.mxu0 0
          %1226 = vmatpush1.bf16.msra.mxu0 0
          %1227 = vmatprep.subr.bf16.mxu0 0
          %1228 = vmatpush1.bf16.msra.mxu0 0
          %1229 = vmatprep.subr.bf16.mxu0 0
          %1230 = vmatpush1.bf16.msra.mxu0 0
          %1231 = vmatprep.subr.bf16.mxu0 0
          %1232 = vmatpush1.bf16.msra.mxu0 0
          %1233 = vmatprep.subr.bf16.mxu0 0
          %1234 = vmatpush1.bf16.msra.mxu0 0
          %1235 = vmatprep.subr.bf16.mxu0 0
          %1236 = vmatpush1.bf16.msra.mxu0 0
          %1237 = vmatprep.mubr.bf16.mxu0 0
          %1238 = vmatmul.mubr.bf16.gmra.mrb[0].mxu0 %v1154
          %v1239 = vpop.f32.mrb[0].mxu0
          %v1240 = vadd.f32 %v1201, %v1239
          %v1241 = vpop.f32.mrb[0].mxu0
          %v1242 = vpop.f32.mrb[0].mxu0
          %v1243 = vpop.f32.mrb[0].mxu0
          %1244 = vdwg.mxu0
          %vm1245 = vcmask 261120
          %1246 = vst.msk [vmem:[#allocation2] sm:$0xff] %vm1245, %v1195
          %vm1247 = vcmask 253952
          %1248 = vst.msk [vmem:[#allocation2] sm:$0x1] %vm1247, %v1240
        $region152: #{graph_attention_model_forward.2} parent=107 // pred_fallthru
          _
        %v1249 = vld [vmem:[#allocation2] sm:$0xff]
        %v1250 = vld [vmem:[%s1100] sm:$0xff]
        %v1251 = vpack.c.bf16 %v1249, %v1249
        %v1252 = vld [vmem:[%s1105] sm:$0xf]
        %v1253 = vld [vmem:[%s1105 + $0x4] sm:$0xf]
        %v1254 = vld [vmem:[%s1105 + $0x8] sm:$0xf]
        %v1255 = vld [vmem:[%s1105 + $0xc] sm:$0xf]
        %v1256 = vld [vmem:[%s906] sm:$0x1]
        %v1258 = vlaneseq
        %v1259 = vshrl.u32 %v1258, 7
        %v1260 = vsub.s32 0, %v1259
        %v1261 = vrot.slane %v1256, %v1260
        %v1267 = vunpack.c.l.b16 %v1252
        %v1268 = vunpack.c.l.b16 %v1253
        %v1269 = vunpack.c.l.b16 %v1254
        %v1270 = vunpack.c.l.b16 %v1255
        %v1271 = vpack.c.b16 %v1268, %v1267
        %v1272 = vpack.c.b16 %v1270, %v1269
        %vm1275 = vcmask 261120
        %v1277 = vsel %vm1275, %v1251, 0
        %1279 = vmatprep.subr.bf16.mxu0 0
        %1280 = vmatpush1.bf16.msra.mxu0 %v1271
        %1281 = vmatprep.subr.bf16.mxu0 0
        %1282 = vmatpush1.bf16.msra.mxu0 %v1272
        %1283 = vmatprep.subr.bf16.mxu0 0
        %1284 = vmatpush1.bf16.msra.mxu0 0
        %1285 = vmatprep.subr.bf16.mxu0 0
        %1286 = vmatpush1.bf16.msra.mxu0 0
        %1287 = vmatprep.subr.bf16.mxu0 0
        %1288 = vmatpush1.bf16.msra.mxu0 0
        %1289 = vmatprep.subr.bf16.mxu0 0
        %1290 = vmatpush1.bf16.msra.mxu0 0
        %1291 = vmatprep.subr.bf16.mxu0 0
        %1292 = vmatpush1.bf16.msra.mxu0 0
        %1293 = vmatprep.subr.bf16.mxu0 0
        %1294 = vmatpush1.bf16.msra.mxu0 0
        %1295 = vmatprep.subr.bf16.mxu0 0
        %1296 = vmatpush1.bf16.msra.mxu0 0
        %1297 = vmatprep.subr.bf16.mxu0 0
        %1298 = vmatpush1.bf16.msra.mxu0 0
        %1299 = vmatprep.subr.bf16.mxu0 0
        %1300 = vmatpush1.bf16.msra.mxu0 0
        %1301 = vmatprep.subr.bf16.mxu0 0
        %1302 = vmatpush1.bf16.msra.mxu0 0
        %1303 = vmatprep.subr.bf16.mxu0 0
        %1304 = vmatpush1.bf16.msra.mxu0 0
        %1305 = vmatprep.subr.bf16.mxu0 0
        %1306 = vmatpush1.bf16.msra.mxu0 0
        %1307 = vmatprep.subr.bf16.mxu0 0
        %1308 = vmatpush1.bf16.msra.mxu0 0
        %1309 = vmatprep.subr.bf16.mxu0 0
        %1310 = vmatpush1.bf16.msra.mxu0 0
        %1311 = vmatprep.mubr.bf16.mxu0 0
        %1312 = vmatmul.mubr.bf16.gmra.mrb[0].mxu0 %v1277
        %v1313 = vpop.f32.mrb[0].mxu0
        %v1314 = vadd.f32 %v1261, %v1313
        %v1315 = vpop.f32.mrb[0].mxu0
        %v1316 = vpop.f32.mrb[0].mxu0
        %v1317 = vpop.f32.mrb[0].mxu0
        %1318 = vdwg.mxu0
        %v1319 = vld [vmem:[%s1110] sm:$0xf]
        %v1320 = vld [vmem:[%s1110 + $0x4] sm:$0xf]
        %v1321 = vld [vmem:[%s1110 + $0x8] sm:$0xf]
        %v1322 = vld [vmem:[%s1110 + $0xc] sm:$0xf]
        %v1323 = vld [vmem:[%s1113] sm:$0x1]
        %v1325 = vlaneseq
        %v1326 = vshrl.u32 %v1325, 7
        %v1327 = vsub.s32 0, %v1326
        %v1328 = vrot.slane %v1323, %v1327
        %v1334 = vunpack.c.l.b16 %v1319
        %v1335 = vunpack.c.l.b16 %v1320
        %v1336 = vunpack.c.l.b16 %v1321
        %v1337 = vunpack.c.l.b16 %v1322
        %v1338 = vpack.c.b16 %v1335, %v1334
        %v1339 = vpack.c.b16 %v1337, %v1336
        %1342 = vmatprep.subr.bf16.mxu0 0
        %1343 = vmatpush1.bf16.msra.mxu0 %v1338
        %1344 = vmatprep.subr.bf16.mxu0 0
        %1345 = vmatpush1.bf16.msra.mxu0 %v1339
        %1346 = vmatprep.subr.bf16.mxu0 0
        %1347 = vmatpush1.bf16.msra.mxu0 0
        %1348 = vmatprep.subr.bf16.mxu0 0
        %1349 = vmatpush1.bf16.msra.mxu0 0
        %1350 = vmatprep.subr.bf16.mxu0 0
        %1351 = vmatpush1.bf16.msra.mxu0 0
        %1352 = vmatprep.subr.bf16.mxu0 0
        %1353 = vmatpush1.bf16.msra.mxu0 0
        %1354 = vmatprep.subr.bf16.mxu0 0
        %1355 = vmatpush1.bf16.msra.mxu0 0
        %1356 = vmatprep.subr.bf16.mxu0 0
        %1357 = vmatpush1.bf16.msra.mxu0 0
        %1358 = vmatprep.subr.bf16.mxu0 0
        %1359 = vmatpush1.bf16.msra.mxu0 0
        %1360 = vmatprep.subr.bf16.mxu0 0
        %1361 = vmatpush1.bf16.msra.mxu0 0
        %1362 = vmatprep.subr.bf16.mxu0 0
        %1363 = vmatpush1.bf16.msra.mxu0 0
        %1364 = vmatprep.subr.bf16.mxu0 0
        %1365 = vmatpush1.bf16.msra.mxu0 0
        %1366 = vmatprep.subr.bf16.mxu0 0
        %1367 = vmatpush1.bf16.msra.mxu0 0
        %1368 = vmatprep.subr.bf16.mxu0 0
        %1369 = vmatpush1.bf16.msra.mxu0 0
        %1370 = vmatprep.subr.bf16.mxu0 0
        %1371 = vmatpush1.bf16.msra.mxu0 0
        %1372 = vmatprep.subr.bf16.mxu0 0
        %1373 = vmatpush1.bf16.msra.mxu0 0
        %1374 = vmatprep.mubr.bf16.mxu0 0
        %1375 = vmatmul.mubr.bf16.gmra.mrb[0].mxu0 %v1277
        %v1376 = vpop.f32.mrb[0].mxu0
        %v1377 = vadd.f32 %v1328, %v1376
        %v1378 = vpop.f32.mrb[0].mxu0
        %v1379 = vpop.f32.mrb[0].mxu0
        %v1380 = vpop.f32.mrb[0].mxu0
        %1381 = vdwg.mxu0
        %v1382 = vld [vmem:[%s1118] sm:$0xf]
        %v1383 = vld [vmem:[%s1118 + $0x4] sm:$0xf]
        %v1384 = vld [vmem:[%s1118 + $0x8] sm:$0xf]
        %v1385 = vld [vmem:[%s1118 + $0xc] sm:$0xf]
        %v1386 = vld [vmem:[%s914] sm:$0x1]
        %v1388 = vlaneseq
        %v1389 = vshrl.u32 %v1388, 7
        %v1390 = vsub.s32 0, %v1389
        %v1391 = vrot.slane %v1386, %v1390
        %v1397 = vunpack.c.l.b16 %v1382
        %v1398 = vunpack.c.l.b16 %v1383
        %v1399 = vunpack.c.l.b16 %v1384
        %v1400 = vunpack.c.l.b16 %v1385
        %v1401 = vpack.c.b16 %v1398, %v1397
        %v1402 = vpack.c.b16 %v1400, %v1399
        %1405 = vmatprep.subr.bf16.mxu0 0
        %1406 = vmatpush1.bf16.msra.mxu0 %v1401
        %1407 = vmatprep.subr.bf16.mxu0 0
        %1408 = vmatpush1.bf16.msra.mxu0 %v1402
        %1409 = vmatprep.subr.bf16.mxu0 0
        %1410 = vmatpush1.bf16.msra.mxu0 0
        %1411 = vmatprep.subr.bf16.mxu0 0
        %1412 = vmatpush1.bf16.msra.mxu0 0
        %1413 = vmatprep.subr.bf16.mxu0 0
        %1414 = vmatpush1.bf16.msra.mxu0 0
        %1415 = vmatprep.subr.bf16.mxu0 0
        %1416 = vmatpush1.bf16.msra.mxu0 0
        %1417 = vmatprep.subr.bf16.mxu0 0
        %1418 = vmatpush1.bf16.msra.mxu0 0
        %1419 = vmatprep.subr.bf16.mxu0 0
        %1420 = vmatpush1.bf16.msra.mxu0 0
        %1421 = vmatprep.subr.bf16.mxu0 0
        %1422 = vmatpush1.bf16.msra.mxu0 0
        %1423 = vmatprep.subr.bf16.mxu0 0
        %1424 = vmatpush1.bf16.msra.mxu0 0
        %1425 = vmatprep.subr.bf16.mxu0 0
        %1426 = vmatpush1.bf16.msra.mxu0 0
        %1427 = vmatprep.subr.bf16.mxu0 0
        %1428 = vmatpush1.bf16.msra.mxu0 0
        %1429 = vmatprep.subr.bf16.mxu0 0
        %1430 = vmatpush1.bf16.msra.mxu0 0
        %1431 = vmatprep.subr.bf16.mxu0 0
        %1432 = vmatpush1.bf16.msra.mxu0 0
        %1433 = vmatprep.subr.bf16.mxu0 0
        %1434 = vmatpush1.bf16.msra.mxu0 0
        %1435 = vmatprep.subr.bf16.mxu0 0
        %1436 = vmatpush1.bf16.msra.mxu0 0
        %1437 = vmatprep.mubr.bf16.mxu0 0
        %1438 = vmatmul.mubr.bf16.gmra.mrb[0].mxu0 %v1277
        %v1439 = vpop.f32.mrb[0].mxu0
        %v1440 = vadd.f32 %v1391, %v1439
        %v1441 = vpop.f32.mrb[0].mxu0
        %v1442 = vpop.f32.mrb[0].mxu0
        %v1443 = vpop.f32.mrb[0].mxu0
        %1444 = vdwg.mxu0
        %s1445 = smul.u32 %s47, 128
        %s1446 = sld [smem:[#allocation4 + %s1445]]
        %v1447 = vstv %s1446
        %v1448 = vmul.f32 %v1250, %v1447
        %s1449 = sadd.s32 %s1445, 4
        %s1450 = sld [smem:[#allocation4 + %s1449]]
        %v1451 = vstv %s1450
        %v1452 = vadd.f32 %v1448, %v1451
        %s1453 = sadd.s32 %s1445, 1
        %s1454 = sld [smem:[#allocation4 + %s1453]]
        %v1455 = vstv %s1454
        %v1456 = vmul.f32 %v1250, %v1455
        %s1457 = sadd.s32 %s1445, 5
        %s1458 = sld [smem:[#allocation4 + %s1457]]
        %v1459 = vstv %s1458
        %v1460 = vadd.f32 %v1456, %v1459
        %s1461 = sadd.s32 %s1445, 2
        %s1462 = sld [smem:[#allocation4 + %s1461]]
        %v1463 = vstv %s1462
        %v1464 = vmul.f32 %v1250, %v1463
        %s1465 = sadd.s32 %s1445, 6
        %s1466 = sld [smem:[#allocation4 + %s1465]]
        %v1467 = vstv %s1466
        %v1468 = vadd.f32 %v1464, %v1467
        %s1469 = sadd.s32 %s1445, 3
        %s1470 = sld [smem:[#allocation4 + %s1469]]
        %v1471 = vstv %s1470
        %v1472 = vmul.f32 %v1250, %v1471
        %s1473 = sadd.s32 %s1445, 7
        %s1474 = sld [smem:[#allocation4 + %s1473]]
        %v1475 = vstv %s1474
        %v1476 = vadd.f32 %v1472, %v1475
        %1478 = vrot.lane.b32.xlu0 %v1314, 120
        %v1479 = vpop.permute.xlu0 %1478
        %1481 = vrot.lane.b32.xlu0 %v1314, 112
        %v1482 = vpop.permute.xlu0 %1481
        %1484 = vrot.lane.b32.xlu0 %v1314, 104
        %v1485 = vpop.permute.xlu0 %1484
        %v1487 = vcombine.low %v1314, %v1482
        %v1488 = vcombine.high %v1314, %v1482
        %v1490 = vunpack.c.l.s4 1983009808
        %v1491 = vunpack.c.0.s8 %v1490
        %v1492 = vlaneseq
        %v1493 = vshrl.u32 %v1492, 7
        %v1494 = vsub.s32 %v1491, %v1493
        %v1495 = vrot.slane %v1487, %v1494
        %v1497 = vunpack.c.l.s4 1983009808
        %v1498 = vunpack.c.0.s8 %v1497
        %v1499 = vlaneseq
        %v1500 = vshrl.u32 %v1499, 7
        %v1501 = vsub.s32 %v1498, %v1500
        %v1502 = vrot.slane %v1488, %v1501
        %v1503 = vcombine.low %v1479, %v1485
        %v1504 = vcombine.high %v1479, %v1485
        %v1506 = vunpack.c.l.s4 1983009808
        %v1507 = vunpack.c.0.s8 %v1506
        %v1508 = vlaneseq
        %v1509 = vshrl.u32 %v1508, 7
        %v1510 = vsub.s32 %v1507, %v1509
        %v1511 = vrot.slane %v1503, %v1510
        %v1513 = vunpack.c.l.s4 1983009808
        %v1514 = vunpack.c.0.s8 %v1513
        %v1515 = vlaneseq
        %v1516 = vshrl.u32 %v1515, 7
        %v1517 = vsub.s32 %v1514, %v1516
        %v1518 = vrot.slane %v1504, %v1517
        %v1519 = vcombine.low %v1495, %v1511
        %v1520 = vcombine.high %v1495, %v1511
        %v1522 = vunpack.c.l.s4 1934713408
        %v1523 = vunpack.c.0.s8 %v1522
        %v1524 = vlaneseq
        %v1525 = vshrl.u32 %v1524, 7
        %v1526 = vsub.s32 %v1523, %v1525
        %v1527 = vrot.slane %v1519, %v1526
        %v1529 = vunpack.c.l.s4 1934713408
        %v1530 = vunpack.c.0.s8 %v1529
        %v1531 = vlaneseq
        %v1532 = vshrl.u32 %v1531, 7
        %v1533 = vsub.s32 %v1530, %v1532
        %v1534 = vrot.slane %v1520, %v1533
        %v1535 = vcombine.low %v1502, %v1518
        %v1536 = vcombine.high %v1502, %v1518
        %v1538 = vunpack.c.l.s4 1934713408
        %v1539 = vunpack.c.0.s8 %v1538
        %v1540 = vlaneseq
        %v1541 = vshrl.u32 %v1540, 7
        %v1542 = vsub.s32 %v1539, %v1541
        %v1543 = vrot.slane %v1535, %v1542
        %v1545 = vunpack.c.l.s4 1934713408
        %v1546 = vunpack.c.0.s8 %v1545
        %v1547 = vlaneseq
        %v1548 = vshrl.u32 %v1547, 7
        %v1549 = vsub.s32 %v1546, %v1548
        %v1550 = vrot.slane %v1536, %v1549
        %v1551 = vcombine.high %v1527, 0.0
        %v1552 = vcombine.high %v1534, 0.0
        %v1553 = vcombine.high %v1543, 0.0
        %v1554 = vcombine.high %v1550, 0.0
        %v1555 = vcombine.low %v1527, %v1534
        %v1557 = vunpack.c.l.s4 1983009808
        %v1558 = vunpack.c.0.s8 %v1557
        %v1559 = vlaneseq
        %v1560 = vshrl.u32 %v1559, 7
        %v1561 = vsub.s32 %v1558, %v1560
        %v1562 = vrot.slane %v1555, %v1561
        %v1563 = vcombine.low %v1551, %v1552
        %v1565 = vunpack.c.l.s4 1983009808
        %v1566 = vunpack.c.0.s8 %v1565
        %v1567 = vlaneseq
        %v1568 = vshrl.u32 %v1567, 7
        %v1569 = vsub.s32 %v1566, %v1568
        %v1570 = vrot.slane %v1563, %v1569
        %v1571 = vcombine.low %v1543, %v1550
        %v1573 = vunpack.c.l.s4 1983009808
        %v1574 = vunpack.c.0.s8 %v1573
        %v1575 = vlaneseq
        %v1576 = vshrl.u32 %v1575, 7
        %v1577 = vsub.s32 %v1574, %v1576
        %v1578 = vrot.slane %v1571, %v1577
        %v1579 = vcombine.low %v1553, %v1554
        %v1581 = vunpack.c.l.s4 1983009808
        %v1582 = vunpack.c.0.s8 %v1581
        %v1583 = vlaneseq
        %v1584 = vshrl.u32 %v1583, 7
        %v1585 = vsub.s32 %v1582, %v1584
        %v1586 = vrot.slane %v1579, %v1585
        %v1587 = vcombine.low %v1562, %v1570
        %v1588 = vcombine.high %v1562, %v1570
        %v1590 = vunpack.c.l.s4 1934713408
        %v1591 = vunpack.c.0.s8 %v1590
        %v1592 = vlaneseq
        %v1593 = vshrl.u32 %v1592, 7
        %v1594 = vsub.s32 %v1591, %v1593
        %v1595 = vrot.slane %v1587, %v1594
        %v1597 = vunpack.c.l.s4 1934713408
        %v1598 = vunpack.c.0.s8 %v1597
        %v1599 = vlaneseq
        %v1600 = vshrl.u32 %v1599, 7
        %v1601 = vsub.s32 %v1598, %v1600
        %v1602 = vrot.slane %v1588, %v1601
        %v1603 = vcombine.low %v1578, %v1586
        %v1604 = vcombine.high %v1578, %v1586
        %v1606 = vunpack.c.l.s4 1934713408
        %v1607 = vunpack.c.0.s8 %v1606
        %v1608 = vlaneseq
        %v1609 = vshrl.u32 %v1608, 7
        %v1610 = vsub.s32 %v1607, %v1609
        %v1611 = vrot.slane %v1603, %v1610
        %v1613 = vunpack.c.l.s4 1934713408
        %v1614 = vunpack.c.0.s8 %v1613
        %v1615 = vlaneseq
        %v1616 = vshrl.u32 %v1615, 7
        %v1617 = vsub.s32 %v1614, %v1616
        %v1618 = vrot.slane %v1604, %v1617
        %v1619 = vcombine.low %v1595, %v1611
        %v1620 = vcombine.high %v1595, %v1611
        %v1621 = vcombine.low %v1602, %v1618
        %v1622 = vcombine.high %v1602, %v1618
        %v1623 = vpack.c.bf16 %v1619, %v1619
        %v1624 = vpack.c.bf16 %v1620, %v1620
        %v1625 = vpack.c.bf16 %v1621, %v1621
        %v1626 = vpack.c.bf16 %v1622, %v1622
        %1628 = vrot.lane.b32.xlu0 %v1377, 120
        %v1629 = vpop.permute.xlu0 %1628
        %1631 = vrot.lane.b32.xlu0 %v1377, 112
        %v1632 = vpop.permute.xlu0 %1631
        %1634 = vrot.lane.b32.xlu0 %v1377, 104
        %v1635 = vpop.permute.xlu0 %1634
        %v1637 = vcombine.low %v1377, %v1632
        %v1638 = vcombine.high %v1377, %v1632
        %v1640 = vunpack.c.l.s4 1983009808
        %v1641 = vunpack.c.0.s8 %v1640
        %v1642 = vlaneseq
        %v1643 = vshrl.u32 %v1642, 7
        %v1644 = vsub.s32 %v1641, %v1643
        %v1645 = vrot.slane %v1637, %v1644
        %v1647 = vunpack.c.l.s4 1983009808
        %v1648 = vunpack.c.0.s8 %v1647
        %v1649 = vlaneseq
        %v1650 = vshrl.u32 %v1649, 7
        %v1651 = vsub.s32 %v1648, %v1650
        %v1652 = vrot.slane %v1638, %v1651
        %v1653 = vcombine.low %v1629, %v1635
        %v1654 = vcombine.high %v1629, %v1635
        %v1656 = vunpack.c.l.s4 1983009808
        %v1657 = vunpack.c.0.s8 %v1656
        %v1658 = vlaneseq
        %v1659 = vshrl.u32 %v1658, 7
        %v1660 = vsub.s32 %v1657, %v1659
        %v1661 = vrot.slane %v1653, %v1660
        %v1663 = vunpack.c.l.s4 1983009808
        %v1664 = vunpack.c.0.s8 %v1663
        %v1665 = vlaneseq
        %v1666 = vshrl.u32 %v1665, 7
        %v1667 = vsub.s32 %v1664, %v1666
        %v1668 = vrot.slane %v1654, %v1667
        %v1669 = vcombine.low %v1645, %v1661
        %v1670 = vcombine.high %v1645, %v1661
        %v1672 = vunpack.c.l.s4 1934713408
        %v1673 = vunpack.c.0.s8 %v1672
        %v1674 = vlaneseq
        %v1675 = vshrl.u32 %v1674, 7
        %v1676 = vsub.s32 %v1673, %v1675
        %v1677 = vrot.slane %v1669, %v1676
        %v1679 = vunpack.c.l.s4 1934713408
        %v1680 = vunpack.c.0.s8 %v1679
        %v1681 = vlaneseq
        %v1682 = vshrl.u32 %v1681, 7
        %v1683 = vsub.s32 %v1680, %v1682
        %v1684 = vrot.slane %v1670, %v1683
        %v1685 = vcombine.low %v1652, %v1668
        %v1686 = vcombine.high %v1652, %v1668
        %v1688 = vunpack.c.l.s4 1934713408
        %v1689 = vunpack.c.0.s8 %v1688
        %v1690 = vlaneseq
        %v1691 = vshrl.u32 %v1690, 7
        %v1692 = vsub.s32 %v1689, %v1691
        %v1693 = vrot.slane %v1685, %v1692
        %v1695 = vunpack.c.l.s4 1934713408
        %v1696 = vunpack.c.0.s8 %v1695
        %v1697 = vlaneseq
        %v1698 = vshrl.u32 %v1697, 7
        %v1699 = vsub.s32 %v1696, %v1698
        %v1700 = vrot.slane %v1686, %v1699
        %v1701 = vcombine.high %v1677, 0.0
        %v1702 = vcombine.high %v1684, 0.0
        %v1703 = vcombine.high %v1693, 0.0
        %v1704 = vcombine.high %v1700, 0.0
        %v1705 = vcombine.low %v1677, %v1684
        %v1707 = vunpack.c.l.s4 1983009808
        %v1708 = vunpack.c.0.s8 %v1707
        %v1709 = vlaneseq
        %v1710 = vshrl.u32 %v1709, 7
        %v1711 = vsub.s32 %v1708, %v1710
        %v1712 = vrot.slane %v1705, %v1711
        %v1713 = vcombine.low %v1701, %v1702
        %v1715 = vunpack.c.l.s4 1983009808
        %v1716 = vunpack.c.0.s8 %v1715
        %v1717 = vlaneseq
        %v1718 = vshrl.u32 %v1717, 7
        %v1719 = vsub.s32 %v1716, %v1718
        %v1720 = vrot.slane %v1713, %v1719
        %v1721 = vcombine.low %v1693, %v1700
        %v1723 = vunpack.c.l.s4 1983009808
        %v1724 = vunpack.c.0.s8 %v1723
        %v1725 = vlaneseq
        %v1726 = vshrl.u32 %v1725, 7
        %v1727 = vsub.s32 %v1724, %v1726
        %v1728 = vrot.slane %v1721, %v1727
        %v1729 = vcombine.low %v1703, %v1704
        %v1731 = vunpack.c.l.s4 1983009808
        %v1732 = vunpack.c.0.s8 %v1731
        %v1733 = vlaneseq
        %v1734 = vshrl.u32 %v1733, 7
        %v1735 = vsub.s32 %v1732, %v1734
        %v1736 = vrot.slane %v1729, %v1735
        %v1737 = vcombine.low %v1712, %v1720
        %v1738 = vcombine.high %v1712, %v1720
        %v1740 = vunpack.c.l.s4 1934713408
        %v1741 = vunpack.c.0.s8 %v1740
        %v1742 = vlaneseq
        %v1743 = vshrl.u32 %v1742, 7
        %v1744 = vsub.s32 %v1741, %v1743
        %v1745 = vrot.slane %v1737, %v1744
        %v1747 = vunpack.c.l.s4 1934713408
        %v1748 = vunpack.c.0.s8 %v1747
        %v1749 = vlaneseq
        %v1750 = vshrl.u32 %v1749, 7
        %v1751 = vsub.s32 %v1748, %v1750
        %v1752 = vrot.slane %v1738, %v1751
        %v1753 = vcombine.low %v1728, %v1736
        %v1754 = vcombine.high %v1728, %v1736
        %v1756 = vunpack.c.l.s4 1934713408
        %v1757 = vunpack.c.0.s8 %v1756
        %v1758 = vlaneseq
        %v1759 = vshrl.u32 %v1758, 7
        %v1760 = vsub.s32 %v1757, %v1759
        %v1761 = vrot.slane %v1753, %v1760
        %v1763 = vunpack.c.l.s4 1934713408
        %v1764 = vunpack.c.0.s8 %v1763
        %v1765 = vlaneseq
        %v1766 = vshrl.u32 %v1765, 7
        %v1767 = vsub.s32 %v1764, %v1766
        %v1768 = vrot.slane %v1754, %v1767
        %v1769 = vcombine.low %v1745, %v1761
        %v1770 = vcombine.high %v1745, %v1761
        %v1771 = vcombine.low %v1752, %v1768
        %v1772 = vcombine.high %v1752, %v1768
        %v1773 = vpack.c.bf16 %v1769, %v1769
        %v1774 = vpack.c.bf16 %v1770, %v1770
        %v1775 = vpack.c.bf16 %v1771, %v1771
        %v1776 = vpack.c.bf16 %v1772, %v1772
        %1778 = vrot.lane.b32.xlu0 %v1440, 120
        %v1779 = vpop.permute.xlu0 %1778
        %1781 = vrot.lane.b32.xlu0 %v1440, 112
        %v1782 = vpop.permute.xlu0 %1781
        %1784 = vrot.lane.b32.xlu0 %v1440, 104
        %v1785 = vpop.permute.xlu0 %1784
        %v1787 = vcombine.low %v1440, %v1782
        %v1788 = vcombine.high %v1440, %v1782
        %v1790 = vunpack.c.l.s4 1983009808
        %v1791 = vunpack.c.0.s8 %v1790
        %v1792 = vlaneseq
        %v1793 = vshrl.u32 %v1792, 7
        %v1794 = vsub.s32 %v1791, %v1793
        %v1795 = vrot.slane %v1787, %v1794
        %v1797 = vunpack.c.l.s4 1983009808
        %v1798 = vunpack.c.0.s8 %v1797
        %v1799 = vlaneseq
        %v1800 = vshrl.u32 %v1799, 7
        %v1801 = vsub.s32 %v1798, %v1800
        %v1802 = vrot.slane %v1788, %v1801
        %v1803 = vcombine.low %v1779, %v1785
        %v1804 = vcombine.high %v1779, %v1785
        %v1806 = vunpack.c.l.s4 1983009808
        %v1807 = vunpack.c.0.s8 %v1806
        %v1808 = vlaneseq
        %v1809 = vshrl.u32 %v1808, 7
        %v1810 = vsub.s32 %v1807, %v1809
        %v1811 = vrot.slane %v1803, %v1810
        %v1813 = vunpack.c.l.s4 1983009808
        %v1814 = vunpack.c.0.s8 %v1813
        %v1815 = vlaneseq
        %v1816 = vshrl.u32 %v1815, 7
        %v1817 = vsub.s32 %v1814, %v1816
        %v1818 = vrot.slane %v1804, %v1817
        %v1819 = vcombine.low %v1795, %v1811
        %v1820 = vcombine.high %v1795, %v1811
        %v1822 = vunpack.c.l.s4 1934713408
        %v1823 = vunpack.c.0.s8 %v1822
        %v1824 = vlaneseq
        %v1825 = vshrl.u32 %v1824, 7
        %v1826 = vsub.s32 %v1823, %v1825
        %v1827 = vrot.slane %v1819, %v1826
        %v1829 = vunpack.c.l.s4 1934713408
        %v1830 = vunpack.c.0.s8 %v1829
        %v1831 = vlaneseq
        %v1832 = vshrl.u32 %v1831, 7
        %v1833 = vsub.s32 %v1830, %v1832
        %v1834 = vrot.slane %v1820, %v1833
        %v1835 = vcombine.low %v1802, %v1818
        %v1836 = vcombine.high %v1802, %v1818
        %v1838 = vunpack.c.l.s4 1934713408
        %v1839 = vunpack.c.0.s8 %v1838
        %v1840 = vlaneseq
        %v1841 = vshrl.u32 %v1840, 7
        %v1842 = vsub.s32 %v1839, %v1841
        %v1843 = vrot.slane %v1835, %v1842
        %v1845 = vunpack.c.l.s4 1934713408
        %v1846 = vunpack.c.0.s8 %v1845
        %v1847 = vlaneseq
        %v1848 = vshrl.u32 %v1847, 7
        %v1849 = vsub.s32 %v1846, %v1848
        %v1850 = vrot.slane %v1836, %v1849
        %v1851 = vcombine.high %v1827, 0.0
        %v1852 = vcombine.high %v1834, 0.0
        %v1853 = vcombine.high %v1843, 0.0
        %v1854 = vcombine.high %v1850, 0.0
        %v1855 = vcombine.low %v1827, %v1834
        %v1857 = vunpack.c.l.s4 1983009808
        %v1858 = vunpack.c.0.s8 %v1857
        %v1859 = vlaneseq
        %v1860 = vshrl.u32 %v1859, 7
        %v1861 = vsub.s32 %v1858, %v1860
        %v1862 = vrot.slane %v1855, %v1861
        %v1863 = vcombine.low %v1851, %v1852
        %v1865 = vunpack.c.l.s4 1983009808
        %v1866 = vunpack.c.0.s8 %v1865
        %v1867 = vlaneseq
        %v1868 = vshrl.u32 %v1867, 7
        %v1869 = vsub.s32 %v1866, %v1868
        %v1870 = vrot.slane %v1863, %v1869
        %v1871 = vcombine.low %v1843, %v1850
        %v1873 = vunpack.c.l.s4 1983009808
        %v1874 = vunpack.c.0.s8 %v1873
        %v1875 = vlaneseq
        %v1876 = vshrl.u32 %v1875, 7
        %v1877 = vsub.s32 %v1874, %v1876
        %v1878 = vrot.slane %v1871, %v1877
        %v1879 = vcombine.low %v1853, %v1854
        %v1881 = vunpack.c.l.s4 1983009808
        %v1882 = vunpack.c.0.s8 %v1881
        %v1883 = vlaneseq
        %v1884 = vshrl.u32 %v1883, 7
        %v1885 = vsub.s32 %v1882, %v1884
        %v1886 = vrot.slane %v1879, %v1885
        %v1887 = vcombine.low %v1862, %v1870
        %v1888 = vcombine.high %v1862, %v1870
        %v1890 = vunpack.c.l.s4 1934713408
        %v1891 = vunpack.c.0.s8 %v1890
        %v1892 = vlaneseq
        %v1893 = vshrl.u32 %v1892, 7
        %v1894 = vsub.s32 %v1891, %v1893
        %v1895 = vrot.slane %v1887, %v1894
        %v1897 = vunpack.c.l.s4 1934713408
        %v1898 = vunpack.c.0.s8 %v1897
        %v1899 = vlaneseq
        %v1900 = vshrl.u32 %v1899, 7
        %v1901 = vsub.s32 %v1898, %v1900
        %v1902 = vrot.slane %v1888, %v1901
        %v1903 = vcombine.low %v1878, %v1886
        %v1904 = vcombine.high %v1878, %v1886
        %v1906 = vunpack.c.l.s4 1934713408
        %v1907 = vunpack.c.0.s8 %v1906
        %v1908 = vlaneseq
        %v1909 = vshrl.u32 %v1908, 7
        %v1910 = vsub.s32 %v1907, %v1909
        %v1911 = vrot.slane %v1903, %v1910
        %v1913 = vunpack.c.l.s4 1934713408
        %v1914 = vunpack.c.0.s8 %v1913
        %v1915 = vlaneseq
        %v1916 = vshrl.u32 %v1915, 7
        %v1917 = vsub.s32 %v1914, %v1916
        %v1918 = vrot.slane %v1904, %v1917
        %v1919 = vcombine.low %v1895, %v1911
        %v1920 = vcombine.high %v1895, %v1911
        %v1921 = vcombine.low %v1902, %v1918
        %v1922 = vcombine.high %v1902, %v1918
        %v1923 = vpack.c.bf16 %v1919, %v1919
        %v1924 = vpack.c.bf16 %v1920, %v1920
        %v1925 = vpack.c.bf16 %v1921, %v1921
        %v1926 = vpack.c.bf16 %v1922, %v1922
        %vm1927 = vcmask 64512
        %v1929 = vsel %vm1927, %v1623, 0
        %v1932 = vsel %vm1927, %v1773, 0
        %1934 = vmatprep.subr.bf16.mxu0 0
        %1935 = vmatpush1.bf16.xpose.msra.mxu0 %v1932
        %1936 = vmatprep.subr.bf16.mxu0 0
        %1937 = vmatpush1.bf16.xpose.msra.mxu0 0
        %1938 = vmatprep.subr.bf16.mxu0 0
        %1939 = vmatpush1.bf16.xpose.msra.mxu0 0
        %1940 = vmatprep.subr.bf16.mxu0 0
        %1941 = vmatpush1.bf16.xpose.msra.mxu0 0
        %1942 = vmatprep.subr.bf16.mxu0 0
        %1943 = vmatpush1.bf16.xpose.msra.mxu0 0
        %1944 = vmatprep.subr.bf16.mxu0 0
        %1945 = vmatpush1.bf16.xpose.msra.mxu0 0
        %1946 = vmatprep.subr.bf16.mxu0 0
        %1947 = vmatpush1.bf16.xpose.msra.mxu0 0
        %1948 = vmatprep.subr.bf16.mxu0 0
        %1949 = vmatpush1.bf16.xpose.msra.mxu0 0
        %1950 = vmatprep.subr.bf16.mxu0 0
        %1951 = vmatpush1.bf16.xpose.msra.mxu0 0
        %1952 = vmatprep.subr.bf16.mxu0 0
        %1953 = vmatpush1.bf16.xpose.msra.mxu0 0
        %1954 = vmatprep.subr.bf16.mxu0 0
        %1955 = vmatpush1.bf16.xpose.msra.mxu0 0
        %1956 = vmatprep.subr.bf16.mxu0 0
        %1957 = vmatpush1.bf16.xpose.msra.mxu0 0
        %1958 = vmatprep.subr.bf16.mxu0 0
        %1959 = vmatpush1.bf16.xpose.msra.mxu0 0
        %1960 = vmatprep.subr.bf16.mxu0 0
        %1961 = vmatpush1.bf16.xpose.msra.mxu0 0
        %1962 = vmatprep.subr.bf16.mxu0 0
        %1963 = vmatpush1.bf16.xpose.msra.mxu0 0
        %1964 = vmatprep.subr.bf16.mxu0 0
        %1965 = vmatpush1.bf16.xpose.msra.mxu0 0
        %1966 = vmatprep.mubr.bf16.mxu0 0
        %1967 = vmatmul.mubr.bf16.gmra.mrb[0].mxu0 %v1929
        %v1968 = vpop.f32.mrb[0].mxu0
        %v1969 = vadd.f32 %v1452, %v1968
        %v1970 = vpop.f32.mrb[0].mxu0
        %v1971 = vpop.f32.mrb[0].mxu0
        %v1972 = vpop.f32.mrb[0].mxu0
        %1973 = vdwg.mxu0
        %v1975 = vsel %vm1927, %v1624, 0
        %v1978 = vsel %vm1927, %v1774, 0
        %1980 = vmatprep.subr.bf16.mxu0 0
        %1981 = vmatpush1.bf16.xpose.msra.mxu0 %v1978
        %1982 = vmatprep.subr.bf16.mxu0 0
        %1983 = vmatpush1.bf16.xpose.msra.mxu0 0
        %1984 = vmatprep.subr.bf16.mxu0 0
        %1985 = vmatpush1.bf16.xpose.msra.mxu0 0
        %1986 = vmatprep.subr.bf16.mxu0 0
        %1987 = vmatpush1.bf16.xpose.msra.mxu0 0
        %1988 = vmatprep.subr.bf16.mxu0 0
        %1989 = vmatpush1.bf16.xpose.msra.mxu0 0
        %1990 = vmatprep.subr.bf16.mxu0 0
        %1991 = vmatpush1.bf16.xpose.msra.mxu0 0
        %1992 = vmatprep.subr.bf16.mxu0 0
        %1993 = vmatpush1.bf16.xpose.msra.mxu0 0
        %1994 = vmatprep.subr.bf16.mxu0 0
        %1995 = vmatpush1.bf16.xpose.msra.mxu0 0
        %1996 = vmatprep.subr.bf16.mxu0 0
        %1997 = vmatpush1.bf16.xpose.msra.mxu0 0
        %1998 = vmatprep.subr.bf16.mxu0 0
        %1999 = vmatpush1.bf16.xpose.msra.mxu0 0
        %2000 = vmatprep.subr.bf16.mxu0 0
        %2001 = vmatpush1.bf16.xpose.msra.mxu0 0
        %2002 = vmatprep.subr.bf16.mxu0 0
        %2003 = vmatpush1.bf16.xpose.msra.mxu0 0
        %2004 = vmatprep.subr.bf16.mxu0 0
        %2005 = vmatpush1.bf16.xpose.msra.mxu0 0
        %2006 = vmatprep.subr.bf16.mxu0 0
        %2007 = vmatpush1.bf16.xpose.msra.mxu0 0
        %2008 = vmatprep.subr.bf16.mxu0 0
        %2009 = vmatpush1.bf16.xpose.msra.mxu0 0
        %2010 = vmatprep.subr.bf16.mxu0 0
        %2011 = vmatpush1.bf16.xpose.msra.mxu0 0
        %2012 = vmatprep.mubr.bf16.mxu0 0
        %2013 = vmatmul.mubr.bf16.gmra.mrb[0].mxu0 %v1975
        %v2014 = vpop.f32.mrb[0].mxu0
        %v2015 = vadd.f32 %v1460, %v2014
        %v2016 = vpop.f32.mrb[0].mxu0
        %v2017 = vpop.f32.mrb[0].mxu0
        %v2018 = vpop.f32.mrb[0].mxu0
        %2019 = vdwg.mxu0
        %v2021 = vsel %vm1927, %v1625, 0
        %v2024 = vsel %vm1927, %v1775, 0
        %2026 = vmatprep.subr.bf16.mxu0 0
        %2027 = vmatpush1.bf16.xpose.msra.mxu0 %v2024
        %2028 = vmatprep.subr.bf16.mxu0 0
        %2029 = vmatpush1.bf16.xpose.msra.mxu0 0
        %2030 = vmatprep.subr.bf16.mxu0 0
        %2031 = vmatpush1.bf16.xpose.msra.mxu0 0
        %2032 = vmatprep.subr.bf16.mxu0 0
        %2033 = vmatpush1.bf16.xpose.msra.mxu0 0
        %2034 = vmatprep.subr.bf16.mxu0 0
        %2035 = vmatpush1.bf16.xpose.msra.mxu0 0
        %2036 = vmatprep.subr.bf16.mxu0 0
        %2037 = vmatpush1.bf16.xpose.msra.mxu0 0
        %2038 = vmatprep.subr.bf16.mxu0 0
        %2039 = vmatpush1.bf16.xpose.msra.mxu0 0
        %2040 = vmatprep.subr.bf16.mxu0 0
        %2041 = vmatpush1.bf16.xpose.msra.mxu0 0
        %2042 = vmatprep.subr.bf16.mxu0 0
        %2043 = vmatpush1.bf16.xpose.msra.mxu0 0
        %2044 = vmatprep.subr.bf16.mxu0 0
        %2045 = vmatpush1.bf16.xpose.msra.mxu0 0
        %2046 = vmatprep.subr.bf16.mxu0 0
        %2047 = vmatpush1.bf16.xpose.msra.mxu0 0
        %2048 = vmatprep.subr.bf16.mxu0 0
        %2049 = vmatpush1.bf16.xpose.msra.mxu0 0
        %2050 = vmatprep.subr.bf16.mxu0 0
        %2051 = vmatpush1.bf16.xpose.msra.mxu0 0
        %2052 = vmatprep.subr.bf16.mxu0 0
        %2053 = vmatpush1.bf16.xpose.msra.mxu0 0
        %2054 = vmatprep.subr.bf16.mxu0 0
        %2055 = vmatpush1.bf16.xpose.msra.mxu0 0
        %2056 = vmatprep.subr.bf16.mxu0 0
        %2057 = vmatpush1.bf16.xpose.msra.mxu0 0
        %2058 = vmatprep.mubr.bf16.mxu0 0
        %2059 = vmatmul.mubr.bf16.gmra.mrb[0].mxu0 %v2021
        %v2060 = vpop.f32.mrb[0].mxu0
        %v2061 = vadd.f32 %v1468, %v2060
        %v2062 = vpop.f32.mrb[0].mxu0
        %v2063 = vpop.f32.mrb[0].mxu0
        %v2064 = vpop.f32.mrb[0].mxu0
        %2065 = vdwg.mxu0
        %v2067 = vsel %vm1927, %v1626, 0
        %v2070 = vsel %vm1927, %v1776, 0
        %2072 = vmatprep.subr.bf16.mxu0 0
        %2073 = vmatpush1.bf16.xpose.msra.mxu0 %v2070
        %2074 = vmatprep.subr.bf16.mxu0 0
        %2075 = vmatpush1.bf16.xpose.msra.mxu0 0
        %2076 = vmatprep.subr.bf16.mxu0 0
        %2077 = vmatpush1.bf16.xpose.msra.mxu0 0
        %2078 = vmatprep.subr.bf16.mxu0 0
        %2079 = vmatpush1.bf16.xpose.msra.mxu0 0
        %2080 = vmatprep.subr.bf16.mxu0 0
        %2081 = vmatpush1.bf16.xpose.msra.mxu0 0
        %2082 = vmatprep.subr.bf16.mxu0 0
        %2083 = vmatpush1.bf16.xpose.msra.mxu0 0
        %2084 = vmatprep.subr.bf16.mxu0 0
        %2085 = vmatpush1.bf16.xpose.msra.mxu0 0
        %2086 = vmatprep.subr.bf16.mxu0 0
        %2087 = vmatpush1.bf16.xpose.msra.mxu0 0
        %2088 = vmatprep.subr.bf16.mxu0 0
        %2089 = vmatpush1.bf16.xpose.msra.mxu0 0
        %2090 = vmatprep.subr.bf16.mxu0 0
        %2091 = vmatpush1.bf16.xpose.msra.mxu0 0
        %2092 = vmatprep.subr.bf16.mxu0 0
        %2093 = vmatpush1.bf16.xpose.msra.mxu0 0
        %2094 = vmatprep.subr.bf16.mxu0 0
        %2095 = vmatpush1.bf16.xpose.msra.mxu0 0
        %2096 = vmatprep.subr.bf16.mxu0 0
        %2097 = vmatpush1.bf16.xpose.msra.mxu0 0
        %2098 = vmatprep.subr.bf16.mxu0 0
        %2099 = vmatpush1.bf16.xpose.msra.mxu0 0
        %2100 = vmatprep.subr.bf16.mxu0 0
        %2101 = vmatpush1.bf16.xpose.msra.mxu0 0
        %2102 = vmatprep.subr.bf16.mxu0 0
        %2103 = vmatpush1.bf16.xpose.msra.mxu0 0
        %2104 = vmatprep.mubr.bf16.mxu0 0
        %2105 = vmatmul.mubr.bf16.gmra.mrb[0].mxu0 %v2067
        %v2106 = vpop.f32.mrb[0].mxu0
        %v2107 = vadd.f32 %v1476, %v2106
        %v2108 = vpop.f32.mrb[0].mxu0
        %v2109 = vpop.f32.mrb[0].mxu0
        %v2110 = vpop.f32.mrb[0].mxu0
        %2111 = vdwg.mxu0
        %v2112 = vsel %vm1927, %v1969, -inf
        %2113 = vmax.xlane.f32.xlu0 %v2112
        %v2114 = vpop.xlane.xlu0 %2113
        %v2115 = vsel %vm1927, %v2015, -inf
        %2116 = vmax.xlane.f32.xlu0 %v2115
        %v2117 = vpop.xlane.xlu0 %2116
        %v2118 = vsel %vm1927, %v2061, -inf
        %2119 = vmax.xlane.f32.xlu0 %v2118
        %v2120 = vpop.xlane.xlu0 %2119
        %v2121 = vsel %vm1927, %v2107, -inf
        %2122 = vmax.xlane.f32.xlu0 %v2121
        %v2123 = vpop.xlane.xlu0 %2122
        %v2124 = vsub.f32 %v1969, %v2114
        %v2125 = vsub.f32 %v2015, %v2117
        %v2126 = vsub.f32 %v2061, %v2120
        %v2127 = vsub.f32 %v2107, %v2123
        %v2128 = vmul.f32 %v2124, 1.442695
        %v2129 = vpow.pop %v2128
        %v2130 = vmul.f32 %v2125, 1.442695
        %v2131 = vpow.pop %v2130
        %v2132 = vmul.f32 %v2126, 1.442695
        %v2133 = vpow.pop %v2132
        %v2134 = vmul.f32 %v2127, 1.442695
        %v2135 = vpow.pop %v2134
        %v2136 = vsel %vm1927, %v2129, 0.0
        %2137 = vadd.xlane.f32.xlu0 %v2136
        %v2138 = vpop.xlane.xlu0 %2137
        %v2139 = vsel %vm1927, %v2131, 0.0
        %2140 = vadd.xlane.f32.xlu0 %v2139
        %v2141 = vpop.xlane.xlu0 %2140
        %v2142 = vsel %vm1927, %v2133, 0.0
        %2143 = vadd.xlane.f32.xlu0 %v2142
        %v2144 = vpop.xlane.xlu0 %2143
        %v2145 = vsel %vm1927, %v2135, 0.0
        %2146 = vadd.xlane.f32.xlu0 %v2145
        %v2147 = vpop.xlane.xlu0 %2146
        %v2148 = vrcp.pop %v2138
        %v2149 = vrcp.pop %v2141
        %v2150 = vrcp.pop %v2144
        %v2151 = vrcp.pop %v2147
        %v2152 = vmul.f32 %v2129, %v2148
        %v2153 = vmul.f32 %v2131, %v2149
        %v2154 = vmul.f32 %v2133, %v2150
        %v2155 = vmul.f32 %v2135, %v2151
        %v2156 = vpack.c.bf16 %v2152, %v2152
        %v2157 = vpack.c.bf16 %v2153, %v2153
        %v2158 = vpack.c.bf16 %v2154, %v2154
        %v2159 = vpack.c.bf16 %v2155, %v2155
        %v2161 = vsel %vm1927, %v2156, 0
        %vm2163 = vcmask 1043456
        %v2165 = vsel %vm2163, %v1923, 0
        %2167 = vmatprep.subr.bf16.mxu0 0
        %2168 = vmatpush1.bf16.msra.mxu0 %v2165
        %2169 = vmatprep.subr.bf16.mxu0 0
        %2170 = vmatpush1.bf16.msra.mxu0 0
        %2171 = vmatprep.subr.bf16.mxu0 0
        %2172 = vmatpush1.bf16.msra.mxu0 0
        %2173 = vmatprep.subr.bf16.mxu0 0
        %2174 = vmatpush1.bf16.msra.mxu0 0
        %2175 = vmatprep.subr.bf16.mxu0 0
        %2176 = vmatpush1.bf16.msra.mxu0 0
        %2177 = vmatprep.subr.bf16.mxu0 0
        %2178 = vmatpush1.bf16.msra.mxu0 0
        %2179 = vmatprep.subr.bf16.mxu0 0
        %2180 = vmatpush1.bf16.msra.mxu0 0
        %2181 = vmatprep.subr.bf16.mxu0 0
        %2182 = vmatpush1.bf16.msra.mxu0 0
        %2183 = vmatprep.subr.bf16.mxu0 0
        %2184 = vmatpush1.bf16.msra.mxu0 0
        %2185 = vmatprep.subr.bf16.mxu0 0
        %2186 = vmatpush1.bf16.msra.mxu0 0
        %2187 = vmatprep.subr.bf16.mxu0 0
        %2188 = vmatpush1.bf16.msra.mxu0 0
        %2189 = vmatprep.subr.bf16.mxu0 0
        %2190 = vmatpush1.bf16.msra.mxu0 0
        %2191 = vmatprep.subr.bf16.mxu0 0
        %2192 = vmatpush1.bf16.msra.mxu0 0
        %2193 = vmatprep.subr.bf16.mxu0 0
        %2194 = vmatpush1.bf16.msra.mxu0 0
        %2195 = vmatprep.subr.bf16.mxu0 0
        %2196 = vmatpush1.bf16.msra.mxu0 0
        %2197 = vmatprep.subr.bf16.mxu0 0
        %2198 = vmatpush1.bf16.msra.mxu0 0
        %2199 = vmatprep.mubr.bf16.mxu0 0
        %2200 = vmatmul.mubr.bf16.gmra.mrb[0].mxu0 %v2161
        %v2201 = vpop.f32.mrb[0].mxu0
        %v2202 = vadd.f32 0.0, %v2201
        %v2203 = vpop.f32.mrb[0].mxu0
        %v2204 = vpop.f32.mrb[0].mxu0
        %v2205 = vpop.f32.mrb[0].mxu0
        %2206 = vdwg.mxu0
        %v2208 = vsel %vm1927, %v2157, 0
        %v2211 = vsel %vm2163, %v1924, 0
        %2213 = vmatprep.subr.bf16.mxu0 0
        %2214 = vmatpush1.bf16.msra.mxu0 %v2211
        %2215 = vmatprep.subr.bf16.mxu0 0
        %2216 = vmatpush1.bf16.msra.mxu0 0
        %2217 = vmatprep.subr.bf16.mxu0 0
        %2218 = vmatpush1.bf16.msra.mxu0 0
        %2219 = vmatprep.subr.bf16.mxu0 0
        %2220 = vmatpush1.bf16.msra.mxu0 0
        %2221 = vmatprep.subr.bf16.mxu0 0
        %2222 = vmatpush1.bf16.msra.mxu0 0
        %2223 = vmatprep.subr.bf16.mxu0 0
        %2224 = vmatpush1.bf16.msra.mxu0 0
        %2225 = vmatprep.subr.bf16.mxu0 0
        %2226 = vmatpush1.bf16.msra.mxu0 0
        %2227 = vmatprep.subr.bf16.mxu0 0
        %2228 = vmatpush1.bf16.msra.mxu0 0
        %2229 = vmatprep.subr.bf16.mxu0 0
        %2230 = vmatpush1.bf16.msra.mxu0 0
        %2231 = vmatprep.subr.bf16.mxu0 0
        %2232 = vmatpush1.bf16.msra.mxu0 0
        %2233 = vmatprep.subr.bf16.mxu0 0
        %2234 = vmatpush1.bf16.msra.mxu0 0
        %2235 = vmatprep.subr.bf16.mxu0 0
        %2236 = vmatpush1.bf16.msra.mxu0 0
        %2237 = vmatprep.subr.bf16.mxu0 0
        %2238 = vmatpush1.bf16.msra.mxu0 0
        %2239 = vmatprep.subr.bf16.mxu0 0
        %2240 = vmatpush1.bf16.msra.mxu0 0
        %2241 = vmatprep.subr.bf16.mxu0 0
        %2242 = vmatpush1.bf16.msra.mxu0 0
        %2243 = vmatprep.subr.bf16.mxu0 0
        %2244 = vmatpush1.bf16.msra.mxu0 0
        %2245 = vmatprep.mubr.bf16.mxu0 0
        %2246 = vmatmul.mubr.bf16.gmra.mrb[0].mxu0 %v2208
        %v2247 = vpop.f32.mrb[0].mxu0
        %v2248 = vadd.f32 0.0, %v2247
        %v2249 = vpop.f32.mrb[0].mxu0
        %v2250 = vpop.f32.mrb[0].mxu0
        %v2251 = vpop.f32.mrb[0].mxu0
        %2252 = vdwg.mxu0
        %v2254 = vsel %vm1927, %v2158, 0
        %v2257 = vsel %vm2163, %v1925, 0
        %2259 = vmatprep.subr.bf16.mxu0 0
        %2260 = vmatpush1.bf16.msra.mxu0 %v2257
        %2261 = vmatprep.subr.bf16.mxu0 0
        %2262 = vmatpush1.bf16.msra.mxu0 0
        %2263 = vmatprep.subr.bf16.mxu0 0
        %2264 = vmatpush1.bf16.msra.mxu0 0
        %2265 = vmatprep.subr.bf16.mxu0 0
        %2266 = vmatpush1.bf16.msra.mxu0 0
        %2267 = vmatprep.subr.bf16.mxu0 0
        %2268 = vmatpush1.bf16.msra.mxu0 0
        %2269 = vmatprep.subr.bf16.mxu0 0
        %2270 = vmatpush1.bf16.msra.mxu0 0
        %2271 = vmatprep.subr.bf16.mxu0 0
        %2272 = vmatpush1.bf16.msra.mxu0 0
        %2273 = vmatprep.subr.bf16.mxu0 0
        %2274 = vmatpush1.bf16.msra.mxu0 0
        %2275 = vmatprep.subr.bf16.mxu0 0
        %2276 = vmatpush1.bf16.msra.mxu0 0
        %2277 = vmatprep.subr.bf16.mxu0 0
        %2278 = vmatpush1.bf16.msra.mxu0 0
        %2279 = vmatprep.subr.bf16.mxu0 0
        %2280 = vmatpush1.bf16.msra.mxu0 0
        %2281 = vmatprep.subr.bf16.mxu0 0
        %2282 = vmatpush1.bf16.msra.mxu0 0
        %2283 = vmatprep.subr.bf16.mxu0 0
        %2284 = vmatpush1.bf16.msra.mxu0 0
        %2285 = vmatprep.subr.bf16.mxu0 0
        %2286 = vmatpush1.bf16.msra.mxu0 0
        %2287 = vmatprep.subr.bf16.mxu0 0
        %2288 = vmatpush1.bf16.msra.mxu0 0
        %2289 = vmatprep.subr.bf16.mxu0 0
        %2290 = vmatpush1.bf16.msra.mxu0 0
        %2291 = vmatprep.mubr.bf16.mxu0 0
        %2292 = vmatmul.mubr.bf16.gmra.mrb[0].mxu0 %v2254
        %v2293 = vpop.f32.mrb[0].mxu0
        %v2294 = vadd.f32 0.0, %v2293
        %v2295 = vpop.f32.mrb[0].mxu0
        %v2296 = vpop.f32.mrb[0].mxu0
        %v2297 = vpop.f32.mrb[0].mxu0
        %2298 = vdwg.mxu0
        %v2300 = vsel %vm1927, %v2159, 0
        %v2303 = vsel %vm2163, %v1926, 0
        %2305 = vmatprep.subr.bf16.mxu0 0
        %2306 = vmatpush1.bf16.msra.mxu0 %v2303
        %2307 = vmatprep.subr.bf16.mxu0 0
        %2308 = vmatpush1.bf16.msra.mxu0 0
        %2309 = vmatprep.subr.bf16.mxu0 0
        %2310 = vmatpush1.bf16.msra.mxu0 0
        %2311 = vmatprep.subr.bf16.mxu0 0
        %2312 = vmatpush1.bf16.msra.mxu0 0
        %2313 = vmatprep.subr.bf16.mxu0 0
        %2314 = vmatpush1.bf16.msra.mxu0 0
        %2315 = vmatprep.subr.bf16.mxu0 0
        %2316 = vmatpush1.bf16.msra.mxu0 0
        %2317 = vmatprep.subr.bf16.mxu0 0
        %2318 = vmatpush1.bf16.msra.mxu0 0
        %2319 = vmatprep.subr.bf16.mxu0 0
        %2320 = vmatpush1.bf16.msra.mxu0 0
        %2321 = vmatprep.subr.bf16.mxu0 0
        %2322 = vmatpush1.bf16.msra.mxu0 0
        %2323 = vmatprep.subr.bf16.mxu0 0
        %2324 = vmatpush1.bf16.msra.mxu0 0
        %2325 = vmatprep.subr.bf16.mxu0 0
        %2326 = vmatpush1.bf16.msra.mxu0 0
        %2327 = vmatprep.subr.bf16.mxu0 0
        %2328 = vmatpush1.bf16.msra.mxu0 0
        %2329 = vmatprep.subr.bf16.mxu0 0
        %2330 = vmatpush1.bf16.msra.mxu0 0
        %2331 = vmatprep.subr.bf16.mxu0 0
        %2332 = vmatpush1.bf16.msra.mxu0 0
        %2333 = vmatprep.subr.bf16.mxu0 0
        %2334 = vmatpush1.bf16.msra.mxu0 0
        %2335 = vmatprep.subr.bf16.mxu0 0
        %2336 = vmatpush1.bf16.msra.mxu0 0
        %2337 = vmatprep.mubr.bf16.mxu0 0
        %2338 = vmatmul.mubr.bf16.gmra.mrb[0].mxu0 %v2300
        %v2339 = vpop.f32.mrb[0].mxu0
        %v2340 = vadd.f32 0.0, %v2339
        %v2341 = vpop.f32.mrb[0].mxu0
        %v2342 = vpop.f32.mrb[0].mxu0
        %v2343 = vpop.f32.mrb[0].mxu0
        %2344 = vdwg.mxu0
        %v2345 = vcombine.low %v2202, %v2294
        %v2346 = vcombine.high %v2202, %v2294
        %v2348 = vunpack.c.l.s4 1983009808
        %v2349 = vunpack.c.0.s8 %v2348
        %v2350 = vlaneseq
        %v2351 = vshrl.u32 %v2350, 7
        %v2352 = vsub.s32 %v2349, %v2351
        %v2353 = vrot.slane %v2345, %v2352
        %v2355 = vunpack.c.l.s4 1983009808
        %v2356 = vunpack.c.0.s8 %v2355
        %v2357 = vlaneseq
        %v2358 = vshrl.u32 %v2357, 7
        %v2359 = vsub.s32 %v2356, %v2358
        %v2360 = vrot.slane %v2346, %v2359
        %v2361 = vcombine.low %v2248, %v2340
        %v2362 = vcombine.high %v2248, %v2340
        %v2364 = vunpack.c.l.s4 1983009808
        %v2365 = vunpack.c.0.s8 %v2364
        %v2366 = vlaneseq
        %v2367 = vshrl.u32 %v2366, 7
        %v2368 = vsub.s32 %v2365, %v2367
        %v2369 = vrot.slane %v2361, %v2368
        %v2371 = vunpack.c.l.s4 1983009808
        %v2372 = vunpack.c.0.s8 %v2371
        %v2373 = vlaneseq
        %v2374 = vshrl.u32 %v2373, 7
        %v2375 = vsub.s32 %v2372, %v2374
        %v2376 = vrot.slane %v2362, %v2375
        %v2377 = vcombine.low %v2353, %v2369
        %v2378 = vcombine.high %v2353, %v2369
        %v2380 = vunpack.c.l.s4 1934713408
        %v2381 = vunpack.c.0.s8 %v2380
        %v2382 = vlaneseq
        %v2383 = vshrl.u32 %v2382, 7
        %v2384 = vsub.s32 %v2381, %v2383
        %v2385 = vrot.slane %v2377, %v2384
        %v2387 = vunpack.c.l.s4 1934713408
        %v2388 = vunpack.c.0.s8 %v2387
        %v2389 = vlaneseq
        %v2390 = vshrl.u32 %v2389, 7
        %v2391 = vsub.s32 %v2388, %v2390
        %v2392 = vrot.slane %v2378, %v2391
        %v2393 = vcombine.low %v2360, %v2376
        %v2394 = vcombine.high %v2360, %v2376
        %v2396 = vunpack.c.l.s4 1934713408
        %v2397 = vunpack.c.0.s8 %v2396
        %v2398 = vlaneseq
        %v2399 = vshrl.u32 %v2398, 7
        %v2400 = vsub.s32 %v2397, %v2399
        %v2401 = vrot.slane %v2393, %v2400
        %v2403 = vunpack.c.l.s4 1934713408
        %v2404 = vunpack.c.0.s8 %v2403
        %v2405 = vlaneseq
        %v2406 = vshrl.u32 %v2405, 7
        %v2407 = vsub.s32 %v2404, %v2406
        %v2408 = vrot.slane %v2394, %v2407
        %v2409 = vcombine.high %v2385, 0.0
        %v2410 = vcombine.high %v2392, 0.0
        %v2411 = vcombine.high %v2401, 0.0
        %v2412 = vcombine.high %v2408, 0.0
        %v2413 = vcombine.low %v2385, %v2392
        %v2415 = vunpack.c.l.s4 1983009808
        %v2416 = vunpack.c.0.s8 %v2415
        %v2417 = vlaneseq
        %v2418 = vshrl.u32 %v2417, 7
        %v2419 = vsub.s32 %v2416, %v2418
        %v2420 = vrot.slane %v2413, %v2419
        %v2421 = vcombine.low %v2409, %v2410
        %v2423 = vunpack.c.l.s4 1983009808
        %v2424 = vunpack.c.0.s8 %v2423
        %v2425 = vlaneseq
        %v2426 = vshrl.u32 %v2425, 7
        %v2427 = vsub.s32 %v2424, %v2426
        %v2428 = vrot.slane %v2421, %v2427
        %v2429 = vcombine.low %v2401, %v2408
        %v2431 = vunpack.c.l.s4 1983009808
        %v2432 = vunpack.c.0.s8 %v2431
        %v2433 = vlaneseq
        %v2434 = vshrl.u32 %v2433, 7
        %v2435 = vsub.s32 %v2432, %v2434
        %v2436 = vrot.slane %v2429, %v2435
        %v2437 = vcombine.low %v2411, %v2412
        %v2439 = vunpack.c.l.s4 1983009808
        %v2440 = vunpack.c.0.s8 %v2439
        %v2441 = vlaneseq
        %v2442 = vshrl.u32 %v2441, 7
        %v2443 = vsub.s32 %v2440, %v2442
        %v2444 = vrot.slane %v2437, %v2443
        %v2445 = vcombine.low %v2420, %v2428
        %v2446 = vcombine.high %v2420, %v2428
        %v2448 = vunpack.c.l.s4 1934713408
        %v2449 = vunpack.c.0.s8 %v2448
        %v2450 = vlaneseq
        %v2451 = vshrl.u32 %v2450, 7
        %v2452 = vsub.s32 %v2449, %v2451
        %v2453 = vrot.slane %v2445, %v2452
        %v2455 = vunpack.c.l.s4 1934713408
        %v2456 = vunpack.c.0.s8 %v2455
        %v2457 = vlaneseq
        %v2458 = vshrl.u32 %v2457, 7
        %v2459 = vsub.s32 %v2456, %v2458
        %v2460 = vrot.slane %v2446, %v2459
        %v2461 = vcombine.low %v2436, %v2444
        %v2462 = vcombine.high %v2436, %v2444
        %v2464 = vunpack.c.l.s4 1934713408
        %v2465 = vunpack.c.0.s8 %v2464
        %v2466 = vlaneseq
        %v2467 = vshrl.u32 %v2466, 7
        %v2468 = vsub.s32 %v2465, %v2467
        %v2469 = vrot.slane %v2461, %v2468
        %v2471 = vunpack.c.l.s4 1934713408
        %v2472 = vunpack.c.0.s8 %v2471
        %v2473 = vlaneseq
        %v2474 = vshrl.u32 %v2473, 7
        %v2475 = vsub.s32 %v2472, %v2474
        %v2476 = vrot.slane %v2462, %v2475
        %v2477 = vcombine.low %v2453, %v2469
        %v2478 = vcombine.high %v2453, %v2469
        %v2479 = vcombine.low %v2460, %v2476
        %v2480 = vcombine.high %v2460, %v2476
        %2482 = vrot.lane.b32.xlu0 %v2478, 8
        %v2483 = vpop.permute.xlu0 %2482
        %2486 = vrot.lane.b32.xlu0 %v2479, 16
        %v2487 = vpop.permute.xlu0 %2486
        %2490 = vrot.lane.b32.xlu0 %v2480, 24
        %v2491 = vpop.permute.xlu0 %2490
        %v2493 = vsel %vm1927, %v2477, %v2483
        %vm2494 = vcmask 130048
        %v2495 = vsel %vm2494, %v2493, %v2487
        %vm2496 = vcmask 195584
        %v2497 = vsel %vm2496, %v2495, %v2491
        %v2498 = vpack.c.bf16 %v2497, %v2497
        %v2499 = vld [vmem:[%s923] sm:$0xf]
        %v2500 = vld [vmem:[%s923 + $0x4] sm:$0xf]
        %v2501 = vld [vmem:[%s923 + $0x8] sm:$0xf]
        %v2502 = vld [vmem:[%s923 + $0xc] sm:$0xf]
        %v2503 = vld [vmem:[%s931] sm:$0x1]
        %v2505 = vlaneseq
        %v2506 = vshrl.u32 %v2505, 7
        %v2507 = vsub.s32 0, %v2506
        %v2508 = vrot.slane %v2503, %v2507
        %v2514 = vunpack.c.l.b16 %v2499
        %v2515 = vunpack.c.l.b16 %v2500
        %v2516 = vunpack.c.l.b16 %v2501
        %v2517 = vunpack.c.l.b16 %v2502
        %v2518 = vpack.c.b16 %v2515, %v2514
        %v2519 = vpack.c.b16 %v2517, %v2516
        %v2523 = vsel %vm1275, %v2498, 0
        %2525 = vmatprep.subr.bf16.mxu0 0
        %2526 = vmatpush1.bf16.msra.mxu0 %v2518
        %2527 = vmatprep.subr.bf16.mxu0 0
        %2528 = vmatpush1.bf16.msra.mxu0 %v2519
        %2529 = vmatprep.subr.bf16.mxu0 0
        %2530 = vmatpush1.bf16.msra.mxu0 0
        %2531 = vmatprep.subr.bf16.mxu0 0
        %2532 = vmatpush1.bf16.msra.mxu0 0
        %2533 = vmatprep.subr.bf16.mxu0 0
        %2534 = vmatpush1.bf16.msra.mxu0 0
        %2535 = vmatprep.subr.bf16.mxu0 0
        %2536 = vmatpush1.bf16.msra.mxu0 0
        %2537 = vmatprep.subr.bf16.mxu0 0
        %2538 = vmatpush1.bf16.msra.mxu0 0
        %2539 = vmatprep.subr.bf16.mxu0 0
        %2540 = vmatpush1.bf16.msra.mxu0 0
        %2541 = vmatprep.subr.bf16.mxu0 0
        %2542 = vmatpush1.bf16.msra.mxu0 0
        %2543 = vmatprep.subr.bf16.mxu0 0
        %2544 = vmatpush1.bf16.msra.mxu0 0
        %2545 = vmatprep.subr.bf16.mxu0 0
        %2546 = vmatpush1.bf16.msra.mxu0 0
        %2547 = vmatprep.subr.bf16.mxu0 0
        %2548 = vmatpush1.bf16.msra.mxu0 0
        %2549 = vmatprep.subr.bf16.mxu0 0
        %2550 = vmatpush1.bf16.msra.mxu0 0
        %2551 = vmatprep.subr.bf16.mxu0 0
        %2552 = vmatpush1.bf16.msra.mxu0 0
        %2553 = vmatprep.subr.bf16.mxu0 0
        %2554 = vmatpush1.bf16.msra.mxu0 0
        %2555 = vmatprep.subr.bf16.mxu0 0
        %2556 = vmatpush1.bf16.msra.mxu0 0
        %2557 = vmatprep.mubr.bf16.mxu0 0
        %2558 = vmatmul.mubr.bf16.gmra.mrb[0].mxu0 %v2523
        %v2559 = vpop.f32.mrb[0].mxu0
        %v2560 = vadd.f32 %v2508, %v2559
        %v2561 = vpop.f32.mrb[0].mxu0
        %v2562 = vpop.f32.mrb[0].mxu0
        %v2563 = vpop.f32.mrb[0].mxu0
        %2564 = vdwg.mxu0
        %v2565 = vadd.f32 %v1249, %v2560
        %v2566 = vld [vmem:[%s948] sm:$0x1]
        %v2567 = vld [vmem:[%s1132] sm:$0x1]
        %v2568 = vsel %vm1275, %v2565, 0.0
        %2569 = vadd.xlane.f32.xlu0 %v2568
        %v2570 = vpop.xlane.xlu0 %2569
        %v2571 = vrcp.pop 32.0
        %v2572 = vmul.f32 %v2570, %v2571
        %v2573 = vsub.f32 %v2565, %v2572
        %v2574 = vmul.f32 %v2573, %v2573
        %v2575 = vsel %vm1275, %v2574, 0.0
        %2576 = vadd.xlane.f32.xlu0 %v2575
        %v2577 = vpop.xlane.xlu0 %2576
        %v2578 = vmul.f32 %v2577, %v2571
        %v2579 = vadd.f32 %v2578, 1e-05
        %v2580 = vrsqrt.pop %v2579
        %v2581 = vmul.f32 %v2573, %v2580
        %v2583 = vlaneseq
        %v2584 = vshrl.u32 %v2583, 7
        %v2585 = vsub.s32 0, %v2584
        %v2586 = vrot.slane %v2566, %v2585
        %v2588 = vmul.f32 %v2581, %v2586
        %v2590 = vlaneseq
        %v2591 = vshrl.u32 %v2590, 7
        %v2592 = vsub.s32 0, %v2591
        %v2593 = vrot.slane %v2567, %v2592
        %v2595 = vadd.f32 %v2588, %v2593
        %v2596 = vpack.c.bf16 %v2595, %v2595
        %v2597 = vld [vmem:[%s1123] sm:$0xf]
        %v2598 = vld [vmem:[%s1123 + $0x4] sm:$0xf]
        %v2599 = vld [vmem:[%s1123 + $0x8] sm:$0xf]
        %v2600 = vld [vmem:[%s1123 + $0xc] sm:$0xf]
        %v2601 = vld [vmem:[%s1126] sm:$0x1]
        %v2603 = vlaneseq
        %v2604 = vshrl.u32 %v2603, 7
        %v2605 = vsub.s32 0, %v2604
        %v2606 = vrot.slane %v2601, %v2605
        %v2612 = vunpack.c.l.b16 %v2597
        %v2613 = vunpack.c.l.b16 %v2598
        %v2614 = vunpack.c.l.b16 %v2599
        %v2615 = vunpack.c.l.b16 %v2600
        %v2616 = vpack.c.b16 %v2613, %v2612
        %v2617 = vpack.c.b16 %v2615, %v2614
        %v2621 = vsel %vm1275, %v2596, 0
        %2623 = vmatprep.subr.bf16.mxu0 0
        %2624 = vmatpush1.bf16.msra.mxu0 %v2616
        %2625 = vmatprep.subr.bf16.mxu0 0
        %2626 = vmatpush1.bf16.msra.mxu0 %v2617
        %2627 = vmatprep.subr.bf16.mxu0 0
        %2628 = vmatpush1.bf16.msra.mxu0 0
        %2629 = vmatprep.subr.bf16.mxu0 0
        %2630 = vmatpush1.bf16.msra.mxu0 0
        %2631 = vmatprep.subr.bf16.mxu0 0
        %2632 = vmatpush1.bf16.msra.mxu0 0
        %2633 = vmatprep.subr.bf16.mxu0 0
        %2634 = vmatpush1.bf16.msra.mxu0 0
        %2635 = vmatprep.subr.bf16.mxu0 0
        %2636 = vmatpush1.bf16.msra.mxu0 0
        %2637 = vmatprep.subr.bf16.mxu0 0
        %2638 = vmatpush1.bf16.msra.mxu0 0
        %2639 = vmatprep.subr.bf16.mxu0 0
        %2640 = vmatpush1.bf16.msra.mxu0 0
        %2641 = vmatprep.subr.bf16.mxu0 0
        %2642 = vmatpush1.bf16.msra.mxu0 0
        %2643 = vmatprep.subr.bf16.mxu0 0
        %2644 = vmatpush1.bf16.msra.mxu0 0
        %2645 = vmatprep.subr.bf16.mxu0 0
        %2646 = vmatpush1.bf16.msra.mxu0 0
        %2647 = vmatprep.subr.bf16.mxu0 0
        %2648 = vmatpush1.bf16.msra.mxu0 0
        %2649 = vmatprep.subr.bf16.mxu0 0
        %2650 = vmatpush1.bf16.msra.mxu0 0
        %2651 = vmatprep.subr.bf16.mxu0 0
        %2652 = vmatpush1.bf16.msra.mxu0 0
        %2653 = vmatprep.subr.bf16.mxu0 0
        %2654 = vmatpush1.bf16.msra.mxu0 0
        %2655 = vmatprep.mubr.bf16.mxu0 0
        %2656 = vmatmul.mubr.bf16.gmra.mrb[0].mxu0 %v2621
        %v2657 = vpop.f32.mrb[0].mxu0
        %v2658 = vadd.f32 %v2606, %v2657
        %v2659 = vpop.f32.mrb[0].mxu0
        %v2660 = vpop.f32.mrb[0].mxu0
        %v2661 = vpop.f32.mrb[0].mxu0
        %2662 = vdwg.mxu0
        %v2663 = vmax.f32 %v2658, 0.0
        %v2664 = vpack.c.bf16 %v2663, %v2663
        %v2665 = vld [vmem:[%s940] sm:$0xf]
        %v2666 = vld [vmem:[%s940 + $0x4] sm:$0xf]
        %v2667 = vld [vmem:[%s940 + $0x8] sm:$0xf]
        %v2668 = vld [vmem:[%s940 + $0xc] sm:$0xf]
        %v2669 = vld [vmem:[%s1129] sm:$0x1]
        %v2671 = vlaneseq
        %v2672 = vshrl.u32 %v2671, 7
        %v2673 = vsub.s32 0, %v2672
        %v2674 = vrot.slane %v2669, %v2673
        %v2680 = vunpack.c.l.b16 %v2665
        %v2681 = vunpack.c.l.b16 %v2666
        %v2682 = vunpack.c.l.b16 %v2667
        %v2683 = vunpack.c.l.b16 %v2668
        %v2684 = vpack.c.b16 %v2681, %v2680
        %v2685 = vpack.c.b16 %v2683, %v2682
        %v2689 = vsel %vm1275, %v2664, 0
        %2691 = vmatprep.subr.bf16.mxu0 0
        %2692 = vmatpush1.bf16.msra.mxu0 %v2684
        %2693 = vmatprep.subr.bf16.mxu0 0
        %2694 = vmatpush1.bf16.msra.mxu0 %v2685
        %2695 = vmatprep.subr.bf16.mxu0 0
        %2696 = vmatpush1.bf16.msra.mxu0 0
        %2697 = vmatprep.subr.bf16.mxu0 0
        %2698 = vmatpush1.bf16.msra.mxu0 0
        %2699 = vmatprep.subr.bf16.mxu0 0
        %2700 = vmatpush1.bf16.msra.mxu0 0
        %2701 = vmatprep.subr.bf16.mxu0 0
        %2702 = vmatpush1.bf16.msra.mxu0 0
        %2703 = vmatprep.subr.bf16.mxu0 0
        %2704 = vmatpush1.bf16.msra.mxu0 0
        %2705 = vmatprep.subr.bf16.mxu0 0
        %2706 = vmatpush1.bf16.msra.mxu0 0
        %2707 = vmatprep.subr.bf16.mxu0 0
        %2708 = vmatpush1.bf16.msra.mxu0 0
        %2709 = vmatprep.subr.bf16.mxu0 0
        %2710 = vmatpush1.bf16.msra.mxu0 0
        %2711 = vmatprep.subr.bf16.mxu0 0
        %2712 = vmatpush1.bf16.msra.mxu0 0
        %2713 = vmatprep.subr.bf16.mxu0 0
        %2714 = vmatpush1.bf16.msra.mxu0 0
        %2715 = vmatprep.subr.bf16.mxu0 0
        %2716 = vmatpush1.bf16.msra.mxu0 0
        %2717 = vmatprep.subr.bf16.mxu0 0
        %2718 = vmatpush1.bf16.msra.mxu0 0
        %2719 = vmatprep.subr.bf16.mxu0 0
        %2720 = vmatpush1.bf16.msra.mxu0 0
        %2721 = vmatprep.subr.bf16.mxu0 0
        %2722 = vmatpush1.bf16.msra.mxu0 0
        %2723 = vmatprep.mubr.bf16.mxu0 0
        %2724 = vmatmul.mubr.bf16.gmra.mrb[0].mxu0 %v2689
        %v2725 = vpop.f32.mrb[0].mxu0
        %v2726 = vadd.f32 %v2674, %v2725
        %v2727 = vpop.f32.mrb[0].mxu0
        %v2728 = vpop.f32.mrb[0].mxu0
        %v2729 = vpop.f32.mrb[0].mxu0
        %2730 = vdwg.mxu0
        %v2731 = vadd.f32 %v2595, %v2726
        %v2732 = vld [vmem:[%s956] sm:$0x1]
        %v2733 = vld [vmem:[%s964] sm:$0x1]
        %v2734 = vsel %vm1275, %v2731, 0.0
        %2735 = vadd.xlane.f32.xlu0 %v2734
        %v2736 = vpop.xlane.xlu0 %2735
        %v2737 = vmul.f32 %v2736, %v2571
        %v2738 = vsub.f32 %v2731, %v2737
        %v2739 = vmul.f32 %v2738, %v2738
        %v2740 = vsel %vm1275, %v2739, 0.0
        %2741 = vadd.xlane.f32.xlu0 %v2740
        %v2742 = vpop.xlane.xlu0 %2741
        %v2743 = vmul.f32 %v2742, %v2571
        %v2744 = vadd.f32 %v2743, 1e-05
        %v2745 = vrsqrt.pop %v2744
        %v2746 = vmul.f32 %v2738, %v2745
        %v2748 = vlaneseq
        %v2749 = vshrl.u32 %v2748, 7
        %v2750 = vsub.s32 0, %v2749
        %v2751 = vrot.slane %v2732, %v2750
        %v2753 = vmul.f32 %v2746, %v2751
        %v2755 = vlaneseq
        %v2756 = vshrl.u32 %v2755, 7
        %v2757 = vsub.s32 0, %v2756
        %v2758 = vrot.slane %v2733, %v2757
        %v2760 = vadd.f32 %v2753, %v2758
        %2761 = vst.msk [vmem:[#allocation2] sm:$0xff] %vm1275, %v2760
        %p2762 = scmp.eq.s32.totalorder %s47, 1
        // Predicated region
        $region153: #{graph_attention_model_forward.2} parent=107 // pred_check
          %p2763 = pneg %p2762
        $region154: #{graph_attention_model_forward.2} parent=107 // pred_check_branch
          %2765 = sbr.rel (%p2763) target = $region156
        $region155: #{graph_attention_model_forward.2} parent=107 // pred_region
          %2766 = vst.msk [vmem:[%s1136] sm:$0xff] %vm1275, %v2760
        $region156: #{graph_attention_model_forward.2} parent=107 // pred_fallthru
          _
        %p2767 = scmp.lt.s32.totalorder %s46, 1
        %s2768 = scalar_select %p2767, %s46, 1
        %s2769 = smul.addr %s2768, 8
        %s2770 = scalar_lea.vmem %s23, %s2769
        // Predicated region
        $region157: #{graph_attention_model_forward.2} parent=107 // pred_check
          %p2771 = pneg %p624
        $region158: #{graph_attention_model_forward.2} parent=107 // pred_check_branch
          %2773 = sbr.rel (%p2771) target = $region160
        $region159: #{graph_attention_model_forward.2} parent=107 // pred_region
          _
        $region160: #{graph_attention_model_forward.2} parent=107 // pred_fallthru
          _
      $region108: #{graph_attention_model_forward.2} parent=5 // pred_fallthru
        _
      %p2774 = scmp.le.s32.totalorder 2, %s37
      // Predicated region
      $region161: #{graph_attention_model_forward.2} parent=5 // pred_check
        %p2775 = pneg %p2774
      $region162: #{graph_attention_model_forward.2} parent=5 // pred_check_branch
        %2777 = sbr.rel (%p2775) target = $region164
      $region163: #{graph_attention_model_forward.2} parent=5 // pred_region
        %s2778 = ssub.s32 %s37, 2
        // Predicated region
        $region165: #{graph_attention_model_forward.2} parent=163 // pred_check
          %p2779 = pneg %p630
        $region166: #{graph_attention_model_forward.2} parent=163 // pred_check_branch
          %2781 = sbr.rel (%p2779) target = $region168
        $region167: #{graph_attention_model_forward.2} parent=163 // pred_region
          %p2782 = scmp.lt.s32.totalorder %s48, 1
          %s2783 = scalar_select %p2782, %s48, 1
          %s2784 = smul.addr %s2783, 8
          %s2785 = scalar_lea.vmem %s23, %s2784
        $region168: #{graph_attention_model_forward.2} parent=163 // pred_fallthru
          _
      $region164: #{graph_attention_model_forward.2} parent=5 // pred_fallthru
        _
    $region6: #{graph_attention_model_forward.2} parent=1 // loop_footer
      %s41 = sadd.s32 1, %s37
    $region7: #{graph_attention_model_forward.2} parent=1 // loop_footer_branch
      %36 = sbr.rel target = $region3
    $region8: #{graph_attention_model_forward.2} parent=1 // loop_exit
      _
    %2786 = vsyncpa [#allocation6], 1
    %s2787 = scalar_lea.sflag [#allocation6], 1
    %2788 = vsyncpa %s2787, 1
    %2789 = vsyncpa [#allocation8], 1

// kernel: graph_attention_model_forward.3
$region0: #{graph_attention_model_forward.3}
  #allocation0 [shape = 'u32[]', space=smem, size = 0x4, offset = 0x4, fixed_abs, tag = 'smem constant byte address 0x4 - core index']
  #allocation1 [shape = 'u32[144,128]{1,0:T(1,128)}', space=vmem, size = 0x12000, scoped, tag = 'internal scratch']
  #allocation2 [shape = 'f32[3,32]{1,0:T(4,128)}', space=vmem, size = 0x800, scoped, tag = 'scratch operand']
  #allocation3 [shape = 's32[1]{0}', space=sflag, size = 0x4, scoped, tag = 'scoped memory for graph_attention_model_forward.3']
  #allocation4 [shape = 'u8[1024]{0}', space=smem, size = 0x400, scoped, tag = 'prefetched SMEM operand 0']
  %s0 = inlined_call_operand.vmem [shape: s32[2,1], index: 0, kind: input, shape index: {}]
  %s1 = inlined_call_operand.vmem [shape: f32[2,3,6], index: 1, kind: input, shape index: {}]
  %s2 = inlined_call_operand.vmem [shape: f32[2,8,32], index: 2, kind: input, shape index: {}]
  %s3 = inlined_call_operand.vmem [shape: f32[2,1,8], index: 3, kind: input, shape index: {}]
  %s4 = inlined_call_operand.vmem [shape: bf16[32,32], index: 4, kind: input, shape index: {}]
  %s5 = inlined_call_operand.vmem [shape: f32[1,32], index: 5, kind: input, shape index: {}]
  %s6 = inlined_call_operand.vmem [shape: bf16[6,32], index: 6, kind: input, shape index: {}]
  %s7 = inlined_call_operand.vmem [shape: f32[1,32], index: 7, kind: input, shape index: {}]
  %s8 = inlined_call_operand.vmem [shape: bf16[32,32], index: 8, kind: input, shape index: {}]
  %s9 = inlined_call_operand.vmem [shape: f32[1,32], index: 9, kind: input, shape index: {}]
  %s10 = inlined_call_operand.vmem [shape: bf16[32,32], index: 10, kind: input, shape index: {}]
  %s11 = inlined_call_operand.vmem [shape: f32[1,32], index: 11, kind: input, shape index: {}]
  %s12 = inlined_call_operand.vmem [shape: bf16[32,32], index: 12, kind: input, shape index: {}]
  %s13 = inlined_call_operand.vmem [shape: f32[1,32], index: 13, kind: input, shape index: {}]
  %s14 = inlined_call_operand.vmem [shape: bf16[32,32], index: 14, kind: input, shape index: {}]
  %s15 = inlined_call_operand.vmem [shape: f32[1,32], index: 15, kind: input, shape index: {}]
  %s16 = inlined_call_operand.vmem [shape: bf16[32,32], index: 16, kind: input, shape index: {}]
  %s17 = inlined_call_operand.vmem [shape: f32[1,32], index: 17, kind: input, shape index: {}]
  %s18 = inlined_call_operand.vmem [shape: bf16[32,32], index: 18, kind: input, shape index: {}]
  %s19 = inlined_call_operand.vmem [shape: f32[1,32], index: 19, kind: input, shape index: {}]
  %s20 = inlined_call_operand.vmem [shape: bf16[32,32], index: 20, kind: input, shape index: {}]
  %s21 = inlined_call_operand.vmem [shape: f32[1,32], index: 21, kind: input, shape index: {}]
  %s22 = inlined_call_operand.hbm [shape: f32[2,1,8], index: 22, kind: output, shape index: {}]
  %s23 = sld [smem:[#allocation0]]
  $region117: #{graph_attention_model_forward.3} parent=0
    _
  %s25 = ssub.s32 1, %s23
  %s26 = scalar_select 0, %s25, %s23
  %s27 = sshll.u32 %s0, 4
  %s28 = int_to_ptr.vmem [resolvable:$true] %s27
  %30 = dma.vmem_to_smem %s28, 32, [#allocation4], [#allocation3]
  %31 = dma.done [#allocation3], 32
  %32 = sfence
  $region1: #{graph_attention_model_forward.3} parent=0
    #allocation5 [shape = 'u8[1024]{0}', space=vmem, size = 0x400, scoped, tag = 'output window, operand 0']
    #allocation6 [shape = 's32[2]{0}', space=sflag, size = 0x8, scoped, tag = 'scoped memory for graph_attention_model_forward.3']
    %33 = vsyncpa [#allocation6], 0
    %s34 = scalar_lea.sflag [#allocation6], 1
    %35 = vsyncpa %s34, 0
    loop: start=0, step=1, limit=4
    $region2: #{graph_attention_model_forward.3} parent=1 // loop_pre_header
      _
    $region3: #{graph_attention_model_forward.3} parent=1 // loop_header
      %s37 = sphi 0, %s41
      %p38 = scmp.ge.s32.totalorder %s37, 4
      %s47 = sphi 0, %s49
      %s50 = sphi 0, %s47
      %s51 = sphi 0, %s50
      %s67 = sphi 0, %s51
      %s73 = sphi 0, %s75
      %s76 = sphi 0, %s73
      %s77 = sphi 0, %s76
      %s93 = sphi 0, %s77
      %s99 = sphi 0, %s101
      %s102 = sphi 0, %s99
      %s103 = sphi 0, %s102
      %s119 = sphi 0, %s103
      %s123 = sphi 0, %s123
      %s125 = sphi 0, %s123
      %s126 = sphi 0, %s125
      %s140 = sphi 0, %s126
      %s144 = sphi 0, %s144
      %s146 = sphi 0, %s144
      %s147 = sphi 0, %s146
      %s161 = sphi 0, %s147
      %s165 = sphi 0, %s165
      %s167 = sphi 0, %s165
      %s168 = sphi 0, %s167
      %s182 = sphi 0, %s168
      %s186 = sphi 0, %s186
      %s188 = sphi 0, %s186
      %s189 = sphi 0, %s188
      %s203 = sphi 0, %s189
      %s207 = sphi 0, %s207
      %s209 = sphi 0, %s207
      %s210 = sphi 0, %s209
      %s224 = sphi 0, %s210
      %s228 = sphi 0, %s228
      %s230 = sphi 0, %s228
      %s231 = sphi 0, %s230
      %s245 = sphi 0, %s231
      %s249 = sphi 0, %s249
      %s251 = sphi 0, %s249
      %s252 = sphi 0, %s251
      %s266 = sphi 0, %s252
      %s270 = sphi 0, %s270
      %s272 = sphi 0, %s270
      %s273 = sphi 0, %s272
      %s287 = sphi 0, %s273
      %s291 = sphi 0, %s291
      %s293 = sphi 0, %s291
      %s294 = sphi 0, %s293
      %s308 = sphi 0, %s294
      %s312 = sphi 0, %s312
      %s314 = sphi 0, %s312
      %s315 = sphi 0, %s314
      %s329 = sphi 0, %s315
      %s333 = sphi 0, %s333
      %s335 = sphi 0, %s333
      %s336 = sphi 0, %s335
      %s350 = sphi 0, %s336
      %s354 = sphi 0, %s354
      %s356 = sphi 0, %s354
      %s357 = sphi 0, %s356
      %s371 = sphi 0, %s357
      %s375 = sphi 0, %s375
      %s377 = sphi 0, %s375
      %s378 = sphi 0, %s377
      %s392 = sphi 0, %s378
      %s396 = sphi 0, %s396
      %s398 = sphi 0, %s396
      %s399 = sphi 0, %s398
      %s413 = sphi 0, %s399
      %s417 = sphi 0, %s417
      %s419 = sphi 0, %s417
      %s420 = sphi 0, %s419
      %s434 = sphi 0, %s420
      %s438 = sphi 0, %s438
      %s440 = sphi 0, %s438
      %s441 = sphi 0, %s440
      %s455 = sphi 0, %s441
      %s459 = sphi 0, %s459
      %s461 = sphi 0, %s459
      %s462 = sphi 0, %s461
      %s476 = sphi 0, %s462
      %s480 = sphi 0, %s480
      %s482 = sphi 0, %s480
      %s483 = sphi 0, %s482
      %s497 = sphi 0, %s483
      %s503 = sphi 0, %s505
      %s506 = sphi 0, %s503
      %s507 = sphi 0, %s506
      %s523 = sphi 0, %s507
    $region4: #{graph_attention_model_forward.3} parent=1 // loop_header_branch
      %40 = sbr.rel (%p38) target = $region8
    $region5: #{graph_attention_model_forward.3} parent=1 // loop_body
      %s42 = ssub.s32 %s37, 1
      %s43 = ssub.s32 %s37, 2
      %s44 = sadd.s32 %s37, 1
      %s45 = ssub.s32 %s37, %s44
      %p46 = scmp.eq.s32.totalorder %s45, 0
      %s48 = sadd.s32 %s47, 1
      %s49 = scalar_select %p46, %s47, %s48
      %p52 = pneg %p46
      %p53 = scmp.eq.s32.totalorder %s37, 1
      %p54 = por %p52, %p53
      %p55 = scmp.ne.s32.totalorder %s47, %s50
      %p56 = scmp.eq.s32.totalorder %s37, 0
      %p57 = por %p55, %p56
      %p58 = scmp.ne.s32.totalorder %s47, %s50
      %p59 = scmp.eq.s32.totalorder %s42, 1
      %p60 = por %p58, %p59
      %p61 = scmp.ne.s32.totalorder %s50, %s51
      %p62 = scmp.eq.s32.totalorder %s42, 0
      %p63 = por %p61, %p62
      %p64 = scmp.ne.s32.totalorder %s50, %s51
      %p65 = scmp.eq.s32.totalorder %s43, 1
      %p66 = por %p64, %p65
      %p68 = scmp.ne.s32.totalorder %s51, %s67
      %p69 = scmp.eq.s32.totalorder %s43, 0
      %p70 = por %p68, %p69
      %s71 = ssub.s32 %s37, %s44
      %p72 = scmp.eq.s32.totalorder %s71, 0
      %s74 = sadd.s32 %s73, 1
      %s75 = scalar_select %p72, %s73, %s74
      %p78 = pneg %p72
      %p79 = scmp.eq.s32.totalorder %s37, 1
      %p80 = por %p78, %p79
      %p81 = scmp.ne.s32.totalorder %s73, %s76
      %p82 = scmp.eq.s32.totalorder %s37, 0
      %p83 = por %p81, %p82
      %p84 = scmp.ne.s32.totalorder %s73, %s76
      %p85 = scmp.eq.s32.totalorder %s42, 1
      %p86 = por %p84, %p85
      %p87 = scmp.ne.s32.totalorder %s76, %s77
      %p88 = scmp.eq.s32.totalorder %s42, 0
      %p89 = por %p87, %p88
      %p90 = scmp.ne.s32.totalorder %s76, %s77
      %p91 = scmp.eq.s32.totalorder %s43, 1
      %p92 = por %p90, %p91
      %p94 = scmp.ne.s32.totalorder %s77, %s93
      %p95 = scmp.eq.s32.totalorder %s43, 0
      %p96 = por %p94, %p95
      %s97 = ssub.s32 %s37, %s44
      %p98 = scmp.eq.s32.totalorder %s97, 0
      %s100 = sadd.s32 %s99, 1
      %s101 = scalar_select %p98, %s99, %s100
      %p104 = pneg %p98
      %p105 = scmp.eq.s32.totalorder %s37, 1
      %p106 = por %p104, %p105
      %p107 = scmp.ne.s32.totalorder %s99, %s102
      %p108 = scmp.eq.s32.totalorder %s37, 0
      %p109 = por %p107, %p108
      %p110 = scmp.ne.s32.totalorder %s99, %s102
      %p111 = scmp.eq.s32.totalorder %s42, 1
      %p112 = por %p110, %p111
      %p113 = scmp.ne.s32.totalorder %s102, %s103
      %p114 = scmp.eq.s32.totalorder %s42, 0
      %p115 = por %p113, %p114
      %p116 = scmp.ne.s32.totalorder %s102, %s103
      %p117 = scmp.eq.s32.totalorder %s43, 1
      %p118 = por %p116, %p117
      %p120 = scmp.ne.s32.totalorder %s103, %s119
      %p121 = scmp.eq.s32.totalorder %s43, 0
      %p122 = por %p120, %p121
      %s124 = sadd.s32 %s123, 1
      %p127 = scmp.eq.s32.totalorder %s37, 1
      %p128 = scmp.ne.s32.totalorder %s123, %s125
      %p129 = scmp.eq.s32.totalorder %s37, 0
      %p130 = por %p128, %p129
      %p131 = scmp.ne.s32.totalorder %s123, %s125
      %p132 = scmp.eq.s32.totalorder %s42, 1
      %p133 = por %p131, %p132
      %p134 = scmp.ne.s32.totalorder %s125, %s126
      %p135 = scmp.eq.s32.totalorder %s42, 0
      %p136 = por %p134, %p135
      %p137 = scmp.ne.s32.totalorder %s125, %s126
      %p138 = scmp.eq.s32.totalorder %s43, 1
      %p139 = por %p137, %p138
      %p141 = scmp.ne.s32.totalorder %s126, %s140
      %p142 = scmp.eq.s32.totalorder %s43, 0
      %p143 = por %p141, %p142
      %s145 = sadd.s32 %s144, 1
      %p148 = scmp.eq.s32.totalorder %s37, 1
      %p149 = scmp.ne.s32.totalorder %s144, %s146
      %p150 = scmp.eq.s32.totalorder %s37, 0
      %p151 = por %p149, %p150
      %p152 = scmp.ne.s32.totalorder %s144, %s146
      %p153 = scmp.eq.s32.totalorder %s42, 1
      %p154 = por %p152, %p153
      %p155 = scmp.ne.s32.totalorder %s146, %s147
      %p156 = scmp.eq.s32.totalorder %s42, 0
      %p157 = por %p155, %p156
      %p158 = scmp.ne.s32.totalorder %s146, %s147
      %p159 = scmp.eq.s32.totalorder %s43, 1
      %p160 = por %p158, %p159
      %p162 = scmp.ne.s32.totalorder %s147, %s161
      %p163 = scmp.eq.s32.totalorder %s43, 0
      %p164 = por %p162, %p163
      %s166 = sadd.s32 %s165, 1
      %p169 = scmp.eq.s32.totalorder %s37, 1
      %p170 = scmp.ne.s32.totalorder %s165, %s167
      %p171 = scmp.eq.s32.totalorder %s37, 0
      %p172 = por %p170, %p171
      %p173 = scmp.ne.s32.totalorder %s165, %s167
      %p174 = scmp.eq.s32.totalorder %s42, 1
      %p175 = por %p173, %p174
      %p176 = scmp.ne.s32.totalorder %s167, %s168
      %p177 = scmp.eq.s32.totalorder %s42, 0
      %p178 = por %p176, %p177
      %p179 = scmp.ne.s32.totalorder %s167, %s168
      %p180 = scmp.eq.s32.totalorder %s43, 1
      %p181 = por %p179, %p180
      %p183 = scmp.ne.s32.totalorder %s168, %s182
      %p184 = scmp.eq.s32.totalorder %s43, 0
      %p185 = por %p183, %p184
      %s187 = sadd.s32 %s186, 1
      %p190 = scmp.eq.s32.totalorder %s37, 1
      %p191 = scmp.ne.s32.totalorder %s186, %s188
      %p192 = scmp.eq.s32.totalorder %s37, 0
      %p193 = por %p191, %p192
      %p194 = scmp.ne.s32.totalorder %s186, %s188
      %p195 = scmp.eq.s32.totalorder %s42, 1
      %p196 = por %p194, %p195
      %p197 = scmp.ne.s32.totalorder %s188, %s189
      %p198 = scmp.eq.s32.totalorder %s42, 0
      %p199 = por %p197, %p198
      %p200 = scmp.ne.s32.totalorder %s188, %s189
      %p201 = scmp.eq.s32.totalorder %s43, 1
      %p202 = por %p200, %p201
      %p204 = scmp.ne.s32.totalorder %s189, %s203
      %p205 = scmp.eq.s32.totalorder %s43, 0
      %p206 = por %p204, %p205
      %s208 = sadd.s32 %s207, 1
      %p211 = scmp.eq.s32.totalorder %s37, 1
      %p212 = scmp.ne.s32.totalorder %s207, %s209
      %p213 = scmp.eq.s32.totalorder %s37, 0
      %p214 = por %p212, %p213
      %p215 = scmp.ne.s32.totalorder %s207, %s209
      %p216 = scmp.eq.s32.totalorder %s42, 1
      %p217 = por %p215, %p216
      %p218 = scmp.ne.s32.totalorder %s209, %s210
      %p219 = scmp.eq.s32.totalorder %s42, 0
      %p220 = por %p218, %p219
      %p221 = scmp.ne.s32.totalorder %s209, %s210
      %p222 = scmp.eq.s32.totalorder %s43, 1
      %p223 = por %p221, %p222
      %p225 = scmp.ne.s32.totalorder %s210, %s224
      %p226 = scmp.eq.s32.totalorder %s43, 0
      %p227 = por %p225, %p226
      %s229 = sadd.s32 %s228, 1
      %p232 = scmp.eq.s32.totalorder %s37, 1
      %p233 = scmp.ne.s32.totalorder %s228, %s230
      %p234 = scmp.eq.s32.totalorder %s37, 0
      %p235 = por %p233, %p234
      %p236 = scmp.ne.s32.totalorder %s228, %s230
      %p237 = scmp.eq.s32.totalorder %s42, 1
      %p238 = por %p236, %p237
      %p239 = scmp.ne.s32.totalorder %s230, %s231
      %p240 = scmp.eq.s32.totalorder %s42, 0
      %p241 = por %p239, %p240
      %p242 = scmp.ne.s32.totalorder %s230, %s231
      %p243 = scmp.eq.s32.totalorder %s43, 1
      %p244 = por %p242, %p243
      %p246 = scmp.ne.s32.totalorder %s231, %s245
      %p247 = scmp.eq.s32.totalorder %s43, 0
      %p248 = por %p246, %p247
      %s250 = sadd.s32 %s249, 1
      %p253 = scmp.eq.s32.totalorder %s37, 1
      %p254 = scmp.ne.s32.totalorder %s249, %s251
      %p255 = scmp.eq.s32.totalorder %s37, 0
      %p256 = por %p254, %p255
      %p257 = scmp.ne.s32.totalorder %s249, %s251
      %p258 = scmp.eq.s32.totalorder %s42, 1
      %p259 = por %p257, %p258
      %p260 = scmp.ne.s32.totalorder %s251, %s252
      %p261 = scmp.eq.s32.totalorder %s42, 0
      %p262 = por %p260, %p261
      %p263 = scmp.ne.s32.totalorder %s251, %s252
      %p264 = scmp.eq.s32.totalorder %s43, 1
      %p265 = por %p263, %p264
      %p267 = scmp.ne.s32.totalorder %s252, %s266
      %p268 = scmp.eq.s32.totalorder %s43, 0
      %p269 = por %p267, %p268
      %s271 = sadd.s32 %s270, 1
      %p274 = scmp.eq.s32.totalorder %s37, 1
      %p275 = scmp.ne.s32.totalorder %s270, %s272
      %p276 = scmp.eq.s32.totalorder %s37, 0
      %p277 = por %p275, %p276
      %p278 = scmp.ne.s32.totalorder %s270, %s272
      %p279 = scmp.eq.s32.totalorder %s42, 1
      %p280 = por %p278, %p279
      %p281 = scmp.ne.s32.totalorder %s272, %s273
      %p282 = scmp.eq.s32.totalorder %s42, 0
      %p283 = por %p281, %p282
      %p284 = scmp.ne.s32.totalorder %s272, %s273
      %p285 = scmp.eq.s32.totalorder %s43, 1
      %p286 = por %p284, %p285
      %p288 = scmp.ne.s32.totalorder %s273, %s287
      %p289 = scmp.eq.s32.totalorder %s43, 0
      %p290 = por %p288, %p289
      %s292 = sadd.s32 %s291, 1
      %p295 = scmp.eq.s32.totalorder %s37, 1
      %p296 = scmp.ne.s32.totalorder %s291, %s293
      %p297 = scmp.eq.s32.totalorder %s37, 0
      %p298 = por %p296, %p297
      %p299 = scmp.ne.s32.totalorder %s291, %s293
      %p300 = scmp.eq.s32.totalorder %s42, 1
      %p301 = por %p299, %p300
      %p302 = scmp.ne.s32.totalorder %s293, %s294
      %p303 = scmp.eq.s32.totalorder %s42, 0
      %p304 = por %p302, %p303
      %p305 = scmp.ne.s32.totalorder %s293, %s294
      %p306 = scmp.eq.s32.totalorder %s43, 1
      %p307 = por %p305, %p306
      %p309 = scmp.ne.s32.totalorder %s294, %s308
      %p310 = scmp.eq.s32.totalorder %s43, 0
      %p311 = por %p309, %p310
      %s313 = sadd.s32 %s312, 1
      %p316 = scmp.eq.s32.totalorder %s37, 1
      %p317 = scmp.ne.s32.totalorder %s312, %s314
      %p318 = scmp.eq.s32.totalorder %s37, 0
      %p319 = por %p317, %p318
      %p320 = scmp.ne.s32.totalorder %s312, %s314
      %p321 = scmp.eq.s32.totalorder %s42, 1
      %p322 = por %p320, %p321
      %p323 = scmp.ne.s32.totalorder %s314, %s315
      %p324 = scmp.eq.s32.totalorder %s42, 0
      %p325 = por %p323, %p324
      %p326 = scmp.ne.s32.totalorder %s314, %s315
      %p327 = scmp.eq.s32.totalorder %s43, 1
      %p328 = por %p326, %p327
      %p330 = scmp.ne.s32.totalorder %s315, %s329
      %p331 = scmp.eq.s32.totalorder %s43, 0
      %p332 = por %p330, %p331
      %s334 = sadd.s32 %s333, 1
      %p337 = scmp.eq.s32.totalorder %s37, 1
      %p338 = scmp.ne.s32.totalorder %s333, %s335
      %p339 = scmp.eq.s32.totalorder %s37, 0
      %p340 = por %p338, %p339
      %p341 = scmp.ne.s32.totalorder %s333, %s335
      %p342 = scmp.eq.s32.totalorder %s42, 1
      %p343 = por %p341, %p342
      %p344 = scmp.ne.s32.totalorder %s335, %s336
      %p345 = scmp.eq.s32.totalorder %s42, 0
      %p346 = por %p344, %p345
      %p347 = scmp.ne.s32.totalorder %s335, %s336
      %p348 = scmp.eq.s32.totalorder %s43, 1
      %p349 = por %p347, %p348
      %p351 = scmp.ne.s32.totalorder %s336, %s350
      %p352 = scmp.eq.s32.totalorder %s43, 0
      %p353 = por %p351, %p352
      %s355 = sadd.s32 %s354, 1
      %p358 = scmp.eq.s32.totalorder %s37, 1
      %p359 = scmp.ne.s32.totalorder %s354, %s356
      %p360 = scmp.eq.s32.totalorder %s37, 0
      %p361 = por %p359, %p360
      %p362 = scmp.ne.s32.totalorder %s354, %s356
      %p363 = scmp.eq.s32.totalorder %s42, 1
      %p364 = por %p362, %p363
      %p365 = scmp.ne.s32.totalorder %s356, %s357
      %p366 = scmp.eq.s32.totalorder %s42, 0
      %p367 = por %p365, %p366
      %p368 = scmp.ne.s32.totalorder %s356, %s357
      %p369 = scmp.eq.s32.totalorder %s43, 1
      %p370 = por %p368, %p369
      %p372 = scmp.ne.s32.totalorder %s357, %s371
      %p373 = scmp.eq.s32.totalorder %s43, 0
      %p374 = por %p372, %p373
      %s376 = sadd.s32 %s375, 1
      %p379 = scmp.eq.s32.totalorder %s37, 1
      %p380 = scmp.ne.s32.totalorder %s375, %s377
      %p381 = scmp.eq.s32.totalorder %s37, 0
      %p382 = por %p380, %p381
      %p383 = scmp.ne.s32.totalorder %s375, %s377
      %p384 = scmp.eq.s32.totalorder %s42, 1
      %p385 = por %p383, %p384
      %p386 = scmp.ne.s32.totalorder %s377, %s378
      %p387 = scmp.eq.s32.totalorder %s42, 0
      %p388 = por %p386, %p387
      %p389 = scmp.ne.s32.totalorder %s377, %s378
      %p390 = scmp.eq.s32.totalorder %s43, 1
      %p391 = por %p389, %p390
      %p393 = scmp.ne.s32.totalorder %s378, %s392
      %p394 = scmp.eq.s32.totalorder %s43, 0
      %p395 = por %p393, %p394
      %s397 = sadd.s32 %s396, 1
      %p400 = scmp.eq.s32.totalorder %s37, 1
      %p401 = scmp.ne.s32.totalorder %s396, %s398
      %p402 = scmp.eq.s32.totalorder %s37, 0
      %p403 = por %p401, %p402
      %p404 = scmp.ne.s32.totalorder %s396, %s398
      %p405 = scmp.eq.s32.totalorder %s42, 1
      %p406 = por %p404, %p405
      %p407 = scmp.ne.s32.totalorder %s398, %s399
      %p408 = scmp.eq.s32.totalorder %s42, 0
      %p409 = por %p407, %p408
      %p410 = scmp.ne.s32.totalorder %s398, %s399
      %p411 = scmp.eq.s32.totalorder %s43, 1
      %p412 = por %p410, %p411
      %p414 = scmp.ne.s32.totalorder %s399, %s413
      %p415 = scmp.eq.s32.totalorder %s43, 0
      %p416 = por %p414, %p415
      %s418 = sadd.s32 %s417, 1
      %p421 = scmp.eq.s32.totalorder %s37, 1
      %p422 = scmp.ne.s32.totalorder %s417, %s419
      %p423 = scmp.eq.s32.totalorder %s37, 0
      %p424 = por %p422, %p423
      %p425 = scmp.ne.s32.totalorder %s417, %s419
      %p426 = scmp.eq.s32.totalorder %s42, 1
      %p427 = por %p425, %p426
      %p428 = scmp.ne.s32.totalorder %s419, %s420
      %p429 = scmp.eq.s32.totalorder %s42, 0
      %p430 = por %p428, %p429
      %p431 = scmp.ne.s32.totalorder %s419, %s420
      %p432 = scmp.eq.s32.totalorder %s43, 1
      %p433 = por %p431, %p432
      %p435 = scmp.ne.s32.totalorder %s420, %s434
      %p436 = scmp.eq.s32.totalorder %s43, 0
      %p437 = por %p435, %p436
      %s439 = sadd.s32 %s438, 1
      %p442 = scmp.eq.s32.totalorder %s37, 1
      %p443 = scmp.ne.s32.totalorder %s438, %s440
      %p444 = scmp.eq.s32.totalorder %s37, 0
      %p445 = por %p443, %p444
      %p446 = scmp.ne.s32.totalorder %s438, %s440
      %p447 = scmp.eq.s32.totalorder %s42, 1
      %p448 = por %p446, %p447
      %p449 = scmp.ne.s32.totalorder %s440, %s441
      %p450 = scmp.eq.s32.totalorder %s42, 0
      %p451 = por %p449, %p450
      %p452 = scmp.ne.s32.totalorder %s440, %s441
      %p453 = scmp.eq.s32.totalorder %s43, 1
      %p454 = por %p452, %p453
      %p456 = scmp.ne.s32.totalorder %s441, %s455
      %p457 = scmp.eq.s32.totalorder %s43, 0
      %p458 = por %p456, %p457
      %s460 = sadd.s32 %s459, 1
      %p463 = scmp.eq.s32.totalorder %s37, 1
      %p464 = scmp.ne.s32.totalorder %s459, %s461
      %p465 = scmp.eq.s32.totalorder %s37, 0
      %p466 = por %p464, %p465
      %p467 = scmp.ne.s32.totalorder %s459, %s461
      %p468 = scmp.eq.s32.totalorder %s42, 1
      %p469 = por %p467, %p468
      %p470 = scmp.ne.s32.totalorder %s461, %s462
      %p471 = scmp.eq.s32.totalorder %s42, 0
      %p472 = por %p470, %p471
      %p473 = scmp.ne.s32.totalorder %s461, %s462
      %p474 = scmp.eq.s32.totalorder %s43, 1
      %p475 = por %p473, %p474
      %p477 = scmp.ne.s32.totalorder %s462, %s476
      %p478 = scmp.eq.s32.totalorder %s43, 0
      %p479 = por %p477, %p478
      %s481 = sadd.s32 %s480, 1
      %p484 = scmp.eq.s32.totalorder %s37, 1
      %p485 = scmp.ne.s32.totalorder %s480, %s482
      %p486 = scmp.eq.s32.totalorder %s37, 0
      %p487 = por %p485, %p486
      %p488 = scmp.ne.s32.totalorder %s480, %s482
      %p489 = scmp.eq.s32.totalorder %s42, 1
      %p490 = por %p488, %p489
      %p491 = scmp.ne.s32.totalorder %s482, %s483
      %p492 = scmp.eq.s32.totalorder %s42, 0
      %p493 = por %p491, %p492
      %p494 = scmp.ne.s32.totalorder %s482, %s483
      %p495 = scmp.eq.s32.totalorder %s43, 1
      %p496 = por %p494, %p495
      %p498 = scmp.ne.s32.totalorder %s483, %s497
      %p499 = scmp.eq.s32.totalorder %s43, 0
      %p500 = por %p498, %p499
      %s501 = ssub.s32 %s37, %s44
      %p502 = scmp.eq.s32.totalorder %s501, 0
      %s504 = sadd.s32 %s503, 1
      %s505 = scalar_select %p502, %s503, %s504
      %p508 = pneg %p502
      %p509 = scmp.eq.s32.totalorder %s37, 1
      %p510 = por %p508, %p509
      %p511 = scmp.ne.s32.totalorder %s503, %s506
      %p512 = scmp.eq.s32.totalorder %s37, 0
      %p513 = por %p511, %p512
      %p514 = scmp.ne.s32.totalorder %s503, %s506
      %p515 = scmp.eq.s32.totalorder %s42, 1
      %p516 = por %p514, %p515
      %p517 = scmp.ne.s32.totalorder %s506, %s507
      %p518 = scmp.eq.s32.totalorder %s42, 0
      %p519 = por %p517, %p518
      %p520 = scmp.ne.s32.totalorder %s506, %s507
      %p521 = scmp.eq.s32.totalorder %s43, 1
      %p522 = por %p520, %p521
      %p524 = scmp.ne.s32.totalorder %s507, %s523
      %p525 = scmp.eq.s32.totalorder %s43, 0
      %p526 = por %p524, %p525
      %p527 = scmp.le.s32.totalorder 1, %s37
      %p528 = scmp.lt.s32.totalorder %s37, 3
      %p529 = pnand %p527, %p528
      %p530 = pneg %p529
      // Predicated region
      $region9: #{graph_attention_model_forward.3} parent=5 // pred_check
        _
      $region10: #{graph_attention_model_forward.3} parent=5 // pred_check_branch
        %532 = sbr.rel (%p529) target = $region12
      $region11: #{graph_attention_model_forward.3} parent=5 // pred_region
        %s533 = ssub.s32 %s37, 1
        // Predicated region
        $region13: #{graph_attention_model_forward.3} parent=11 // pred_check
          %p534 = pneg %p136
        $region14: #{graph_attention_model_forward.3} parent=11 // pred_check_branch
          %536 = sbr.rel (%p534) target = $region16
        $region15: #{graph_attention_model_forward.3} parent=11 // pred_region
          _
        $region16: #{graph_attention_model_forward.3} parent=11 // pred_fallthru
          _
        // Predicated region
        $region17: #{graph_attention_model_forward.3} parent=11 // pred_check
          %p537 = pneg %p157
        $region18: #{graph_attention_model_forward.3} parent=11 // pred_check_branch
          %539 = sbr.rel (%p537) target = $region20
        $region19: #{graph_attention_model_forward.3} parent=11 // pred_region
          _
        $region20: #{graph_attention_model_forward.3} parent=11 // pred_fallthru
          _
        // Predicated region
        $region21: #{graph_attention_model_forward.3} parent=11 // pred_check
          %p540 = pneg %p178
        $region22: #{graph_attention_model_forward.3} parent=11 // pred_check_branch
          %542 = sbr.rel (%p540) target = $region24
        $region23: #{graph_attention_model_forward.3} parent=11 // pred_region
          _
        $region24: #{graph_attention_model_forward.3} parent=11 // pred_fallthru
          _
        // Predicated region
        $region25: #{graph_attention_model_forward.3} parent=11 // pred_check
          %p543 = pneg %p199
        $region26: #{graph_attention_model_forward.3} parent=11 // pred_check_branch
          %545 = sbr.rel (%p543) target = $region28
        $region27: #{graph_attention_model_forward.3} parent=11 // pred_region
          _
        $region28: #{graph_attention_model_forward.3} parent=11 // pred_fallthru
          _
        // Predicated region
        $region29: #{graph_attention_model_forward.3} parent=11 // pred_check
          %p546 = pneg %p220
        $region30: #{graph_attention_model_forward.3} parent=11 // pred_check_branch
          %548 = sbr.rel (%p546) target = $region32
        $region31: #{graph_attention_model_forward.3} parent=11 // pred_region
          _
        $region32: #{graph_attention_model_forward.3} parent=11 // pred_fallthru
          _
        // Predicated region
        $region33: #{graph_attention_model_forward.3} parent=11 // pred_check
          %p549 = pneg %p241
        $region34: #{graph_attention_model_forward.3} parent=11 // pred_check_branch
          %551 = sbr.rel (%p549) target = $region36
        $region35: #{graph_attention_model_forward.3} parent=11 // pred_region
          _
        $region36: #{graph_attention_model_forward.3} parent=11 // pred_fallthru
          _
        // Predicated region
        $region37: #{graph_attention_model_forward.3} parent=11 // pred_check
          %p552 = pneg %p262
        $region38: #{graph_attention_model_forward.3} parent=11 // pred_check_branch
          %554 = sbr.rel (%p552) target = $region40
        $region39: #{graph_attention_model_forward.3} parent=11 // pred_region
          _
        $region40: #{graph_attention_model_forward.3} parent=11 // pred_fallthru
          _
        // Predicated region
        $region41: #{graph_attention_model_forward.3} parent=11 // pred_check
          %p555 = pneg %p283
        $region42: #{graph_attention_model_forward.3} parent=11 // pred_check_branch
          %557 = sbr.rel (%p555) target = $region44
        $region43: #{graph_attention_model_forward.3} parent=11 // pred_region
          _
        $region44: #{graph_attention_model_forward.3} parent=11 // pred_fallthru
          _
        // Predicated region
        $region45: #{graph_attention_model_forward.3} parent=11 // pred_check
          %p558 = pneg %p304
        $region46: #{graph_attention_model_forward.3} parent=11 // pred_check_branch
          %560 = sbr.rel (%p558) target = $region48
        $region47: #{graph_attention_model_forward.3} parent=11 // pred_region
          _
        $region48: #{graph_attention_model_forward.3} parent=11 // pred_fallthru
          _
        // Predicated region
        $region49: #{graph_attention_model_forward.3} parent=11 // pred_check
          %p561 = pneg %p325
        $region50: #{graph_attention_model_forward.3} parent=11 // pred_check_branch
          %563 = sbr.rel (%p561) target = $region52
        $region51: #{graph_attention_model_forward.3} parent=11 // pred_region
          _
        $region52: #{graph_attention_model_forward.3} parent=11 // pred_fallthru
          _
        // Predicated region
        $region53: #{graph_attention_model_forward.3} parent=11 // pred_check
          %p564 = pneg %p346
        $region54: #{graph_attention_model_forward.3} parent=11 // pred_check_branch
          %566 = sbr.rel (%p564) target = $region56
        $region55: #{graph_attention_model_forward.3} parent=11 // pred_region
          _
        $region56: #{graph_attention_model_forward.3} parent=11 // pred_fallthru
          _
        // Predicated region
        $region57: #{graph_attention_model_forward.3} parent=11 // pred_check
          %p567 = pneg %p367
        $region58: #{graph_attention_model_forward.3} parent=11 // pred_check_branch
          %569 = sbr.rel (%p567) target = $region60
        $region59: #{graph_attention_model_forward.3} parent=11 // pred_region
          _
        $region60: #{graph_attention_model_forward.3} parent=11 // pred_fallthru
          _
        // Predicated region
        $region61: #{graph_attention_model_forward.3} parent=11 // pred_check
          %p570 = pneg %p388
        $region62: #{graph_attention_model_forward.3} parent=11 // pred_check_branch
          %572 = sbr.rel (%p570) target = $region64
        $region63: #{graph_attention_model_forward.3} parent=11 // pred_region
          _
        $region64: #{graph_attention_model_forward.3} parent=11 // pred_fallthru
          _
        // Predicated region
        $region65: #{graph_attention_model_forward.3} parent=11 // pred_check
          %p573 = pneg %p409
        $region66: #{graph_attention_model_forward.3} parent=11 // pred_check_branch
          %575 = sbr.rel (%p573) target = $region68
        $region67: #{graph_attention_model_forward.3} parent=11 // pred_region
          _
        $region68: #{graph_attention_model_forward.3} parent=11 // pred_fallthru
          _
        // Predicated region
        $region69: #{graph_attention_model_forward.3} parent=11 // pred_check
          %p576 = pneg %p430
        $region70: #{graph_attention_model_forward.3} parent=11 // pred_check_branch
          %578 = sbr.rel (%p576) target = $region72
        $region71: #{graph_attention_model_forward.3} parent=11 // pred_region
          _
        $region72: #{graph_attention_model_forward.3} parent=11 // pred_fallthru
          _
        // Predicated region
        $region73: #{graph_attention_model_forward.3} parent=11 // pred_check
          %p579 = pneg %p451
        $region74: #{graph_attention_model_forward.3} parent=11 // pred_check_branch
          %581 = sbr.rel (%p579) target = $region76
        $region75: #{graph_attention_model_forward.3} parent=11 // pred_region
          _
        $region76: #{graph_attention_model_forward.3} parent=11 // pred_fallthru
          _
        // Predicated region
        $region77: #{graph_attention_model_forward.3} parent=11 // pred_check
          %p582 = pneg %p472
        $region78: #{graph_attention_model_forward.3} parent=11 // pred_check_branch
          %584 = sbr.rel (%p582) target = $region80
        $region79: #{graph_attention_model_forward.3} parent=11 // pred_region
          _
        $region80: #{graph_attention_model_forward.3} parent=11 // pred_fallthru
          _
        // Predicated region
        $region81: #{graph_attention_model_forward.3} parent=11 // pred_check
          %p585 = pneg %p493
        $region82: #{graph_attention_model_forward.3} parent=11 // pred_check_branch
          %587 = sbr.rel (%p585) target = $region84
        $region83: #{graph_attention_model_forward.3} parent=11 // pred_region
          _
        $region84: #{graph_attention_model_forward.3} parent=11 // pred_fallthru
          _
      $region12: #{graph_attention_model_forward.3} parent=5 // pred_fallthru
        _
      %p588 = scmp.lt.s32.totalorder %s37, 2
      // Predicated region
      $region85: #{graph_attention_model_forward.3} parent=5 // pred_check
        %p589 = pneg %p588
      $region86: #{graph_attention_model_forward.3} parent=5 // pred_check_branch
        %591 = sbr.rel (%p589) target = $region88
      $region87: #{graph_attention_model_forward.3} parent=5 // pred_region
        // Predicated region
        $region89: #{graph_attention_model_forward.3} parent=87 // pred_check
          %p592 = pneg %p57
        $region90: #{graph_attention_model_forward.3} parent=87 // pred_check_branch
          %594 = sbr.rel (%p592) target = $region92
        $region91: #{graph_attention_model_forward.3} parent=87 // pred_region
          %p595 = scmp.lt.s32.totalorder %s37, 1
          %s596 = scalar_select %p595, %s37, 1
          %s597 = smul.addr %s596, 4
          %s598 = scalar_lea.vmem %s1, %s597
        $region92: #{graph_attention_model_forward.3} parent=87 // pred_fallthru
          _
        // Predicated region
        $region93: #{graph_attention_model_forward.3} parent=87 // pred_check
          %p599 = pneg %p83
        $region94: #{graph_attention_model_forward.3} parent=87 // pred_check_branch
          %601 = sbr.rel (%p599) target = $region96
        $region95: #{graph_attention_model_forward.3} parent=87 // pred_region
          %p602 = scmp.lt.s32.totalorder %s37, 1
          %s603 = scalar_select %p602, %s37, 1
          %s604 = smul.addr %s603, 8
          %s605 = scalar_lea.vmem %s2, %s604
        $region96: #{graph_attention_model_forward.3} parent=87 // pred_fallthru
          _
        // Predicated region
        $region97: #{graph_attention_model_forward.3} parent=87 // pred_check
          %p606 = pneg %p109
        $region98: #{graph_attention_model_forward.3} parent=87 // pred_check_branch
          %608 = sbr.rel (%p606) target = $region100
        $region99: #{graph_attention_model_forward.3} parent=87 // pred_region
          %p609 = scmp.lt.s32.totalorder %s37, 1
          %s610 = scalar_select %p609, %s37, 1
          %s611 = scalar_lea.vmem %s3, %s610
        $region100: #{graph_attention_model_forward.3} parent=87 // pred_fallthru
          _
      $region88: #{graph_attention_model_forward.3} parent=5 // pred_fallthru
        _
      %p612 = scmp.le.s32.totalorder 1, %s37
      %p613 = scmp.lt.s32.totalorder %s37, 3
      %p614 = pnand %p612, %p613
      %p615 = pneg %p614
      // Predicated region
      $region101: #{graph_attention_model_forward.3} parent=5 // pred_check
        _
      $region102: #{graph_attention_model_forward.3} parent=5 // pred_check_branch
        %617 = sbr.rel (%p614) target = $region104
      $region103: #{graph_attention_model_forward.3} parent=5 // pred_region
        %s618 = ssub.s32 %s37, 1
        %p619 = scmp.lt.s32.totalorder %s42, 1
        %s620 = scalar_select %p619, %s42, 1
        %s621 = smul.addr %s620, 4
        %s622 = scalar_lea.vmem %s1, %s621
        %p623 = pneg %p63
        %p624 = pneg %p60
        %p625 = scmp.lt.s32.totalorder %s42, 1
        %s626 = scalar_select %p625, %s42, 1
        %s627 = smul.addr %s626, 8
        %s628 = scalar_lea.vmem %s2, %s627
        %p629 = pneg %p89
        %p630 = pneg %p86
        %p631 = scmp.lt.s32.totalorder %s42, 1
        %s632 = scalar_select %p631, %s42, 1
        %s633 = scalar_lea.vmem %s3, %s632
        %p634 = pneg %p115
        %p635 = pneg %p112
        %p636 = pneg %p136
        %p637 = pneg %p133
        %p638 = pneg %p157
        %p639 = pneg %p154
        %p640 = pneg %p178
        %p641 = pneg %p175
        %p642 = pneg %p199
        %p643 = pneg %p196
        %p644 = pneg %p220
        %p645 = pneg %p217
        %p646 = pneg %p241
        %p647 = pneg %p238
        %p648 = pneg %p262
        %p649 = pneg %p259
        %p650 = pneg %p283
        %p651 = pneg %p280
        %p652 = pneg %p304
        %p653 = pneg %p301
        %p654 = pneg %p325
        %p655 = pneg %p322
        %p656 = pneg %p346
        %p657 = pneg %p343
        %p658 = pneg %p367
        %p659 = pneg %p364
        %p660 = pneg %p388
        %p661 = pneg %p385
        %p662 = pneg %p409
        %p663 = pneg %p406
        %p664 = pneg %p430
        %p665 = pneg %p427
        %p666 = pneg %p451
        %p667 = pneg %p448
        %p668 = pneg %p472
        %p669 = pneg %p469
        %p670 = pneg %p493
        %p671 = pneg %p490
        %p672 = pneg %p519
        %p673 = pneg %p516
        %s674 = sand.u32 %s506, 1
        %s675 = scalar_lea.sflag [#allocation6], %s674
        %s676 = sand.u32 %s506, 1
        %s677 = scalar_lea.vmem [#allocation5], %s676
        %p678 = scmp.lt.s32.totalorder %s42, 1
        %s679 = scalar_select %p678, %s42, 1
        %s680 = smul.addr %s679, 4
        %s681 = scalar_lea.vmem %s1, %s680
        %p682 = scmp.lt.s32.totalorder %s42, 1
        %s683 = scalar_select %p682, %s42, 1
        %s684 = smul.addr %s683, 8
        %s685 = scalar_lea.vmem %s2, %s684
        %p686 = scmp.lt.s32.totalorder %s42, 1
        %s687 = scalar_select %p686, %s42, 1
        %s688 = scalar_lea.vmem %s3, %s687
        %v690 = vld [vmem:[%s681] sm:$0x7]
        %v691 = vld [vmem:[%s685] sm:$0xff]
        %v692 = vld [vmem:[%s688] sm:$0x1]
        %v693 = vpack.c.bf16 %v691, %v691
        %v694 = vld [vmem:[%s4] sm:$0xf]
        %v695 = vld [vmem:[%s4 + $0x4] sm:$0xf]
        %v696 = vld [vmem:[%s4 + $0x8] sm:$0xf]
        %v697 = vld [vmem:[%s4 + $0xc] sm:$0xf]
        %v698 = vld [vmem:[%s5] sm:$0x1]
        %v700 = vlaneseq
        %v701 = vshrl.u32 %v700, 7
        %v702 = vsub.s32 0, %v701
        %v703 = vrot.slane %v698, %v702
        %v709 = vunpack.c.l.b16 %v694
        %v710 = vunpack.c.l.b16 %v695
        %v711 = vunpack.c.l.b16 %v696
        %v712 = vunpack.c.l.b16 %v697
        %v713 = vpack.c.b16 %v710, %v709
        %v714 = vpack.c.b16 %v712, %v711
        %vm717 = vcmask 261120
        %v719 = vsel %vm717, %v693, 0
        %721 = vmatprep.subr.bf16.mxu0 0
        %722 = vmatpush1.bf16.msra.mxu0 %v713
        %723 = vmatprep.subr.bf16.mxu0 0
        %724 = vmatpush1.bf16.msra.mxu0 %v714
        %725 = vmatprep.subr.bf16.mxu0 0
        %726 = vmatpush1.bf16.msra.mxu0 0
        %727 = vmatprep.subr.bf16.mxu0 0
        %728 = vmatpush1.bf16.msra.mxu0 0
        %729 = vmatprep.subr.bf16.mxu0 0
        %730 = vmatpush1.bf16.msra.mxu0 0
        %731 = vmatprep.subr.bf16.mxu0 0
        %732 = vmatpush1.bf16.msra.mxu0 0
        %733 = vmatprep.subr.bf16.mxu0 0
        %734 = vmatpush1.bf16.msra.mxu0 0
        %735 = vmatprep.subr.bf16.mxu0 0
        %736 = vmatpush1.bf16.msra.mxu0 0
        %737 = vmatprep.subr.bf16.mxu0 0
        %738 = vmatpush1.bf16.msra.mxu0 0
        %739 = vmatprep.subr.bf16.mxu0 0
        %740 = vmatpush1.bf16.msra.mxu0 0
        %741 = vmatprep.subr.bf16.mxu0 0
        %742 = vmatpush1.bf16.msra.mxu0 0
        %743 = vmatprep.subr.bf16.mxu0 0
        %744 = vmatpush1.bf16.msra.mxu0 0
        %745 = vmatprep.subr.bf16.mxu0 0
        %746 = vmatpush1.bf16.msra.mxu0 0
        %747 = vmatprep.subr.bf16.mxu0 0
        %748 = vmatpush1.bf16.msra.mxu0 0
        %749 = vmatprep.subr.bf16.mxu0 0
        %750 = vmatpush1.bf16.msra.mxu0 0
        %751 = vmatprep.subr.bf16.mxu0 0
        %752 = vmatpush1.bf16.msra.mxu0 0
        %753 = vmatprep.mubr.bf16.mxu0 0
        %754 = vmatmul.mubr.bf16.gmra.mrb[0].mxu0 %v719
        %v755 = vpop.f32.mrb[0].mxu0
        %v756 = vadd.f32 %v703, %v755
        %v757 = vpop.f32.mrb[0].mxu0
        %v758 = vpop.f32.mrb[0].mxu0
        %v759 = vpop.f32.mrb[0].mxu0
        %760 = vdwg.mxu0
        %v761 = vpack.c.bf16 %v690, %v690
        %v762 = vld [vmem:[%s6] sm:$0x7]
        %v763 = vld [vmem:[%s7] sm:$0x1]
        %v765 = vlaneseq
        %v766 = vshrl.u32 %v765, 7
        %v767 = vsub.s32 0, %v766
        %v768 = vrot.slane %v763, %v767
        %vm770 = vcmask 48128
        %v772 = vsel %vm770, %v761, 0
        %vm774 = vcmask 1042432
        %v776 = vsel %vm774, %v762, 0
        %778 = vmatprep.subr.bf16.mxu0 0
        %779 = vmatpush1.bf16.msra.mxu0 %v776
        %780 = vmatprep.subr.bf16.mxu0 0
        %781 = vmatpush1.bf16.msra.mxu0 0
        %782 = vmatprep.subr.bf16.mxu0 0
        %783 = vmatpush1.bf16.msra.mxu0 0
        %784 = vmatprep.subr.bf16.mxu0 0
        %785 = vmatpush1.bf16.msra.mxu0 0
        %786 = vmatprep.subr.bf16.mxu0 0
        %787 = vmatpush1.bf16.msra.mxu0 0
        %788 = vmatprep.subr.bf16.mxu0 0
        %789 = vmatpush1.bf16.msra.mxu0 0
        %790 = vmatprep.subr.bf16.mxu0 0
        %791 = vmatpush1.bf16.msra.mxu0 0
        %792 = vmatprep.subr.bf16.mxu0 0
        %793 = vmatpush1.bf16.msra.mxu0 0
        %794 = vmatprep.subr.bf16.mxu0 0
        %795 = vmatpush1.bf16.msra.mxu0 0
        %796 = vmatprep.subr.bf16.mxu0 0
        %797 = vmatpush1.bf16.msra.mxu0 0
        %798 = vmatprep.subr.bf16.mxu0 0
        %799 = vmatpush1.bf16.msra.mxu0 0
        %800 = vmatprep.subr.bf16.mxu0 0
        %801 = vmatpush1.bf16.msra.mxu0 0
        %802 = vmatprep.subr.bf16.mxu0 0
        %803 = vmatpush1.bf16.msra.mxu0 0
        %804 = vmatprep.subr.bf16.mxu0 0
        %805 = vmatpush1.bf16.msra.mxu0 0
        %806 = vmatprep.subr.bf16.mxu0 0
        %807 = vmatpush1.bf16.msra.mxu0 0
        %808 = vmatprep.subr.bf16.mxu0 0
        %809 = vmatpush1.bf16.msra.mxu0 0
        %810 = vmatprep.mubr.bf16.mxu0 0
        %811 = vmatmul.mubr.bf16.gmra.mrb[0].mxu0 %v772
        %v812 = vpop.f32.mrb[0].mxu0
        %v813 = vadd.f32 %v768, %v812
        %v814 = vpop.f32.mrb[0].mxu0
        %v815 = vpop.f32.mrb[0].mxu0
        %v816 = vpop.f32.mrb[0].mxu0
        %817 = vdwg.mxu0
        %v818 = vld [vmem:[%s8] sm:$0xf]
        %v819 = vld [vmem:[%s8 + $0x4] sm:$0xf]
        %v820 = vld [vmem:[%s8 + $0x8] sm:$0xf]
        %v821 = vld [vmem:[%s8 + $0xc] sm:$0xf]
        %v822 = vld [vmem:[%s9] sm:$0x1]
        %v824 = vlaneseq
        %v825 = vshrl.u32 %v824, 7
        %v826 = vsub.s32 0, %v825
        %v827 = vrot.slane %v822, %v826
        %v833 = vunpack.c.l.b16 %v818
        %v834 = vunpack.c.l.b16 %v819
        %v835 = vunpack.c.l.b16 %v820
        %v836 = vunpack.c.l.b16 %v821
        %v837 = vpack.c.b16 %v834, %v833
        %v838 = vpack.c.b16 %v836, %v835
        %841 = vmatprep.subr.bf16.mxu0 0
        %842 = vmatpush1.bf16.msra.mxu0 %v837
        %843 = vmatprep.subr.bf16.mxu0 0
        %844 = vmatpush1.bf16.msra.mxu0 %v838
        %845 = vmatprep.subr.bf16.mxu0 0
        %846 = vmatpush1.bf16.msra.mxu0 0
        %847 = vmatprep.subr.bf16.mxu0 0
        %848 = vmatpush1.bf16.msra.mxu0 0
        %849 = vmatprep.subr.bf16.mxu0 0
        %850 = vmatpush1.bf16.msra.mxu0 0
        %851 = vmatprep.subr.bf16.mxu0 0
        %852 = vmatpush1.bf16.msra.mxu0 0
        %853 = vmatprep.subr.bf16.mxu0 0
        %854 = vmatpush1.bf16.msra.mxu0 0
        %855 = vmatprep.subr.bf16.mxu0 0
        %856 = vmatpush1.bf16.msra.mxu0 0
        %857 = vmatprep.subr.bf16.mxu0 0
        %858 = vmatpush1.bf16.msra.mxu0 0
        %859 = vmatprep.subr.bf16.mxu0 0
        %860 = vmatpush1.bf16.msra.mxu0 0
        %861 = vmatprep.subr.bf16.mxu0 0
        %862 = vmatpush1.bf16.msra.mxu0 0
        %863 = vmatprep.subr.bf16.mxu0 0
        %864 = vmatpush1.bf16.msra.mxu0 0
        %865 = vmatprep.subr.bf16.mxu0 0
        %866 = vmatpush1.bf16.msra.mxu0 0
        %867 = vmatprep.subr.bf16.mxu0 0
        %868 = vmatpush1.bf16.msra.mxu0 0
        %869 = vmatprep.subr.bf16.mxu0 0
        %870 = vmatpush1.bf16.msra.mxu0 0
        %871 = vmatprep.subr.bf16.mxu0 0
        %872 = vmatpush1.bf16.msra.mxu0 0
        %873 = vmatprep.mubr.bf16.mxu0 0
        %874 = vmatmul.mubr.bf16.gmra.mrb[0].mxu0 %v719
        %v875 = vpop.f32.mrb[0].mxu0
        %v876 = vadd.f32 %v827, %v875
        %v877 = vpop.f32.mrb[0].mxu0
        %v878 = vpop.f32.mrb[0].mxu0
        %v879 = vpop.f32.mrb[0].mxu0
        %880 = vdwg.mxu0
        %v881 = vld [vmem:[%s10] sm:$0xf]
        %v882 = vld [vmem:[%s10 + $0x4] sm:$0xf]
        %v883 = vld [vmem:[%s10 + $0x8] sm:$0xf]
        %v884 = vld [vmem:[%s10 + $0xc] sm:$0xf]
        %v885 = vld [vmem:[%s11] sm:$0x1]
        %v887 = vlaneseq
        %v888 = vshrl.u32 %v887, 7
        %v889 = vsub.s32 0, %v888
        %v890 = vrot.slane %v885, %v889
        %v896 = vunpack.c.l.b16 %v881
        %v897 = vunpack.c.l.b16 %v882
        %v898 = vunpack.c.l.b16 %v883
        %v899 = vunpack.c.l.b16 %v884
        %v900 = vpack.c.b16 %v897, %v896
        %v901 = vpack.c.b16 %v899, %v898
        %904 = vmatprep.subr.bf16.mxu0 0
        %905 = vmatpush1.bf16.msra.mxu0 %v900
        %906 = vmatprep.subr.bf16.mxu0 0
        %907 = vmatpush1.bf16.msra.mxu0 %v901
        %908 = vmatprep.subr.bf16.mxu0 0
        %909 = vmatpush1.bf16.msra.mxu0 0
        %910 = vmatprep.subr.bf16.mxu0 0
        %911 = vmatpush1.bf16.msra.mxu0 0
        %912 = vmatprep.subr.bf16.mxu0 0
        %913 = vmatpush1.bf16.msra.mxu0 0
        %914 = vmatprep.subr.bf16.mxu0 0
        %915 = vmatpush1.bf16.msra.mxu0 0
        %916 = vmatprep.subr.bf16.mxu0 0
        %917 = vmatpush1.bf16.msra.mxu0 0
        %918 = vmatprep.subr.bf16.mxu0 0
        %919 = vmatpush1.bf16.msra.mxu0 0
        %920 = vmatprep.subr.bf16.mxu0 0
        %921 = vmatpush1.bf16.msra.mxu0 0
        %922 = vmatprep.subr.bf16.mxu0 0
        %923 = vmatpush1.bf16.msra.mxu0 0
        %924 = vmatprep.subr.bf16.mxu0 0
        %925 = vmatpush1.bf16.msra.mxu0 0
        %926 = vmatprep.subr.bf16.mxu0 0
        %927 = vmatpush1.bf16.msra.mxu0 0
        %928 = vmatprep.subr.bf16.mxu0 0
        %929 = vmatpush1.bf16.msra.mxu0 0
        %930 = vmatprep.subr.bf16.mxu0 0
        %931 = vmatpush1.bf16.msra.mxu0 0
        %932 = vmatprep.subr.bf16.mxu0 0
        %933 = vmatpush1.bf16.msra.mxu0 0
        %934 = vmatprep.subr.bf16.mxu0 0
        %935 = vmatpush1.bf16.msra.mxu0 0
        %936 = vmatprep.mubr.bf16.mxu0 0
        %937 = vmatmul.mubr.bf16.gmra.mrb[0].mxu0 %v719
        %v938 = vpop.f32.mrb[0].mxu0
        %v939 = vadd.f32 %v890, %v938
        %v940 = vpop.f32.mrb[0].mxu0
        %v941 = vpop.f32.mrb[0].mxu0
        %v942 = vpop.f32.mrb[0].mxu0
        %943 = vdwg.mxu0
        %945 = vrot.lane.b32.xlu0 %v813, 120
        %v946 = vpop.permute.xlu0 %945
        %948 = vrot.lane.b32.xlu0 %v813, 112
        %v949 = vpop.permute.xlu0 %948
        %951 = vrot.lane.b32.xlu0 %v813, 104
        %v952 = vpop.permute.xlu0 %951
        %v954 = vcombine.low %v813, %v949
        %v956 = vunpack.c.l.s4 1983009808
        %v957 = vunpack.c.0.s8 %v956
        %v958 = vlaneseq
        %v959 = vshrl.u32 %v958, 7
        %v960 = vsub.s32 %v957, %v959
        %v961 = vrot.slane %v954, %v960
        %v962 = vcombine.low %v946, %v952
        %v964 = vunpack.c.l.s4 1983009808
        %v965 = vunpack.c.0.s8 %v964
        %v966 = vlaneseq
        %v967 = vshrl.u32 %v966, 7
        %v968 = vsub.s32 %v965, %v967
        %v969 = vrot.slane %v962, %v968
        %v970 = vcombine.low %v961, %v969
        %v971 = vcombine.high %v961, %v969
        %v973 = vunpack.c.l.s4 1934713408
        %v974 = vunpack.c.0.s8 %v973
        %v975 = vlaneseq
        %v976 = vshrl.u32 %v975, 7
        %v977 = vsub.s32 %v974, %v976
        %v978 = vrot.slane %v970, %v977
        %v980 = vunpack.c.l.s4 1934713408
        %v981 = vunpack.c.0.s8 %v980
        %v982 = vlaneseq
        %v983 = vshrl.u32 %v982, 7
        %v984 = vsub.s32 %v981, %v983
        %v985 = vrot.slane %v971, %v984
        %v986 = vcombine.low %v978, %v985
        %v988 = vunpack.c.l.s4 1983009808
        %v989 = vunpack.c.0.s8 %v988
        %v990 = vlaneseq
        %v991 = vshrl.u32 %v990, 7
        %v992 = vsub.s32 %v989, %v991
        %v993 = vrot.slane %v986, %v992
        %v994 = vcombine.high %v978, 0.0
        %v996 = vunpack.c.l.s4 1983009808
        %v997 = vunpack.c.0.s8 %v996
        %v998 = vlaneseq
        %v999 = vshrl.u32 %v998, 7
        %v1000 = vsub.s32 %v997, %v999
        %v1001 = vrot.slane %v994, %v1000
        %v1002 = vcombine.low %v993, %v1001
        %v1003 = vcombine.high %v993, %v1001
        %v1005 = vunpack.c.l.s4 1934713408
        %v1006 = vunpack.c.0.s8 %v1005
        %v1007 = vlaneseq
        %v1008 = vshrl.u32 %v1007, 7
        %v1009 = vsub.s32 %v1006, %v1008
        %v1010 = vrot.slane %v1002, %v1009
        %v1012 = vunpack.c.l.s4 1934713408
        %v1013 = vunpack.c.0.s8 %v1012
        %v1014 = vlaneseq
        %v1015 = vshrl.u32 %v1014, 7
        %v1016 = vsub.s32 %v1013, %v1015
        %v1017 = vrot.slane %v1003, %v1016
        %v1018 = vcombine.high %v1010, 0.0
        %v1019 = vcombine.high %v1017, 0.0
        %v1020 = vpack.c.bf16 %v1010, %v1010
        %v1021 = vpack.c.bf16 %v1018, %v1018
        %v1022 = vpack.c.bf16 %v1017, %v1017
        %v1023 = vpack.c.bf16 %v1019, %v1019
        %1025 = vrot.lane.b32.xlu0 %v876, 120
        %v1026 = vpop.permute.xlu0 %1025
        %1028 = vrot.lane.b32.xlu0 %v876, 112
        %v1029 = vpop.permute.xlu0 %1028
        %1031 = vrot.lane.b32.xlu0 %v876, 104
        %v1032 = vpop.permute.xlu0 %1031
        %v1034 = vcombine.low %v876, %v1029
        %v1035 = vcombine.high %v876, %v1029
        %v1037 = vunpack.c.l.s4 1983009808
        %v1038 = vunpack.c.0.s8 %v1037
        %v1039 = vlaneseq
        %v1040 = vshrl.u32 %v1039, 7
        %v1041 = vsub.s32 %v1038, %v1040
        %v1042 = vrot.slane %v1034, %v1041
        %v1044 = vunpack.c.l.s4 1983009808
        %v1045 = vunpack.c.0.s8 %v1044
        %v1046 = vlaneseq
        %v1047 = vshrl.u32 %v1046, 7
        %v1048 = vsub.s32 %v1045, %v1047
        %v1049 = vrot.slane %v1035, %v1048
        %v1050 = vcombine.low %v1026, %v1032
        %v1051 = vcombine.high %v1026, %v1032
        %v1053 = vunpack.c.l.s4 1983009808
        %v1054 = vunpack.c.0.s8 %v1053
        %v1055 = vlaneseq
        %v1056 = vshrl.u32 %v1055, 7
        %v1057 = vsub.s32 %v1054, %v1056
        %v1058 = vrot.slane %v1050, %v1057
        %v1060 = vunpack.c.l.s4 1983009808
        %v1061 = vunpack.c.0.s8 %v1060
        %v1062 = vlaneseq
        %v1063 = vshrl.u32 %v1062, 7
        %v1064 = vsub.s32 %v1061, %v1063
        %v1065 = vrot.slane %v1051, %v1064
        %v1066 = vcombine.low %v1042, %v1058
        %v1067 = vcombine.high %v1042, %v1058
        %v1069 = vunpack.c.l.s4 1934713408
        %v1070 = vunpack.c.0.s8 %v1069
        %v1071 = vlaneseq
        %v1072 = vshrl.u32 %v1071, 7
        %v1073 = vsub.s32 %v1070, %v1072
        %v1074 = vrot.slane %v1066, %v1073
        %v1076 = vunpack.c.l.s4 1934713408
        %v1077 = vunpack.c.0.s8 %v1076
        %v1078 = vlaneseq
        %v1079 = vshrl.u32 %v1078, 7
        %v1080 = vsub.s32 %v1077, %v1079
        %v1081 = vrot.slane %v1067, %v1080
        %v1082 = vcombine.low %v1049, %v1065
        %v1083 = vcombine.high %v1049, %v1065
        %v1085 = vunpack.c.l.s4 1934713408
        %v1086 = vunpack.c.0.s8 %v1085
        %v1087 = vlaneseq
        %v1088 = vshrl.u32 %v1087, 7
        %v1089 = vsub.s32 %v1086, %v1088
        %v1090 = vrot.slane %v1082, %v1089
        %v1092 = vunpack.c.l.s4 1934713408
        %v1093 = vunpack.c.0.s8 %v1092
        %v1094 = vlaneseq
        %v1095 = vshrl.u32 %v1094, 7
        %v1096 = vsub.s32 %v1093, %v1095
        %v1097 = vrot.slane %v1083, %v1096
        %v1098 = vcombine.high %v1074, 0.0
        %v1099 = vcombine.high %v1081, 0.0
        %v1100 = vcombine.high %v1090, 0.0
        %v1101 = vcombine.high %v1097, 0.0
        %v1102 = vcombine.low %v1074, %v1081
        %v1104 = vunpack.c.l.s4 1983009808
        %v1105 = vunpack.c.0.s8 %v1104
        %v1106 = vlaneseq
        %v1107 = vshrl.u32 %v1106, 7
        %v1108 = vsub.s32 %v1105, %v1107
        %v1109 = vrot.slane %v1102, %v1108
        %v1110 = vcombine.low %v1098, %v1099
        %v1112 = vunpack.c.l.s4 1983009808
        %v1113 = vunpack.c.0.s8 %v1112
        %v1114 = vlaneseq
        %v1115 = vshrl.u32 %v1114, 7
        %v1116 = vsub.s32 %v1113, %v1115
        %v1117 = vrot.slane %v1110, %v1116
        %v1118 = vcombine.low %v1090, %v1097
        %v1120 = vunpack.c.l.s4 1983009808
        %v1121 = vunpack.c.0.s8 %v1120
        %v1122 = vlaneseq
        %v1123 = vshrl.u32 %v1122, 7
        %v1124 = vsub.s32 %v1121, %v1123
        %v1125 = vrot.slane %v1118, %v1124
        %v1126 = vcombine.low %v1100, %v1101
        %v1128 = vunpack.c.l.s4 1983009808
        %v1129 = vunpack.c.0.s8 %v1128
        %v1130 = vlaneseq
        %v1131 = vshrl.u32 %v1130, 7
        %v1132 = vsub.s32 %v1129, %v1131
        %v1133 = vrot.slane %v1126, %v1132
        %v1134 = vcombine.low %v1109, %v1117
        %v1135 = vcombine.high %v1109, %v1117
        %v1137 = vunpack.c.l.s4 1934713408
        %v1138 = vunpack.c.0.s8 %v1137
        %v1139 = vlaneseq
        %v1140 = vshrl.u32 %v1139, 7
        %v1141 = vsub.s32 %v1138, %v1140
        %v1142 = vrot.slane %v1134, %v1141
        %v1144 = vunpack.c.l.s4 1934713408
        %v1145 = vunpack.c.0.s8 %v1144
        %v1146 = vlaneseq
        %v1147 = vshrl.u32 %v1146, 7
        %v1148 = vsub.s32 %v1145, %v1147
        %v1149 = vrot.slane %v1135, %v1148
        %v1150 = vcombine.low %v1125, %v1133
        %v1151 = vcombine.high %v1125, %v1133
        %v1153 = vunpack.c.l.s4 1934713408
        %v1154 = vunpack.c.0.s8 %v1153
        %v1155 = vlaneseq
        %v1156 = vshrl.u32 %v1155, 7
        %v1157 = vsub.s32 %v1154, %v1156
        %v1158 = vrot.slane %v1150, %v1157
        %v1160 = vunpack.c.l.s4 1934713408
        %v1161 = vunpack.c.0.s8 %v1160
        %v1162 = vlaneseq
        %v1163 = vshrl.u32 %v1162, 7
        %v1164 = vsub.s32 %v1161, %v1163
        %v1165 = vrot.slane %v1151, %v1164
        %v1166 = vcombine.low %v1142, %v1158
        %v1167 = vcombine.high %v1142, %v1158
        %v1168 = vcombine.low %v1149, %v1165
        %v1169 = vcombine.high %v1149, %v1165
        %v1170 = vpack.c.bf16 %v1166, %v1166
        %v1171 = vpack.c.bf16 %v1167, %v1167
        %v1172 = vpack.c.bf16 %v1168, %v1168
        %v1173 = vpack.c.bf16 %v1169, %v1169
        %1175 = vrot.lane.b32.xlu0 %v939, 120
        %v1176 = vpop.permute.xlu0 %1175
        %1178 = vrot.lane.b32.xlu0 %v939, 112
        %v1179 = vpop.permute.xlu0 %1178
        %1181 = vrot.lane.b32.xlu0 %v939, 104
        %v1182 = vpop.permute.xlu0 %1181
        %v1184 = vcombine.low %v939, %v1179
        %v1185 = vcombine.high %v939, %v1179
        %v1187 = vunpack.c.l.s4 1983009808
        %v1188 = vunpack.c.0.s8 %v1187
        %v1189 = vlaneseq
        %v1190 = vshrl.u32 %v1189, 7
        %v1191 = vsub.s32 %v1188, %v1190
        %v1192 = vrot.slane %v1184, %v1191
        %v1194 = vunpack.c.l.s4 1983009808
        %v1195 = vunpack.c.0.s8 %v1194
        %v1196 = vlaneseq
        %v1197 = vshrl.u32 %v1196, 7
        %v1198 = vsub.s32 %v1195, %v1197
        %v1199 = vrot.slane %v1185, %v1198
        %v1200 = vcombine.low %v1176, %v1182
        %v1201 = vcombine.high %v1176, %v1182
        %v1203 = vunpack.c.l.s4 1983009808
        %v1204 = vunpack.c.0.s8 %v1203
        %v1205 = vlaneseq
        %v1206 = vshrl.u32 %v1205, 7
        %v1207 = vsub.s32 %v1204, %v1206
        %v1208 = vrot.slane %v1200, %v1207
        %v1210 = vunpack.c.l.s4 1983009808
        %v1211 = vunpack.c.0.s8 %v1210
        %v1212 = vlaneseq
        %v1213 = vshrl.u32 %v1212, 7
        %v1214 = vsub.s32 %v1211, %v1213
        %v1215 = vrot.slane %v1201, %v1214
        %v1216 = vcombine.low %v1192, %v1208
        %v1217 = vcombine.high %v1192, %v1208
        %v1219 = vunpack.c.l.s4 1934713408
        %v1220 = vunpack.c.0.s8 %v1219
        %v1221 = vlaneseq
        %v1222 = vshrl.u32 %v1221, 7
        %v1223 = vsub.s32 %v1220, %v1222
        %v1224 = vrot.slane %v1216, %v1223
        %v1226 = vunpack.c.l.s4 1934713408
        %v1227 = vunpack.c.0.s8 %v1226
        %v1228 = vlaneseq
        %v1229 = vshrl.u32 %v1228, 7
        %v1230 = vsub.s32 %v1227, %v1229
        %v1231 = vrot.slane %v1217, %v1230
        %v1232 = vcombine.low %v1199, %v1215
        %v1233 = vcombine.high %v1199, %v1215
        %v1235 = vunpack.c.l.s4 1934713408
        %v1236 = vunpack.c.0.s8 %v1235
        %v1237 = vlaneseq
        %v1238 = vshrl.u32 %v1237, 7
        %v1239 = vsub.s32 %v1236, %v1238
        %v1240 = vrot.slane %v1232, %v1239
        %v1242 = vunpack.c.l.s4 1934713408
        %v1243 = vunpack.c.0.s8 %v1242
        %v1244 = vlaneseq
        %v1245 = vshrl.u32 %v1244, 7
        %v1246 = vsub.s32 %v1243, %v1245
        %v1247 = vrot.slane %v1233, %v1246
        %v1248 = vcombine.high %v1224, 0.0
        %v1249 = vcombine.high %v1231, 0.0
        %v1250 = vcombine.high %v1240, 0.0
        %v1251 = vcombine.high %v1247, 0.0
        %v1252 = vcombine.low %v1224, %v1231
        %v1254 = vunpack.c.l.s4 1983009808
        %v1255 = vunpack.c.0.s8 %v1254
        %v1256 = vlaneseq
        %v1257 = vshrl.u32 %v1256, 7
        %v1258 = vsub.s32 %v1255, %v1257
        %v1259 = vrot.slane %v1252, %v1258
        %v1260 = vcombine.low %v1248, %v1249
        %v1262 = vunpack.c.l.s4 1983009808
        %v1263 = vunpack.c.0.s8 %v1262
        %v1264 = vlaneseq
        %v1265 = vshrl.u32 %v1264, 7
        %v1266 = vsub.s32 %v1263, %v1265
        %v1267 = vrot.slane %v1260, %v1266
        %v1268 = vcombine.low %v1240, %v1247
        %v1270 = vunpack.c.l.s4 1983009808
        %v1271 = vunpack.c.0.s8 %v1270
        %v1272 = vlaneseq
        %v1273 = vshrl.u32 %v1272, 7
        %v1274 = vsub.s32 %v1271, %v1273
        %v1275 = vrot.slane %v1268, %v1274
        %v1276 = vcombine.low %v1250, %v1251
        %v1278 = vunpack.c.l.s4 1983009808
        %v1279 = vunpack.c.0.s8 %v1278
        %v1280 = vlaneseq
        %v1281 = vshrl.u32 %v1280, 7
        %v1282 = vsub.s32 %v1279, %v1281
        %v1283 = vrot.slane %v1276, %v1282
        %v1284 = vcombine.low %v1259, %v1267
        %v1285 = vcombine.high %v1259, %v1267
        %v1287 = vunpack.c.l.s4 1934713408
        %v1288 = vunpack.c.0.s8 %v1287
        %v1289 = vlaneseq
        %v1290 = vshrl.u32 %v1289, 7
        %v1291 = vsub.s32 %v1288, %v1290
        %v1292 = vrot.slane %v1284, %v1291
        %v1294 = vunpack.c.l.s4 1934713408
        %v1295 = vunpack.c.0.s8 %v1294
        %v1296 = vlaneseq
        %v1297 = vshrl.u32 %v1296, 7
        %v1298 = vsub.s32 %v1295, %v1297
        %v1299 = vrot.slane %v1285, %v1298
        %v1300 = vcombine.low %v1275, %v1283
        %v1301 = vcombine.high %v1275, %v1283
        %v1303 = vunpack.c.l.s4 1934713408
        %v1304 = vunpack.c.0.s8 %v1303
        %v1305 = vlaneseq
        %v1306 = vshrl.u32 %v1305, 7
        %v1307 = vsub.s32 %v1304, %v1306
        %v1308 = vrot.slane %v1300, %v1307
        %v1310 = vunpack.c.l.s4 1934713408
        %v1311 = vunpack.c.0.s8 %v1310
        %v1312 = vlaneseq
        %v1313 = vshrl.u32 %v1312, 7
        %v1314 = vsub.s32 %v1311, %v1313
        %v1315 = vrot.slane %v1301, %v1314
        %v1316 = vcombine.low %v1292, %v1308
        %v1317 = vcombine.high %v1292, %v1308
        %v1318 = vcombine.low %v1299, %v1315
        %v1319 = vcombine.high %v1299, %v1315
        %v1320 = vpack.c.bf16 %v1316, %v1316
        %v1321 = vpack.c.bf16 %v1317, %v1317
        %v1322 = vpack.c.bf16 %v1318, %v1318
        %v1323 = vpack.c.bf16 %v1319, %v1319
        %vm1324 = vcmask 64512
        %v1326 = vsel %vm1324, %v1020, 0
        %v1329 = vsel %vm1324, %v1170, 0
        %1331 = vmatprep.subr.bf16.mxu0 0
        %1332 = vmatpush1.bf16.xpose.msra.mxu0 %v1329
        %1333 = vmatprep.subr.bf16.mxu0 0
        %1334 = vmatpush1.bf16.xpose.msra.mxu0 0
        %1335 = vmatprep.subr.bf16.mxu0 0
        %1336 = vmatpush1.bf16.xpose.msra.mxu0 0
        %1337 = vmatprep.subr.bf16.mxu0 0
        %1338 = vmatpush1.bf16.xpose.msra.mxu0 0
        %1339 = vmatprep.subr.bf16.mxu0 0
        %1340 = vmatpush1.bf16.xpose.msra.mxu0 0
        %1341 = vmatprep.subr.bf16.mxu0 0
        %1342 = vmatpush1.bf16.xpose.msra.mxu0 0
        %1343 = vmatprep.subr.bf16.mxu0 0
        %1344 = vmatpush1.bf16.xpose.msra.mxu0 0
        %1345 = vmatprep.subr.bf16.mxu0 0
        %1346 = vmatpush1.bf16.xpose.msra.mxu0 0
        %1347 = vmatprep.subr.bf16.mxu0 0
        %1348 = vmatpush1.bf16.xpose.msra.mxu0 0
        %1349 = vmatprep.subr.bf16.mxu0 0
        %1350 = vmatpush1.bf16.xpose.msra.mxu0 0
        %1351 = vmatprep.subr.bf16.mxu0 0
        %1352 = vmatpush1.bf16.xpose.msra.mxu0 0
        %1353 = vmatprep.subr.bf16.mxu0 0
        %1354 = vmatpush1.bf16.xpose.msra.mxu0 0
        %1355 = vmatprep.subr.bf16.mxu0 0
        %1356 = vmatpush1.bf16.xpose.msra.mxu0 0
        %1357 = vmatprep.subr.bf16.mxu0 0
        %1358 = vmatpush1.bf16.xpose.msra.mxu0 0
        %1359 = vmatprep.subr.bf16.mxu0 0
        %1360 = vmatpush1.bf16.xpose.msra.mxu0 0
        %1361 = vmatprep.subr.bf16.mxu0 0
        %1362 = vmatpush1.bf16.xpose.msra.mxu0 0
        %1363 = vmatprep.mubr.bf16.mxu0 0
        %1364 = vmatmul.mubr.bf16.gmra.mrb[0].mxu0 %v1326
        %v1365 = vpop.f32.mrb[0].mxu0
        %v1366 = vadd.f32 0.0, %v1365
        %v1367 = vpop.f32.mrb[0].mxu0
        %v1368 = vpop.f32.mrb[0].mxu0
        %v1369 = vpop.f32.mrb[0].mxu0
        %1370 = vdwg.mxu0
        %v1372 = vsel %vm1324, %v1021, 0
        %v1375 = vsel %vm1324, %v1171, 0
        %1377 = vmatprep.subr.bf16.mxu0 0
        %1378 = vmatpush1.bf16.xpose.msra.mxu0 %v1375
        %1379 = vmatprep.subr.bf16.mxu0 0
        %1380 = vmatpush1.bf16.xpose.msra.mxu0 0
        %1381 = vmatprep.subr.bf16.mxu0 0
        %1382 = vmatpush1.bf16.xpose.msra.mxu0 0
        %1383 = vmatprep.subr.bf16.mxu0 0
        %1384 = vmatpush1.bf16.xpose.msra.mxu0 0
        %1385 = vmatprep.subr.bf16.mxu0 0
        %1386 = vmatpush1.bf16.xpose.msra.mxu0 0
        %1387 = vmatprep.subr.bf16.mxu0 0
        %1388 = vmatpush1.bf16.xpose.msra.mxu0 0
        %1389 = vmatprep.subr.bf16.mxu0 0
        %1390 = vmatpush1.bf16.xpose.msra.mxu0 0
        %1391 = vmatprep.subr.bf16.mxu0 0
        %1392 = vmatpush1.bf16.xpose.msra.mxu0 0
        %1393 = vmatprep.subr.bf16.mxu0 0
        %1394 = vmatpush1.bf16.xpose.msra.mxu0 0
        %1395 = vmatprep.subr.bf16.mxu0 0
        %1396 = vmatpush1.bf16.xpose.msra.mxu0 0
        %1397 = vmatprep.subr.bf16.mxu0 0
        %1398 = vmatpush1.bf16.xpose.msra.mxu0 0
        %1399 = vmatprep.subr.bf16.mxu0 0
        %1400 = vmatpush1.bf16.xpose.msra.mxu0 0
        %1401 = vmatprep.subr.bf16.mxu0 0
        %1402 = vmatpush1.bf16.xpose.msra.mxu0 0
        %1403 = vmatprep.subr.bf16.mxu0 0
        %1404 = vmatpush1.bf16.xpose.msra.mxu0 0
        %1405 = vmatprep.subr.bf16.mxu0 0
        %1406 = vmatpush1.bf16.xpose.msra.mxu0 0
        %1407 = vmatprep.subr.bf16.mxu0 0
        %1408 = vmatpush1.bf16.xpose.msra.mxu0 0
        %1409 = vmatprep.mubr.bf16.mxu0 0
        %1410 = vmatmul.mubr.bf16.gmra.mrb[0].mxu0 %v1372
        %v1411 = vpop.f32.mrb[0].mxu0
        %v1412 = vadd.f32 0.0, %v1411
        %v1413 = vpop.f32.mrb[0].mxu0
        %v1414 = vpop.f32.mrb[0].mxu0
        %v1415 = vpop.f32.mrb[0].mxu0
        %1416 = vdwg.mxu0
        %v1418 = vsel %vm1324, %v1022, 0
        %v1421 = vsel %vm1324, %v1172, 0
        %1423 = vmatprep.subr.bf16.mxu0 0
        %1424 = vmatpush1.bf16.xpose.msra.mxu0 %v1421
        %1425 = vmatprep.subr.bf16.mxu0 0
        %1426 = vmatpush1.bf16.xpose.msra.mxu0 0
        %1427 = vmatprep.subr.bf16.mxu0 0
        %1428 = vmatpush1.bf16.xpose.msra.mxu0 0
        %1429 = vmatprep.subr.bf16.mxu0 0
        %1430 = vmatpush1.bf16.xpose.msra.mxu0 0
        %1431 = vmatprep.subr.bf16.mxu0 0
        %1432 = vmatpush1.bf16.xpose.msra.mxu0 0
        %1433 = vmatprep.subr.bf16.mxu0 0
        %1434 = vmatpush1.bf16.xpose.msra.mxu0 0
        %1435 = vmatprep.subr.bf16.mxu0 0
        %1436 = vmatpush1.bf16.xpose.msra.mxu0 0
        %1437 = vmatprep.subr.bf16.mxu0 0
        %1438 = vmatpush1.bf16.xpose.msra.mxu0 0
        %1439 = vmatprep.subr.bf16.mxu0 0
        %1440 = vmatpush1.bf16.xpose.msra.mxu0 0
        %1441 = vmatprep.subr.bf16.mxu0 0
        %1442 = vmatpush1.bf16.xpose.msra.mxu0 0
        %1443 = vmatprep.subr.bf16.mxu0 0
        %1444 = vmatpush1.bf16.xpose.msra.mxu0 0
        %1445 = vmatprep.subr.bf16.mxu0 0
        %1446 = vmatpush1.bf16.xpose.msra.mxu0 0
        %1447 = vmatprep.subr.bf16.mxu0 0
        %1448 = vmatpush1.bf16.xpose.msra.mxu0 0
        %1449 = vmatprep.subr.bf16.mxu0 0
        %1450 = vmatpush1.bf16.xpose.msra.mxu0 0
        %1451 = vmatprep.subr.bf16.mxu0 0
        %1452 = vmatpush1.bf16.xpose.msra.mxu0 0
        %1453 = vmatprep.subr.bf16.mxu0 0
        %1454 = vmatpush1.bf16.xpose.msra.mxu0 0
        %1455 = vmatprep.mubr.bf16.mxu0 0
        %1456 = vmatmul.mubr.bf16.gmra.mrb[0].mxu0 %v1418
        %v1457 = vpop.f32.mrb[0].mxu0
        %v1458 = vadd.f32 0.0, %v1457
        %v1459 = vpop.f32.mrb[0].mxu0
        %v1460 = vpop.f32.mrb[0].mxu0
        %v1461 = vpop.f32.mrb[0].mxu0
        %1462 = vdwg.mxu0
        %v1464 = vsel %vm1324, %v1023, 0
        %v1467 = vsel %vm1324, %v1173, 0
        %1469 = vmatprep.subr.bf16.mxu0 0
        %1470 = vmatpush1.bf16.xpose.msra.mxu0 %v1467
        %1471 = vmatprep.subr.bf16.mxu0 0
        %1472 = vmatpush1.bf16.xpose.msra.mxu0 0
        %1473 = vmatprep.subr.bf16.mxu0 0
        %1474 = vmatpush1.bf16.xpose.msra.mxu0 0
        %1475 = vmatprep.subr.bf16.mxu0 0
        %1476 = vmatpush1.bf16.xpose.msra.mxu0 0
        %1477 = vmatprep.subr.bf16.mxu0 0
        %1478 = vmatpush1.bf16.xpose.msra.mxu0 0
        %1479 = vmatprep.subr.bf16.mxu0 0
        %1480 = vmatpush1.bf16.xpose.msra.mxu0 0
        %1481 = vmatprep.subr.bf16.mxu0 0
        %1482 = vmatpush1.bf16.xpose.msra.mxu0 0
        %1483 = vmatprep.subr.bf16.mxu0 0
        %1484 = vmatpush1.bf16.xpose.msra.mxu0 0
        %1485 = vmatprep.subr.bf16.mxu0 0
        %1486 = vmatpush1.bf16.xpose.msra.mxu0 0
        %1487 = vmatprep.subr.bf16.mxu0 0
        %1488 = vmatpush1.bf16.xpose.msra.mxu0 0
        %1489 = vmatprep.subr.bf16.mxu0 0
        %1490 = vmatpush1.bf16.xpose.msra.mxu0 0
        %1491 = vmatprep.subr.bf16.mxu0 0
        %1492 = vmatpush1.bf16.xpose.msra.mxu0 0
        %1493 = vmatprep.subr.bf16.mxu0 0
        %1494 = vmatpush1.bf16.xpose.msra.mxu0 0
        %1495 = vmatprep.subr.bf16.mxu0 0
        %1496 = vmatpush1.bf16.xpose.msra.mxu0 0
        %1497 = vmatprep.subr.bf16.mxu0 0
        %1498 = vmatpush1.bf16.xpose.msra.mxu0 0
        %1499 = vmatprep.subr.bf16.mxu0 0
        %1500 = vmatpush1.bf16.xpose.msra.mxu0 0
        %1501 = vmatprep.mubr.bf16.mxu0 0
        %1502 = vmatmul.mubr.bf16.gmra.mrb[0].mxu0 %v1464
        %v1503 = vpop.f32.mrb[0].mxu0
        %v1504 = vadd.f32 0.0, %v1503
        %v1505 = vpop.f32.mrb[0].mxu0
        %v1506 = vpop.f32.mrb[0].mxu0
        %v1507 = vpop.f32.mrb[0].mxu0
        %1508 = vdwg.mxu0
        %vm1509 = vcmp.gt.f32.partialorder %v692, 0.5
        %v1510 = vsel %vm1509, 1, 0
        %v1511 = vlaneseq
        %v1512 = vshrl.u32 %v1511, 7
        %v1513 = vsub.s32 0, %v1512
        %v1514 = vrot.slane %v1510, %v1513
        %vm1515 = vcmp.eq.s32.totalorder %v1514, 1
        %v1516 = vsel %vm1515, -1e+30, %v1366
        %v1517 = vsel %vm1515, -1e+30, %v1412
        %v1518 = vsel %vm1515, -1e+30, %v1458
        %v1519 = vsel %vm1515, -1e+30, %v1504
        %vm1520 = vcmask 59392
        %v1521 = vsel %vm1520, %v1516, -inf
        %1522 = vmax.xlane.f32.xlu0 %v1521
        %v1523 = vpop.xlane.xlu0 %1522
        %v1524 = vsel %vm1520, %v1517, -inf
        %1525 = vmax.xlane.f32.xlu0 %v1524
        %v1526 = vpop.xlane.xlu0 %1525
        %v1527 = vsel %vm1520, %v1518, -inf
        %1528 = vmax.xlane.f32.xlu0 %v1527
        %v1529 = vpop.xlane.xlu0 %1528
        %v1530 = vsel %vm1520, %v1519, -inf
        %1531 = vmax.xlane.f32.xlu0 %v1530
        %v1532 = vpop.xlane.xlu0 %1531
        %v1533 = vsub.f32 %v1516, %v1523
        %v1534 = vsub.f32 %v1517, %v1526
        %v1535 = vsub.f32 %v1518, %v1529
        %v1536 = vsub.f32 %v1519, %v1532
        %v1537 = vmul.f32 %v1533, 1.442695
        %v1538 = vpow.pop %v1537
        %v1539 = vmul.f32 %v1534, 1.442695
        %v1540 = vpow.pop %v1539
        %v1541 = vmul.f32 %v1535, 1.442695
        %v1542 = vpow.pop %v1541
        %v1543 = vmul.f32 %v1536, 1.442695
        %v1544 = vpow.pop %v1543
        %v1545 = vsel %vm1520, %v1538, 0.0
        %1546 = vadd.xlane.f32.xlu0 %v1545
        %v1547 = vpop.xlane.xlu0 %1546
        %v1548 = vsel %vm1520, %v1540, 0.0
        %1549 = vadd.xlane.f32.xlu0 %v1548
        %v1550 = vpop.xlane.xlu0 %1549
        %v1551 = vsel %vm1520, %v1542, 0.0
        %1552 = vadd.xlane.f32.xlu0 %v1551
        %v1553 = vpop.xlane.xlu0 %1552
        %v1554 = vsel %vm1520, %v1544, 0.0
        %1555 = vadd.xlane.f32.xlu0 %v1554
        %v1556 = vpop.xlane.xlu0 %1555
        %v1557 = vrcp.pop %v1547
        %v1558 = vrcp.pop %v1550
        %v1559 = vrcp.pop %v1553
        %v1560 = vrcp.pop %v1556
        %v1561 = vmul.f32 %v1538, %v1557
        %v1562 = vmul.f32 %v1540, %v1558
        %v1563 = vmul.f32 %v1542, %v1559
        %v1564 = vmul.f32 %v1544, %v1560
        %v1565 = vpack.c.bf16 %v1561, %v1561
        %v1566 = vpack.c.bf16 %v1562, %v1562
        %v1567 = vpack.c.bf16 %v1563, %v1563
        %v1568 = vpack.c.bf16 %v1564, %v1564
        %v1570 = vsel %vm1324, %v1565, 0
        %vm1572 = vcmask 1043456
        %v1574 = vsel %vm1572, %v1320, 0
        %1576 = vmatprep.subr.bf16.mxu0 0
        %1577 = vmatpush1.bf16.msra.mxu0 %v1574
        %1578 = vmatprep.subr.bf16.mxu0 0
        %1579 = vmatpush1.bf16.msra.mxu0 0
        %1580 = vmatprep.subr.bf16.mxu0 0
        %1581 = vmatpush1.bf16.msra.mxu0 0
        %1582 = vmatprep.subr.bf16.mxu0 0
        %1583 = vmatpush1.bf16.msra.mxu0 0
        %1584 = vmatprep.subr.bf16.mxu0 0
        %1585 = vmatpush1.bf16.msra.mxu0 0
        %1586 = vmatprep.subr.bf16.mxu0 0
        %1587 = vmatpush1.bf16.msra.mxu0 0
        %1588 = vmatprep.subr.bf16.mxu0 0
        %1589 = vmatpush1.bf16.msra.mxu0 0
        %1590 = vmatprep.subr.bf16.mxu0 0
        %1591 = vmatpush1.bf16.msra.mxu0 0
        %1592 = vmatprep.subr.bf16.mxu0 0
        %1593 = vmatpush1.bf16.msra.mxu0 0
        %1594 = vmatprep.subr.bf16.mxu0 0
        %1595 = vmatpush1.bf16.msra.mxu0 0
        %1596 = vmatprep.subr.bf16.mxu0 0
        %1597 = vmatpush1.bf16.msra.mxu0 0
        %1598 = vmatprep.subr.bf16.mxu0 0
        %1599 = vmatpush1.bf16.msra.mxu0 0
        %1600 = vmatprep.subr.bf16.mxu0 0
        %1601 = vmatpush1.bf16.msra.mxu0 0
        %1602 = vmatprep.subr.bf16.mxu0 0
        %1603 = vmatpush1.bf16.msra.mxu0 0
        %1604 = vmatprep.subr.bf16.mxu0 0
        %1605 = vmatpush1.bf16.msra.mxu0 0
        %1606 = vmatprep.subr.bf16.mxu0 0
        %1607 = vmatpush1.bf16.msra.mxu0 0
        %1608 = vmatprep.mubr.bf16.mxu0 0
        %1609 = vmatmul.mubr.bf16.gmra.mrb[0].mxu0 %v1570
        %v1610 = vpop.f32.mrb[0].mxu0
        %v1611 = vadd.f32 0.0, %v1610
        %v1612 = vpop.f32.mrb[0].mxu0
        %v1613 = vpop.f32.mrb[0].mxu0
        %v1614 = vpop.f32.mrb[0].mxu0
        %1615 = vdwg.mxu0
        %v1617 = vsel %vm1324, %v1566, 0
        %v1620 = vsel %vm1572, %v1321, 0
        %1622 = vmatprep.subr.bf16.mxu0 0
        %1623 = vmatpush1.bf16.msra.mxu0 %v1620
        %1624 = vmatprep.subr.bf16.mxu0 0
        %1625 = vmatpush1.bf16.msra.mxu0 0
        %1626 = vmatprep.subr.bf16.mxu0 0
        %1627 = vmatpush1.bf16.msra.mxu0 0
        %1628 = vmatprep.subr.bf16.mxu0 0
        %1629 = vmatpush1.bf16.msra.mxu0 0
        %1630 = vmatprep.subr.bf16.mxu0 0
        %1631 = vmatpush1.bf16.msra.mxu0 0
        %1632 = vmatprep.subr.bf16.mxu0 0
        %1633 = vmatpush1.bf16.msra.mxu0 0
        %1634 = vmatprep.subr.bf16.mxu0 0
        %1635 = vmatpush1.bf16.msra.mxu0 0
        %1636 = vmatprep.subr.bf16.mxu0 0
        %1637 = vmatpush1.bf16.msra.mxu0 0
        %1638 = vmatprep.subr.bf16.mxu0 0
        %1639 = vmatpush1.bf16.msra.mxu0 0
        %1640 = vmatprep.subr.bf16.mxu0 0
        %1641 = vmatpush1.bf16.msra.mxu0 0
        %1642 = vmatprep.subr.bf16.mxu0 0
        %1643 = vmatpush1.bf16.msra.mxu0 0
        %1644 = vmatprep.subr.bf16.mxu0 0
        %1645 = vmatpush1.bf16.msra.mxu0 0
        %1646 = vmatprep.subr.bf16.mxu0 0
        %1647 = vmatpush1.bf16.msra.mxu0 0
        %1648 = vmatprep.subr.bf16.mxu0 0
        %1649 = vmatpush1.bf16.msra.mxu0 0
        %1650 = vmatprep.subr.bf16.mxu0 0
        %1651 = vmatpush1.bf16.msra.mxu0 0
        %1652 = vmatprep.subr.bf16.mxu0 0
        %1653 = vmatpush1.bf16.msra.mxu0 0
        %1654 = vmatprep.mubr.bf16.mxu0 0
        %1655 = vmatmul.mubr.bf16.gmra.mrb[0].mxu0 %v1617
        %v1656 = vpop.f32.mrb[0].mxu0
        %v1657 = vadd.f32 0.0, %v1656
        %v1658 = vpop.f32.mrb[0].mxu0
        %v1659 = vpop.f32.mrb[0].mxu0
        %v1660 = vpop.f32.mrb[0].mxu0
        %1661 = vdwg.mxu0
        %v1663 = vsel %vm1324, %v1567, 0
        %v1666 = vsel %vm1572, %v1322, 0
        %1668 = vmatprep.subr.bf16.mxu0 0
        %1669 = vmatpush1.bf16.msra.mxu0 %v1666
        %1670 = vmatprep.subr.bf16.mxu0 0
        %1671 = vmatpush1.bf16.msra.mxu0 0
        %1672 = vmatprep.subr.bf16.mxu0 0
        %1673 = vmatpush1.bf16.msra.mxu0 0
        %1674 = vmatprep.subr.bf16.mxu0 0
        %1675 = vmatpush1.bf16.msra.mxu0 0
        %1676 = vmatprep.subr.bf16.mxu0 0
        %1677 = vmatpush1.bf16.msra.mxu0 0
        %1678 = vmatprep.subr.bf16.mxu0 0
        %1679 = vmatpush1.bf16.msra.mxu0 0
        %1680 = vmatprep.subr.bf16.mxu0 0
        %1681 = vmatpush1.bf16.msra.mxu0 0
        %1682 = vmatprep.subr.bf16.mxu0 0
        %1683 = vmatpush1.bf16.msra.mxu0 0
        %1684 = vmatprep.subr.bf16.mxu0 0
        %1685 = vmatpush1.bf16.msra.mxu0 0
        %1686 = vmatprep.subr.bf16.mxu0 0
        %1687 = vmatpush1.bf16.msra.mxu0 0
        %1688 = vmatprep.subr.bf16.mxu0 0
        %1689 = vmatpush1.bf16.msra.mxu0 0
        %1690 = vmatprep.subr.bf16.mxu0 0
        %1691 = vmatpush1.bf16.msra.mxu0 0
        %1692 = vmatprep.subr.bf16.mxu0 0
        %1693 = vmatpush1.bf16.msra.mxu0 0
        %1694 = vmatprep.subr.bf16.mxu0 0
        %1695 = vmatpush1.bf16.msra.mxu0 0
        %1696 = vmatprep.subr.bf16.mxu0 0
        %1697 = vmatpush1.bf16.msra.mxu0 0
        %1698 = vmatprep.subr.bf16.mxu0 0
        %1699 = vmatpush1.bf16.msra.mxu0 0
        %1700 = vmatprep.mubr.bf16.mxu0 0
        %1701 = vmatmul.mubr.bf16.gmra.mrb[0].mxu0 %v1663
        %v1702 = vpop.f32.mrb[0].mxu0
        %v1703 = vadd.f32 0.0, %v1702
        %v1704 = vpop.f32.mrb[0].mxu0
        %v1705 = vpop.f32.mrb[0].mxu0
        %v1706 = vpop.f32.mrb[0].mxu0
        %1707 = vdwg.mxu0
        %v1709 = vsel %vm1324, %v1568, 0
        %v1712 = vsel %vm1572, %v1323, 0
        %1714 = vmatprep.subr.bf16.mxu0 0
        %1715 = vmatpush1.bf16.msra.mxu0 %v1712
        %1716 = vmatprep.subr.bf16.mxu0 0
        %1717 = vmatpush1.bf16.msra.mxu0 0
        %1718 = vmatprep.subr.bf16.mxu0 0
        %1719 = vmatpush1.bf16.msra.mxu0 0
        %1720 = vmatprep.subr.bf16.mxu0 0
        %1721 = vmatpush1.bf16.msra.mxu0 0
        %1722 = vmatprep.subr.bf16.mxu0 0
        %1723 = vmatpush1.bf16.msra.mxu0 0
        %1724 = vmatprep.subr.bf16.mxu0 0
        %1725 = vmatpush1.bf16.msra.mxu0 0
        %1726 = vmatprep.subr.bf16.mxu0 0
        %1727 = vmatpush1.bf16.msra.mxu0 0
        %1728 = vmatprep.subr.bf16.mxu0 0
        %1729 = vmatpush1.bf16.msra.mxu0 0
        %1730 = vmatprep.subr.bf16.mxu0 0
        %1731 = vmatpush1.bf16.msra.mxu0 0
        %1732 = vmatprep.subr.bf16.mxu0 0
        %1733 = vmatpush1.bf16.msra.mxu0 0
        %1734 = vmatprep.subr.bf16.mxu0 0
        %1735 = vmatpush1.bf16.msra.mxu0 0
        %1736 = vmatprep.subr.bf16.mxu0 0
        %1737 = vmatpush1.bf16.msra.mxu0 0
        %1738 = vmatprep.subr.bf16.mxu0 0
        %1739 = vmatpush1.bf16.msra.mxu0 0
        %1740 = vmatprep.subr.bf16.mxu0 0
        %1741 = vmatpush1.bf16.msra.mxu0 0
        %1742 = vmatprep.subr.bf16.mxu0 0
        %1743 = vmatpush1.bf16.msra.mxu0 0
        %1744 = vmatprep.subr.bf16.mxu0 0
        %1745 = vmatpush1.bf16.msra.mxu0 0
        %1746 = vmatprep.mubr.bf16.mxu0 0
        %1747 = vmatmul.mubr.bf16.gmra.mrb[0].mxu0 %v1709
        %v1748 = vpop.f32.mrb[0].mxu0
        %v1749 = vadd.f32 0.0, %v1748
        %v1750 = vpop.f32.mrb[0].mxu0
        %v1751 = vpop.f32.mrb[0].mxu0
        %v1752 = vpop.f32.mrb[0].mxu0
        %1753 = vdwg.mxu0
        %v1754 = vcombine.low %v1611, %v1703
        %v1756 = vunpack.c.l.s4 1983009808
        %v1757 = vunpack.c.0.s8 %v1756
        %v1758 = vlaneseq
        %v1759 = vshrl.u32 %v1758, 7
        %v1760 = vsub.s32 %v1757, %v1759
        %v1761 = vrot.slane %v1754, %v1760
        %v1762 = vcombine.low %v1657, %v1749
        %v1764 = vunpack.c.l.s4 1983009808
        %v1765 = vunpack.c.0.s8 %v1764
        %v1766 = vlaneseq
        %v1767 = vshrl.u32 %v1766, 7
        %v1768 = vsub.s32 %v1765, %v1767
        %v1769 = vrot.slane %v1762, %v1768
        %v1770 = vcombine.low %v1761, %v1769
        %v1771 = vcombine.high %v1761, %v1769
        %v1773 = vunpack.c.l.s4 1934713408
        %v1774 = vunpack.c.0.s8 %v1773
        %v1775 = vlaneseq
        %v1776 = vshrl.u32 %v1775, 7
        %v1777 = vsub.s32 %v1774, %v1776
        %v1778 = vrot.slane %v1770, %v1777
        %v1780 = vunpack.c.l.s4 1934713408
        %v1781 = vunpack.c.0.s8 %v1780
        %v1782 = vlaneseq
        %v1783 = vshrl.u32 %v1782, 7
        %v1784 = vsub.s32 %v1781, %v1783
        %v1785 = vrot.slane %v1771, %v1784
        %v1786 = vcombine.low %v1778, %v1785
        %v1788 = vunpack.c.l.s4 1983009808
        %v1789 = vunpack.c.0.s8 %v1788
        %v1790 = vlaneseq
        %v1791 = vshrl.u32 %v1790, 7
        %v1792 = vsub.s32 %v1789, %v1791
        %v1793 = vrot.slane %v1786, %v1792
        %v1794 = vcombine.high %v1778, 0.0
        %v1796 = vunpack.c.l.s4 1983009808
        %v1797 = vunpack.c.0.s8 %v1796
        %v1798 = vlaneseq
        %v1799 = vshrl.u32 %v1798, 7
        %v1800 = vsub.s32 %v1797, %v1799
        %v1801 = vrot.slane %v1794, %v1800
        %v1802 = vcombine.low %v1793, %v1801
        %v1803 = vcombine.high %v1793, %v1801
        %v1805 = vunpack.c.l.s4 1934713408
        %v1806 = vunpack.c.0.s8 %v1805
        %v1807 = vlaneseq
        %v1808 = vshrl.u32 %v1807, 7
        %v1809 = vsub.s32 %v1806, %v1808
        %v1810 = vrot.slane %v1802, %v1809
        %v1812 = vunpack.c.l.s4 1934713408
        %v1813 = vunpack.c.0.s8 %v1812
        %v1814 = vlaneseq
        %v1815 = vshrl.u32 %v1814, 7
        %v1816 = vsub.s32 %v1813, %v1815
        %v1817 = vrot.slane %v1803, %v1816
        %v1818 = vcombine.high %v1810, 0.0
        %v1819 = vcombine.high %v1817, 0.0
        %1821 = vrot.lane.b32.xlu0 %v1818, 8
        %v1822 = vpop.permute.xlu0 %1821
        %1825 = vrot.lane.b32.xlu0 %v1817, 16
        %v1826 = vpop.permute.xlu0 %1825
        %1829 = vrot.lane.b32.xlu0 %v1819, 24
        %v1830 = vpop.permute.xlu0 %1829
        %v1832 = vsel %vm1324, %v1810, %v1822
        %vm1833 = vcmask 130048
        %v1834 = vsel %vm1833, %v1832, %v1826
        %vm1835 = vcmask 195584
        %v1836 = vsel %vm1835, %v1834, %v1830
        %v1837 = vpack.c.bf16 %v1836, %v1836
        %v1838 = vld [vmem:[%s12] sm:$0xf]
        %v1839 = vld [vmem:[%s12 + $0x4] sm:$0xf]
        %v1840 = vld [vmem:[%s12 + $0x8] sm:$0xf]
        %v1841 = vld [vmem:[%s12 + $0xc] sm:$0xf]
        %v1842 = vld [vmem:[%s13] sm:$0x1]
        %v1844 = vlaneseq
        %v1845 = vshrl.u32 %v1844, 7
        %v1846 = vsub.s32 0, %v1845
        %v1847 = vrot.slane %v1842, %v1846
        %v1853 = vunpack.c.l.b16 %v1838
        %v1854 = vunpack.c.l.b16 %v1839
        %v1855 = vunpack.c.l.b16 %v1840
        %v1856 = vunpack.c.l.b16 %v1841
        %v1857 = vpack.c.b16 %v1854, %v1853
        %v1858 = vpack.c.b16 %v1856, %v1855
        %v1862 = vsel %vm717, %v1837, 0
        %1864 = vmatprep.subr.bf16.mxu0 0
        %1865 = vmatpush1.bf16.msra.mxu0 %v1857
        %1866 = vmatprep.subr.bf16.mxu0 0
        %1867 = vmatpush1.bf16.msra.mxu0 %v1858
        %1868 = vmatprep.subr.bf16.mxu0 0
        %1869 = vmatpush1.bf16.msra.mxu0 0
        %1870 = vmatprep.subr.bf16.mxu0 0
        %1871 = vmatpush1.bf16.msra.mxu0 0
        %1872 = vmatprep.subr.bf16.mxu0 0
        %1873 = vmatpush1.bf16.msra.mxu0 0
        %1874 = vmatprep.subr.bf16.mxu0 0
        %1875 = vmatpush1.bf16.msra.mxu0 0
        %1876 = vmatprep.subr.bf16.mxu0 0
        %1877 = vmatpush1.bf16.msra.mxu0 0
        %1878 = vmatprep.subr.bf16.mxu0 0
        %1879 = vmatpush1.bf16.msra.mxu0 0
        %1880 = vmatprep.subr.bf16.mxu0 0
        %1881 = vmatpush1.bf16.msra.mxu0 0
        %1882 = vmatprep.subr.bf16.mxu0 0
        %1883 = vmatpush1.bf16.msra.mxu0 0
        %1884 = vmatprep.subr.bf16.mxu0 0
        %1885 = vmatpush1.bf16.msra.mxu0 0
        %1886 = vmatprep.subr.bf16.mxu0 0
        %1887 = vmatpush1.bf16.msra.mxu0 0
        %1888 = vmatprep.subr.bf16.mxu0 0
        %1889 = vmatpush1.bf16.msra.mxu0 0
        %1890 = vmatprep.subr.bf16.mxu0 0
        %1891 = vmatpush1.bf16.msra.mxu0 0
        %1892 = vmatprep.subr.bf16.mxu0 0
        %1893 = vmatpush1.bf16.msra.mxu0 0
        %1894 = vmatprep.subr.bf16.mxu0 0
        %1895 = vmatpush1.bf16.msra.mxu0 0
        %1896 = vmatprep.mubr.bf16.mxu0 0
        %1897 = vmatmul.mubr.bf16.gmra.mrb[0].mxu0 %v1862
        %v1898 = vpop.f32.mrb[0].mxu0
        %v1899 = vadd.f32 %v1847, %v1898
        %v1900 = vpop.f32.mrb[0].mxu0
        %v1901 = vpop.f32.mrb[0].mxu0
        %v1902 = vpop.f32.mrb[0].mxu0
        %1903 = vdwg.mxu0
        %vm1904 = vcmask 256000
        %1905 = vst.msk [vmem:[#allocation2] sm:$0x7] %vm1904, %v1899
        %s1906 = smul.u32 %s42, 128
        %s1907 = sld [smem:[#allocation4 + %s1906]]
        %s1908 = scalar_lea.vmem [#allocation2], %s1907
        %v1909 = vld [vmem:[%s1908] sm:$0x1]
        %v1910 = vpack.c.bf16 %v1909, %v1909
        %v1911 = vld [vmem:[%s14] sm:$0xf]
        %v1912 = vld [vmem:[%s14 + $0x4] sm:$0xf]
        %v1913 = vld [vmem:[%s14 + $0x8] sm:$0xf]
        %v1914 = vld [vmem:[%s14 + $0xc] sm:$0xf]
        %v1915 = vld [vmem:[%s15] sm:$0x1]
        %v1920 = vunpack.c.l.b16 %v1911
        %v1921 = vunpack.c.l.b16 %v1912
        %v1922 = vunpack.c.l.b16 %v1913
        %v1923 = vunpack.c.l.b16 %v1914
        %v1924 = vpack.c.b16 %v1921, %v1920
        %v1925 = vpack.c.b16 %v1923, %v1922
        %v1929 = vsel %vm717, %v1910, 0
        %1931 = vmatprep.subr.bf16.mxu0 0
        %1932 = vmatpush1.bf16.msra.mxu0 %v1924
        %1933 = vmatprep.subr.bf16.mxu0 0
        %1934 = vmatpush1.bf16.msra.mxu0 %v1925
        %1935 = vmatprep.subr.bf16.mxu0 0
        %1936 = vmatpush1.bf16.msra.mxu0 0
        %1937 = vmatprep.subr.bf16.mxu0 0
        %1938 = vmatpush1.bf16.msra.mxu0 0
        %1939 = vmatprep.subr.bf16.mxu0 0
        %1940 = vmatpush1.bf16.msra.mxu0 0
        %1941 = vmatprep.subr.bf16.mxu0 0
        %1942 = vmatpush1.bf16.msra.mxu0 0
        %1943 = vmatprep.subr.bf16.mxu0 0
        %1944 = vmatpush1.bf16.msra.mxu0 0
        %1945 = vmatprep.subr.bf16.mxu0 0
        %1946 = vmatpush1.bf16.msra.mxu0 0
        %1947 = vmatprep.subr.bf16.mxu0 0
        %1948 = vmatpush1.bf16.msra.mxu0 0
        %1949 = vmatprep.subr.bf16.mxu0 0
        %1950 = vmatpush1.bf16.msra.mxu0 0
        %1951 = vmatprep.subr.bf16.mxu0 0
        %1952 = vmatpush1.bf16.msra.mxu0 0
        %1953 = vmatprep.subr.bf16.mxu0 0
        %1954 = vmatpush1.bf16.msra.mxu0 0
        %1955 = vmatprep.subr.bf16.mxu0 0
        %1956 = vmatpush1.bf16.msra.mxu0 0
        %1957 = vmatprep.subr.bf16.mxu0 0
        %1958 = vmatpush1.bf16.msra.mxu0 0
        %1959 = vmatprep.subr.bf16.mxu0 0
        %1960 = vmatpush1.bf16.msra.mxu0 0
        %1961 = vmatprep.subr.bf16.mxu0 0
        %1962 = vmatpush1.bf16.msra.mxu0 0
        %1963 = vmatprep.mubr.bf16.mxu0 0
        %1964 = vmatmul.mubr.bf16.gmra.mrb[0].mxu0 %v1929
        %v1965 = vpop.f32.mrb[0].mxu0
        %v1966 = vadd.f32 %v1915, %v1965
        %v1967 = vpop.f32.mrb[0].mxu0
        %v1968 = vpop.f32.mrb[0].mxu0
        %v1969 = vpop.f32.mrb[0].mxu0
        %1970 = vdwg.mxu0
        %v1971 = vpack.c.bf16 %v756, %v756
        %v1972 = vld [vmem:[%s16] sm:$0xf]
        %v1973 = vld [vmem:[%s16 + $0x4] sm:$0xf]
        %v1974 = vld [vmem:[%s16 + $0x8] sm:$0xf]
        %v1975 = vld [vmem:[%s16 + $0xc] sm:$0xf]
        %v1976 = vld [vmem:[%s17] sm:$0x1]
        %v1978 = vlaneseq
        %v1979 = vshrl.u32 %v1978, 7
        %v1980 = vsub.s32 0, %v1979
        %v1981 = vrot.slane %v1976, %v1980
        %v1987 = vunpack.c.l.b16 %v1972
        %v1988 = vunpack.c.l.b16 %v1973
        %v1989 = vunpack.c.l.b16 %v1974
        %v1990 = vunpack.c.l.b16 %v1975
        %v1991 = vpack.c.b16 %v1988, %v1987
        %v1992 = vpack.c.b16 %v1990, %v1989
        %v1996 = vsel %vm717, %v1971, 0
        %1998 = vmatprep.subr.bf16.mxu0 0
        %1999 = vmatpush1.bf16.msra.mxu0 %v1991
        %2000 = vmatprep.subr.bf16.mxu0 0
        %2001 = vmatpush1.bf16.msra.mxu0 %v1992
        %2002 = vmatprep.subr.bf16.mxu0 0
        %2003 = vmatpush1.bf16.msra.mxu0 0
        %2004 = vmatprep.subr.bf16.mxu0 0
        %2005 = vmatpush1.bf16.msra.mxu0 0
        %2006 = vmatprep.subr.bf16.mxu0 0
        %2007 = vmatpush1.bf16.msra.mxu0 0
        %2008 = vmatprep.subr.bf16.mxu0 0
        %2009 = vmatpush1.bf16.msra.mxu0 0
        %2010 = vmatprep.subr.bf16.mxu0 0
        %2011 = vmatpush1.bf16.msra.mxu0 0
        %2012 = vmatprep.subr.bf16.mxu0 0
        %2013 = vmatpush1.bf16.msra.mxu0 0
        %2014 = vmatprep.subr.bf16.mxu0 0
        %2015 = vmatpush1.bf16.msra.mxu0 0
        %2016 = vmatprep.subr.bf16.mxu0 0
        %2017 = vmatpush1.bf16.msra.mxu0 0
        %2018 = vmatprep.subr.bf16.mxu0 0
        %2019 = vmatpush1.bf16.msra.mxu0 0
        %2020 = vmatprep.subr.bf16.mxu0 0
        %2021 = vmatpush1.bf16.msra.mxu0 0
        %2022 = vmatprep.subr.bf16.mxu0 0
        %2023 = vmatpush1.bf16.msra.mxu0 0
        %2024 = vmatprep.subr.bf16.mxu0 0
        %2025 = vmatpush1.bf16.msra.mxu0 0
        %2026 = vmatprep.subr.bf16.mxu0 0
        %2027 = vmatpush1.bf16.msra.mxu0 0
        %2028 = vmatprep.subr.bf16.mxu0 0
        %2029 = vmatpush1.bf16.msra.mxu0 0
        %2030 = vmatprep.mubr.bf16.mxu0 0
        %2031 = vmatmul.mubr.bf16.gmra.mrb[0].mxu0 %v1996
        %v2032 = vpop.f32.mrb[0].mxu0
        %v2033 = vadd.f32 %v1981, %v2032
        %v2034 = vpop.f32.mrb[0].mxu0
        %v2035 = vpop.f32.mrb[0].mxu0
        %v2036 = vpop.f32.mrb[0].mxu0
        %2037 = vdwg.mxu0
        %v2038 = vld [vmem:[%s18] sm:$0xf]
        %v2039 = vld [vmem:[%s18 + $0x4] sm:$0xf]
        %v2040 = vld [vmem:[%s18 + $0x8] sm:$0xf]
        %v2041 = vld [vmem:[%s18 + $0xc] sm:$0xf]
        %v2042 = vld [vmem:[%s19] sm:$0x1]
        %v2044 = vlaneseq
        %v2045 = vshrl.u32 %v2044, 7
        %v2046 = vsub.s32 0, %v2045
        %v2047 = vrot.slane %v2042, %v2046
        %v2053 = vunpack.c.l.b16 %v2038
        %v2054 = vunpack.c.l.b16 %v2039
        %v2055 = vunpack.c.l.b16 %v2040
        %v2056 = vunpack.c.l.b16 %v2041
        %v2057 = vpack.c.b16 %v2054, %v2053
        %v2058 = vpack.c.b16 %v2056, %v2055
        %2061 = vmatprep.subr.bf16.mxu0 0
        %2062 = vmatpush1.bf16.msra.mxu0 %v2057
        %2063 = vmatprep.subr.bf16.mxu0 0
        %2064 = vmatpush1.bf16.msra.mxu0 %v2058
        %2065 = vmatprep.subr.bf16.mxu0 0
        %2066 = vmatpush1.bf16.msra.mxu0 0
        %2067 = vmatprep.subr.bf16.mxu0 0
        %2068 = vmatpush1.bf16.msra.mxu0 0
        %2069 = vmatprep.subr.bf16.mxu0 0
        %2070 = vmatpush1.bf16.msra.mxu0 0
        %2071 = vmatprep.subr.bf16.mxu0 0
        %2072 = vmatpush1.bf16.msra.mxu0 0
        %2073 = vmatprep.subr.bf16.mxu0 0
        %2074 = vmatpush1.bf16.msra.mxu0 0
        %2075 = vmatprep.subr.bf16.mxu0 0
        %2076 = vmatpush1.bf16.msra.mxu0 0
        %2077 = vmatprep.subr.bf16.mxu0 0
        %2078 = vmatpush1.bf16.msra.mxu0 0
        %2079 = vmatprep.subr.bf16.mxu0 0
        %2080 = vmatpush1.bf16.msra.mxu0 0
        %2081 = vmatprep.subr.bf16.mxu0 0
        %2082 = vmatpush1.bf16.msra.mxu0 0
        %2083 = vmatprep.subr.bf16.mxu0 0
        %2084 = vmatpush1.bf16.msra.mxu0 0
        %2085 = vmatprep.subr.bf16.mxu0 0
        %2086 = vmatpush1.bf16.msra.mxu0 0
        %2087 = vmatprep.subr.bf16.mxu0 0
        %2088 = vmatpush1.bf16.msra.mxu0 0
        %2089 = vmatprep.subr.bf16.mxu0 0
        %2090 = vmatpush1.bf16.msra.mxu0 0
        %2091 = vmatprep.subr.bf16.mxu0 0
        %2092 = vmatpush1.bf16.msra.mxu0 0
        %2093 = vmatprep.mubr.bf16.mxu0 0
        %2094 = vmatmul.mubr.bf16.gmra.mrb[0].mxu0 %v1996
        %v2095 = vpop.f32.mrb[0].mxu0
        %v2096 = vadd.f32 %v2047, %v2095
        %v2097 = vpop.f32.mrb[0].mxu0
        %v2098 = vpop.f32.mrb[0].mxu0
        %v2099 = vpop.f32.mrb[0].mxu0
        %2100 = vdwg.mxu0
        %2102 = vrot.lane.b32.xlu0 %v1966, 120
        %v2103 = vpop.permute.xlu0 %2102
        %2105 = vrot.lane.b32.xlu0 %v1966, 112
        %v2106 = vpop.permute.xlu0 %2105
        %2108 = vrot.lane.b32.xlu0 %v1966, 104
        %v2109 = vpop.permute.xlu0 %2108
        %v2111 = vcombine.low %v1966, %v2106
        %v2113 = vunpack.c.l.s4 1983009808
        %v2114 = vunpack.c.0.s8 %v2113
        %v2115 = vlaneseq
        %v2116 = vshrl.u32 %v2115, 7
        %v2117 = vsub.s32 %v2114, %v2116
        %v2118 = vrot.slane %v2111, %v2117
        %v2119 = vcombine.low %v2103, %v2109
        %v2121 = vunpack.c.l.s4 1983009808
        %v2122 = vunpack.c.0.s8 %v2121
        %v2123 = vlaneseq
        %v2124 = vshrl.u32 %v2123, 7
        %v2125 = vsub.s32 %v2122, %v2124
        %v2126 = vrot.slane %v2119, %v2125
        %v2127 = vcombine.low %v2118, %v2126
        %v2129 = vunpack.c.l.s4 1934713408
        %v2130 = vunpack.c.0.s8 %v2129
        %v2131 = vlaneseq
        %v2132 = vshrl.u32 %v2131, 7
        %v2133 = vsub.s32 %v2130, %v2132
        %v2134 = vrot.slane %v2127, %v2133
        %v2136 = vunpack.c.l.s4 1983009808
        %v2137 = vunpack.c.0.s8 %v2136
        %v2138 = vlaneseq
        %v2139 = vshrl.u32 %v2138, 7
        %v2140 = vsub.s32 %v2137, %v2139
        %v2141 = vrot.slane %v2134, %v2140
        %v2142 = vcombine.high %v2141, 0.0
        %v2144 = vunpack.c.l.s4 1934713408
        %v2145 = vunpack.c.0.s8 %v2144
        %v2146 = vlaneseq
        %v2147 = vshrl.u32 %v2146, 7
        %v2148 = vsub.s32 %v2145, %v2147
        %v2149 = vrot.slane %v2141, %v2148
        %v2151 = vunpack.c.l.s4 1934713408
        %v2152 = vunpack.c.0.s8 %v2151
        %v2153 = vlaneseq
        %v2154 = vshrl.u32 %v2153, 7
        %v2155 = vsub.s32 %v2152, %v2154
        %v2156 = vrot.slane %v2142, %v2155
        %v2157 = vcombine.high %v2149, 0.0
        %v2158 = vcombine.high %v2156, 0.0
        %v2159 = vpack.c.bf16 %v2149, %v2149
        %v2160 = vpack.c.bf16 %v2157, %v2157
        %v2161 = vpack.c.bf16 %v2156, %v2156
        %v2162 = vpack.c.bf16 %v2158, %v2158
        %2164 = vrot.lane.b32.xlu0 %v2033, 120
        %v2165 = vpop.permute.xlu0 %2164
        %2167 = vrot.lane.b32.xlu0 %v2033, 112
        %v2168 = vpop.permute.xlu0 %2167
        %2170 = vrot.lane.b32.xlu0 %v2033, 104
        %v2171 = vpop.permute.xlu0 %2170
        %v2173 = vcombine.low %v2033, %v2168
        %v2174 = vcombine.high %v2033, %v2168
        %v2176 = vunpack.c.l.s4 1983009808
        %v2177 = vunpack.c.0.s8 %v2176
        %v2178 = vlaneseq
        %v2179 = vshrl.u32 %v2178, 7
        %v2180 = vsub.s32 %v2177, %v2179
        %v2181 = vrot.slane %v2173, %v2180
        %v2183 = vunpack.c.l.s4 1983009808
        %v2184 = vunpack.c.0.s8 %v2183
        %v2185 = vlaneseq
        %v2186 = vshrl.u32 %v2185, 7
        %v2187 = vsub.s32 %v2184, %v2186
        %v2188 = vrot.slane %v2174, %v2187
        %v2189 = vcombine.low %v2165, %v2171
        %v2190 = vcombine.high %v2165, %v2171
        %v2192 = vunpack.c.l.s4 1983009808
        %v2193 = vunpack.c.0.s8 %v2192
        %v2194 = vlaneseq
        %v2195 = vshrl.u32 %v2194, 7
        %v2196 = vsub.s32 %v2193, %v2195
        %v2197 = vrot.slane %v2189, %v2196
        %v2199 = vunpack.c.l.s4 1983009808
        %v2200 = vunpack.c.0.s8 %v2199
        %v2201 = vlaneseq
        %v2202 = vshrl.u32 %v2201, 7
        %v2203 = vsub.s32 %v2200, %v2202
        %v2204 = vrot.slane %v2190, %v2203
        %v2205 = vcombine.low %v2181, %v2197
        %v2206 = vcombine.high %v2181, %v2197
        %v2208 = vunpack.c.l.s4 1934713408
        %v2209 = vunpack.c.0.s8 %v2208
        %v2210 = vlaneseq
        %v2211 = vshrl.u32 %v2210, 7
        %v2212 = vsub.s32 %v2209, %v2211
        %v2213 = vrot.slane %v2205, %v2212
        %v2215 = vunpack.c.l.s4 1934713408
        %v2216 = vunpack.c.0.s8 %v2215
        %v2217 = vlaneseq
        %v2218 = vshrl.u32 %v2217, 7
        %v2219 = vsub.s32 %v2216, %v2218
        %v2220 = vrot.slane %v2206, %v2219
        %v2221 = vcombine.low %v2188, %v2204
        %v2222 = vcombine.high %v2188, %v2204
        %v2224 = vunpack.c.l.s4 1934713408
        %v2225 = vunpack.c.0.s8 %v2224
        %v2226 = vlaneseq
        %v2227 = vshrl.u32 %v2226, 7
        %v2228 = vsub.s32 %v2225, %v2227
        %v2229 = vrot.slane %v2221, %v2228
        %v2231 = vunpack.c.l.s4 1934713408
        %v2232 = vunpack.c.0.s8 %v2231
        %v2233 = vlaneseq
        %v2234 = vshrl.u32 %v2233, 7
        %v2235 = vsub.s32 %v2232, %v2234
        %v2236 = vrot.slane %v2222, %v2235
        %v2237 = vcombine.high %v2213, 0.0
        %v2238 = vcombine.high %v2220, 0.0
        %v2239 = vcombine.high %v2229, 0.0
        %v2240 = vcombine.high %v2236, 0.0
        %v2241 = vcombine.low %v2213, %v2220
        %v2243 = vunpack.c.l.s4 1983009808
        %v2244 = vunpack.c.0.s8 %v2243
        %v2245 = vlaneseq
        %v2246 = vshrl.u32 %v2245, 7
        %v2247 = vsub.s32 %v2244, %v2246
        %v2248 = vrot.slane %v2241, %v2247
        %v2249 = vcombine.low %v2237, %v2238
        %v2251 = vunpack.c.l.s4 1983009808
        %v2252 = vunpack.c.0.s8 %v2251
        %v2253 = vlaneseq
        %v2254 = vshrl.u32 %v2253, 7
        %v2255 = vsub.s32 %v2252, %v2254
        %v2256 = vrot.slane %v2249, %v2255
        %v2257 = vcombine.low %v2229, %v2236
        %v2259 = vunpack.c.l.s4 1983009808
        %v2260 = vunpack.c.0.s8 %v2259
        %v2261 = vlaneseq
        %v2262 = vshrl.u32 %v2261, 7
        %v2263 = vsub.s32 %v2260, %v2262
        %v2264 = vrot.slane %v2257, %v2263
        %v2265 = vcombine.low %v2239, %v2240
        %v2267 = vunpack.c.l.s4 1983009808
        %v2268 = vunpack.c.0.s8 %v2267
        %v2269 = vlaneseq
        %v2270 = vshrl.u32 %v2269, 7
        %v2271 = vsub.s32 %v2268, %v2270
        %v2272 = vrot.slane %v2265, %v2271
        %v2273 = vcombine.low %v2248, %v2256
        %v2274 = vcombine.high %v2248, %v2256
        %v2276 = vunpack.c.l.s4 1934713408
        %v2277 = vunpack.c.0.s8 %v2276
        %v2278 = vlaneseq
        %v2279 = vshrl.u32 %v2278, 7
        %v2280 = vsub.s32 %v2277, %v2279
        %v2281 = vrot.slane %v2273, %v2280
        %v2283 = vunpack.c.l.s4 1934713408
        %v2284 = vunpack.c.0.s8 %v2283
        %v2285 = vlaneseq
        %v2286 = vshrl.u32 %v2285, 7
        %v2287 = vsub.s32 %v2284, %v2286
        %v2288 = vrot.slane %v2274, %v2287
        %v2289 = vcombine.low %v2264, %v2272
        %v2290 = vcombine.high %v2264, %v2272
        %v2292 = vunpack.c.l.s4 1934713408
        %v2293 = vunpack.c.0.s8 %v2292
        %v2294 = vlaneseq
        %v2295 = vshrl.u32 %v2294, 7
        %v2296 = vsub.s32 %v2293, %v2295
        %v2297 = vrot.slane %v2289, %v2296
        %v2299 = vunpack.c.l.s4 1934713408
        %v2300 = vunpack.c.0.s8 %v2299
        %v2301 = vlaneseq
        %v2302 = vshrl.u32 %v2301, 7
        %v2303 = vsub.s32 %v2300, %v2302
        %v2304 = vrot.slane %v2290, %v2303
        %v2305 = vcombine.low %v2281, %v2297
        %v2306 = vcombine.high %v2281, %v2297
        %v2307 = vcombine.low %v2288, %v2304
        %v2308 = vcombine.high %v2288, %v2304
        %v2309 = vpack.c.bf16 %v2305, %v2305
        %v2310 = vpack.c.bf16 %v2306, %v2306
        %v2311 = vpack.c.bf16 %v2307, %v2307
        %v2312 = vpack.c.bf16 %v2308, %v2308
        %2314 = vrot.lane.b32.xlu0 %v2096, 120
        %v2315 = vpop.permute.xlu0 %2314
        %2317 = vrot.lane.b32.xlu0 %v2096, 112
        %v2318 = vpop.permute.xlu0 %2317
        %2320 = vrot.lane.b32.xlu0 %v2096, 104
        %v2321 = vpop.permute.xlu0 %2320
        %v2323 = vcombine.low %v2096, %v2318
        %v2324 = vcombine.high %v2096, %v2318
        %v2326 = vunpack.c.l.s4 1983009808
        %v2327 = vunpack.c.0.s8 %v2326
        %v2328 = vlaneseq
        %v2329 = vshrl.u32 %v2328, 7
        %v2330 = vsub.s32 %v2327, %v2329
        %v2331 = vrot.slane %v2323, %v2330
        %v2333 = vunpack.c.l.s4 1983009808
        %v2334 = vunpack.c.0.s8 %v2333
        %v2335 = vlaneseq
        %v2336 = vshrl.u32 %v2335, 7
        %v2337 = vsub.s32 %v2334, %v2336
        %v2338 = vrot.slane %v2324, %v2337
        %v2339 = vcombine.low %v2315, %v2321
        %v2340 = vcombine.high %v2315, %v2321
        %v2342 = vunpack.c.l.s4 1983009808
        %v2343 = vunpack.c.0.s8 %v2342
        %v2344 = vlaneseq
        %v2345 = vshrl.u32 %v2344, 7
        %v2346 = vsub.s32 %v2343, %v2345
        %v2347 = vrot.slane %v2339, %v2346
        %v2349 = vunpack.c.l.s4 1983009808
        %v2350 = vunpack.c.0.s8 %v2349
        %v2351 = vlaneseq
        %v2352 = vshrl.u32 %v2351, 7
        %v2353 = vsub.s32 %v2350, %v2352
        %v2354 = vrot.slane %v2340, %v2353
        %v2355 = vcombine.low %v2331, %v2347
        %v2356 = vcombine.high %v2331, %v2347
        %v2358 = vunpack.c.l.s4 1934713408
        %v2359 = vunpack.c.0.s8 %v2358
        %v2360 = vlaneseq
        %v2361 = vshrl.u32 %v2360, 7
        %v2362 = vsub.s32 %v2359, %v2361
        %v2363 = vrot.slane %v2355, %v2362
        %v2365 = vunpack.c.l.s4 1934713408
        %v2366 = vunpack.c.0.s8 %v2365
        %v2367 = vlaneseq
        %v2368 = vshrl.u32 %v2367, 7
        %v2369 = vsub.s32 %v2366, %v2368
        %v2370 = vrot.slane %v2356, %v2369
        %v2371 = vcombine.low %v2338, %v2354
        %v2372 = vcombine.high %v2338, %v2354
        %v2374 = vunpack.c.l.s4 1934713408
        %v2375 = vunpack.c.0.s8 %v2374
        %v2376 = vlaneseq
        %v2377 = vshrl.u32 %v2376, 7
        %v2378 = vsub.s32 %v2375, %v2377
        %v2379 = vrot.slane %v2371, %v2378
        %v2381 = vunpack.c.l.s4 1934713408
        %v2382 = vunpack.c.0.s8 %v2381
        %v2383 = vlaneseq
        %v2384 = vshrl.u32 %v2383, 7
        %v2385 = vsub.s32 %v2382, %v2384
        %v2386 = vrot.slane %v2372, %v2385
        %v2387 = vcombine.high %v2363, 0.0
        %v2388 = vcombine.high %v2370, 0.0
        %v2389 = vcombine.high %v2379, 0.0
        %v2390 = vcombine.high %v2386, 0.0
        %v2391 = vcombine.low %v2363, %v2370
        %v2393 = vunpack.c.l.s4 1983009808
        %v2394 = vunpack.c.0.s8 %v2393
        %v2395 = vlaneseq
        %v2396 = vshrl.u32 %v2395, 7
        %v2397 = vsub.s32 %v2394, %v2396
        %v2398 = vrot.slane %v2391, %v2397
        %v2399 = vcombine.low %v2387, %v2388
        %v2401 = vunpack.c.l.s4 1983009808
        %v2402 = vunpack.c.0.s8 %v2401
        %v2403 = vlaneseq
        %v2404 = vshrl.u32 %v2403, 7
        %v2405 = vsub.s32 %v2402, %v2404
        %v2406 = vrot.slane %v2399, %v2405
        %v2407 = vcombine.low %v2379, %v2386
        %v2409 = vunpack.c.l.s4 1983009808
        %v2410 = vunpack.c.0.s8 %v2409
        %v2411 = vlaneseq
        %v2412 = vshrl.u32 %v2411, 7
        %v2413 = vsub.s32 %v2410, %v2412
        %v2414 = vrot.slane %v2407, %v2413
        %v2415 = vcombine.low %v2389, %v2390
        %v2417 = vunpack.c.l.s4 1983009808
        %v2418 = vunpack.c.0.s8 %v2417
        %v2419 = vlaneseq
        %v2420 = vshrl.u32 %v2419, 7
        %v2421 = vsub.s32 %v2418, %v2420
        %v2422 = vrot.slane %v2415, %v2421
        %v2423 = vcombine.low %v2398, %v2406
        %v2424 = vcombine.high %v2398, %v2406
        %v2426 = vunpack.c.l.s4 1934713408
        %v2427 = vunpack.c.0.s8 %v2426
        %v2428 = vlaneseq
        %v2429 = vshrl.u32 %v2428, 7
        %v2430 = vsub.s32 %v2427, %v2429
        %v2431 = vrot.slane %v2423, %v2430
        %v2433 = vunpack.c.l.s4 1934713408
        %v2434 = vunpack.c.0.s8 %v2433
        %v2435 = vlaneseq
        %v2436 = vshrl.u32 %v2435, 7
        %v2437 = vsub.s32 %v2434, %v2436
        %v2438 = vrot.slane %v2424, %v2437
        %v2439 = vcombine.low %v2414, %v2422
        %v2440 = vcombine.high %v2414, %v2422
        %v2442 = vunpack.c.l.s4 1934713408
        %v2443 = vunpack.c.0.s8 %v2442
        %v2444 = vlaneseq
        %v2445 = vshrl.u32 %v2444, 7
        %v2446 = vsub.s32 %v2443, %v2445
        %v2447 = vrot.slane %v2439, %v2446
        %v2449 = vunpack.c.l.s4 1934713408
        %v2450 = vunpack.c.0.s8 %v2449
        %v2451 = vlaneseq
        %v2452 = vshrl.u32 %v2451, 7
        %v2453 = vsub.s32 %v2450, %v2452
        %v2454 = vrot.slane %v2440, %v2453
        %v2455 = vcombine.low %v2431, %v2447
        %v2456 = vcombine.high %v2431, %v2447
        %v2457 = vcombine.low %v2438, %v2454
        %v2458 = vcombine.high %v2438, %v2454
        %v2459 = vpack.c.bf16 %v2455, %v2455
        %v2460 = vpack.c.bf16 %v2456, %v2456
        %v2461 = vpack.c.bf16 %v2457, %v2457
        %v2462 = vpack.c.bf16 %v2458, %v2458
        %v2464 = vsel %vm1324, %v2159, 0
        %v2467 = vsel %vm1324, %v2309, 0
        %2469 = vmatprep.subr.bf16.mxu0 0
        %2470 = vmatpush1.bf16.xpose.msra.mxu0 %v2467
        %2471 = vmatprep.subr.bf16.mxu0 0
        %2472 = vmatpush1.bf16.xpose.msra.mxu0 0
        %2473 = vmatprep.subr.bf16.mxu0 0
        %2474 = vmatpush1.bf16.xpose.msra.mxu0 0
        %2475 = vmatprep.subr.bf16.mxu0 0
        %2476 = vmatpush1.bf16.xpose.msra.mxu0 0
        %2477 = vmatprep.subr.bf16.mxu0 0
        %2478 = vmatpush1.bf16.xpose.msra.mxu0 0
        %2479 = vmatprep.subr.bf16.mxu0 0
        %2480 = vmatpush1.bf16.xpose.msra.mxu0 0
        %2481 = vmatprep.subr.bf16.mxu0 0
        %2482 = vmatpush1.bf16.xpose.msra.mxu0 0
        %2483 = vmatprep.subr.bf16.mxu0 0
        %2484 = vmatpush1.bf16.xpose.msra.mxu0 0
        %2485 = vmatprep.subr.bf16.mxu0 0
        %2486 = vmatpush1.bf16.xpose.msra.mxu0 0
        %2487 = vmatprep.subr.bf16.mxu0 0
        %2488 = vmatpush1.bf16.xpose.msra.mxu0 0
        %2489 = vmatprep.subr.bf16.mxu0 0
        %2490 = vmatpush1.bf16.xpose.msra.mxu0 0
        %2491 = vmatprep.subr.bf16.mxu0 0
        %2492 = vmatpush1.bf16.xpose.msra.mxu0 0
        %2493 = vmatprep.subr.bf16.mxu0 0
        %2494 = vmatpush1.bf16.xpose.msra.mxu0 0
        %2495 = vmatprep.subr.bf16.mxu0 0
        %2496 = vmatpush1.bf16.xpose.msra.mxu0 0
        %2497 = vmatprep.subr.bf16.mxu0 0
        %2498 = vmatpush1.bf16.xpose.msra.mxu0 0
        %2499 = vmatprep.subr.bf16.mxu0 0
        %2500 = vmatpush1.bf16.xpose.msra.mxu0 0
        %2501 = vmatprep.mubr.bf16.mxu0 0
        %2502 = vmatmul.mubr.bf16.gmra.mrb[0].mxu0 %v2464
        %v2503 = vpop.f32.mrb[0].mxu0
        %v2504 = vadd.f32 0.0, %v2503
        %v2505 = vpop.f32.mrb[0].mxu0
        %v2506 = vpop.f32.mrb[0].mxu0
        %v2507 = vpop.f32.mrb[0].mxu0
        %2508 = vdwg.mxu0
        %v2510 = vsel %vm1324, %v2160, 0
        %v2513 = vsel %vm1324, %v2310, 0
        %2515 = vmatprep.subr.bf16.mxu0 0
        %2516 = vmatpush1.bf16.xpose.msra.mxu0 %v2513
        %2517 = vmatprep.subr.bf16.mxu0 0
        %2518 = vmatpush1.bf16.xpose.msra.mxu0 0
        %2519 = vmatprep.subr.bf16.mxu0 0
        %2520 = vmatpush1.bf16.xpose.msra.mxu0 0
        %2521 = vmatprep.subr.bf16.mxu0 0
        %2522 = vmatpush1.bf16.xpose.msra.mxu0 0
        %2523 = vmatprep.subr.bf16.mxu0 0
        %2524 = vmatpush1.bf16.xpose.msra.mxu0 0
        %2525 = vmatprep.subr.bf16.mxu0 0
        %2526 = vmatpush1.bf16.xpose.msra.mxu0 0
        %2527 = vmatprep.subr.bf16.mxu0 0
        %2528 = vmatpush1.bf16.xpose.msra.mxu0 0
        %2529 = vmatprep.subr.bf16.mxu0 0
        %2530 = vmatpush1.bf16.xpose.msra.mxu0 0
        %2531 = vmatprep.subr.bf16.mxu0 0
        %2532 = vmatpush1.bf16.xpose.msra.mxu0 0
        %2533 = vmatprep.subr.bf16.mxu0 0
        %2534 = vmatpush1.bf16.xpose.msra.mxu0 0
        %2535 = vmatprep.subr.bf16.mxu0 0
        %2536 = vmatpush1.bf16.xpose.msra.mxu0 0
        %2537 = vmatprep.subr.bf16.mxu0 0
        %2538 = vmatpush1.bf16.xpose.msra.mxu0 0
        %2539 = vmatprep.subr.bf16.mxu0 0
        %2540 = vmatpush1.bf16.xpose.msra.mxu0 0
        %2541 = vmatprep.subr.bf16.mxu0 0
        %2542 = vmatpush1.bf16.xpose.msra.mxu0 0
        %2543 = vmatprep.subr.bf16.mxu0 0
        %2544 = vmatpush1.bf16.xpose.msra.mxu0 0
        %2545 = vmatprep.subr.bf16.mxu0 0
        %2546 = vmatpush1.bf16.xpose.msra.mxu0 0
        %2547 = vmatprep.mubr.bf16.mxu0 0
        %2548 = vmatmul.mubr.bf16.gmra.mrb[0].mxu0 %v2510
        %v2549 = vpop.f32.mrb[0].mxu0
        %v2550 = vadd.f32 0.0, %v2549
        %v2551 = vpop.f32.mrb[0].mxu0
        %v2552 = vpop.f32.mrb[0].mxu0
        %v2553 = vpop.f32.mrb[0].mxu0
        %2554 = vdwg.mxu0
        %v2556 = vsel %vm1324, %v2161, 0
        %v2559 = vsel %vm1324, %v2311, 0
        %2561 = vmatprep.subr.bf16.mxu0 0
        %2562 = vmatpush1.bf16.xpose.msra.mxu0 %v2559
        %2563 = vmatprep.subr.bf16.mxu0 0
        %2564 = vmatpush1.bf16.xpose.msra.mxu0 0
        %2565 = vmatprep.subr.bf16.mxu0 0
        %2566 = vmatpush1.bf16.xpose.msra.mxu0 0
        %2567 = vmatprep.subr.bf16.mxu0 0
        %2568 = vmatpush1.bf16.xpose.msra.mxu0 0
        %2569 = vmatprep.subr.bf16.mxu0 0
        %2570 = vmatpush1.bf16.xpose.msra.mxu0 0
        %2571 = vmatprep.subr.bf16.mxu0 0
        %2572 = vmatpush1.bf16.xpose.msra.mxu0 0
        %2573 = vmatprep.subr.bf16.mxu0 0
        %2574 = vmatpush1.bf16.xpose.msra.mxu0 0
        %2575 = vmatprep.subr.bf16.mxu0 0
        %2576 = vmatpush1.bf16.xpose.msra.mxu0 0
        %2577 = vmatprep.subr.bf16.mxu0 0
        %2578 = vmatpush1.bf16.xpose.msra.mxu0 0
        %2579 = vmatprep.subr.bf16.mxu0 0
        %2580 = vmatpush1.bf16.xpose.msra.mxu0 0
        %2581 = vmatprep.subr.bf16.mxu0 0
        %2582 = vmatpush1.bf16.xpose.msra.mxu0 0
        %2583 = vmatprep.subr.bf16.mxu0 0
        %2584 = vmatpush1.bf16.xpose.msra.mxu0 0
        %2585 = vmatprep.subr.bf16.mxu0 0
        %2586 = vmatpush1.bf16.xpose.msra.mxu0 0
        %2587 = vmatprep.subr.bf16.mxu0 0
        %2588 = vmatpush1.bf16.xpose.msra.mxu0 0
        %2589 = vmatprep.subr.bf16.mxu0 0
        %2590 = vmatpush1.bf16.xpose.msra.mxu0 0
        %2591 = vmatprep.subr.bf16.mxu0 0
        %2592 = vmatpush1.bf16.xpose.msra.mxu0 0
        %2593 = vmatprep.mubr.bf16.mxu0 0
        %2594 = vmatmul.mubr.bf16.gmra.mrb[0].mxu0 %v2556
        %v2595 = vpop.f32.mrb[0].mxu0
        %v2596 = vadd.f32 0.0, %v2595
        %v2597 = vpop.f32.mrb[0].mxu0
        %v2598 = vpop.f32.mrb[0].mxu0
        %v2599 = vpop.f32.mrb[0].mxu0
        %2600 = vdwg.mxu0
        %v2602 = vsel %vm1324, %v2162, 0
        %v2605 = vsel %vm1324, %v2312, 0
        %2607 = vmatprep.subr.bf16.mxu0 0
        %2608 = vmatpush1.bf16.xpose.msra.mxu0 %v2605
        %2609 = vmatprep.subr.bf16.mxu0 0
        %2610 = vmatpush1.bf16.xpose.msra.mxu0 0
        %2611 = vmatprep.subr.bf16.mxu0 0
        %2612 = vmatpush1.bf16.xpose.msra.mxu0 0
        %2613 = vmatprep.subr.bf16.mxu0 0
        %2614 = vmatpush1.bf16.xpose.msra.mxu0 0
        %2615 = vmatprep.subr.bf16.mxu0 0
        %2616 = vmatpush1.bf16.xpose.msra.mxu0 0
        %2617 = vmatprep.subr.bf16.mxu0 0
        %2618 = vmatpush1.bf16.xpose.msra.mxu0 0
        %2619 = vmatprep.subr.bf16.mxu0 0
        %2620 = vmatpush1.bf16.xpose.msra.mxu0 0
        %2621 = vmatprep.subr.bf16.mxu0 0
        %2622 = vmatpush1.bf16.xpose.msra.mxu0 0
        %2623 = vmatprep.subr.bf16.mxu0 0
        %2624 = vmatpush1.bf16.xpose.msra.mxu0 0
        %2625 = vmatprep.subr.bf16.mxu0 0
        %2626 = vmatpush1.bf16.xpose.msra.mxu0 0
        %2627 = vmatprep.subr.bf16.mxu0 0
        %2628 = vmatpush1.bf16.xpose.msra.mxu0 0
        %2629 = vmatprep.subr.bf16.mxu0 0
        %2630 = vmatpush1.bf16.xpose.msra.mxu0 0
        %2631 = vmatprep.subr.bf16.mxu0 0
        %2632 = vmatpush1.bf16.xpose.msra.mxu0 0
        %2633 = vmatprep.subr.bf16.mxu0 0
        %2634 = vmatpush1.bf16.xpose.msra.mxu0 0
        %2635 = vmatprep.subr.bf16.mxu0 0
        %2636 = vmatpush1.bf16.xpose.msra.mxu0 0
        %2637 = vmatprep.subr.bf16.mxu0 0
        %2638 = vmatpush1.bf16.xpose.msra.mxu0 0
        %2639 = vmatprep.mubr.bf16.mxu0 0
        %2640 = vmatmul.mubr.bf16.gmra.mrb[0].mxu0 %v2602
        %v2641 = vpop.f32.mrb[0].mxu0
        %v2642 = vadd.f32 0.0, %v2641
        %v2643 = vpop.f32.mrb[0].mxu0
        %v2644 = vpop.f32.mrb[0].mxu0
        %v2645 = vpop.f32.mrb[0].mxu0
        %2646 = vdwg.mxu0
        %vm2647 = vcmask 57344
        %v2648 = vsel %vm2647, %v2504, -inf
        %2649 = vmax.xlane.f32.xlu0 %v2648
        %v2650 = vpop.xlane.xlu0 %2649
        %v2651 = vsel %vm2647, %v2550, -inf
        %2652 = vmax.xlane.f32.xlu0 %v2651
        %v2653 = vpop.xlane.xlu0 %2652
        %v2654 = vsel %vm2647, %v2596, -inf
        %2655 = vmax.xlane.f32.xlu0 %v2654
        %v2656 = vpop.xlane.xlu0 %2655
        %v2657 = vsel %vm2647, %v2642, -inf
        %2658 = vmax.xlane.f32.xlu0 %v2657
        %v2659 = vpop.xlane.xlu0 %2658
        %v2660 = vsub.f32 %v2504, %v2650
        %v2661 = vsub.f32 %v2550, %v2653
        %v2662 = vsub.f32 %v2596, %v2656
        %v2663 = vsub.f32 %v2642, %v2659
        %v2664 = vmul.f32 %v2660, 1.442695
        %v2665 = vpow.pop %v2664
        %v2666 = vmul.f32 %v2661, 1.442695
        %v2667 = vpow.pop %v2666
        %v2668 = vmul.f32 %v2662, 1.442695
        %v2669 = vpow.pop %v2668
        %v2670 = vmul.f32 %v2663, 1.442695
        %v2671 = vpow.pop %v2670
        %v2672 = vsel %vm2647, %v2665, 0.0
        %2673 = vadd.xlane.f32.xlu0 %v2672
        %v2674 = vpop.xlane.xlu0 %2673
        %v2675 = vsel %vm2647, %v2667, 0.0
        %2676 = vadd.xlane.f32.xlu0 %v2675
        %v2677 = vpop.xlane.xlu0 %2676
        %v2678 = vsel %vm2647, %v2669, 0.0
        %2679 = vadd.xlane.f32.xlu0 %v2678
        %v2680 = vpop.xlane.xlu0 %2679
        %v2681 = vsel %vm2647, %v2671, 0.0
        %2682 = vadd.xlane.f32.xlu0 %v2681
        %v2683 = vpop.xlane.xlu0 %2682
        %v2684 = vrcp.pop %v2674
        %v2685 = vrcp.pop %v2677
        %v2686 = vrcp.pop %v2680
        %v2687 = vrcp.pop %v2683
        %v2688 = vmul.f32 %v2665, %v2684
        %v2689 = vmul.f32 %v2667, %v2685
        %v2690 = vmul.f32 %v2669, %v2686
        %v2691 = vmul.f32 %v2671, %v2687
        %v2692 = vpack.c.bf16 %v2688, %v2688
        %v2693 = vpack.c.bf16 %v2689, %v2689
        %v2694 = vpack.c.bf16 %v2690, %v2690
        %v2695 = vpack.c.bf16 %v2691, %v2691
        %v2697 = vsel %vm1324, %v2692, 0
        %v2700 = vsel %vm1572, %v2459, 0
        %2702 = vmatprep.subr.bf16.mxu0 0
        %2703 = vmatpush1.bf16.msra.mxu0 %v2700
        %2704 = vmatprep.subr.bf16.mxu0 0
        %2705 = vmatpush1.bf16.msra.mxu0 0
        %2706 = vmatprep.subr.bf16.mxu0 0
        %2707 = vmatpush1.bf16.msra.mxu0 0
        %2708 = vmatprep.subr.bf16.mxu0 0
        %2709 = vmatpush1.bf16.msra.mxu0 0
        %2710 = vmatprep.subr.bf16.mxu0 0
        %2711 = vmatpush1.bf16.msra.mxu0 0
        %2712 = vmatprep.subr.bf16.mxu0 0
        %2713 = vmatpush1.bf16.msra.mxu0 0
        %2714 = vmatprep.subr.bf16.mxu0 0
        %2715 = vmatpush1.bf16.msra.mxu0 0
        %2716 = vmatprep.subr.bf16.mxu0 0
        %2717 = vmatpush1.bf16.msra.mxu0 0
        %2718 = vmatprep.subr.bf16.mxu0 0
        %2719 = vmatpush1.bf16.msra.mxu0 0
        %2720 = vmatprep.subr.bf16.mxu0 0
        %2721 = vmatpush1.bf16.msra.mxu0 0
        %2722 = vmatprep.subr.bf16.mxu0 0
        %2723 = vmatpush1.bf16.msra.mxu0 0
        %2724 = vmatprep.subr.bf16.mxu0 0
        %2725 = vmatpush1.bf16.msra.mxu0 0
        %2726 = vmatprep.subr.bf16.mxu0 0
        %2727 = vmatpush1.bf16.msra.mxu0 0
        %2728 = vmatprep.subr.bf16.mxu0 0
        %2729 = vmatpush1.bf16.msra.mxu0 0
        %2730 = vmatprep.subr.bf16.mxu0 0
        %2731 = vmatpush1.bf16.msra.mxu0 0
        %2732 = vmatprep.subr.bf16.mxu0 0
        %2733 = vmatpush1.bf16.msra.mxu0 0
        %2734 = vmatprep.mubr.bf16.mxu0 0
        %2735 = vmatmul.mubr.bf16.gmra.mrb[0].mxu0 %v2697
        %v2736 = vpop.f32.mrb[0].mxu0
        %v2737 = vadd.f32 0.0, %v2736
        %v2738 = vpop.f32.mrb[0].mxu0
        %v2739 = vpop.f32.mrb[0].mxu0
        %v2740 = vpop.f32.mrb[0].mxu0
        %2741 = vdwg.mxu0
        %v2743 = vsel %vm1324, %v2693, 0
        %v2746 = vsel %vm1572, %v2460, 0
        %2748 = vmatprep.subr.bf16.mxu0 0
        %2749 = vmatpush1.bf16.msra.mxu0 %v2746
        %2750 = vmatprep.subr.bf16.mxu0 0
        %2751 = vmatpush1.bf16.msra.mxu0 0
        %2752 = vmatprep.subr.bf16.mxu0 0
        %2753 = vmatpush1.bf16.msra.mxu0 0
        %2754 = vmatprep.subr.bf16.mxu0 0
        %2755 = vmatpush1.bf16.msra.mxu0 0
        %2756 = vmatprep.subr.bf16.mxu0 0
        %2757 = vmatpush1.bf16.msra.mxu0 0
        %2758 = vmatprep.subr.bf16.mxu0 0
        %2759 = vmatpush1.bf16.msra.mxu0 0
        %2760 = vmatprep.subr.bf16.mxu0 0
        %2761 = vmatpush1.bf16.msra.mxu0 0
        %2762 = vmatprep.subr.bf16.mxu0 0
        %2763 = vmatpush1.bf16.msra.mxu0 0
        %2764 = vmatprep.subr.bf16.mxu0 0
        %2765 = vmatpush1.bf16.msra.mxu0 0
        %2766 = vmatprep.subr.bf16.mxu0 0
        %2767 = vmatpush1.bf16.msra.mxu0 0
        %2768 = vmatprep.subr.bf16.mxu0 0
        %2769 = vmatpush1.bf16.msra.mxu0 0
        %2770 = vmatprep.subr.bf16.mxu0 0
        %2771 = vmatpush1.bf16.msra.mxu0 0
        %2772 = vmatprep.subr.bf16.mxu0 0
        %2773 = vmatpush1.bf16.msra.mxu0 0
        %2774 = vmatprep.subr.bf16.mxu0 0
        %2775 = vmatpush1.bf16.msra.mxu0 0
        %2776 = vmatprep.subr.bf16.mxu0 0
        %2777 = vmatpush1.bf16.msra.mxu0 0
        %2778 = vmatprep.subr.bf16.mxu0 0
        %2779 = vmatpush1.bf16.msra.mxu0 0
        %2780 = vmatprep.mubr.bf16.mxu0 0
        %2781 = vmatmul.mubr.bf16.gmra.mrb[0].mxu0 %v2743
        %v2782 = vpop.f32.mrb[0].mxu0
        %v2783 = vadd.f32 0.0, %v2782
        %v2784 = vpop.f32.mrb[0].mxu0
        %v2785 = vpop.f32.mrb[0].mxu0
        %v2786 = vpop.f32.mrb[0].mxu0
        %2787 = vdwg.mxu0
        %v2789 = vsel %vm1324, %v2694, 0
        %v2792 = vsel %vm1572, %v2461, 0
        %2794 = vmatprep.subr.bf16.mxu0 0
        %2795 = vmatpush1.bf16.msra.mxu0 %v2792
        %2796 = vmatprep.subr.bf16.mxu0 0
        %2797 = vmatpush1.bf16.msra.mxu0 0
        %2798 = vmatprep.subr.bf16.mxu0 0
        %2799 = vmatpush1.bf16.msra.mxu0 0
        %2800 = vmatprep.subr.bf16.mxu0 0
        %2801 = vmatpush1.bf16.msra.mxu0 0
        %2802 = vmatprep.subr.bf16.mxu0 0
        %2803 = vmatpush1.bf16.msra.mxu0 0
        %2804 = vmatprep.subr.bf16.mxu0 0
        %2805 = vmatpush1.bf16.msra.mxu0 0
        %2806 = vmatprep.subr.bf16.mxu0 0
        %2807 = vmatpush1.bf16.msra.mxu0 0
        %2808 = vmatprep.subr.bf16.mxu0 0
        %2809 = vmatpush1.bf16.msra.mxu0 0
        %2810 = vmatprep.subr.bf16.mxu0 0
        %2811 = vmatpush1.bf16.msra.mxu0 0
        %2812 = vmatprep.subr.bf16.mxu0 0
        %2813 = vmatpush1.bf16.msra.mxu0 0
        %2814 = vmatprep.subr.bf16.mxu0 0
        %2815 = vmatpush1.bf16.msra.mxu0 0
        %2816 = vmatprep.subr.bf16.mxu0 0
        %2817 = vmatpush1.bf16.msra.mxu0 0
        %2818 = vmatprep.subr.bf16.mxu0 0
        %2819 = vmatpush1.bf16.msra.mxu0 0
        %2820 = vmatprep.subr.bf16.mxu0 0
        %2821 = vmatpush1.bf16.msra.mxu0 0
        %2822 = vmatprep.subr.bf16.mxu0 0
        %2823 = vmatpush1.bf16.msra.mxu0 0
        %2824 = vmatprep.subr.bf16.mxu0 0
        %2825 = vmatpush1.bf16.msra.mxu0 0
        %2826 = vmatprep.mubr.bf16.mxu0 0
        %2827 = vmatmul.mubr.bf16.gmra.mrb[0].mxu0 %v2789
        %v2828 = vpop.f32.mrb[0].mxu0
        %v2829 = vadd.f32 0.0, %v2828
        %v2830 = vpop.f32.mrb[0].mxu0
        %v2831 = vpop.f32.mrb[0].mxu0
        %v2832 = vpop.f32.mrb[0].mxu0
        %2833 = vdwg.mxu0
        %v2835 = vsel %vm1324, %v2695, 0
        %v2838 = vsel %vm1572, %v2462, 0
        %2840 = vmatprep.subr.bf16.mxu0 0
        %2841 = vmatpush1.bf16.msra.mxu0 %v2838
        %2842 = vmatprep.subr.bf16.mxu0 0
        %2843 = vmatpush1.bf16.msra.mxu0 0
        %2844 = vmatprep.subr.bf16.mxu0 0
        %2845 = vmatpush1.bf16.msra.mxu0 0
        %2846 = vmatprep.subr.bf16.mxu0 0
        %2847 = vmatpush1.bf16.msra.mxu0 0
        %2848 = vmatprep.subr.bf16.mxu0 0
        %2849 = vmatpush1.bf16.msra.mxu0 0
        %2850 = vmatprep.subr.bf16.mxu0 0
        %2851 = vmatpush1.bf16.msra.mxu0 0
        %2852 = vmatprep.subr.bf16.mxu0 0
        %2853 = vmatpush1.bf16.msra.mxu0 0
        %2854 = vmatprep.subr.bf16.mxu0 0
        %2855 = vmatpush1.bf16.msra.mxu0 0
        %2856 = vmatprep.subr.bf16.mxu0 0
        %2857 = vmatpush1.bf16.msra.mxu0 0
        %2858 = vmatprep.subr.bf16.mxu0 0
        %2859 = vmatpush1.bf16.msra.mxu0 0
        %2860 = vmatprep.subr.bf16.mxu0 0
        %2861 = vmatpush1.bf16.msra.mxu0 0
        %2862 = vmatprep.subr.bf16.mxu0 0
        %2863 = vmatpush1.bf16.msra.mxu0 0
        %2864 = vmatprep.subr.bf16.mxu0 0
        %2865 = vmatpush1.bf16.msra.mxu0 0
        %2866 = vmatprep.subr.bf16.mxu0 0
        %2867 = vmatpush1.bf16.msra.mxu0 0
        %2868 = vmatprep.subr.bf16.mxu0 0
        %2869 = vmatpush1.bf16.msra.mxu0 0
        %2870 = vmatprep.subr.bf16.mxu0 0
        %2871 = vmatpush1.bf16.msra.mxu0 0
        %2872 = vmatprep.mubr.bf16.mxu0 0
        %2873 = vmatmul.mubr.bf16.gmra.mrb[0].mxu0 %v2835
        %v2874 = vpop.f32.mrb[0].mxu0
        %v2875 = vadd.f32 0.0, %v2874
        %v2876 = vpop.f32.mrb[0].mxu0
        %v2877 = vpop.f32.mrb[0].mxu0
        %v2878 = vpop.f32.mrb[0].mxu0
        %2879 = vdwg.mxu0
        %v2880 = vcombine.low %v2737, %v2829
        %v2882 = vunpack.c.l.s4 1983009808
        %v2883 = vunpack.c.0.s8 %v2882
        %v2884 = vlaneseq
        %v2885 = vshrl.u32 %v2884, 7
        %v2886 = vsub.s32 %v2883, %v2885
        %v2887 = vrot.slane %v2880, %v2886
        %v2888 = vcombine.low %v2783, %v2875
        %v2890 = vunpack.c.l.s4 1983009808
        %v2891 = vunpack.c.0.s8 %v2890
        %v2892 = vlaneseq
        %v2893 = vshrl.u32 %v2892, 7
        %v2894 = vsub.s32 %v2891, %v2893
        %v2895 = vrot.slane %v2888, %v2894
        %v2896 = vcombine.low %v2887, %v2895
        %v2898 = vunpack.c.l.s4 1934713408
        %v2899 = vunpack.c.0.s8 %v2898
        %v2900 = vlaneseq
        %v2901 = vshrl.u32 %v2900, 7
        %v2902 = vsub.s32 %v2899, %v2901
        %v2903 = vrot.slane %v2896, %v2902
        %v2905 = vunpack.c.l.s4 1983009808
        %v2906 = vunpack.c.0.s8 %v2905
        %v2907 = vlaneseq
        %v2908 = vshrl.u32 %v2907, 7
        %v2909 = vsub.s32 %v2906, %v2908
        %v2910 = vrot.slane %v2903, %v2909
        %v2911 = vcombine.high %v2910, 0.0
        %v2913 = vunpack.c.l.s4 1934713408
        %v2914 = vunpack.c.0.s8 %v2913
        %v2915 = vlaneseq
        %v2916 = vshrl.u32 %v2915, 7
        %v2917 = vsub.s32 %v2914, %v2916
        %v2918 = vrot.slane %v2910, %v2917
        %v2920 = vunpack.c.l.s4 1934713408
        %v2921 = vunpack.c.0.s8 %v2920
        %v2922 = vlaneseq
        %v2923 = vshrl.u32 %v2922, 7
        %v2924 = vsub.s32 %v2921, %v2923
        %v2925 = vrot.slane %v2911, %v2924
        %v2926 = vcombine.high %v2918, 0.0
        %v2927 = vcombine.high %v2925, 0.0
        %2929 = vrot.lane.b32.xlu0 %v2926, 8
        %v2930 = vpop.permute.xlu0 %2929
        %2933 = vrot.lane.b32.xlu0 %v2925, 16
        %v2934 = vpop.permute.xlu0 %2933
        %2937 = vrot.lane.b32.xlu0 %v2927, 24
        %v2938 = vpop.permute.xlu0 %2937
        %v2940 = vsel %vm1324, %v2918, %v2930
        %v2941 = vsel %vm1833, %v2940, %v2934
        %v2942 = vsel %vm1835, %v2941, %v2938
        %v2943 = vpack.c.bf16 %v2942, %v2942
        %v2944 = vld [vmem:[%s20] sm:$0xf]
        %v2945 = vld [vmem:[%s20 + $0x4] sm:$0xf]
        %v2946 = vld [vmem:[%s20 + $0x8] sm:$0xf]
        %v2947 = vld [vmem:[%s20 + $0xc] sm:$0xf]
        %v2948 = vld [vmem:[%s21] sm:$0x1]
        %v2953 = vunpack.c.l.b16 %v2944
        %v2954 = vunpack.c.l.b16 %v2945
        %v2955 = vunpack.c.l.b16 %v2946
        %v2956 = vunpack.c.l.b16 %v2947
        %v2957 = vpack.c.b16 %v2954, %v2953
        %v2958 = vpack.c.b16 %v2956, %v2955
        %v2962 = vsel %vm717, %v2943, 0
        %2964 = vmatprep.subr.bf16.mxu0 0
        %2965 = vmatpush1.bf16.msra.mxu0 %v2957
        %2966 = vmatprep.subr.bf16.mxu0 0
        %2967 = vmatpush1.bf16.msra.mxu0 %v2958
        %2968 = vmatprep.subr.bf16.mxu0 0
        %2969 = vmatpush1.bf16.msra.mxu0 0
        %2970 = vmatprep.subr.bf16.mxu0 0
        %2971 = vmatpush1.bf16.msra.mxu0 0
        %2972 = vmatprep.subr.bf16.mxu0 0
        %2973 = vmatpush1.bf16.msra.mxu0 0
        %2974 = vmatprep.subr.bf16.mxu0 0
        %2975 = vmatpush1.bf16.msra.mxu0 0
        %2976 = vmatprep.subr.bf16.mxu0 0
        %2977 = vmatpush1.bf16.msra.mxu0 0
        %2978 = vmatprep.subr.bf16.mxu0 0
        %2979 = vmatpush1.bf16.msra.mxu0 0
        %2980 = vmatprep.subr.bf16.mxu0 0
        %2981 = vmatpush1.bf16.msra.mxu0 0
        %2982 = vmatprep.subr.bf16.mxu0 0
        %2983 = vmatpush1.bf16.msra.mxu0 0
        %2984 = vmatprep.subr.bf16.mxu0 0
        %2985 = vmatpush1.bf16.msra.mxu0 0
        %2986 = vmatprep.subr.bf16.mxu0 0
        %2987 = vmatpush1.bf16.msra.mxu0 0
        %2988 = vmatprep.subr.bf16.mxu0 0
        %2989 = vmatpush1.bf16.msra.mxu0 0
        %2990 = vmatprep.subr.bf16.mxu0 0
        %2991 = vmatpush1.bf16.msra.mxu0 0
        %2992 = vmatprep.subr.bf16.mxu0 0
        %2993 = vmatpush1.bf16.msra.mxu0 0
        %2994 = vmatprep.subr.bf16.mxu0 0
        %2995 = vmatpush1.bf16.msra.mxu0 0
        %2996 = vmatprep.mubr.bf16.mxu0 0
        %2997 = vmatmul.mubr.bf16.gmra.mrb[0].mxu0 %v2962
        %v2998 = vpop.f32.mrb[0].mxu0
        %v2999 = vadd.f32 %v2948, %v2998
        %v3000 = vpop.f32.mrb[0].mxu0
        %v3001 = vpop.f32.mrb[0].mxu0
        %v3002 = vpop.f32.mrb[0].mxu0
        %3003 = vdwg.mxu0
        %v3005 = vsel %vm717, %v2999, 0
        %v3008 = vsel %vm717, %v756, 0
        %3010 = vmatprep.subr.mxu0 0.0
        %3011 = vmatpush1.xpose.msra.mxu0 %v3008
        %3012 = vmatprep.subr.mxu0 0.0
        %3013 = vmatpush1.xpose.msra.mxu0 0.0
        %3014 = vmatprep.subr.mxu0 0.0
        %3015 = vmatpush1.xpose.msra.mxu0 0.0
        %3016 = vmatprep.subr.mxu0 0.0
        %3017 = vmatpush1.xpose.msra.mxu0 0.0
        %3018 = vmatprep.subr.mxu0 0.0
        %3019 = vmatpush1.xpose.msra.mxu0 0.0
        %3020 = vmatprep.subr.mxu0 0.0
        %3021 = vmatpush1.xpose.msra.mxu0 0.0
        %3022 = vmatprep.subr.mxu0 0.0
        %3023 = vmatpush1.xpose.msra.mxu0 0.0
        %3024 = vmatprep.subr.mxu0 0.0
        %3025 = vmatpush1.xpose.msra.mxu0 0.0
        %3026 = vmatprep.subr.mxu0 0.0
        %3027 = vmatpush1.xpose.msra.mxu0 0.0
        %3028 = vmatprep.subr.mxu0 0.0
        %3029 = vmatpush1.xpose.msra.mxu0 0.0
        %3030 = vmatprep.subr.mxu0 0.0
        %3031 = vmatpush1.xpose.msra.mxu0 0.0
        %3032 = vmatprep.subr.mxu0 0.0
        %3033 = vmatpush1.xpose.msra.mxu0 0.0
        %3034 = vmatprep.subr.mxu0 0.0
        %3035 = vmatpush1.xpose.msra.mxu0 0.0
        %3036 = vmatprep.subr.mxu0 0.0
        %3037 = vmatpush1.xpose.msra.mxu0 0.0
        %3038 = vmatprep.subr.mxu0 0.0
        %3039 = vmatpush1.xpose.msra.mxu0 0.0
        %3040 = vmatprep.subr.mxu0 0.0
        %3041 = vmatpush1.xpose.msra.mxu0 0.0
        %3042 = vmatprep.subr.mxu0 0.0
        %3043 = vmatpush1.xpose.msra.mxu0 0.0
        %3044 = vmatprep.subr.mxu0 0.0
        %3045 = vmatpush1.xpose.msra.mxu0 0.0
        %3046 = vmatprep.subr.mxu0 0.0
        %3047 = vmatpush1.xpose.msra.mxu0 0.0
        %3048 = vmatprep.subr.mxu0 0.0
        %3049 = vmatpush1.xpose.msra.mxu0 0.0
        %3050 = vmatprep.subr.mxu0 0.0
        %3051 = vmatpush1.xpose.msra.mxu0 0.0
        %3052 = vmatprep.subr.mxu0 0.0
        %3053 = vmatpush1.xpose.msra.mxu0 0.0
        %3054 = vmatprep.subr.mxu0 0.0
        %3055 = vmatpush1.xpose.msra.mxu0 0.0
        %3056 = vmatprep.subr.mxu0 0.0
        %3057 = vmatpush1.xpose.msra.mxu0 0.0
        %3058 = vmatprep.subr.mxu0 0.0
        %3059 = vmatpush1.xpose.msra.mxu0 0.0
        %3060 = vmatprep.subr.mxu0 0.0
        %3061 = vmatpush1.xpose.msra.mxu0 0.0
        %3062 = vmatprep.subr.mxu0 0.0
        %3063 = vmatpush1.xpose.msra.mxu0 0.0
        %3064 = vmatprep.subr.mxu0 0.0
        %3065 = vmatpush1.xpose.msra.mxu0 0.0
        %3066 = vmatprep.subr.mxu0 0.0
        %3067 = vmatpush1.xpose.msra.mxu0 0.0
        %3068 = vmatprep.subr.mxu0 0.0
        %3069 = vmatpush1.xpose.msra.mxu0 0.0
        %3070 = vmatprep.subr.mxu0 0.0
        %3071 = vmatpush1.xpose.msra.mxu0 0.0
        %3072 = vmatprep.subr.mxu0 0.0
        %3073 = vmatpush1.xpose.msra.mxu0 0.0
        %3074 = vmatprep.mubr.f32.mxu0 0.0
        %3075 = vmatmul.mubr.f32.gmra.mrb[0].mxu0 %v3005
        %v3076 = vpop.f32.mrb[0].mxu0
        %v3077 = vadd.f32 0.0, %v3076
        %v3078 = vpop.f32.mrb[0].mxu0
        %3079 = vdwg.mxu0
        %v3080 = vmul.f32 %v3077, 0.17677669
        %v3081 = vtanh.pop %v3080
        %v3082 = vmul.f32 %v3081, 10.0
        %v3083 = vsel %vm1509, -1e+30, %v3082
        %v3084 = vsel %vm2647, %v3083, -inf
        %3085 = vmax.xlane.f32.xlu0 %v3084
        %v3086 = vpop.xlane.xlu0 %3085
        %v3087 = vsub.f32 %v3083, %v3086
        %v3088 = vmul.f32 %v3087, 1.442695
        %v3089 = vpow.pop %v3088
        %v3090 = vsel %vm2647, %v3089, 0.0
        %3091 = vadd.xlane.f32.xlu0 %v3090
        %v3092 = vpop.xlane.xlu0 %3091
        %v3093 = vrcp.pop %v3092
        %v3094 = vmul.f32 %v3089, %v3093
        %3095 = vst.msk [vmem:[%s677] sm:$0x1] %vm2647, %v3094
        %s3096 = sand.u32 %s506, 1
        %s3097 = scalar_lea.sflag [#allocation6], %s3096
        %s3098 = sand.u32 %s506, 1
        %s3099 = scalar_lea.vmem [#allocation5], %s3098
        // Predicated region
        $region105: #{graph_attention_model_forward.3} parent=103 // pred_check
          %p3100 = pneg %p516
        $region106: #{graph_attention_model_forward.3} parent=103 // pred_check_branch
          %3102 = sbr.rel (%p3100) target = $region108
        $region107: #{graph_attention_model_forward.3} parent=103 // pred_region
          %s3104 = ssub.s32 16, 16
          %3105 = vsyncadd %s3097, %s3104
          %s3106 = smul.addr %s42, 16
          %s3107 = scalar_lea.hbm %s22, %s3106
          %s3109 = sshll.u32 %s3099, 4
          %s3110 = int_to_ptr.vmem [resolvable:$true] %s3109
          %3112 = dma.vmem_to_hbm [thread:$0]  %s3110, 16, %s3107, %s3097
        $region108: #{graph_attention_model_forward.3} parent=103 // pred_fallthru
          _
      $region104: #{graph_attention_model_forward.3} parent=5 // pred_fallthru
        _
      %p3113 = scmp.le.s32.totalorder 2, %s37
      // Predicated region
      $region109: #{graph_attention_model_forward.3} parent=5 // pred_check
        %p3114 = pneg %p3113
      $region110: #{graph_attention_model_forward.3} parent=5 // pred_check_branch
        %3116 = sbr.rel (%p3114) target = $region112
      $region111: #{graph_attention_model_forward.3} parent=5 // pred_region
        %s3117 = ssub.s32 %s37, 2
        // Predicated region
        $region113: #{graph_attention_model_forward.3} parent=111 // pred_check
          %p3118 = pneg %p522
        $region114: #{graph_attention_model_forward.3} parent=111 // pred_check_branch
          %3120 = sbr.rel (%p3118) target = $region116
        $region115: #{graph_attention_model_forward.3} parent=111 // pred_region
          %s3121 = sand.u32 %s507, 1
          %s3122 = scalar_lea.sflag [#allocation6], %s3121
          %s3123 = sand.u32 %s507, 1
          %s3124 = scalar_lea.vmem [#allocation5], %s3123
          %3125 = dma.done %s3122, 16
        $region116: #{graph_attention_model_forward.3} parent=111 // pred_fallthru
          _
      $region112: #{graph_attention_model_forward.3} parent=5 // pred_fallthru
        _
    $region6: #{graph_attention_model_forward.3} parent=1 // loop_footer
      %s41 = sadd.s32 1, %s37
    $region7: #{graph_attention_model_forward.3} parent=1 // loop_footer_branch
      %36 = sbr.rel target = $region3
    $region8: #{graph_attention_model_forward.3} parent=1 // loop_exit
      _
    %3126 = vsyncpa [#allocation6], 1
    %s3127 = scalar_lea.sflag [#allocation6], 1
    %3128 = vsyncpa %s3127, 1

</llo_original>
